<compile_context>
chip_gen: v7x
topology: tpu7x:2x2x1
jax: 0.10.0
libtpu: 0.0.40
codegen_flags: <defaults>
</compile_context>

<pallas_src>
import functools

import jax
import jax.numpy as jnp
from jax.experimental import pallas as pl
from jax.experimental.pallas import tpu as pltpu


# ---------------------------------------------------------------------------
# Pallas kernel: one batch tile of the UserEncoder hot path
#   fused-QKV MHA self-attention -> additive attention -> sum over history
# ---------------------------------------------------------------------------
def user_encoder_kernel(
    x_ref,       # (TB, S, E)      bf16  encoded news history (batch tile)
    wqkv_ref,    # (E, 3E)         bf16  [Wq^T/sqrt(hd) | Wk^T | Wv^T]
    bqkv_ref,    # (1, 3E)         f32   [bq/sqrt(hd) | bk | bv]
    hmask_ref,   # (NH, 1, E)      bf16  head h -> 1.0 on its E-slice, else 0.0
    wfused_ref,  # (E, DPAD + E)   bf16  [Wo^T @ Wa^T (padded) | Wo^T]
    bfused_ref,  # (1, DPAD + E)   f32   [bo @ Wa^T + ba (padded) | bo]
    qa_ref,      # (1, DPAD)       f32   additive-attn query vector (row layout)
    out_ref,     # (TB, E)         f32
):
    TB, S, E = x_ref.shape
    NH = hmask_ref.shape[0]
    DPAD = qa_ref.shape[1]
    f32 = jnp.float32
    bf16 = jnp.bfloat16

    # ---- fused QKV projection: one lane-dense (TB*S, E) @ (E, 3E) matmul.
    x2 = x_ref[...].reshape(TB * S, E)
    qkv = jnp.dot(x2, wqkv_ref[...], preferred_element_type=f32) + bqkv_ref[...]

    q = qkv[:, :E].astype(bf16).reshape(TB, S, E)          # scale pre-folded
    k = qkv[:, E:2 * E].astype(bf16).reshape(TB, S, E)
    v = qkv[:, 2 * E:].astype(bf16).reshape(TB, S, E)

    hm = hmask_ref[...]                                     # (NH, 1, E) bf16

    # ---- head-blocked queries with a single broadcast multiply: block h holds
    # q masked to head h's E-slice, so one batched matmul yields every head's
    # scores and a plain key-axis softmax IS the per-head softmax.
    qt = (q[:, None, :, :] * hm[None, :, :, :]).reshape(TB, NH * S, E)

    # Lane-dense score layout: keys on sublanes, (head, query) on the 128 lanes.
    s = jnp.einsum("bje,bre->bjr", k, qt,
                   preferred_element_type=f32)              # (TB, S, NH*S)

    # Hand-rolled softmax over the key axis (axis=1); reciprocal on the EUP.
    m = jnp.max(s, axis=1, keepdims=True)
    e = jnp.exp(s - m)
    p = e * pl.reciprocal(jnp.sum(e, axis=1, keepdims=True), approx=True)

    # Context for every head block: (TB, NH*S, E).
    ctx_full = jnp.einsum("bjr,bje->bre", p.astype(bf16), v,
                          preferred_element_type=f32)

    # Fold head blocks back to the packed heads-along-lanes layout with one
    # masked reduction (masks are disjoint -> the bf16 select/add is exact).
    ctx = jnp.sum(ctx_full.reshape(TB, NH, S, E).astype(bf16) * hm[None],
                  axis=1)                                   # (TB, S, E) bf16

    # ---- fused out_proj + additive-attention projection: one MXU pass.
    yfull = jnp.dot(ctx.reshape(TB * S, E), wfused_ref[...],
                    preferred_element_type=f32) + bfused_ref[...]
    a = jnp.tanh(yfull[:, :DPAD])                           # (TB*S, DPAD)
    y3 = yfull[:, DPAD:].reshape(TB, S, E)                  # multihead output

    # ---- additive attention over the history axis (f32, EUP reciprocal).
    sc = jnp.sum(a * qa_ref[...], axis=-1, keepdims=True).reshape(TB, S, 1)
    ms = jnp.max(sc, axis=1, keepdims=True)
    es = jnp.exp(sc - ms)
    w = es * pl.reciprocal(jnp.sum(es, axis=1, keepdims=True), approx=True)

    out_ref[...] = jnp.sum(w * y3, axis=1)                  # (TB, E)


# ---------------------------------------------------------------------------
# Tiling policy helpers (generation-aware)
# ---------------------------------------------------------------------------
def _chip_config():
    """Returns (dual_tc, vmem_limit_bytes, per_step_scratch_budget_bytes)."""
    kind = ""
    try:
        kind = jax.devices()[0].device_kind.lower()
    except Exception:
        pass
    is_v7 = "v7" in kind
    dual_tc = is_v7 or ("v4" in kind) or ("v5p" in kind)
    if is_v7:            # 64 MiB VMEM per TensorCore -> smaller scoped limit
        return dual_tc, 40 << 20, 8 << 20
    return dual_tc, 64 << 20, 16 << 20


def _row_bytes_estimate(hist, emb, nheads, dpad):
    """Rough f32 VMEM bytes of per-batch-row kernel intermediates (2x margin)."""
    rep = nheads * hist * emb                 # qt / ctx_full (NH-replicated)
    per_row = (2 * rep                        # qt + ctx_full
               + 4 * hist * emb               # q/k/v/ctx copies
               + hist * 3 * emb               # qkv
               + 3 * hist * nheads * hist     # s / exp / p
               + 2 * hist * (emb + dpad))     # yfull + tanh
    return 2 * per_row * 4


def _pick_tb(batch, row_bytes, *, dual_tc, budget_bytes):
    """Largest sublane-legal batch tile (TB % 8 == 0 or TB == batch) dividing
    `batch` and fitting `budget_bytes`; on dual-TC chips prefer an even grid
    count >= 2 so both TensorCores stay busy."""
    divs = [d for d in range(1, batch + 1) if batch % d == 0]
    valid = [d for d in divs if d % 8 == 0 or d == batch]
    cap = max(1, budget_bytes // max(row_bytes, 1))
    pool = [d for d in valid if d <= cap] or [min(valid)]
    if dual_tc:
        even = [d for d in pool if (batch // d) % 2 == 0]
        if even:
            pool = even
    return max(pool)


# ---------------------------------------------------------------------------
# Wrapper: parameter re-layout (glue) + pallas_call
# ---------------------------------------------------------------------------
@functools.partial(jax.jit, static_argnames=("num_heads",))
def user_encoder_forward(news_histories, params, *, num_heads):
    """news_histories: (B, HIST, SEQ) int32 token ids."""
    B, HIST, SEQ = news_histories.shape
    emb = params["emb"]
    E = emb.shape[1]
    NH = num_heads
    HD = E // NH
    scale = 1.0 / (HD ** 0.5)
    DADD = params["add_b"].shape[0]
    DPAD = ((DADD + 127) // 128) * 128
    pad = DPAD - DADD

    # ---- news_encoder stand-in (glue, plain JAX): embedding mean pooling.
    # TODO(synk): the real news_encoder is an external module passed at call
    # time; a deterministic embedding-mean encoder is used in its place.
    tok = news_histories.reshape(B * HIST, SEQ)
    x = jnp.mean(emb[tok], axis=1).reshape(B, HIST, E).astype(jnp.bfloat16)

    # ---- fused QKV weights, 1/sqrt(head_dim) folded into the Q projection.
    in_w = params["in_proj_w"].astype(jnp.float32)
    in_b = params["in_proj_b"].astype(jnp.float32)
    Wq, Wk, Wv = in_w[:E], in_w[E:2 * E], in_w[2 * E:]
    bq, bk, bv = in_b[:E], in_b[E:2 * E], in_b[2 * E:]
    wqkv = jnp.concatenate([Wq.T * scale, Wk.T, Wv.T], axis=1).astype(jnp.bfloat16)
    bqkv = jnp.concatenate([bq * scale, bk, bv]).reshape(1, 3 * E)

    # ---- fused [additive | out_proj] weight: products in f32, one bf16 cast.
    wo_t = params["out_proj_w"].T.astype(jnp.float32)       # (E, E)
    bo = params["out_proj_b"].astype(jnp.float32)           # (E,)
    wa_t = params["add_w"].T.astype(jnp.float32)            # (E, DADD)
    ba = params["add_b"].astype(jnp.float32)                # (DADD,)
    w_add = jnp.pad(wo_t @ wa_t, ((0, 0), (0, pad)))        # (E, DPAD)
    b_add = jnp.pad(bo @ wa_t + ba, (0, pad))               # (DPAD,)
    wfused = jnp.concatenate([w_add, wo_t], axis=1).astype(jnp.bfloat16)
    bfused = jnp.concatenate([b_add, bo]).reshape(1, DPAD + E)
    qa = jnp.pad(params["add_q"].astype(jnp.float32), (0, pad)).reshape(1, DPAD)

    # ---- per-head lane masks (0/1, exact in bf16).
    head_of_lane = jnp.arange(E, dtype=jnp.int32) // HD
    hmask = (head_of_lane[None, :] == jnp.arange(NH, dtype=jnp.int32)[:, None])
    hmask = hmask.astype(jnp.bfloat16).reshape(NH, 1, E)

    # ---- generation-aware batch tiling.
    dual_tc, vmem_limit, budget = _chip_config()
    TB = _pick_tb(B, _row_bytes_estimate(HIST, E, NH, DPAD),
                  dual_tc=dual_tc, budget_bytes=budget)
    grid = (B // TB,)

    full = lambda shape: pl.BlockSpec(shape, lambda b: (0,) * len(shape))

    return pl.pallas_call(
        user_encoder_kernel,
        out_shape=jax.ShapeDtypeStruct((B, E), jnp.float32),
        grid_spec=pltpu.PrefetchScalarGridSpec(
            num_scalar_prefetch=0,
            grid=grid,
            in_specs=[
                pl.BlockSpec((TB, HIST, E), lambda b: (b, 0, 0)),   # x (bf16)
                full((E, 3 * E)),                                   # wqkv
                full((1, 3 * E)),                                   # bqkv
                full((NH, 1, E)),                                   # head masks
                full((E, DPAD + E)),                                # wfused
                full((1, DPAD + E)),                                # bfused
                full((1, DPAD)),                                    # qa
            ],
            out_specs=pl.BlockSpec((TB, E), lambda b: (b, 0)),
        ),
        compiler_params=pltpu.CompilerParams(
            dimension_semantics=("parallel",),
            vmem_limit_bytes=vmem_limit),
    )(x, wqkv, bqkv, hmask, wfused, bfused, qa)


# ---------------------------------------------------------------------------
# Pure-JAX reference (mirrors torch.nn.MultiheadAttention + AdditiveAttention)
# ---------------------------------------------------------------------------
def user_encoder_reference(news_histories, params, *, num_heads):
    B, HIST, SEQ = news_histories.shape
    emb = params["emb"]
    E = emb.shape[1]
    NH = num_heads
    HD = E // NH

    tok = news_histories.reshape(B * HIST, SEQ)
    x = jnp.mean(emb[tok], axis=1).reshape(B, HIST, E).astype(jnp.float32)

    in_w, in_b = params["in_proj_w"], params["in_proj_b"]
    Wq, Wk, Wv = in_w[:E], in_w[E:2 * E], in_w[2 * E:]
    bq, bk, bv = in_b[:E], in_b[E:2 * E], in_b[2 * E:]

    def proj(z, W, b):
        return jnp.einsum("bse,fe->bsf", z, W) + b

    def heads(z):  # (B,S,E) -> (B,NH,S,HD)
        return z.reshape(B, HIST, NH, HD).transpose(0, 2, 1, 3)

    q, k, v = heads(proj(x, Wq, bq)), heads(proj(x, Wk, bk)), heads(proj(x, Wv, bv))
    s = jnp.einsum("bhqd,bhkd->bhqk", q, k) / (HD ** 0.5)
    p = jax.nn.softmax(s, axis=-1)
    ctx = jnp.einsum("bhqk,bhkd->bhqd", p, v)
    ctx = ctx.transpose(0, 2, 1, 3).reshape(B, HIST, E)
    y = jnp.einsum("bse,fe->bsf", ctx, params["out_proj_w"]) + params["out_proj_b"]

    a = jnp.tanh(jnp.einsum("bse,fe->bsf", y, params["add_w"]) + params["add_b"])
    sc = jnp.einsum("bsf,f->bs", a, params["add_q"])
    w = jax.nn.softmax(sc, axis=-1)[..., None]
    return jnp.sum(w * y, axis=1)


# ---------------------------------------------------------------------------
if __name__ == "__main__":
    B, HIST, SEQ = 16, 8, 8
    E, NHEADS, DADD = 64, 16, 200
    VOCAB = 1000

    key = jax.random.PRNGKey(0)
    ks = jax.random.split(key, 9)
    params = {
        "emb":        jax.random.normal(ks[0], (VOCAB, E), jnp.float32),
        "in_proj_w":  jax.random.normal(ks[1], (3 * E, E), jnp.float32) * 0.05,
        "in_proj_b":  jax.random.normal(ks[2], (3 * E,), jnp.float32) * 0.05,
        "out_proj_w": jax.random.normal(ks[3], (E, E), jnp.float32) * 0.05,
        "out_proj_b": jax.random.normal(ks[4], (E,), jnp.float32) * 0.05,
        "add_w":      jax.random.normal(ks[5], (DADD, E), jnp.float32) * 0.05,
        "add_b":      jax.random.normal(ks[6], (DADD,), jnp.float32) * 0.05,
        "add_q":      jax.random.normal(ks[7], (DADD,), jnp.float32) * 0.05,
    }
    news_histories = jax.random.randint(ks[8], (B, HIST, SEQ), 0, VOCAB, jnp.int32)

    out = user_encoder_forward(news_histories, params, num_heads=NHEADS)
    out = jax.block_until_ready(out)

    ref = user_encoder_reference(news_histories, params, num_heads=NHEADS)
    assert out.shape == (B, E), out.shape
    assert bool(jnp.all(jnp.isfinite(out)))
    err = float(jnp.max(jnp.abs(out - ref)))
    assert bool(jnp.allclose(out, ref, atol=5e-3, rtol=2e-2)), err
    print("KERNEL_OK")
</pallas_src>

<mosaic_0001>
module attributes {stable_mosaic.version = 11 : i64} {
  func.func @user_encoder_kernel(%arg0: i32, %arg1: memref<16x8x64xbf16, #tpu.memory_space<vmem>>, %arg2: memref<64x192xbf16, #tpu.memory_space<vmem>>, %arg3: memref<1x192xf32, #tpu.memory_space<vmem>>, %arg4: memref<16x1x64xbf16, #tpu.memory_space<vmem>>, %arg5: memref<64x320xbf16, #tpu.memory_space<vmem>>, %arg6: memref<1x320xf32, #tpu.memory_space<vmem>>, %arg7: memref<1x256xf32, #tpu.memory_space<vmem>>, %arg8: memref<16x64xf32, #tpu.memory_space<vmem>>) attributes {dimension_semantics = [#tpu.dimension_semantics<parallel>], iteration_bounds = array<i64: 1>, scalar_prefetch = 0 : i64, scratch_operands = 0 : i64, tpu.core_type = #tpu.core_type<tc>, window_params = [{transform_indices = @transform_0, window_bounds = array<i64: 16, 8, 64>}, {pipeline_mode = #tpu.pipeline_mode<synchronous>, transform_indices = @transform_1, window_bounds = array<i64: 64, 192>}, {pipeline_mode = #tpu.pipeline_mode<synchronous>, transform_indices = @transform_2, window_bounds = array<i64: 1, 192>}, {pipeline_mode = #tpu.pipeline_mode<synchronous>, transform_indices = @transform_3, window_bounds = array<i64: 16, 1, 64>}, {pipeline_mode = #tpu.pipeline_mode<synchronous>, transform_indices = @transform_4, window_bounds = array<i64: 64, 320>}, {pipeline_mode = #tpu.pipeline_mode<synchronous>, transform_indices = @transform_5, window_bounds = array<i64: 1, 320>}, {pipeline_mode = #tpu.pipeline_mode<synchronous>, transform_indices = @transform_6, window_bounds = array<i64: 1, 256>}, {transform_indices = @transform_7, window_bounds = array<i64: 16, 64>}]} {
    %c0 = arith.constant 0 : index
    %c0_0 = arith.constant 0 : index
    %c0_1 = arith.constant 0 : index
    %0 = vector.load %arg1[%c0, %c0_0, %c0_1] : memref<16x8x64xbf16, #tpu.memory_space<vmem>>, vector<16x8x64xbf16>
    %1 = vector.shape_cast %0 : vector<16x8x64xbf16> to vector<128x64xbf16>
    %c0_2 = arith.constant 0 : index
    %c0_3 = arith.constant 0 : index
    %2 = vector.load %arg2[%c0_2, %c0_3] : memref<64x192xbf16, #tpu.memory_space<vmem>>, vector<64x192xbf16>
    %cst = arith.constant dense<0.000000e+00> : vector<128x192xf32>
    %3 = tpu.matmul %1, %2, %cst {dimension_numbers = #tpu.dot_dimension_numbers<[1], [0], [0], [1], [0, 0, 1, 1], [], []>} : vector<128x64xbf16>, vector<64x192xbf16>, vector<128x192xf32> -> vector<128x192xf32>
    %c0_4 = arith.constant 0 : index
    %c0_5 = arith.constant 0 : index
    %4 = vector.load %arg3[%c0_4, %c0_5] : memref<1x192xf32, #tpu.memory_space<vmem>>, vector<1x192xf32>
    %5 = vector.broadcast %4 : vector<1x192xf32> to vector<128x192xf32>
    %6 = arith.addf %3, %5 : vector<128x192xf32>
    %7 = vector.extract_strided_slice %6 {offsets = [0, 0], sizes = [128, 64], strides = [1, 1]} : vector<128x192xf32> to vector<128x64xf32>
    %8 = arith.truncf %7 : vector<128x64xf32> to vector<128x64xbf16>
    %9 = vector.shape_cast %8 : vector<128x64xbf16> to vector<16x8x64xbf16>
    %10 = vector.extract_strided_slice %6 {offsets = [0, 64], sizes = [128, 64], strides = [1, 1]} : vector<128x192xf32> to vector<128x64xf32>
    %11 = arith.truncf %10 : vector<128x64xf32> to vector<128x64xbf16>
    %12 = vector.shape_cast %11 : vector<128x64xbf16> to vector<16x8x64xbf16>
    %13 = vector.extract_strided_slice %6 {offsets = [0, 128], sizes = [128, 64], strides = [1, 1]} : vector<128x192xf32> to vector<128x64xf32>
    %14 = arith.truncf %13 : vector<128x64xf32> to vector<128x64xbf16>
    %15 = vector.shape_cast %14 : vector<128x64xbf16> to vector<16x8x64xbf16>
    %c0_6 = arith.constant 0 : index
    %c0_7 = arith.constant 0 : index
    %c0_8 = arith.constant 0 : index
    %16 = vector.load %arg4[%c0_6, %c0_7, %c0_8] : memref<16x1x64xbf16, #tpu.memory_space<vmem>>, vector<16x1x64xbf16>
    %17 = vector.shape_cast %9 : vector<16x8x64xbf16> to vector<16x1x8x64xbf16>
    %18 = vector.shape_cast %16 : vector<16x1x64xbf16> to vector<1x16x1x64xbf16>
    %19 = vector.broadcast %17 : vector<16x1x8x64xbf16> to vector<16x16x8x64xbf16>
    %20 = vector.broadcast %18 : vector<1x16x1x64xbf16> to vector<16x16x8x64xbf16>
    %21 = arith.mulf %19, %20 : vector<16x16x8x64xbf16>
    %22 = vector.shape_cast %21 : vector<16x16x8x64xbf16> to vector<16x128x64xbf16>
    "tpu.trace_start"() <{level = 10 : i32, message = "bje,bre->bjr"}> : () -> ()
    %cst_9 = arith.constant dense<0.000000e+00> : vector<16x8x128xf32>
    %23 = tpu.matmul %12, %22, %cst_9 {dimension_numbers = #tpu.dot_dimension_numbers<[2], [2], [1], [1], [0, 0, 0, 1, 1, 1], [0], [0]>} : vector<16x8x64xbf16>, vector<16x128x64xbf16>, vector<16x8x128xf32> -> vector<16x8x128xf32>
    "tpu.trace_stop"() : () -> ()
    %cst_10 = arith.constant dense<0xFF800000> : vector<16x128xf32>
    %24 = vector.multi_reduction <maximumf>, %23, %cst_10 [1] : vector<16x8x128xf32> to vector<16x128xf32>
    %25 = vector.shape_cast %24 : vector<16x128xf32> to vector<16x1x128xf32>
    %26 = vector.broadcast %25 : vector<16x1x128xf32> to vector<16x8x128xf32>
    %27 = arith.subf %23, %26 : vector<16x8x128xf32>
    %28 = math.exp %27 : vector<16x8x128xf32>
    %cst_11 = arith.constant dense<0.000000e+00> : vector<16x128xf32>
    %29 = vector.multi_reduction <add>, %28, %cst_11 [1] : vector<16x8x128xf32> to vector<16x128xf32>
    %30 = vector.shape_cast %29 : vector<16x128xf32> to vector<16x1x128xf32>
    %31 = tpu.reciprocal %30 {approx = true} : vector<16x1x128xf32> -> vector<16x1x128xf32>
    %32 = vector.broadcast %31 : vector<16x1x128xf32> to vector<16x8x128xf32>
    %33 = arith.mulf %28, %32 : vector<16x8x128xf32>
    %34 = arith.truncf %33 : vector<16x8x128xf32> to vector<16x8x128xbf16>
    "tpu.trace_start"() <{level = 10 : i32, message = "bjr,bje->bre"}> : () -> ()
    %cst_12 = arith.constant dense<0.000000e+00> : vector<16x128x64xf32>
    %35 = tpu.matmul %34, %15, %cst_12 {dimension_numbers = #tpu.dot_dimension_numbers<[1], [1], [2], [2], [0, 0, 0, 2, 1, 2], [0], [0]>} : vector<16x8x128xbf16>, vector<16x8x64xbf16>, vector<16x128x64xf32> -> vector<16x128x64xf32>
    "tpu.trace_stop"() : () -> ()
    %36 = vector.shape_cast %35 : vector<16x128x64xf32> to vector<16x16x8x64xf32>
    %37 = arith.truncf %36 : vector<16x16x8x64xf32> to vector<16x16x8x64xbf16>
    %38 = vector.shape_cast %16 : vector<16x1x64xbf16> to vector<1x16x1x64xbf16>
    %39 = vector.broadcast %38 : vector<1x16x1x64xbf16> to vector<16x16x8x64xbf16>
    %40 = arith.mulf %37, %39 : vector<16x16x8x64xbf16>
    %41 = arith.extf %40 : vector<16x16x8x64xbf16> to vector<16x16x8x64xf32>
    %cst_13 = arith.constant dense<0.000000e+00> : vector<16x8x64xf32>
    %42 = vector.multi_reduction <add>, %41, %cst_13 [1] : vector<16x16x8x64xf32> to vector<16x8x64xf32>
    %43 = arith.truncf %42 : vector<16x8x64xf32> to vector<16x8x64xbf16>
    %44 = vector.shape_cast %43 : vector<16x8x64xbf16> to vector<128x64xbf16>
    %c0_14 = arith.constant 0 : index
    %c0_15 = arith.constant 0 : index
    %45 = vector.load %arg5[%c0_14, %c0_15] : memref<64x320xbf16, #tpu.memory_space<vmem>>, vector<64x320xbf16>
    %cst_16 = arith.constant dense<0.000000e+00> : vector<128x320xf32>
    %46 = tpu.matmul %44, %45, %cst_16 {dimension_numbers = #tpu.dot_dimension_numbers<[1], [0], [0], [1], [0, 0, 1, 1], [], []>} : vector<128x64xbf16>, vector<64x320xbf16>, vector<128x320xf32> -> vector<128x320xf32>
    %c0_17 = arith.constant 0 : index
    %c0_18 = arith.constant 0 : index
    %47 = vector.load %arg6[%c0_17, %c0_18] : memref<1x320xf32, #tpu.memory_space<vmem>>, vector<1x320xf32>
    %48 = vector.broadcast %47 : vector<1x320xf32> to vector<128x320xf32>
    %49 = arith.addf %46, %48 : vector<128x320xf32>
    %50 = vector.extract_strided_slice %49 {offsets = [0, 0], sizes = [128, 256], strides = [1, 1]} : vector<128x320xf32> to vector<128x256xf32>
    %51 = math.tanh %50 : vector<128x256xf32>
    %52 = vector.extract_strided_slice %49 {offsets = [0, 256], sizes = [128, 64], strides = [1, 1]} : vector<128x320xf32> to vector<128x64xf32>
    %53 = vector.shape_cast %52 : vector<128x64xf32> to vector<16x8x64xf32>
    %c0_19 = arith.constant 0 : index
    %c0_20 = arith.constant 0 : index
    %54 = vector.load %arg7[%c0_19, %c0_20] : memref<1x256xf32, #tpu.memory_space<vmem>>, vector<1x256xf32>
    %55 = vector.broadcast %54 : vector<1x256xf32> to vector<128x256xf32>
    %56 = arith.mulf %51, %55 : vector<128x256xf32>
    %cst_21 = arith.constant dense<0.000000e+00> : vector<128xf32>
    %57 = vector.multi_reduction <add>, %56, %cst_21 [1] : vector<128x256xf32> to vector<128xf32>
    %58 = vector.shape_cast %57 : vector<128xf32> to vector<128x1xf32>
    %59 = vector.shape_cast %58 : vector<128x1xf32> to vector<16x8x1xf32>
    %cst_22 = arith.constant dense<0xFF800000> : vector<16x1xf32>
    %60 = vector.multi_reduction <maximumf>, %59, %cst_22 [1] : vector<16x8x1xf32> to vector<16x1xf32>
    %61 = vector.shape_cast %60 : vector<16x1xf32> to vector<16x1x1xf32>
    %62 = vector.broadcast %61 : vector<16x1x1xf32> to vector<16x8x1xf32>
    %63 = arith.subf %59, %62 : vector<16x8x1xf32>
    %64 = math.exp %63 : vector<16x8x1xf32>
    %cst_23 = arith.constant dense<0.000000e+00> : vector<16x1xf32>
    %65 = vector.multi_reduction <add>, %64, %cst_23 [1] : vector<16x8x1xf32> to vector<16x1xf32>
    %66 = vector.shape_cast %65 : vector<16x1xf32> to vector<16x1x1xf32>
    %67 = tpu.reciprocal %66 {approx = true} : vector<16x1x1xf32> -> vector<16x1x1xf32>
    %68 = vector.broadcast %67 : vector<16x1x1xf32> to vector<16x8x1xf32>
    %69 = arith.mulf %64, %68 : vector<16x8x1xf32>
    %70 = vector.broadcast %69 : vector<16x8x1xf32> to vector<16x8x64xf32>
    %71 = arith.mulf %70, %53 : vector<16x8x64xf32>
    %cst_24 = arith.constant dense<0.000000e+00> : vector<16x64xf32>
    %72 = vector.multi_reduction <add>, %71, %cst_24 [1] : vector<16x8x64xf32> to vector<16x64xf32>
    %c0_25 = arith.constant 0 : index
    %c0_26 = arith.constant 0 : index
    %73 = vector.load %arg8[%c0_25, %c0_26] : memref<16x64xf32, #tpu.memory_space<vmem>>, vector<16x64xf32>
    tpu.vector_store %arg8[%c0_25, %c0_26], %72 {strides = array<i32>} : memref<16x64xf32, #tpu.memory_space<vmem>>, vector<16x64xf32>,
    return
  }
  func.func @transform_0(%arg0: i32) -> (i32, i32, i32) {
    %c0_i32 = arith.constant 0 : i32
    %c0_i32_0 = arith.constant 0 : i32
    %c0_i32_1 = arith.constant 0 : i32
    return %arg0, %c0_i32, %c0_i32_0 : i32, i32, i32
  }
  func.func @transform_1(%arg0: i32) -> (i32, i32) {
    %c0_i32 = arith.constant 0 : i32
    %c0_i32_0 = arith.constant 0 : i32
    %c0_i32_1 = arith.constant 0 : i32
    return %c0_i32, %c0_i32_0 : i32, i32
  }
  func.func @transform_2(%arg0: i32) -> (i32, i32) {
    %c0_i32 = arith.constant 0 : i32
    %c0_i32_0 = arith.constant 0 : i32
    %c0_i32_1 = arith.constant 0 : i32
    return %c0_i32, %c0_i32_0 : i32, i32
  }
  func.func @transform_3(%arg0: i32) -> (i32, i32, i32) {
    %c0_i32 = arith.constant 0 : i32
    %c0_i32_0 = arith.constant 0 : i32
    %c0_i32_1 = arith.constant 0 : i32
    %c0_i32_2 = arith.constant 0 : i32
    return %c0_i32, %c0_i32_0, %c0_i32_1 : i32, i32, i32
  }
  func.func @transform_4(%arg0: i32) -> (i32, i32) {
    %c0_i32 = arith.constant 0 : i32
    %c0_i32_0 = arith.constant 0 : i32
    %c0_i32_1 = arith.constant 0 : i32
    return %c0_i32, %c0_i32_0 : i32, i32
  }
  func.func @transform_5(%arg0: i32) -> (i32, i32) {
    %c0_i32 = arith.constant 0 : i32
    %c0_i32_0 = arith.constant 0 : i32
    %c0_i32_1 = arith.constant 0 : i32
    return %c0_i32, %c0_i32_0 : i32, i32
  }
  func.func @transform_6(%arg0: i32) -> (i32, i32) {
    %c0_i32 = arith.constant 0 : i32
    %c0_i32_0 = arith.constant 0 : i32
    %c0_i32_1 = arith.constant 0 : i32
    return %c0_i32, %c0_i32_0 : i32, i32
  }
  func.func @transform_7(%arg0: i32) -> (i32, i32) {
    %c0_i32 = arith.constant 0 : i32
    %c0_i32_0 = arith.constant 0 : i32
    return %arg0, %c0_i32 : i32, i32
  }
}

</mosaic_0001>

<llo_original>
// kernel: user_encoder_forward.1
$region0: #{user_encoder_forward.1}
  #allocation0 [shape = 'u32[]', space=smem, size = 0x4, offset = 0x4, fixed_abs, tag = 'smem constant byte address 0x4 - core index']
  #allocation1 [shape = 'u32[144,128]{1,0:T(1,128)}', space=vmem, size = 0x12000, scoped, tag = 'internal scratch']
  %s0 = inlined_call_operand.hbm [shape: bf16[16,8,64], index: 0, kind: input, shape index: {}]
  %s1 = inlined_call_operand.hbm [shape: bf16[64,192], index: 1, kind: input, shape index: {}]
  %s2 = inlined_call_operand.hbm [shape: f32[1,192], index: 2, kind: input, shape index: {}]
  %s3 = inlined_call_operand.hbm [shape: bf16[16,1,64], index: 3, kind: input, shape index: {}]
  %s4 = inlined_call_operand.hbm [shape: bf16[64,320], index: 4, kind: input, shape index: {}]
  %s5 = inlined_call_operand.hbm [shape: f32[1,320], index: 5, kind: input, shape index: {}]
  %s6 = inlined_call_operand.hbm [shape: f32[1,256], index: 6, kind: input, shape index: {}]
  %s7 = inlined_call_operand.hbm [shape: f32[16,64], index: 7, kind: output, shape index: {}]
  %s8 = sld [smem:[#allocation0]]
  $region66: #{user_encoder_forward.1} parent=0
    _
  %s10 = ssub.s32 1, %s8
  %s11 = scalar_select 0, %s10, %s8
  $region1: #{user_encoder_forward.1} parent=0
    #allocation2 [shape = 'u8[32768]{0}', space=vmem, size = 0x8000, scoped, tag = 'input window, operand 0, single buffered']
    #allocation3 [shape = 's32[1]{0}', space=sflag, size = 0x4, scoped, tag = 'scoped memory for user_encoder_forward.1']
    #allocation4 [shape = 's32[1]{0}', space=sflag, size = 0x4, scoped, tag = 'scoped memory for user_encoder_forward.1']
    #allocation5 [shape = 'u8[32768]{0}', space=vmem, size = 0x8000, scoped, tag = 'input window, operand 1, single buffered']
    #allocation6 [shape = 's32[1]{0}', space=sflag, size = 0x4, scoped, tag = 'scoped memory for user_encoder_forward.1']
    #allocation7 [shape = 'u8[1024]{0}', space=vmem, size = 0x400, scoped, tag = 'input window, operand 2, single buffered']
    #allocation8 [shape = 'u8[8192]{0}', space=vmem, size = 0x2000, scoped, tag = 'input window, operand 3, single buffered']
    #allocation9 [shape = 's32[1]{0}', space=sflag, size = 0x4, scoped, tag = 'scoped memory for user_encoder_forward.1']
    #allocation10 [shape = 'u8[49152]{0}', space=vmem, size = 0xc000, scoped, tag = 'input window, operand 4, single buffered']
    #allocation11 [shape = 'u8[1536]{0}', space=vmem, size = 0x800, scoped, tag = 'input window, operand 5, single buffered']
    #allocation12 [shape = 's32[1]{0}', space=sflag, size = 0x4, scoped, tag = 'scoped memory for user_encoder_forward.1']
    #allocation13 [shape = 'u8[1024]{0}', space=vmem, size = 0x400, scoped, tag = 'input window, operand 6, single buffered']
    #allocation14 [shape = 'u8[8192]{0}', space=vmem, size = 0x2000, scoped, tag = 'output window, operand 0, single buffered']
    %12 = vsyncpa [#allocation3], 0
    %13 = vsyncpa [#allocation6], 0
    %14 = vsyncpa [#allocation9], 0
    %15 = vsyncpa [#allocation12], 0
    %16 = vsyncpa [#allocation4], 0
    // Predicated region
    $region2: #{user_encoder_forward.1} parent=1 // pred_check
      _
    $region3: #{user_encoder_forward.1} parent=1 // pred_check_branch
      %18 = sbr.rel (0) target = $region5
    $region4: #{user_encoder_forward.1} parent=1 // pred_region
      %s20 = ssub.s32 1024, 1024
      %21 = vsyncadd [#allocation3], %s20
      %s22 = sshll.u32 [#allocation2], 4
      %s23 = int_to_ptr.vmem [resolvable:$true] %s22
      %28 = dma.hbm_to_vmem [thread:$0]  %s0, 1024, %s23, [#allocation3], 64, 64, 4
    $region5: #{user_encoder_forward.1} parent=1 // pred_fallthru
      _
    // Predicated region
    $region6: #{user_encoder_forward.1} parent=1 // pred_check
      _
    $region7: #{user_encoder_forward.1} parent=1 // pred_check_branch
      %30 = sbr.rel (0) target = $region9
    $region8: #{user_encoder_forward.1} parent=1 // pred_region
      %s32 = ssub.s32 1024, 1024
      %33 = vsyncadd [#allocation6], %s32
      %s34 = sshll.u32 [#allocation5], 4
      %s35 = int_to_ptr.vmem [resolvable:$true] %s34
      %40 = dma.hbm_to_vmem [thread:$0]  %s1, 1024, %s35, [#allocation6], 128, 128, 8
    $region9: #{user_encoder_forward.1} parent=1 // pred_fallthru
      _
    // Predicated region
    $region10: #{user_encoder_forward.1} parent=1 // pred_check
      _
    $region11: #{user_encoder_forward.1} parent=1 // pred_check_branch
      %42 = sbr.rel (0) target = $region13
    $region12: #{user_encoder_forward.1} parent=1 // pred_region
      %s44 = ssub.s32 32, 32
      %45 = vsyncadd [#allocation6], %s44
      %s47 = sshll.u32 [#allocation7], 4
      %s48 = int_to_ptr.vmem [resolvable:$true] %s47
      %50 = dma.hbm_to_vmem [thread:$0]  %s2, 32, %s48, [#allocation6]
    $region13: #{user_encoder_forward.1} parent=1 // pred_fallthru
      _
    // Predicated region
    $region14: #{user_encoder_forward.1} parent=1 // pred_check
      _
    $region15: #{user_encoder_forward.1} parent=1 // pred_check_branch
      %52 = sbr.rel (0) target = $region17
    $region16: #{user_encoder_forward.1} parent=1 // pred_region
      %s54 = ssub.s32 256, 256
      %55 = vsyncadd [#allocation9], %s54
      %s56 = sshll.u32 [#allocation8], 4
      %s57 = int_to_ptr.vmem [resolvable:$true] %s56
      %62 = dma.hbm_to_vmem [thread:$0]  %s3, 256, %s57, [#allocation9], 16, 16, 1
    $region17: #{user_encoder_forward.1} parent=1 // pred_fallthru
      _
    // Predicated region
    $region18: #{user_encoder_forward.1} parent=1 // pred_check
      _
    $region19: #{user_encoder_forward.1} parent=1 // pred_check_branch
      %64 = sbr.rel (0) target = $region21
    $region20: #{user_encoder_forward.1} parent=1 // pred_region
      %s66 = ssub.s32 1536, 1536
      %67 = vsyncadd [#allocation9], %s66
      %s68 = sshll.u32 [#allocation10], 4
      %s69 = int_to_ptr.vmem [resolvable:$true] %s68
      %74 = dma.hbm_to_vmem [thread:$0]  %s4, 1536, %s69, [#allocation9], 192, 192, 12
    $region21: #{user_encoder_forward.1} parent=1 // pred_fallthru
      _
    // Predicated region
    $region22: #{user_encoder_forward.1} parent=1 // pred_check
      _
    $region23: #{user_encoder_forward.1} parent=1 // pred_check_branch
      %76 = sbr.rel (0) target = $region25
    $region24: #{user_encoder_forward.1} parent=1 // pred_region
      %s78 = ssub.s32 48, 48
      %79 = vsyncadd [#allocation12], %s78
      %s81 = sshll.u32 [#allocation11], 4
      %s82 = int_to_ptr.vmem [resolvable:$true] %s81
      %84 = dma.hbm_to_vmem [thread:$0]  %s5, 48, %s82, [#allocation12]
    $region25: #{user_encoder_forward.1} parent=1 // pred_fallthru
      _
    // Predicated region
    $region26: #{user_encoder_forward.1} parent=1 // pred_check
      _
    $region27: #{user_encoder_forward.1} parent=1 // pred_check_branch
      %86 = sbr.rel (0) target = $region29
    $region28: #{user_encoder_forward.1} parent=1 // pred_region
      %s88 = ssub.s32 32, 32
      %89 = vsyncadd [#allocation12], %s88
      %s91 = sshll.u32 [#allocation13], 4
      %s92 = int_to_ptr.vmem [resolvable:$true] %s91
      %94 = dma.hbm_to_vmem [thread:$0]  %s6, 32, %s92, [#allocation12]
    $region29: #{user_encoder_forward.1} parent=1 // pred_fallthru
      _
    // Predicated region
    $region30: #{user_encoder_forward.1} parent=1 // pred_check
      _
    $region31: #{user_encoder_forward.1} parent=1 // pred_check_branch
      %96 = sbr.rel (0) target = $region33
    $region32: #{user_encoder_forward.1} parent=1 // pred_region
      %97 = dma.done [#allocation3], 1024
    $region33: #{user_encoder_forward.1} parent=1 // pred_fallthru
      _
    // Predicated region
    $region34: #{user_encoder_forward.1} parent=1 // pred_check
      _
    $region35: #{user_encoder_forward.1} parent=1 // pred_check_branch
      %99 = sbr.rel (0) target = $region37
    $region36: #{user_encoder_forward.1} parent=1 // pred_region
      %100 = dma.done [#allocation6], 1024
    $region37: #{user_encoder_forward.1} parent=1 // pred_fallthru
      _
    // Predicated region
    $region38: #{user_encoder_forward.1} parent=1 // pred_check
      _
    $region39: #{user_encoder_forward.1} parent=1 // pred_check_branch
      %102 = sbr.rel (0) target = $region41
    $region40: #{user_encoder_forward.1} parent=1 // pred_region
      %103 = dma.done [#allocation6], 32
    $region41: #{user_encoder_forward.1} parent=1 // pred_fallthru
      _
    // Predicated region
    $region42: #{user_encoder_forward.1} parent=1 // pred_check
      _
    $region43: #{user_encoder_forward.1} parent=1 // pred_check_branch
      %105 = sbr.rel (0) target = $region45
    $region44: #{user_encoder_forward.1} parent=1 // pred_region
      %106 = dma.done [#allocation9], 256
    $region45: #{user_encoder_forward.1} parent=1 // pred_fallthru
      _
    // Predicated region
    $region46: #{user_encoder_forward.1} parent=1 // pred_check
      _
    $region47: #{user_encoder_forward.1} parent=1 // pred_check_branch
      %108 = sbr.rel (0) target = $region49
    $region48: #{user_encoder_forward.1} parent=1 // pred_region
      %109 = dma.done [#allocation9], 1536
    $region49: #{user_encoder_forward.1} parent=1 // pred_fallthru
      _
    // Predicated region
    $region50: #{user_encoder_forward.1} parent=1 // pred_check
      _
    $region51: #{user_encoder_forward.1} parent=1 // pred_check_branch
      %111 = sbr.rel (0) target = $region53
    $region52: #{user_encoder_forward.1} parent=1 // pred_region
      %112 = dma.done [#allocation12], 48
    $region53: #{user_encoder_forward.1} parent=1 // pred_fallthru
      _
    // Predicated region
    $region54: #{user_encoder_forward.1} parent=1 // pred_check
      _
    $region55: #{user_encoder_forward.1} parent=1 // pred_check_branch
      %114 = sbr.rel (0) target = $region57
    $region56: #{user_encoder_forward.1} parent=1 // pred_region
      %115 = dma.done [#allocation12], 32
    $region57: #{user_encoder_forward.1} parent=1 // pred_fallthru
      _
    %v117 = vld [vmem:[#allocation2] sm:$0xf]
    %v118 = vld [vmem:[#allocation2 + $0x4] sm:$0xf]
    %v119 = vld [vmem:[#allocation2 + $0x8] sm:$0xf]
    %v120 = vld [vmem:[#allocation2 + $0xc] sm:$0xf]
    %v121 = vld [vmem:[#allocation2 + $0x10] sm:$0xf]
    %v122 = vld [vmem:[#allocation2 + $0x14] sm:$0xf]
    %v123 = vld [vmem:[#allocation2 + $0x18] sm:$0xf]
    %v124 = vld [vmem:[#allocation2 + $0x1c] sm:$0xf]
    %v125 = vld [vmem:[#allocation2 + $0x20] sm:$0xf]
    %v126 = vld [vmem:[#allocation2 + $0x24] sm:$0xf]
    %v127 = vld [vmem:[#allocation2 + $0x28] sm:$0xf]
    %v128 = vld [vmem:[#allocation2 + $0x2c] sm:$0xf]
    %v129 = vld [vmem:[#allocation2 + $0x30] sm:$0xf]
    %v130 = vld [vmem:[#allocation2 + $0x34] sm:$0xf]
    %v131 = vld [vmem:[#allocation2 + $0x38] sm:$0xf]
    %v132 = vld [vmem:[#allocation2 + $0x3c] sm:$0xf]
    %v133 = vld [vmem:[#allocation5] sm:$0xff]
    %v134 = vld [vmem:[#allocation5 + $0x8] sm:$0xff]
    %v135 = vld [vmem:[#allocation5 + $0x10] sm:$0xff]
    %v136 = vld [vmem:[#allocation5 + $0x18] sm:$0xff]
    %v137 = vld [vmem:[#allocation5 + $0x20] sm:$0xff]
    %v138 = vld [vmem:[#allocation5 + $0x28] sm:$0xff]
    %v139 = vld [vmem:[#allocation5 + $0x30] sm:$0xff]
    %v140 = vld [vmem:[#allocation5 + $0x38] sm:$0xff]
    %v141 = vld [vmem:[#allocation7] sm:$0x3]
    %v143 = vlaneseq
    %v144 = vshrl.u32 %v143, 7
    %v145 = vsub.s32 0, %v144
    %v146 = vrot.slane %v141, %v145
    %v147 = vlaneseq
    %v148 = vshrl.u32 %v147, 7
    %v149 = vsub.s32 1, %v148
    %v150 = vrot.slane %v141, %v149
    %v169 = vunpack.c.l.b16 %v117
    %v170 = vunpack.c.l.b16 %v118
    %v171 = vunpack.c.l.b16 %v119
    %v172 = vunpack.c.l.b16 %v120
    %v173 = vunpack.c.l.b16 %v121
    %v174 = vunpack.c.l.b16 %v122
    %v175 = vunpack.c.l.b16 %v123
    %v176 = vunpack.c.l.b16 %v124
    %v177 = vunpack.c.l.b16 %v125
    %v178 = vunpack.c.l.b16 %v126
    %v179 = vunpack.c.l.b16 %v127
    %v180 = vunpack.c.l.b16 %v128
    %v181 = vunpack.c.l.b16 %v129
    %v182 = vunpack.c.l.b16 %v130
    %v183 = vunpack.c.l.b16 %v131
    %v184 = vunpack.c.l.b16 %v132
    %v185 = vpack.c.b16 %v170, %v169
    %v186 = vpack.c.b16 %v172, %v171
    %v187 = vpack.c.b16 %v174, %v173
    %v188 = vpack.c.b16 %v176, %v175
    %v189 = vpack.c.b16 %v178, %v177
    %v190 = vpack.c.b16 %v180, %v179
    %v191 = vpack.c.b16 %v182, %v181
    %v192 = vpack.c.b16 %v184, %v183
    %v201 = vunpack.c.l.b16 %v133
    %v202 = vunpack.c.h.b16 %v133
    %v203 = vunpack.c.l.b16 %v134
    %v204 = vunpack.c.h.b16 %v134
    %v205 = vunpack.c.l.b16 %v135
    %v206 = vunpack.c.h.b16 %v135
    %v207 = vunpack.c.l.b16 %v136
    %v208 = vunpack.c.h.b16 %v136
    %v209 = vunpack.c.l.b16 %v137
    %v210 = vunpack.c.h.b16 %v137
    %v211 = vunpack.c.l.b16 %v138
    %v212 = vunpack.c.h.b16 %v138
    %v213 = vunpack.c.l.b16 %v139
    %v214 = vunpack.c.h.b16 %v139
    %v215 = vunpack.c.l.b16 %v140
    %v216 = vunpack.c.h.b16 %v140
    %v217 = vpack.c.b16 %v203, %v201
    %v218 = vpack.c.b16 %v204, %v202
    %v219 = vpack.c.b16 %v207, %v205
    %v220 = vpack.c.b16 %v208, %v206
    %v221 = vpack.c.b16 %v211, %v209
    %v222 = vpack.c.b16 %v212, %v210
    %v223 = vpack.c.b16 %v215, %v213
    %v224 = vpack.c.b16 %v216, %v214
    %vm233 = vcmask 523264
    %v235 = vsel %vm233, %v185, 0
    %v238 = vsel %vm233, %v186, 0
    %v241 = vsel %vm233, %v187, 0
    %v244 = vsel %vm233, %v188, 0
    %v247 = vsel %vm233, %v189, 0
    %v250 = vsel %vm233, %v190, 0
    %v253 = vsel %vm233, %v191, 0
    %v256 = vsel %vm233, %v192, 0
    %258 = vmatprep.subr.bf16.mxu0 %v218
    %259 = vmatpush1.bf16.msra.mxu0 %v217
    %260 = vmatprep.subr.bf16.mxu0 %v220
    %261 = vmatpush1.bf16.msra.mxu0 %v219
    %262 = vmatprep.subr.bf16.mxu0 %v222
    %263 = vmatpush1.bf16.msra.mxu0 %v221
    %264 = vmatprep.subr.bf16.mxu0 %v224
    %265 = vmatpush1.bf16.msra.mxu0 %v223
    %266 = vmatprep.subr.bf16.mxu0 0
    %267 = vmatpush1.bf16.msra.mxu0 0
    %268 = vmatprep.subr.bf16.mxu0 0
    %269 = vmatpush1.bf16.msra.mxu0 0
    %270 = vmatprep.subr.bf16.mxu0 0
    %271 = vmatpush1.bf16.msra.mxu0 0
    %272 = vmatprep.subr.bf16.mxu0 0
    %273 = vmatpush1.bf16.msra.mxu0 0
    %274 = vmatprep.subr.bf16.mxu0 0
    %275 = vmatpush1.bf16.msra.mxu0 0
    %276 = vmatprep.subr.bf16.mxu0 0
    %277 = vmatpush1.bf16.msra.mxu0 0
    %278 = vmatprep.subr.bf16.mxu0 0
    %279 = vmatpush1.bf16.msra.mxu0 0
    %280 = vmatprep.subr.bf16.mxu0 0
    %281 = vmatpush1.bf16.msra.mxu0 0
    %282 = vmatprep.subr.bf16.mxu0 0
    %283 = vmatpush1.bf16.msra.mxu0 0
    %284 = vmatprep.subr.bf16.mxu0 0
    %285 = vmatpush1.bf16.msra.mxu0 0
    %286 = vmatprep.subr.bf16.mxu0 0
    %287 = vmatpush1.bf16.msra.mxu0 0
    %288 = vmatprep.subr.bf16.mxu0 0
    %289 = vmatpush1.bf16.msra.mxu0 0
    %290 = vmatprep.mubr.bf16.mxu0 0
    %291 = vmatmul.mubr.bf16.gmra.mrb[0].mxu0 %v235
    %v292 = vpop.f32.mrb[0].mxu0
    %v293 = vadd.f32 %v146, %v292
    %v294 = vpop.f32.mrb[0].mxu0
    %v295 = vadd.f32 %v150, %v294
    %v296 = vpop.f32.mrb[0].mxu0
    %v297 = vadd.f32 %v146, %v296
    %v298 = vpop.f32.mrb[0].mxu0
    %v299 = vadd.f32 %v150, %v298
    %300 = vmatprep.mubr.bf16.mxu0 0
    %301 = vmatmul.mubr.bf16.gmra.mrb[0].mxu0 %v238
    %v302 = vpop.f32.mrb[0].mxu0
    %v303 = vadd.f32 %v146, %v302
    %v304 = vpop.f32.mrb[0].mxu0
    %v305 = vadd.f32 %v150, %v304
    %v306 = vpop.f32.mrb[0].mxu0
    %v307 = vadd.f32 %v146, %v306
    %v308 = vpop.f32.mrb[0].mxu0
    %v309 = vadd.f32 %v150, %v308
    %310 = vmatprep.mubr.bf16.mxu0 0
    %311 = vmatmul.mubr.bf16.gmra.mrb[0].mxu0 %v241
    %v312 = vpop.f32.mrb[0].mxu0
    %v313 = vadd.f32 %v146, %v312
    %v314 = vpop.f32.mrb[0].mxu0
    %v315 = vadd.f32 %v150, %v314
    %v316 = vpop.f32.mrb[0].mxu0
    %v317 = vadd.f32 %v146, %v316
    %v318 = vpop.f32.mrb[0].mxu0
    %v319 = vadd.f32 %v150, %v318
    %320 = vmatprep.mubr.bf16.mxu0 0
    %321 = vmatmul.mubr.bf16.gmra.mrb[0].mxu0 %v244
    %v322 = vpop.f32.mrb[0].mxu0
    %v323 = vadd.f32 %v146, %v322
    %v324 = vpop.f32.mrb[0].mxu0
    %v325 = vadd.f32 %v150, %v324
    %v326 = vpop.f32.mrb[0].mxu0
    %v327 = vadd.f32 %v146, %v326
    %v328 = vpop.f32.mrb[0].mxu0
    %v329 = vadd.f32 %v150, %v328
    %330 = vmatprep.mubr.bf16.mxu0 0
    %331 = vmatmul.mubr.bf16.gmra.mrb[0].mxu0 %v247
    %v332 = vpop.f32.mrb[0].mxu0
    %v333 = vadd.f32 %v146, %v332
    %v334 = vpop.f32.mrb[0].mxu0
    %v335 = vadd.f32 %v150, %v334
    %v336 = vpop.f32.mrb[0].mxu0
    %v337 = vadd.f32 %v146, %v336
    %v338 = vpop.f32.mrb[0].mxu0
    %v339 = vadd.f32 %v150, %v338
    %340 = vmatprep.mubr.bf16.mxu0 0
    %341 = vmatmul.mubr.bf16.gmra.mrb[0].mxu0 %v250
    %v342 = vpop.f32.mrb[0].mxu0
    %v343 = vadd.f32 %v146, %v342
    %v344 = vpop.f32.mrb[0].mxu0
    %v345 = vadd.f32 %v150, %v344
    %v346 = vpop.f32.mrb[0].mxu0
    %v347 = vadd.f32 %v146, %v346
    %v348 = vpop.f32.mrb[0].mxu0
    %v349 = vadd.f32 %v150, %v348
    %350 = vmatprep.mubr.bf16.mxu0 0
    %351 = vmatmul.mubr.bf16.gmra.mrb[0].mxu0 %v253
    %v352 = vpop.f32.mrb[0].mxu0
    %v353 = vadd.f32 %v146, %v352
    %v354 = vpop.f32.mrb[0].mxu0
    %v355 = vadd.f32 %v150, %v354
    %v356 = vpop.f32.mrb[0].mxu0
    %v357 = vadd.f32 %v146, %v356
    %v358 = vpop.f32.mrb[0].mxu0
    %v359 = vadd.f32 %v150, %v358
    %360 = vmatprep.mubr.bf16.mxu0 0
    %361 = vmatmul.mubr.bf16.gmra.mrb[0].mxu0 %v256
    %v362 = vpop.f32.mrb[0].mxu0
    %v363 = vadd.f32 %v146, %v362
    %v364 = vpop.f32.mrb[0].mxu0
    %v365 = vadd.f32 %v150, %v364
    %v366 = vpop.f32.mrb[0].mxu0
    %v367 = vadd.f32 %v146, %v366
    %v368 = vpop.f32.mrb[0].mxu0
    %v369 = vadd.f32 %v150, %v368
    %370 = vdwg.mxu0
    %v371 = vpack.c.bf16 %v297, %v293
    %v372 = vpack.c.bf16 %v307, %v303
    %v373 = vpack.c.bf16 %v317, %v313
    %v374 = vpack.c.bf16 %v327, %v323
    %v375 = vpack.c.bf16 %v337, %v333
    %v376 = vpack.c.bf16 %v347, %v343
    %v377 = vpack.c.bf16 %v357, %v353
    %v378 = vpack.c.bf16 %v367, %v363
    %v387 = vunpack.c.l.b16 %v371
    %v388 = vunpack.c.h.b16 %v371
    %v389 = vunpack.c.l.b16 %v372
    %v390 = vunpack.c.h.b16 %v372
    %v391 = vunpack.c.l.b16 %v373
    %v392 = vunpack.c.h.b16 %v373
    %v393 = vunpack.c.l.b16 %v374
    %v394 = vunpack.c.h.b16 %v374
    %v395 = vunpack.c.l.b16 %v375
    %v396 = vunpack.c.h.b16 %v375
    %v397 = vunpack.c.l.b16 %v376
    %v398 = vunpack.c.h.b16 %v376
    %v399 = vunpack.c.l.b16 %v377
    %v400 = vunpack.c.h.b16 %v377
    %v401 = vunpack.c.l.b16 %v378
    %v402 = vunpack.c.h.b16 %v378
    %v403 = vpack.c.bf16 %v299, %v295
    %v404 = vpack.c.bf16 %v309, %v305
    %v405 = vpack.c.bf16 %v319, %v315
    %v406 = vpack.c.bf16 %v329, %v325
    %v407 = vpack.c.bf16 %v339, %v335
    %v408 = vpack.c.bf16 %v349, %v345
    %v409 = vpack.c.bf16 %v359, %v355
    %v410 = vpack.c.bf16 %v369, %v365
    %v419 = vunpack.c.l.b16 %v403
    %v420 = vunpack.c.h.b16 %v403
    %v421 = vunpack.c.l.b16 %v404
    %v422 = vunpack.c.h.b16 %v404
    %v423 = vunpack.c.l.b16 %v405
    %v424 = vunpack.c.h.b16 %v405
    %v425 = vunpack.c.l.b16 %v406
    %v426 = vunpack.c.h.b16 %v406
    %v427 = vunpack.c.l.b16 %v407
    %v428 = vunpack.c.h.b16 %v407
    %v429 = vunpack.c.l.b16 %v408
    %v430 = vunpack.c.h.b16 %v408
    %v431 = vunpack.c.l.b16 %v409
    %v432 = vunpack.c.h.b16 %v409
    %v433 = vunpack.c.l.b16 %v410
    %v434 = vunpack.c.h.b16 %v410
    %v435 = vpack.c.b16 %v419, %v419
    %v436 = vpack.c.b16 %v420, %v420
    %v437 = vpack.c.b16 %v421, %v421
    %v438 = vpack.c.b16 %v422, %v422
    %v439 = vpack.c.b16 %v423, %v423
    %v440 = vpack.c.b16 %v424, %v424
    %v441 = vpack.c.b16 %v425, %v425
    %v442 = vpack.c.b16 %v426, %v426
    %v443 = vpack.c.b16 %v427, %v427
    %v444 = vpack.c.b16 %v428, %v428
    %v445 = vpack.c.b16 %v429, %v429
    %v446 = vpack.c.b16 %v430, %v430
    %v447 = vpack.c.b16 %v431, %v431
    %v448 = vpack.c.b16 %v432, %v432
    %v449 = vpack.c.b16 %v433, %v433
    %v450 = vpack.c.b16 %v434, %v434
    %v451 = vld [vmem:[#allocation8] sm:$0x1]
    %v452 = vld [vmem:[#allocation8 + $0x1] sm:$0x1]
    %v453 = vld [vmem:[#allocation8 + $0x2] sm:$0x1]
    %v454 = vld [vmem:[#allocation8 + $0x3] sm:$0x1]
    %v455 = vld [vmem:[#allocation8 + $0x4] sm:$0x1]
    %v456 = vld [vmem:[#allocation8 + $0x5] sm:$0x1]
    %v457 = vld [vmem:[#allocation8 + $0x6] sm:$0x1]
    %v458 = vld [vmem:[#allocation8 + $0x7] sm:$0x1]
    %v459 = vld [vmem:[#allocation8 + $0x8] sm:$0x1]
    %v460 = vld [vmem:[#allocation8 + $0x9] sm:$0x1]
    %v461 = vld [vmem:[#allocation8 + $0xa] sm:$0x1]
    %v462 = vld [vmem:[#allocation8 + $0xb] sm:$0x1]
    %v463 = vld [vmem:[#allocation8 + $0xc] sm:$0x1]
    %v464 = vld [vmem:[#allocation8 + $0xd] sm:$0x1]
    %v465 = vld [vmem:[#allocation8 + $0xe] sm:$0x1]
    %v466 = vld [vmem:[#allocation8 + $0xf] sm:$0x1]
    %v467 = vpack.c.b16 %v387, %v387
    %v468 = vpack.c.b16 %v388, %v388
    %v469 = vpack.c.b16 %v389, %v389
    %v470 = vpack.c.b16 %v390, %v390
    %v471 = vpack.c.b16 %v391, %v391
    %v472 = vpack.c.b16 %v392, %v392
    %v473 = vpack.c.b16 %v393, %v393
    %v474 = vpack.c.b16 %v394, %v394
    %v475 = vpack.c.b16 %v395, %v395
    %v476 = vpack.c.b16 %v396, %v396
    %v477 = vpack.c.b16 %v397, %v397
    %v478 = vpack.c.b16 %v398, %v398
    %v479 = vpack.c.b16 %v399, %v399
    %v480 = vpack.c.b16 %v400, %v400
    %v481 = vpack.c.b16 %v401, %v401
    %v482 = vpack.c.b16 %v402, %v402
    %v500 = vpack.i.b16 %v451, %v451
    %v502 = vlaneseq
    %v503 = vshrl.u32 %v502, 7
    %v504 = vsub.s32 0, %v503
    %v505 = vrot.slane %v500, %v504
    %v507 = vpack.i.b16 %v452, %v452
    %v509 = vlaneseq
    %v510 = vshrl.u32 %v509, 7
    %v511 = vsub.s32 0, %v510
    %v512 = vrot.slane %v507, %v511
    %v514 = vpack.i.b16 %v453, %v453
    %v516 = vlaneseq
    %v517 = vshrl.u32 %v516, 7
    %v518 = vsub.s32 0, %v517
    %v519 = vrot.slane %v514, %v518
    %v521 = vpack.i.b16 %v454, %v454
    %v523 = vlaneseq
    %v524 = vshrl.u32 %v523, 7
    %v525 = vsub.s32 0, %v524
    %v526 = vrot.slane %v521, %v525
    %v528 = vpack.i.b16 %v455, %v455
    %v530 = vlaneseq
    %v531 = vshrl.u32 %v530, 7
    %v532 = vsub.s32 0, %v531
    %v533 = vrot.slane %v528, %v532
    %v535 = vpack.i.b16 %v456, %v456
    %v537 = vlaneseq
    %v538 = vshrl.u32 %v537, 7
    %v539 = vsub.s32 0, %v538
    %v540 = vrot.slane %v535, %v539
    %v542 = vpack.i.b16 %v457, %v457
    %v544 = vlaneseq
    %v545 = vshrl.u32 %v544, 7
    %v546 = vsub.s32 0, %v545
    %v547 = vrot.slane %v542, %v546
    %v549 = vpack.i.b16 %v458, %v458
    %v551 = vlaneseq
    %v552 = vshrl.u32 %v551, 7
    %v553 = vsub.s32 0, %v552
    %v554 = vrot.slane %v549, %v553
    %v556 = vpack.i.b16 %v459, %v459
    %v558 = vlaneseq
    %v559 = vshrl.u32 %v558, 7
    %v560 = vsub.s32 0, %v559
    %v561 = vrot.slane %v556, %v560
    %v563 = vpack.i.b16 %v460, %v460
    %v565 = vlaneseq
    %v566 = vshrl.u32 %v565, 7
    %v567 = vsub.s32 0, %v566
    %v568 = vrot.slane %v563, %v567
    %v570 = vpack.i.b16 %v461, %v461
    %v572 = vlaneseq
    %v573 = vshrl.u32 %v572, 7
    %v574 = vsub.s32 0, %v573
    %v575 = vrot.slane %v570, %v574
    %v577 = vpack.i.b16 %v462, %v462
    %v579 = vlaneseq
    %v580 = vshrl.u32 %v579, 7
    %v581 = vsub.s32 0, %v580
    %v582 = vrot.slane %v577, %v581
    %v584 = vpack.i.b16 %v463, %v463
    %v586 = vlaneseq
    %v587 = vshrl.u32 %v586, 7
    %v588 = vsub.s32 0, %v587
    %v589 = vrot.slane %v584, %v588
    %v591 = vpack.i.b16 %v464, %v464
    %v593 = vlaneseq
    %v594 = vshrl.u32 %v593, 7
    %v595 = vsub.s32 0, %v594
    %v596 = vrot.slane %v591, %v595
    %v598 = vpack.i.b16 %v465, %v465
    %v600 = vlaneseq
    %v601 = vshrl.u32 %v600, 7
    %v602 = vsub.s32 0, %v601
    %v603 = vrot.slane %v598, %v602
    %v605 = vpack.i.b16 %v466, %v466
    %v607 = vlaneseq
    %v608 = vshrl.u32 %v607, 7
    %v609 = vsub.s32 0, %v608
    %v610 = vrot.slane %v605, %v609
    %v611 = vmul.bf16 %v467, %v505
    %v612 = vmul.bf16 %v467, %v512
    %v613 = vmul.bf16 %v467, %v519
    %v614 = vmul.bf16 %v467, %v526
    %v615 = vmul.bf16 %v467, %v533
    %v616 = vmul.bf16 %v467, %v540
    %v617 = vmul.bf16 %v467, %v547
    %v618 = vmul.bf16 %v467, %v554
    %v619 = vmul.bf16 %v467, %v561
    %v620 = vmul.bf16 %v467, %v568
    %v621 = vmul.bf16 %v467, %v575
    %v622 = vmul.bf16 %v467, %v582
    %v623 = vmul.bf16 %v467, %v589
    %v624 = vmul.bf16 %v467, %v596
    %v625 = vmul.bf16 %v467, %v603
    %v626 = vmul.bf16 %v467, %v610
    %v627 = vmul.bf16 %v468, %v505
    %v628 = vmul.bf16 %v468, %v512
    %v629 = vmul.bf16 %v468, %v519
    %v630 = vmul.bf16 %v468, %v526
    %v631 = vmul.bf16 %v468, %v533
    %v632 = vmul.bf16 %v468, %v540
    %v633 = vmul.bf16 %v468, %v547
    %v634 = vmul.bf16 %v468, %v554
    %v635 = vmul.bf16 %v468, %v561
    %v636 = vmul.bf16 %v468, %v568
    %v637 = vmul.bf16 %v468, %v575
    %v638 = vmul.bf16 %v468, %v582
    %v639 = vmul.bf16 %v468, %v589
    %v640 = vmul.bf16 %v468, %v596
    %v641 = vmul.bf16 %v468, %v603
    %v642 = vmul.bf16 %v468, %v610
    %v643 = vmul.bf16 %v469, %v505
    %v644 = vmul.bf16 %v469, %v512
    %v645 = vmul.bf16 %v469, %v519
    %v646 = vmul.bf16 %v469, %v526
    %v647 = vmul.bf16 %v469, %v533
    %v648 = vmul.bf16 %v469, %v540
    %v649 = vmul.bf16 %v469, %v547
    %v650 = vmul.bf16 %v469, %v554
    %v651 = vmul.bf16 %v469, %v561
    %v652 = vmul.bf16 %v469, %v568
    %v653 = vmul.bf16 %v469, %v575
    %v654 = vmul.bf16 %v469, %v582
    %v655 = vmul.bf16 %v469, %v589
    %v656 = vmul.bf16 %v469, %v596
    %v657 = vmul.bf16 %v469, %v603
    %v658 = vmul.bf16 %v469, %v610
    %v659 = vmul.bf16 %v470, %v505
    %v660 = vmul.bf16 %v470, %v512
    %v661 = vmul.bf16 %v470, %v519
    %v662 = vmul.bf16 %v470, %v526
    %v663 = vmul.bf16 %v470, %v533
    %v664 = vmul.bf16 %v470, %v540
    %v665 = vmul.bf16 %v470, %v547
    %v666 = vmul.bf16 %v470, %v554
    %v667 = vmul.bf16 %v470, %v561
    %v668 = vmul.bf16 %v470, %v568
    %v669 = vmul.bf16 %v470, %v575
    %v670 = vmul.bf16 %v470, %v582
    %v671 = vmul.bf16 %v470, %v589
    %v672 = vmul.bf16 %v470, %v596
    %v673 = vmul.bf16 %v470, %v603
    %v674 = vmul.bf16 %v470, %v610
    %v675 = vmul.bf16 %v471, %v505
    %v676 = vmul.bf16 %v471, %v512
    %v677 = vmul.bf16 %v471, %v519
    %v678 = vmul.bf16 %v471, %v526
    %v679 = vmul.bf16 %v471, %v533
    %v680 = vmul.bf16 %v471, %v540
    %v681 = vmul.bf16 %v471, %v547
    %v682 = vmul.bf16 %v471, %v554
    %v683 = vmul.bf16 %v471, %v561
    %v684 = vmul.bf16 %v471, %v568
    %v685 = vmul.bf16 %v471, %v575
    %v686 = vmul.bf16 %v471, %v582
    %v687 = vmul.bf16 %v471, %v589
    %v688 = vmul.bf16 %v471, %v596
    %v689 = vmul.bf16 %v471, %v603
    %v690 = vmul.bf16 %v471, %v610
    %v691 = vmul.bf16 %v472, %v505
    %v692 = vmul.bf16 %v472, %v512
    %v693 = vmul.bf16 %v472, %v519
    %v694 = vmul.bf16 %v472, %v526
    %v695 = vmul.bf16 %v472, %v533
    %v696 = vmul.bf16 %v472, %v540
    %v697 = vmul.bf16 %v472, %v547
    %v698 = vmul.bf16 %v472, %v554
    %v699 = vmul.bf16 %v472, %v561
    %v700 = vmul.bf16 %v472, %v568
    %v701 = vmul.bf16 %v472, %v575
    %v702 = vmul.bf16 %v472, %v582
    %v703 = vmul.bf16 %v472, %v589
    %v704 = vmul.bf16 %v472, %v596
    %v705 = vmul.bf16 %v472, %v603
    %v706 = vmul.bf16 %v472, %v610
    %v707 = vmul.bf16 %v473, %v505
    %v708 = vmul.bf16 %v473, %v512
    %v709 = vmul.bf16 %v473, %v519
    %v710 = vmul.bf16 %v473, %v526
    %v711 = vmul.bf16 %v473, %v533
    %v712 = vmul.bf16 %v473, %v540
    %v713 = vmul.bf16 %v473, %v547
    %v714 = vmul.bf16 %v473, %v554
    %v715 = vmul.bf16 %v473, %v561
    %v716 = vmul.bf16 %v473, %v568
    %v717 = vmul.bf16 %v473, %v575
    %v718 = vmul.bf16 %v473, %v582
    %v719 = vmul.bf16 %v473, %v589
    %v720 = vmul.bf16 %v473, %v596
    %v721 = vmul.bf16 %v473, %v603
    %v722 = vmul.bf16 %v473, %v610
    %v723 = vmul.bf16 %v474, %v505
    %v724 = vmul.bf16 %v474, %v512
    %v725 = vmul.bf16 %v474, %v519
    %v726 = vmul.bf16 %v474, %v526
    %v727 = vmul.bf16 %v474, %v533
    %v728 = vmul.bf16 %v474, %v540
    %v729 = vmul.bf16 %v474, %v547
    %v730 = vmul.bf16 %v474, %v554
    %v731 = vmul.bf16 %v474, %v561
    %v732 = vmul.bf16 %v474, %v568
    %v733 = vmul.bf16 %v474, %v575
    %v734 = vmul.bf16 %v474, %v582
    %v735 = vmul.bf16 %v474, %v589
    %v736 = vmul.bf16 %v474, %v596
    %v737 = vmul.bf16 %v474, %v603
    %v738 = vmul.bf16 %v474, %v610
    %v739 = vmul.bf16 %v475, %v505
    %v740 = vmul.bf16 %v475, %v512
    %v741 = vmul.bf16 %v475, %v519
    %v742 = vmul.bf16 %v475, %v526
    %v743 = vmul.bf16 %v475, %v533
    %v744 = vmul.bf16 %v475, %v540
    %v745 = vmul.bf16 %v475, %v547
    %v746 = vmul.bf16 %v475, %v554
    %v747 = vmul.bf16 %v475, %v561
    %v748 = vmul.bf16 %v475, %v568
    %v749 = vmul.bf16 %v475, %v575
    %v750 = vmul.bf16 %v475, %v582
    %v751 = vmul.bf16 %v475, %v589
    %v752 = vmul.bf16 %v475, %v596
    %v753 = vmul.bf16 %v475, %v603
    %v754 = vmul.bf16 %v475, %v610
    %v755 = vmul.bf16 %v476, %v505
    %v756 = vmul.bf16 %v476, %v512
    %v757 = vmul.bf16 %v476, %v519
    %v758 = vmul.bf16 %v476, %v526
    %v759 = vmul.bf16 %v476, %v533
    %v760 = vmul.bf16 %v476, %v540
    %v761 = vmul.bf16 %v476, %v547
    %v762 = vmul.bf16 %v476, %v554
    %v763 = vmul.bf16 %v476, %v561
    %v764 = vmul.bf16 %v476, %v568
    %v765 = vmul.bf16 %v476, %v575
    %v766 = vmul.bf16 %v476, %v582
    %v767 = vmul.bf16 %v476, %v589
    %v768 = vmul.bf16 %v476, %v596
    %v769 = vmul.bf16 %v476, %v603
    %v770 = vmul.bf16 %v476, %v610
    %v771 = vmul.bf16 %v477, %v505
    %v772 = vmul.bf16 %v477, %v512
    %v773 = vmul.bf16 %v477, %v519
    %v774 = vmul.bf16 %v477, %v526
    %v775 = vmul.bf16 %v477, %v533
    %v776 = vmul.bf16 %v477, %v540
    %v777 = vmul.bf16 %v477, %v547
    %v778 = vmul.bf16 %v477, %v554
    %v779 = vmul.bf16 %v477, %v561
    %v780 = vmul.bf16 %v477, %v568
    %v781 = vmul.bf16 %v477, %v575
    %v782 = vmul.bf16 %v477, %v582
    %v783 = vmul.bf16 %v477, %v589
    %v784 = vmul.bf16 %v477, %v596
    %v785 = vmul.bf16 %v477, %v603
    %v786 = vmul.bf16 %v477, %v610
    %v787 = vmul.bf16 %v478, %v505
    %v788 = vmul.bf16 %v478, %v512
    %v789 = vmul.bf16 %v478, %v519
    %v790 = vmul.bf16 %v478, %v526
    %v791 = vmul.bf16 %v478, %v533
    %v792 = vmul.bf16 %v478, %v540
    %v793 = vmul.bf16 %v478, %v547
    %v794 = vmul.bf16 %v478, %v554
    %v795 = vmul.bf16 %v478, %v561
    %v796 = vmul.bf16 %v478, %v568
    %v797 = vmul.bf16 %v478, %v575
    %v798 = vmul.bf16 %v478, %v582
    %v799 = vmul.bf16 %v478, %v589
    %v800 = vmul.bf16 %v478, %v596
    %v801 = vmul.bf16 %v478, %v603
    %v802 = vmul.bf16 %v478, %v610
    %v803 = vmul.bf16 %v479, %v505
    %v804 = vmul.bf16 %v479, %v512
    %v805 = vmul.bf16 %v479, %v519
    %v806 = vmul.bf16 %v479, %v526
    %v807 = vmul.bf16 %v479, %v533
    %v808 = vmul.bf16 %v479, %v540
    %v809 = vmul.bf16 %v479, %v547
    %v810 = vmul.bf16 %v479, %v554
    %v811 = vmul.bf16 %v479, %v561
    %v812 = vmul.bf16 %v479, %v568
    %v813 = vmul.bf16 %v479, %v575
    %v814 = vmul.bf16 %v479, %v582
    %v815 = vmul.bf16 %v479, %v589
    %v816 = vmul.bf16 %v479, %v596
    %v817 = vmul.bf16 %v479, %v603
    %v818 = vmul.bf16 %v479, %v610
    %v819 = vmul.bf16 %v480, %v505
    %v820 = vmul.bf16 %v480, %v512
    %v821 = vmul.bf16 %v480, %v519
    %v822 = vmul.bf16 %v480, %v526
    %v823 = vmul.bf16 %v480, %v533
    %v824 = vmul.bf16 %v480, %v540
    %v825 = vmul.bf16 %v480, %v547
    %v826 = vmul.bf16 %v480, %v554
    %v827 = vmul.bf16 %v480, %v561
    %v828 = vmul.bf16 %v480, %v568
    %v829 = vmul.bf16 %v480, %v575
    %v830 = vmul.bf16 %v480, %v582
    %v831 = vmul.bf16 %v480, %v589
    %v832 = vmul.bf16 %v480, %v596
    %v833 = vmul.bf16 %v480, %v603
    %v834 = vmul.bf16 %v480, %v610
    %v835 = vmul.bf16 %v481, %v505
    %v836 = vmul.bf16 %v481, %v512
    %v837 = vmul.bf16 %v481, %v519
    %v838 = vmul.bf16 %v481, %v526
    %v839 = vmul.bf16 %v481, %v533
    %v840 = vmul.bf16 %v481, %v540
    %v841 = vmul.bf16 %v481, %v547
    %v842 = vmul.bf16 %v481, %v554
    %v843 = vmul.bf16 %v481, %v561
    %v844 = vmul.bf16 %v481, %v568
    %v845 = vmul.bf16 %v481, %v575
    %v846 = vmul.bf16 %v481, %v582
    %v847 = vmul.bf16 %v481, %v589
    %v848 = vmul.bf16 %v481, %v596
    %v849 = vmul.bf16 %v481, %v603
    %v850 = vmul.bf16 %v481, %v610
    %v851 = vmul.bf16 %v482, %v505
    %v852 = vmul.bf16 %v482, %v512
    %v853 = vmul.bf16 %v482, %v519
    %v854 = vmul.bf16 %v482, %v526
    %v855 = vmul.bf16 %v482, %v533
    %v856 = vmul.bf16 %v482, %v540
    %v857 = vmul.bf16 %v482, %v547
    %v858 = vmul.bf16 %v482, %v554
    %v859 = vmul.bf16 %v482, %v561
    %v860 = vmul.bf16 %v482, %v568
    %v861 = vmul.bf16 %v482, %v575
    %v862 = vmul.bf16 %v482, %v582
    %v863 = vmul.bf16 %v482, %v589
    %v864 = vmul.bf16 %v482, %v596
    %v865 = vmul.bf16 %v482, %v603
    %v866 = vmul.bf16 %v482, %v610
    %867 = vrot.lane.b32.xlu0 %v467, 64
    %v868 = vpop.permute.xlu0 %867
    %v885 = vunpack.c.l.b16 %v611
    %v886 = vunpack.c.l.b16 %v612
    %v887 = vunpack.c.l.b16 %v613
    %v888 = vunpack.c.l.b16 %v614
    %v889 = vunpack.c.l.b16 %v615
    %v890 = vunpack.c.l.b16 %v616
    %v891 = vunpack.c.l.b16 %v617
    %v892 = vunpack.c.l.b16 %v618
    %v893 = vunpack.c.l.b16 %v619
    %v894 = vunpack.c.l.b16 %v620
    %v895 = vunpack.c.l.b16 %v621
    %v896 = vunpack.c.l.b16 %v622
    %v897 = vunpack.c.l.b16 %v623
    %v898 = vunpack.c.l.b16 %v624
    %v899 = vunpack.c.l.b16 %v625
    %v900 = vunpack.c.l.b16 %v626
    %v901 = vpack.c.b16 %v886, %v885
    %v902 = vpack.c.b16 %v888, %v887
    %v903 = vpack.c.b16 %v890, %v889
    %v904 = vpack.c.b16 %v892, %v891
    %v905 = vpack.c.b16 %v894, %v893
    %v906 = vpack.c.b16 %v896, %v895
    %v907 = vpack.c.b16 %v898, %v897
    %v908 = vpack.c.b16 %v900, %v899
    %v910 = vsel %vm233, %v868, 0
    %v913 = vsel %vm233, %v901, 0
    %v916 = vsel %vm233, %v902, 0
    %v919 = vsel %vm233, %v903, 0
    %v922 = vsel %vm233, %v904, 0
    %v925 = vsel %vm233, %v905, 0
    %v928 = vsel %vm233, %v906, 0
    %v931 = vsel %vm233, %v907, 0
    %v934 = vsel %vm233, %v908, 0
    %936 = vmatprep.subr.bf16.mxu0 0
    %937 = vmatpush1.bf16.xpose.msra.mxu0 %v913
    %938 = vmatprep.subr.bf16.mxu0 0
    %939 = vmatpush1.bf16.xpose.msra.mxu0 %v916
    %940 = vmatprep.subr.bf16.mxu0 0
    %941 = vmatpush1.bf16.xpose.msra.mxu0 %v919
    %942 = vmatprep.subr.bf16.mxu0 0
    %943 = vmatpush1.bf16.xpose.msra.mxu0 %v922
    %944 = vmatprep.subr.bf16.mxu0 0
    %945 = vmatpush1.bf16.xpose.msra.mxu0 %v925
    %946 = vmatprep.subr.bf16.mxu0 0
    %947 = vmatpush1.bf16.xpose.msra.mxu0 %v928
    %948 = vmatprep.subr.bf16.mxu0 0
    %949 = vmatpush1.bf16.xpose.msra.mxu0 %v931
    %950 = vmatprep.subr.bf16.mxu0 0
    %951 = vmatpush1.bf16.xpose.msra.mxu0 %v934
    %952 = vmatprep.subr.bf16.mxu0 0
    %953 = vmatpush1.bf16.xpose.msra.mxu0 0
    %954 = vmatprep.subr.bf16.mxu0 0
    %955 = vmatpush1.bf16.xpose.msra.mxu0 0
    %956 = vmatprep.subr.bf16.mxu0 0
    %957 = vmatpush1.bf16.xpose.msra.mxu0 0
    %958 = vmatprep.subr.bf16.mxu0 0
    %959 = vmatpush1.bf16.xpose.msra.mxu0 0
    %960 = vmatprep.subr.bf16.mxu0 0
    %961 = vmatpush1.bf16.xpose.msra.mxu0 0
    %962 = vmatprep.subr.bf16.mxu0 0
    %963 = vmatpush1.bf16.xpose.msra.mxu0 0
    %964 = vmatprep.subr.bf16.mxu0 0
    %965 = vmatpush1.bf16.xpose.msra.mxu0 0
    %966 = vmatprep.subr.bf16.mxu0 0
    %967 = vmatpush1.bf16.xpose.msra.mxu0 0
    %968 = vmatprep.mubr.bf16.mxu0 0
    %969 = vmatmul.mubr.bf16.gmra.mrb[0].mxu0 %v910
    %v970 = vpop.f32.mrb[0].mxu0
    %v971 = vadd.f32 0.0, %v970
    %v972 = vpop.f32.mrb[0].mxu0
    %v973 = vpop.f32.mrb[0].mxu0
    %v974 = vpop.f32.mrb[0].mxu0
    %975 = vdwg.mxu0
    %976 = vrot.lane.b32.xlu0 %v468, 64
    %v977 = vpop.permute.xlu0 %976
    %v994 = vunpack.c.l.b16 %v627
    %v995 = vunpack.c.l.b16 %v628
    %v996 = vunpack.c.l.b16 %v629
    %v997 = vunpack.c.l.b16 %v630
    %v998 = vunpack.c.l.b16 %v631
    %v999 = vunpack.c.l.b16 %v632
    %v1000 = vunpack.c.l.b16 %v633
    %v1001 = vunpack.c.l.b16 %v634
    %v1002 = vunpack.c.l.b16 %v635
    %v1003 = vunpack.c.l.b16 %v636
    %v1004 = vunpack.c.l.b16 %v637
    %v1005 = vunpack.c.l.b16 %v638
    %v1006 = vunpack.c.l.b16 %v639
    %v1007 = vunpack.c.l.b16 %v640
    %v1008 = vunpack.c.l.b16 %v641
    %v1009 = vunpack.c.l.b16 %v642
    %v1010 = vpack.c.b16 %v995, %v994
    %v1011 = vpack.c.b16 %v997, %v996
    %v1012 = vpack.c.b16 %v999, %v998
    %v1013 = vpack.c.b16 %v1001, %v1000
    %v1014 = vpack.c.b16 %v1003, %v1002
    %v1015 = vpack.c.b16 %v1005, %v1004
    %v1016 = vpack.c.b16 %v1007, %v1006
    %v1017 = vpack.c.b16 %v1009, %v1008
    %v1019 = vsel %vm233, %v977, 0
    %v1022 = vsel %vm233, %v1010, 0
    %v1025 = vsel %vm233, %v1011, 0
    %v1028 = vsel %vm233, %v1012, 0
    %v1031 = vsel %vm233, %v1013, 0
    %v1034 = vsel %vm233, %v1014, 0
    %v1037 = vsel %vm233, %v1015, 0
    %v1040 = vsel %vm233, %v1016, 0
    %v1043 = vsel %vm233, %v1017, 0
    %1045 = vmatprep.subr.bf16.mxu0 0
    %1046 = vmatpush1.bf16.xpose.msra.mxu0 %v1022
    %1047 = vmatprep.subr.bf16.mxu0 0
    %1048 = vmatpush1.bf16.xpose.msra.mxu0 %v1025
    %1049 = vmatprep.subr.bf16.mxu0 0
    %1050 = vmatpush1.bf16.xpose.msra.mxu0 %v1028
    %1051 = vmatprep.subr.bf16.mxu0 0
    %1052 = vmatpush1.bf16.xpose.msra.mxu0 %v1031
    %1053 = vmatprep.subr.bf16.mxu0 0
    %1054 = vmatpush1.bf16.xpose.msra.mxu0 %v1034
    %1055 = vmatprep.subr.bf16.mxu0 0
    %1056 = vmatpush1.bf16.xpose.msra.mxu0 %v1037
    %1057 = vmatprep.subr.bf16.mxu0 0
    %1058 = vmatpush1.bf16.xpose.msra.mxu0 %v1040
    %1059 = vmatprep.subr.bf16.mxu0 0
    %1060 = vmatpush1.bf16.xpose.msra.mxu0 %v1043
    %1061 = vmatprep.subr.bf16.mxu0 0
    %1062 = vmatpush1.bf16.xpose.msra.mxu0 0
    %1063 = vmatprep.subr.bf16.mxu0 0
    %1064 = vmatpush1.bf16.xpose.msra.mxu0 0
    %1065 = vmatprep.subr.bf16.mxu0 0
    %1066 = vmatpush1.bf16.xpose.msra.mxu0 0
    %1067 = vmatprep.subr.bf16.mxu0 0
    %1068 = vmatpush1.bf16.xpose.msra.mxu0 0
    %1069 = vmatprep.subr.bf16.mxu0 0
    %1070 = vmatpush1.bf16.xpose.msra.mxu0 0
    %1071 = vmatprep.subr.bf16.mxu0 0
    %1072 = vmatpush1.bf16.xpose.msra.mxu0 0
    %1073 = vmatprep.subr.bf16.mxu0 0
    %1074 = vmatpush1.bf16.xpose.msra.mxu0 0
    %1075 = vmatprep.subr.bf16.mxu0 0
    %1076 = vmatpush1.bf16.xpose.msra.mxu0 0
    %1077 = vmatprep.mubr.bf16.mxu0 0
    %1078 = vmatmul.mubr.bf16.gmra.mrb[0].mxu0 %v1019
    %v1079 = vpop.f32.mrb[0].mxu0
    %v1080 = vadd.f32 0.0, %v1079
    %v1081 = vpop.f32.mrb[0].mxu0
    %v1082 = vpop.f32.mrb[0].mxu0
    %v1083 = vpop.f32.mrb[0].mxu0
    %1084 = vdwg.mxu0
    %1085 = vrot.lane.b32.xlu0 %v469, 64
    %v1086 = vpop.permute.xlu0 %1085
    %v1103 = vunpack.c.l.b16 %v643
    %v1104 = vunpack.c.l.b16 %v644
    %v1105 = vunpack.c.l.b16 %v645
    %v1106 = vunpack.c.l.b16 %v646
    %v1107 = vunpack.c.l.b16 %v647
    %v1108 = vunpack.c.l.b16 %v648
    %v1109 = vunpack.c.l.b16 %v649
    %v1110 = vunpack.c.l.b16 %v650
    %v1111 = vunpack.c.l.b16 %v651
    %v1112 = vunpack.c.l.b16 %v652
    %v1113 = vunpack.c.l.b16 %v653
    %v1114 = vunpack.c.l.b16 %v654
    %v1115 = vunpack.c.l.b16 %v655
    %v1116 = vunpack.c.l.b16 %v656
    %v1117 = vunpack.c.l.b16 %v657
    %v1118 = vunpack.c.l.b16 %v658
    %v1119 = vpack.c.b16 %v1104, %v1103
    %v1120 = vpack.c.b16 %v1106, %v1105
    %v1121 = vpack.c.b16 %v1108, %v1107
    %v1122 = vpack.c.b16 %v1110, %v1109
    %v1123 = vpack.c.b16 %v1112, %v1111
    %v1124 = vpack.c.b16 %v1114, %v1113
    %v1125 = vpack.c.b16 %v1116, %v1115
    %v1126 = vpack.c.b16 %v1118, %v1117
    %v1128 = vsel %vm233, %v1086, 0
    %v1131 = vsel %vm233, %v1119, 0
    %v1134 = vsel %vm233, %v1120, 0
    %v1137 = vsel %vm233, %v1121, 0
    %v1140 = vsel %vm233, %v1122, 0
    %v1143 = vsel %vm233, %v1123, 0
    %v1146 = vsel %vm233, %v1124, 0
    %v1149 = vsel %vm233, %v1125, 0
    %v1152 = vsel %vm233, %v1126, 0
    %1154 = vmatprep.subr.bf16.mxu0 0
    %1155 = vmatpush1.bf16.xpose.msra.mxu0 %v1131
    %1156 = vmatprep.subr.bf16.mxu0 0
    %1157 = vmatpush1.bf16.xpose.msra.mxu0 %v1134
    %1158 = vmatprep.subr.bf16.mxu0 0
    %1159 = vmatpush1.bf16.xpose.msra.mxu0 %v1137
    %1160 = vmatprep.subr.bf16.mxu0 0
    %1161 = vmatpush1.bf16.xpose.msra.mxu0 %v1140
    %1162 = vmatprep.subr.bf16.mxu0 0
    %1163 = vmatpush1.bf16.xpose.msra.mxu0 %v1143
    %1164 = vmatprep.subr.bf16.mxu0 0
    %1165 = vmatpush1.bf16.xpose.msra.mxu0 %v1146
    %1166 = vmatprep.subr.bf16.mxu0 0
    %1167 = vmatpush1.bf16.xpose.msra.mxu0 %v1149
    %1168 = vmatprep.subr.bf16.mxu0 0
    %1169 = vmatpush1.bf16.xpose.msra.mxu0 %v1152
    %1170 = vmatprep.subr.bf16.mxu0 0
    %1171 = vmatpush1.bf16.xpose.msra.mxu0 0
    %1172 = vmatprep.subr.bf16.mxu0 0
    %1173 = vmatpush1.bf16.xpose.msra.mxu0 0
    %1174 = vmatprep.subr.bf16.mxu0 0
    %1175 = vmatpush1.bf16.xpose.msra.mxu0 0
    %1176 = vmatprep.subr.bf16.mxu0 0
    %1177 = vmatpush1.bf16.xpose.msra.mxu0 0
    %1178 = vmatprep.subr.bf16.mxu0 0
    %1179 = vmatpush1.bf16.xpose.msra.mxu0 0
    %1180 = vmatprep.subr.bf16.mxu0 0
    %1181 = vmatpush1.bf16.xpose.msra.mxu0 0
    %1182 = vmatprep.subr.bf16.mxu0 0
    %1183 = vmatpush1.bf16.xpose.msra.mxu0 0
    %1184 = vmatprep.subr.bf16.mxu0 0
    %1185 = vmatpush1.bf16.xpose.msra.mxu0 0
    %1186 = vmatprep.mubr.bf16.mxu0 0
    %1187 = vmatmul.mubr.bf16.gmra.mrb[0].mxu0 %v1128
    %v1188 = vpop.f32.mrb[0].mxu0
    %v1189 = vadd.f32 0.0, %v1188
    %v1190 = vpop.f32.mrb[0].mxu0
    %v1191 = vpop.f32.mrb[0].mxu0
    %v1192 = vpop.f32.mrb[0].mxu0
    %1193 = vdwg.mxu0
    %1194 = vrot.lane.b32.xlu0 %v470, 64
    %v1195 = vpop.permute.xlu0 %1194
    %v1212 = vunpack.c.l.b16 %v659
    %v1213 = vunpack.c.l.b16 %v660
    %v1214 = vunpack.c.l.b16 %v661
    %v1215 = vunpack.c.l.b16 %v662
    %v1216 = vunpack.c.l.b16 %v663
    %v1217 = vunpack.c.l.b16 %v664
    %v1218 = vunpack.c.l.b16 %v665
    %v1219 = vunpack.c.l.b16 %v666
    %v1220 = vunpack.c.l.b16 %v667
    %v1221 = vunpack.c.l.b16 %v668
    %v1222 = vunpack.c.l.b16 %v669
    %v1223 = vunpack.c.l.b16 %v670
    %v1224 = vunpack.c.l.b16 %v671
    %v1225 = vunpack.c.l.b16 %v672
    %v1226 = vunpack.c.l.b16 %v673
    %v1227 = vunpack.c.l.b16 %v674
    %v1228 = vpack.c.b16 %v1213, %v1212
    %v1229 = vpack.c.b16 %v1215, %v1214
    %v1230 = vpack.c.b16 %v1217, %v1216
    %v1231 = vpack.c.b16 %v1219, %v1218
    %v1232 = vpack.c.b16 %v1221, %v1220
    %v1233 = vpack.c.b16 %v1223, %v1222
    %v1234 = vpack.c.b16 %v1225, %v1224
    %v1235 = vpack.c.b16 %v1227, %v1226
    %v1237 = vsel %vm233, %v1195, 0
    %v1240 = vsel %vm233, %v1228, 0
    %v1243 = vsel %vm233, %v1229, 0
    %v1246 = vsel %vm233, %v1230, 0
    %v1249 = vsel %vm233, %v1231, 0
    %v1252 = vsel %vm233, %v1232, 0
    %v1255 = vsel %vm233, %v1233, 0
    %v1258 = vsel %vm233, %v1234, 0
    %v1261 = vsel %vm233, %v1235, 0
    %1263 = vmatprep.subr.bf16.mxu0 0
    %1264 = vmatpush1.bf16.xpose.msra.mxu0 %v1240
    %1265 = vmatprep.subr.bf16.mxu0 0
    %1266 = vmatpush1.bf16.xpose.msra.mxu0 %v1243
    %1267 = vmatprep.subr.bf16.mxu0 0
    %1268 = vmatpush1.bf16.xpose.msra.mxu0 %v1246
    %1269 = vmatprep.subr.bf16.mxu0 0
    %1270 = vmatpush1.bf16.xpose.msra.mxu0 %v1249
    %1271 = vmatprep.subr.bf16.mxu0 0
    %1272 = vmatpush1.bf16.xpose.msra.mxu0 %v1252
    %1273 = vmatprep.subr.bf16.mxu0 0
    %1274 = vmatpush1.bf16.xpose.msra.mxu0 %v1255
    %1275 = vmatprep.subr.bf16.mxu0 0
    %1276 = vmatpush1.bf16.xpose.msra.mxu0 %v1258
    %1277 = vmatprep.subr.bf16.mxu0 0
    %1278 = vmatpush1.bf16.xpose.msra.mxu0 %v1261
    %1279 = vmatprep.subr.bf16.mxu0 0
    %1280 = vmatpush1.bf16.xpose.msra.mxu0 0
    %1281 = vmatprep.subr.bf16.mxu0 0
    %1282 = vmatpush1.bf16.xpose.msra.mxu0 0
    %1283 = vmatprep.subr.bf16.mxu0 0
    %1284 = vmatpush1.bf16.xpose.msra.mxu0 0
    %1285 = vmatprep.subr.bf16.mxu0 0
    %1286 = vmatpush1.bf16.xpose.msra.mxu0 0
    %1287 = vmatprep.subr.bf16.mxu0 0
    %1288 = vmatpush1.bf16.xpose.msra.mxu0 0
    %1289 = vmatprep.subr.bf16.mxu0 0
    %1290 = vmatpush1.bf16.xpose.msra.mxu0 0
    %1291 = vmatprep.subr.bf16.mxu0 0
    %1292 = vmatpush1.bf16.xpose.msra.mxu0 0
    %1293 = vmatprep.subr.bf16.mxu0 0
    %1294 = vmatpush1.bf16.xpose.msra.mxu0 0
    %1295 = vmatprep.mubr.bf16.mxu0 0
    %1296 = vmatmul.mubr.bf16.gmra.mrb[0].mxu0 %v1237
    %v1297 = vpop.f32.mrb[0].mxu0
    %v1298 = vadd.f32 0.0, %v1297
    %v1299 = vpop.f32.mrb[0].mxu0
    %v1300 = vpop.f32.mrb[0].mxu0
    %v1301 = vpop.f32.mrb[0].mxu0
    %1302 = vdwg.mxu0
    %1303 = vrot.lane.b32.xlu0 %v471, 64
    %v1304 = vpop.permute.xlu0 %1303
    %v1321 = vunpack.c.l.b16 %v675
    %v1322 = vunpack.c.l.b16 %v676
    %v1323 = vunpack.c.l.b16 %v677
    %v1324 = vunpack.c.l.b16 %v678
    %v1325 = vunpack.c.l.b16 %v679
    %v1326 = vunpack.c.l.b16 %v680
    %v1327 = vunpack.c.l.b16 %v681
    %v1328 = vunpack.c.l.b16 %v682
    %v1329 = vunpack.c.l.b16 %v683
    %v1330 = vunpack.c.l.b16 %v684
    %v1331 = vunpack.c.l.b16 %v685
    %v1332 = vunpack.c.l.b16 %v686
    %v1333 = vunpack.c.l.b16 %v687
    %v1334 = vunpack.c.l.b16 %v688
    %v1335 = vunpack.c.l.b16 %v689
    %v1336 = vunpack.c.l.b16 %v690
    %v1337 = vpack.c.b16 %v1322, %v1321
    %v1338 = vpack.c.b16 %v1324, %v1323
    %v1339 = vpack.c.b16 %v1326, %v1325
    %v1340 = vpack.c.b16 %v1328, %v1327
    %v1341 = vpack.c.b16 %v1330, %v1329
    %v1342 = vpack.c.b16 %v1332, %v1331
    %v1343 = vpack.c.b16 %v1334, %v1333
    %v1344 = vpack.c.b16 %v1336, %v1335
    %v1346 = vsel %vm233, %v1304, 0
    %v1349 = vsel %vm233, %v1337, 0
    %v1352 = vsel %vm233, %v1338, 0
    %v1355 = vsel %vm233, %v1339, 0
    %v1358 = vsel %vm233, %v1340, 0
    %v1361 = vsel %vm233, %v1341, 0
    %v1364 = vsel %vm233, %v1342, 0
    %v1367 = vsel %vm233, %v1343, 0
    %v1370 = vsel %vm233, %v1344, 0
    %1372 = vmatprep.subr.bf16.mxu0 0
    %1373 = vmatpush1.bf16.xpose.msra.mxu0 %v1349
    %1374 = vmatprep.subr.bf16.mxu0 0
    %1375 = vmatpush1.bf16.xpose.msra.mxu0 %v1352
    %1376 = vmatprep.subr.bf16.mxu0 0
    %1377 = vmatpush1.bf16.xpose.msra.mxu0 %v1355
    %1378 = vmatprep.subr.bf16.mxu0 0
    %1379 = vmatpush1.bf16.xpose.msra.mxu0 %v1358
    %1380 = vmatprep.subr.bf16.mxu0 0
    %1381 = vmatpush1.bf16.xpose.msra.mxu0 %v1361
    %1382 = vmatprep.subr.bf16.mxu0 0
    %1383 = vmatpush1.bf16.xpose.msra.mxu0 %v1364
    %1384 = vmatprep.subr.bf16.mxu0 0
    %1385 = vmatpush1.bf16.xpose.msra.mxu0 %v1367
    %1386 = vmatprep.subr.bf16.mxu0 0
    %1387 = vmatpush1.bf16.xpose.msra.mxu0 %v1370
    %1388 = vmatprep.subr.bf16.mxu0 0
    %1389 = vmatpush1.bf16.xpose.msra.mxu0 0
    %1390 = vmatprep.subr.bf16.mxu0 0
    %1391 = vmatpush1.bf16.xpose.msra.mxu0 0
    %1392 = vmatprep.subr.bf16.mxu0 0
    %1393 = vmatpush1.bf16.xpose.msra.mxu0 0
    %1394 = vmatprep.subr.bf16.mxu0 0
    %1395 = vmatpush1.bf16.xpose.msra.mxu0 0
    %1396 = vmatprep.subr.bf16.mxu0 0
    %1397 = vmatpush1.bf16.xpose.msra.mxu0 0
    %1398 = vmatprep.subr.bf16.mxu0 0
    %1399 = vmatpush1.bf16.xpose.msra.mxu0 0
    %1400 = vmatprep.subr.bf16.mxu0 0
    %1401 = vmatpush1.bf16.xpose.msra.mxu0 0
    %1402 = vmatprep.subr.bf16.mxu0 0
    %1403 = vmatpush1.bf16.xpose.msra.mxu0 0
    %1404 = vmatprep.mubr.bf16.mxu0 0
    %1405 = vmatmul.mubr.bf16.gmra.mrb[0].mxu0 %v1346
    %v1406 = vpop.f32.mrb[0].mxu0
    %v1407 = vadd.f32 0.0, %v1406
    %v1408 = vpop.f32.mrb[0].mxu0
    %v1409 = vpop.f32.mrb[0].mxu0
    %v1410 = vpop.f32.mrb[0].mxu0
    %1411 = vdwg.mxu0
    %1412 = vrot.lane.b32.xlu0 %v472, 64
    %v1413 = vpop.permute.xlu0 %1412
    %v1430 = vunpack.c.l.b16 %v691
    %v1431 = vunpack.c.l.b16 %v692
    %v1432 = vunpack.c.l.b16 %v693
    %v1433 = vunpack.c.l.b16 %v694
    %v1434 = vunpack.c.l.b16 %v695
    %v1435 = vunpack.c.l.b16 %v696
    %v1436 = vunpack.c.l.b16 %v697
    %v1437 = vunpack.c.l.b16 %v698
    %v1438 = vunpack.c.l.b16 %v699
    %v1439 = vunpack.c.l.b16 %v700
    %v1440 = vunpack.c.l.b16 %v701
    %v1441 = vunpack.c.l.b16 %v702
    %v1442 = vunpack.c.l.b16 %v703
    %v1443 = vunpack.c.l.b16 %v704
    %v1444 = vunpack.c.l.b16 %v705
    %v1445 = vunpack.c.l.b16 %v706
    %v1446 = vpack.c.b16 %v1431, %v1430
    %v1447 = vpack.c.b16 %v1433, %v1432
    %v1448 = vpack.c.b16 %v1435, %v1434
    %v1449 = vpack.c.b16 %v1437, %v1436
    %v1450 = vpack.c.b16 %v1439, %v1438
    %v1451 = vpack.c.b16 %v1441, %v1440
    %v1452 = vpack.c.b16 %v1443, %v1442
    %v1453 = vpack.c.b16 %v1445, %v1444
    %v1455 = vsel %vm233, %v1413, 0
    %v1458 = vsel %vm233, %v1446, 0
    %v1461 = vsel %vm233, %v1447, 0
    %v1464 = vsel %vm233, %v1448, 0
    %v1467 = vsel %vm233, %v1449, 0
    %v1470 = vsel %vm233, %v1450, 0
    %v1473 = vsel %vm233, %v1451, 0
    %v1476 = vsel %vm233, %v1452, 0
    %v1479 = vsel %vm233, %v1453, 0
    %1481 = vmatprep.subr.bf16.mxu0 0
    %1482 = vmatpush1.bf16.xpose.msra.mxu0 %v1458
    %1483 = vmatprep.subr.bf16.mxu0 0
    %1484 = vmatpush1.bf16.xpose.msra.mxu0 %v1461
    %1485 = vmatprep.subr.bf16.mxu0 0
    %1486 = vmatpush1.bf16.xpose.msra.mxu0 %v1464
    %1487 = vmatprep.subr.bf16.mxu0 0
    %1488 = vmatpush1.bf16.xpose.msra.mxu0 %v1467
    %1489 = vmatprep.subr.bf16.mxu0 0
    %1490 = vmatpush1.bf16.xpose.msra.mxu0 %v1470
    %1491 = vmatprep.subr.bf16.mxu0 0
    %1492 = vmatpush1.bf16.xpose.msra.mxu0 %v1473
    %1493 = vmatprep.subr.bf16.mxu0 0
    %1494 = vmatpush1.bf16.xpose.msra.mxu0 %v1476
    %1495 = vmatprep.subr.bf16.mxu0 0
    %1496 = vmatpush1.bf16.xpose.msra.mxu0 %v1479
    %1497 = vmatprep.subr.bf16.mxu0 0
    %1498 = vmatpush1.bf16.xpose.msra.mxu0 0
    %1499 = vmatprep.subr.bf16.mxu0 0
    %1500 = vmatpush1.bf16.xpose.msra.mxu0 0
    %1501 = vmatprep.subr.bf16.mxu0 0
    %1502 = vmatpush1.bf16.xpose.msra.mxu0 0
    %1503 = vmatprep.subr.bf16.mxu0 0
    %1504 = vmatpush1.bf16.xpose.msra.mxu0 0
    %1505 = vmatprep.subr.bf16.mxu0 0
    %1506 = vmatpush1.bf16.xpose.msra.mxu0 0
    %1507 = vmatprep.subr.bf16.mxu0 0
    %1508 = vmatpush1.bf16.xpose.msra.mxu0 0
    %1509 = vmatprep.subr.bf16.mxu0 0
    %1510 = vmatpush1.bf16.xpose.msra.mxu0 0
    %1511 = vmatprep.subr.bf16.mxu0 0
    %1512 = vmatpush1.bf16.xpose.msra.mxu0 0
    %1513 = vmatprep.mubr.bf16.mxu0 0
    %1514 = vmatmul.mubr.bf16.gmra.mrb[0].mxu0 %v1455
    %v1515 = vpop.f32.mrb[0].mxu0
    %v1516 = vadd.f32 0.0, %v1515
    %v1517 = vpop.f32.mrb[0].mxu0
    %v1518 = vpop.f32.mrb[0].mxu0
    %v1519 = vpop.f32.mrb[0].mxu0
    %1520 = vdwg.mxu0
    %1521 = vrot.lane.b32.xlu0 %v473, 64
    %v1522 = vpop.permute.xlu0 %1521
    %v1539 = vunpack.c.l.b16 %v707
    %v1540 = vunpack.c.l.b16 %v708
    %v1541 = vunpack.c.l.b16 %v709
    %v1542 = vunpack.c.l.b16 %v710
    %v1543 = vunpack.c.l.b16 %v711
    %v1544 = vunpack.c.l.b16 %v712
    %v1545 = vunpack.c.l.b16 %v713
    %v1546 = vunpack.c.l.b16 %v714
    %v1547 = vunpack.c.l.b16 %v715
    %v1548 = vunpack.c.l.b16 %v716
    %v1549 = vunpack.c.l.b16 %v717
    %v1550 = vunpack.c.l.b16 %v718
    %v1551 = vunpack.c.l.b16 %v719
    %v1552 = vunpack.c.l.b16 %v720
    %v1553 = vunpack.c.l.b16 %v721
    %v1554 = vunpack.c.l.b16 %v722
    %v1555 = vpack.c.b16 %v1540, %v1539
    %v1556 = vpack.c.b16 %v1542, %v1541
    %v1557 = vpack.c.b16 %v1544, %v1543
    %v1558 = vpack.c.b16 %v1546, %v1545
    %v1559 = vpack.c.b16 %v1548, %v1547
    %v1560 = vpack.c.b16 %v1550, %v1549
    %v1561 = vpack.c.b16 %v1552, %v1551
    %v1562 = vpack.c.b16 %v1554, %v1553
    %v1564 = vsel %vm233, %v1522, 0
    %v1567 = vsel %vm233, %v1555, 0
    %v1570 = vsel %vm233, %v1556, 0
    %v1573 = vsel %vm233, %v1557, 0
    %v1576 = vsel %vm233, %v1558, 0
    %v1579 = vsel %vm233, %v1559, 0
    %v1582 = vsel %vm233, %v1560, 0
    %v1585 = vsel %vm233, %v1561, 0
    %v1588 = vsel %vm233, %v1562, 0
    %1590 = vmatprep.subr.bf16.mxu0 0
    %1591 = vmatpush1.bf16.xpose.msra.mxu0 %v1567
    %1592 = vmatprep.subr.bf16.mxu0 0
    %1593 = vmatpush1.bf16.xpose.msra.mxu0 %v1570
    %1594 = vmatprep.subr.bf16.mxu0 0
    %1595 = vmatpush1.bf16.xpose.msra.mxu0 %v1573
    %1596 = vmatprep.subr.bf16.mxu0 0
    %1597 = vmatpush1.bf16.xpose.msra.mxu0 %v1576
    %1598 = vmatprep.subr.bf16.mxu0 0
    %1599 = vmatpush1.bf16.xpose.msra.mxu0 %v1579
    %1600 = vmatprep.subr.bf16.mxu0 0
    %1601 = vmatpush1.bf16.xpose.msra.mxu0 %v1582
    %1602 = vmatprep.subr.bf16.mxu0 0
    %1603 = vmatpush1.bf16.xpose.msra.mxu0 %v1585
    %1604 = vmatprep.subr.bf16.mxu0 0
    %1605 = vmatpush1.bf16.xpose.msra.mxu0 %v1588
    %1606 = vmatprep.subr.bf16.mxu0 0
    %1607 = vmatpush1.bf16.xpose.msra.mxu0 0
    %1608 = vmatprep.subr.bf16.mxu0 0
    %1609 = vmatpush1.bf16.xpose.msra.mxu0 0
    %1610 = vmatprep.subr.bf16.mxu0 0
    %1611 = vmatpush1.bf16.xpose.msra.mxu0 0
    %1612 = vmatprep.subr.bf16.mxu0 0
    %1613 = vmatpush1.bf16.xpose.msra.mxu0 0
    %1614 = vmatprep.subr.bf16.mxu0 0
    %1615 = vmatpush1.bf16.xpose.msra.mxu0 0
    %1616 = vmatprep.subr.bf16.mxu0 0
    %1617 = vmatpush1.bf16.xpose.msra.mxu0 0
    %1618 = vmatprep.subr.bf16.mxu0 0
    %1619 = vmatpush1.bf16.xpose.msra.mxu0 0
    %1620 = vmatprep.subr.bf16.mxu0 0
    %1621 = vmatpush1.bf16.xpose.msra.mxu0 0
    %1622 = vmatprep.mubr.bf16.mxu0 0
    %1623 = vmatmul.mubr.bf16.gmra.mrb[0].mxu0 %v1564
    %v1624 = vpop.f32.mrb[0].mxu0
    %v1625 = vadd.f32 0.0, %v1624
    %v1626 = vpop.f32.mrb[0].mxu0
    %v1627 = vpop.f32.mrb[0].mxu0
    %v1628 = vpop.f32.mrb[0].mxu0
    %1629 = vdwg.mxu0
    %1630 = vrot.lane.b32.xlu0 %v474, 64
    %v1631 = vpop.permute.xlu0 %1630
    %v1648 = vunpack.c.l.b16 %v723
    %v1649 = vunpack.c.l.b16 %v724
    %v1650 = vunpack.c.l.b16 %v725
    %v1651 = vunpack.c.l.b16 %v726
    %v1652 = vunpack.c.l.b16 %v727
    %v1653 = vunpack.c.l.b16 %v728
    %v1654 = vunpack.c.l.b16 %v729
    %v1655 = vunpack.c.l.b16 %v730
    %v1656 = vunpack.c.l.b16 %v731
    %v1657 = vunpack.c.l.b16 %v732
    %v1658 = vunpack.c.l.b16 %v733
    %v1659 = vunpack.c.l.b16 %v734
    %v1660 = vunpack.c.l.b16 %v735
    %v1661 = vunpack.c.l.b16 %v736
    %v1662 = vunpack.c.l.b16 %v737
    %v1663 = vunpack.c.l.b16 %v738
    %v1664 = vpack.c.b16 %v1649, %v1648
    %v1665 = vpack.c.b16 %v1651, %v1650
    %v1666 = vpack.c.b16 %v1653, %v1652
    %v1667 = vpack.c.b16 %v1655, %v1654
    %v1668 = vpack.c.b16 %v1657, %v1656
    %v1669 = vpack.c.b16 %v1659, %v1658
    %v1670 = vpack.c.b16 %v1661, %v1660
    %v1671 = vpack.c.b16 %v1663, %v1662
    %v1673 = vsel %vm233, %v1631, 0
    %v1676 = vsel %vm233, %v1664, 0
    %v1679 = vsel %vm233, %v1665, 0
    %v1682 = vsel %vm233, %v1666, 0
    %v1685 = vsel %vm233, %v1667, 0
    %v1688 = vsel %vm233, %v1668, 0
    %v1691 = vsel %vm233, %v1669, 0
    %v1694 = vsel %vm233, %v1670, 0
    %v1697 = vsel %vm233, %v1671, 0
    %1699 = vmatprep.subr.bf16.mxu0 0
    %1700 = vmatpush1.bf16.xpose.msra.mxu0 %v1676
    %1701 = vmatprep.subr.bf16.mxu0 0
    %1702 = vmatpush1.bf16.xpose.msra.mxu0 %v1679
    %1703 = vmatprep.subr.bf16.mxu0 0
    %1704 = vmatpush1.bf16.xpose.msra.mxu0 %v1682
    %1705 = vmatprep.subr.bf16.mxu0 0
    %1706 = vmatpush1.bf16.xpose.msra.mxu0 %v1685
    %1707 = vmatprep.subr.bf16.mxu0 0
    %1708 = vmatpush1.bf16.xpose.msra.mxu0 %v1688
    %1709 = vmatprep.subr.bf16.mxu0 0
    %1710 = vmatpush1.bf16.xpose.msra.mxu0 %v1691
    %1711 = vmatprep.subr.bf16.mxu0 0
    %1712 = vmatpush1.bf16.xpose.msra.mxu0 %v1694
    %1713 = vmatprep.subr.bf16.mxu0 0
    %1714 = vmatpush1.bf16.xpose.msra.mxu0 %v1697
    %1715 = vmatprep.subr.bf16.mxu0 0
    %1716 = vmatpush1.bf16.xpose.msra.mxu0 0
    %1717 = vmatprep.subr.bf16.mxu0 0
    %1718 = vmatpush1.bf16.xpose.msra.mxu0 0
    %1719 = vmatprep.subr.bf16.mxu0 0
    %1720 = vmatpush1.bf16.xpose.msra.mxu0 0
    %1721 = vmatprep.subr.bf16.mxu0 0
    %1722 = vmatpush1.bf16.xpose.msra.mxu0 0
    %1723 = vmatprep.subr.bf16.mxu0 0
    %1724 = vmatpush1.bf16.xpose.msra.mxu0 0
    %1725 = vmatprep.subr.bf16.mxu0 0
    %1726 = vmatpush1.bf16.xpose.msra.mxu0 0
    %1727 = vmatprep.subr.bf16.mxu0 0
    %1728 = vmatpush1.bf16.xpose.msra.mxu0 0
    %1729 = vmatprep.subr.bf16.mxu0 0
    %1730 = vmatpush1.bf16.xpose.msra.mxu0 0
    %1731 = vmatprep.mubr.bf16.mxu0 0
    %1732 = vmatmul.mubr.bf16.gmra.mrb[0].mxu0 %v1673
    %v1733 = vpop.f32.mrb[0].mxu0
    %v1734 = vadd.f32 0.0, %v1733
    %v1735 = vpop.f32.mrb[0].mxu0
    %v1736 = vpop.f32.mrb[0].mxu0
    %v1737 = vpop.f32.mrb[0].mxu0
    %1738 = vdwg.mxu0
    %1739 = vrot.lane.b32.xlu0 %v475, 64
    %v1740 = vpop.permute.xlu0 %1739
    %v1757 = vunpack.c.l.b16 %v739
    %v1758 = vunpack.c.l.b16 %v740
    %v1759 = vunpack.c.l.b16 %v741
    %v1760 = vunpack.c.l.b16 %v742
    %v1761 = vunpack.c.l.b16 %v743
    %v1762 = vunpack.c.l.b16 %v744
    %v1763 = vunpack.c.l.b16 %v745
    %v1764 = vunpack.c.l.b16 %v746
    %v1765 = vunpack.c.l.b16 %v747
    %v1766 = vunpack.c.l.b16 %v748
    %v1767 = vunpack.c.l.b16 %v749
    %v1768 = vunpack.c.l.b16 %v750
    %v1769 = vunpack.c.l.b16 %v751
    %v1770 = vunpack.c.l.b16 %v752
    %v1771 = vunpack.c.l.b16 %v753
    %v1772 = vunpack.c.l.b16 %v754
    %v1773 = vpack.c.b16 %v1758, %v1757
    %v1774 = vpack.c.b16 %v1760, %v1759
    %v1775 = vpack.c.b16 %v1762, %v1761
    %v1776 = vpack.c.b16 %v1764, %v1763
    %v1777 = vpack.c.b16 %v1766, %v1765
    %v1778 = vpack.c.b16 %v1768, %v1767
    %v1779 = vpack.c.b16 %v1770, %v1769
    %v1780 = vpack.c.b16 %v1772, %v1771
    %v1782 = vsel %vm233, %v1740, 0
    %v1785 = vsel %vm233, %v1773, 0
    %v1788 = vsel %vm233, %v1774, 0
    %v1791 = vsel %vm233, %v1775, 0
    %v1794 = vsel %vm233, %v1776, 0
    %v1797 = vsel %vm233, %v1777, 0
    %v1800 = vsel %vm233, %v1778, 0
    %v1803 = vsel %vm233, %v1779, 0
    %v1806 = vsel %vm233, %v1780, 0
    %1808 = vmatprep.subr.bf16.mxu0 0
    %1809 = vmatpush1.bf16.xpose.msra.mxu0 %v1785
    %1810 = vmatprep.subr.bf16.mxu0 0
    %1811 = vmatpush1.bf16.xpose.msra.mxu0 %v1788
    %1812 = vmatprep.subr.bf16.mxu0 0
    %1813 = vmatpush1.bf16.xpose.msra.mxu0 %v1791
    %1814 = vmatprep.subr.bf16.mxu0 0
    %1815 = vmatpush1.bf16.xpose.msra.mxu0 %v1794
    %1816 = vmatprep.subr.bf16.mxu0 0
    %1817 = vmatpush1.bf16.xpose.msra.mxu0 %v1797
    %1818 = vmatprep.subr.bf16.mxu0 0
    %1819 = vmatpush1.bf16.xpose.msra.mxu0 %v1800
    %1820 = vmatprep.subr.bf16.mxu0 0
    %1821 = vmatpush1.bf16.xpose.msra.mxu0 %v1803
    %1822 = vmatprep.subr.bf16.mxu0 0
    %1823 = vmatpush1.bf16.xpose.msra.mxu0 %v1806
    %1824 = vmatprep.subr.bf16.mxu0 0
    %1825 = vmatpush1.bf16.xpose.msra.mxu0 0
    %1826 = vmatprep.subr.bf16.mxu0 0
    %1827 = vmatpush1.bf16.xpose.msra.mxu0 0
    %1828 = vmatprep.subr.bf16.mxu0 0
    %1829 = vmatpush1.bf16.xpose.msra.mxu0 0
    %1830 = vmatprep.subr.bf16.mxu0 0
    %1831 = vmatpush1.bf16.xpose.msra.mxu0 0
    %1832 = vmatprep.subr.bf16.mxu0 0
    %1833 = vmatpush1.bf16.xpose.msra.mxu0 0
    %1834 = vmatprep.subr.bf16.mxu0 0
    %1835 = vmatpush1.bf16.xpose.msra.mxu0 0
    %1836 = vmatprep.subr.bf16.mxu0 0
    %1837 = vmatpush1.bf16.xpose.msra.mxu0 0
    %1838 = vmatprep.subr.bf16.mxu0 0
    %1839 = vmatpush1.bf16.xpose.msra.mxu0 0
    %1840 = vmatprep.mubr.bf16.mxu0 0
    %1841 = vmatmul.mubr.bf16.gmra.mrb[0].mxu0 %v1782
    %v1842 = vpop.f32.mrb[0].mxu0
    %v1843 = vadd.f32 0.0, %v1842
    %v1844 = vpop.f32.mrb[0].mxu0
    %v1845 = vpop.f32.mrb[0].mxu0
    %v1846 = vpop.f32.mrb[0].mxu0
    %1847 = vdwg.mxu0
    %1848 = vrot.lane.b32.xlu0 %v476, 64
    %v1849 = vpop.permute.xlu0 %1848
    %v1866 = vunpack.c.l.b16 %v755
    %v1867 = vunpack.c.l.b16 %v756
    %v1868 = vunpack.c.l.b16 %v757
    %v1869 = vunpack.c.l.b16 %v758
    %v1870 = vunpack.c.l.b16 %v759
    %v1871 = vunpack.c.l.b16 %v760
    %v1872 = vunpack.c.l.b16 %v761
    %v1873 = vunpack.c.l.b16 %v762
    %v1874 = vunpack.c.l.b16 %v763
    %v1875 = vunpack.c.l.b16 %v764
    %v1876 = vunpack.c.l.b16 %v765
    %v1877 = vunpack.c.l.b16 %v766
    %v1878 = vunpack.c.l.b16 %v767
    %v1879 = vunpack.c.l.b16 %v768
    %v1880 = vunpack.c.l.b16 %v769
    %v1881 = vunpack.c.l.b16 %v770
    %v1882 = vpack.c.b16 %v1867, %v1866
    %v1883 = vpack.c.b16 %v1869, %v1868
    %v1884 = vpack.c.b16 %v1871, %v1870
    %v1885 = vpack.c.b16 %v1873, %v1872
    %v1886 = vpack.c.b16 %v1875, %v1874
    %v1887 = vpack.c.b16 %v1877, %v1876
    %v1888 = vpack.c.b16 %v1879, %v1878
    %v1889 = vpack.c.b16 %v1881, %v1880
    %v1891 = vsel %vm233, %v1849, 0
    %v1894 = vsel %vm233, %v1882, 0
    %v1897 = vsel %vm233, %v1883, 0
    %v1900 = vsel %vm233, %v1884, 0
    %v1903 = vsel %vm233, %v1885, 0
    %v1906 = vsel %vm233, %v1886, 0
    %v1909 = vsel %vm233, %v1887, 0
    %v1912 = vsel %vm233, %v1888, 0
    %v1915 = vsel %vm233, %v1889, 0
    %1917 = vmatprep.subr.bf16.mxu0 0
    %1918 = vmatpush1.bf16.xpose.msra.mxu0 %v1894
    %1919 = vmatprep.subr.bf16.mxu0 0
    %1920 = vmatpush1.bf16.xpose.msra.mxu0 %v1897
    %1921 = vmatprep.subr.bf16.mxu0 0
    %1922 = vmatpush1.bf16.xpose.msra.mxu0 %v1900
    %1923 = vmatprep.subr.bf16.mxu0 0
    %1924 = vmatpush1.bf16.xpose.msra.mxu0 %v1903
    %1925 = vmatprep.subr.bf16.mxu0 0
    %1926 = vmatpush1.bf16.xpose.msra.mxu0 %v1906
    %1927 = vmatprep.subr.bf16.mxu0 0
    %1928 = vmatpush1.bf16.xpose.msra.mxu0 %v1909
    %1929 = vmatprep.subr.bf16.mxu0 0
    %1930 = vmatpush1.bf16.xpose.msra.mxu0 %v1912
    %1931 = vmatprep.subr.bf16.mxu0 0
    %1932 = vmatpush1.bf16.xpose.msra.mxu0 %v1915
    %1933 = vmatprep.subr.bf16.mxu0 0
    %1934 = vmatpush1.bf16.xpose.msra.mxu0 0
    %1935 = vmatprep.subr.bf16.mxu0 0
    %1936 = vmatpush1.bf16.xpose.msra.mxu0 0
    %1937 = vmatprep.subr.bf16.mxu0 0
    %1938 = vmatpush1.bf16.xpose.msra.mxu0 0
    %1939 = vmatprep.subr.bf16.mxu0 0
    %1940 = vmatpush1.bf16.xpose.msra.mxu0 0
    %1941 = vmatprep.subr.bf16.mxu0 0
    %1942 = vmatpush1.bf16.xpose.msra.mxu0 0
    %1943 = vmatprep.subr.bf16.mxu0 0
    %1944 = vmatpush1.bf16.xpose.msra.mxu0 0
    %1945 = vmatprep.subr.bf16.mxu0 0
    %1946 = vmatpush1.bf16.xpose.msra.mxu0 0
    %1947 = vmatprep.subr.bf16.mxu0 0
    %1948 = vmatpush1.bf16.xpose.msra.mxu0 0
    %1949 = vmatprep.mubr.bf16.mxu0 0
    %1950 = vmatmul.mubr.bf16.gmra.mrb[0].mxu0 %v1891
    %v1951 = vpop.f32.mrb[0].mxu0
    %v1952 = vadd.f32 0.0, %v1951
    %v1953 = vpop.f32.mrb[0].mxu0
    %v1954 = vpop.f32.mrb[0].mxu0
    %v1955 = vpop.f32.mrb[0].mxu0
    %1956 = vdwg.mxu0
    %1957 = vrot.lane.b32.xlu0 %v477, 64
    %v1958 = vpop.permute.xlu0 %1957
    %v1975 = vunpack.c.l.b16 %v771
    %v1976 = vunpack.c.l.b16 %v772
    %v1977 = vunpack.c.l.b16 %v773
    %v1978 = vunpack.c.l.b16 %v774
    %v1979 = vunpack.c.l.b16 %v775
    %v1980 = vunpack.c.l.b16 %v776
    %v1981 = vunpack.c.l.b16 %v777
    %v1982 = vunpack.c.l.b16 %v778
    %v1983 = vunpack.c.l.b16 %v779
    %v1984 = vunpack.c.l.b16 %v780
    %v1985 = vunpack.c.l.b16 %v781
    %v1986 = vunpack.c.l.b16 %v782
    %v1987 = vunpack.c.l.b16 %v783
    %v1988 = vunpack.c.l.b16 %v784
    %v1989 = vunpack.c.l.b16 %v785
    %v1990 = vunpack.c.l.b16 %v786
    %v1991 = vpack.c.b16 %v1976, %v1975
    %v1992 = vpack.c.b16 %v1978, %v1977
    %v1993 = vpack.c.b16 %v1980, %v1979
    %v1994 = vpack.c.b16 %v1982, %v1981
    %v1995 = vpack.c.b16 %v1984, %v1983
    %v1996 = vpack.c.b16 %v1986, %v1985
    %v1997 = vpack.c.b16 %v1988, %v1987
    %v1998 = vpack.c.b16 %v1990, %v1989
    %v2000 = vsel %vm233, %v1958, 0
    %v2003 = vsel %vm233, %v1991, 0
    %v2006 = vsel %vm233, %v1992, 0
    %v2009 = vsel %vm233, %v1993, 0
    %v2012 = vsel %vm233, %v1994, 0
    %v2015 = vsel %vm233, %v1995, 0
    %v2018 = vsel %vm233, %v1996, 0
    %v2021 = vsel %vm233, %v1997, 0
    %v2024 = vsel %vm233, %v1998, 0
    %2026 = vmatprep.subr.bf16.mxu0 0
    %2027 = vmatpush1.bf16.xpose.msra.mxu0 %v2003
    %2028 = vmatprep.subr.bf16.mxu0 0
    %2029 = vmatpush1.bf16.xpose.msra.mxu0 %v2006
    %2030 = vmatprep.subr.bf16.mxu0 0
    %2031 = vmatpush1.bf16.xpose.msra.mxu0 %v2009
    %2032 = vmatprep.subr.bf16.mxu0 0
    %2033 = vmatpush1.bf16.xpose.msra.mxu0 %v2012
    %2034 = vmatprep.subr.bf16.mxu0 0
    %2035 = vmatpush1.bf16.xpose.msra.mxu0 %v2015
    %2036 = vmatprep.subr.bf16.mxu0 0
    %2037 = vmatpush1.bf16.xpose.msra.mxu0 %v2018
    %2038 = vmatprep.subr.bf16.mxu0 0
    %2039 = vmatpush1.bf16.xpose.msra.mxu0 %v2021
    %2040 = vmatprep.subr.bf16.mxu0 0
    %2041 = vmatpush1.bf16.xpose.msra.mxu0 %v2024
    %2042 = vmatprep.subr.bf16.mxu0 0
    %2043 = vmatpush1.bf16.xpose.msra.mxu0 0
    %2044 = vmatprep.subr.bf16.mxu0 0
    %2045 = vmatpush1.bf16.xpose.msra.mxu0 0
    %2046 = vmatprep.subr.bf16.mxu0 0
    %2047 = vmatpush1.bf16.xpose.msra.mxu0 0
    %2048 = vmatprep.subr.bf16.mxu0 0
    %2049 = vmatpush1.bf16.xpose.msra.mxu0 0
    %2050 = vmatprep.subr.bf16.mxu0 0
    %2051 = vmatpush1.bf16.xpose.msra.mxu0 0
    %2052 = vmatprep.subr.bf16.mxu0 0
    %2053 = vmatpush1.bf16.xpose.msra.mxu0 0
    %2054 = vmatprep.subr.bf16.mxu0 0
    %2055 = vmatpush1.bf16.xpose.msra.mxu0 0
    %2056 = vmatprep.subr.bf16.mxu0 0
    %2057 = vmatpush1.bf16.xpose.msra.mxu0 0
    %2058 = vmatprep.mubr.bf16.mxu0 0
    %2059 = vmatmul.mubr.bf16.gmra.mrb[0].mxu0 %v2000
    %v2060 = vpop.f32.mrb[0].mxu0
    %v2061 = vadd.f32 0.0, %v2060
    %v2062 = vpop.f32.mrb[0].mxu0
    %v2063 = vpop.f32.mrb[0].mxu0
    %v2064 = vpop.f32.mrb[0].mxu0
    %2065 = vdwg.mxu0
    %2066 = vrot.lane.b32.xlu0 %v478, 64
    %v2067 = vpop.permute.xlu0 %2066
    %v2084 = vunpack.c.l.b16 %v787
    %v2085 = vunpack.c.l.b16 %v788
    %v2086 = vunpack.c.l.b16 %v789
    %v2087 = vunpack.c.l.b16 %v790
    %v2088 = vunpack.c.l.b16 %v791
    %v2089 = vunpack.c.l.b16 %v792
    %v2090 = vunpack.c.l.b16 %v793
    %v2091 = vunpack.c.l.b16 %v794
    %v2092 = vunpack.c.l.b16 %v795
    %v2093 = vunpack.c.l.b16 %v796
    %v2094 = vunpack.c.l.b16 %v797
    %v2095 = vunpack.c.l.b16 %v798
    %v2096 = vunpack.c.l.b16 %v799
    %v2097 = vunpack.c.l.b16 %v800
    %v2098 = vunpack.c.l.b16 %v801
    %v2099 = vunpack.c.l.b16 %v802
    %v2100 = vpack.c.b16 %v2085, %v2084
    %v2101 = vpack.c.b16 %v2087, %v2086
    %v2102 = vpack.c.b16 %v2089, %v2088
    %v2103 = vpack.c.b16 %v2091, %v2090
    %v2104 = vpack.c.b16 %v2093, %v2092
    %v2105 = vpack.c.b16 %v2095, %v2094
    %v2106 = vpack.c.b16 %v2097, %v2096
    %v2107 = vpack.c.b16 %v2099, %v2098
    %v2109 = vsel %vm233, %v2067, 0
    %v2112 = vsel %vm233, %v2100, 0
    %v2115 = vsel %vm233, %v2101, 0
    %v2118 = vsel %vm233, %v2102, 0
    %v2121 = vsel %vm233, %v2103, 0
    %v2124 = vsel %vm233, %v2104, 0
    %v2127 = vsel %vm233, %v2105, 0
    %v2130 = vsel %vm233, %v2106, 0
    %v2133 = vsel %vm233, %v2107, 0
    %2135 = vmatprep.subr.bf16.mxu0 0
    %2136 = vmatpush1.bf16.xpose.msra.mxu0 %v2112
    %2137 = vmatprep.subr.bf16.mxu0 0
    %2138 = vmatpush1.bf16.xpose.msra.mxu0 %v2115
    %2139 = vmatprep.subr.bf16.mxu0 0
    %2140 = vmatpush1.bf16.xpose.msra.mxu0 %v2118
    %2141 = vmatprep.subr.bf16.mxu0 0
    %2142 = vmatpush1.bf16.xpose.msra.mxu0 %v2121
    %2143 = vmatprep.subr.bf16.mxu0 0
    %2144 = vmatpush1.bf16.xpose.msra.mxu0 %v2124
    %2145 = vmatprep.subr.bf16.mxu0 0
    %2146 = vmatpush1.bf16.xpose.msra.mxu0 %v2127
    %2147 = vmatprep.subr.bf16.mxu0 0
    %2148 = vmatpush1.bf16.xpose.msra.mxu0 %v2130
    %2149 = vmatprep.subr.bf16.mxu0 0
    %2150 = vmatpush1.bf16.xpose.msra.mxu0 %v2133
    %2151 = vmatprep.subr.bf16.mxu0 0
    %2152 = vmatpush1.bf16.xpose.msra.mxu0 0
    %2153 = vmatprep.subr.bf16.mxu0 0
    %2154 = vmatpush1.bf16.xpose.msra.mxu0 0
    %2155 = vmatprep.subr.bf16.mxu0 0
    %2156 = vmatpush1.bf16.xpose.msra.mxu0 0
    %2157 = vmatprep.subr.bf16.mxu0 0
    %2158 = vmatpush1.bf16.xpose.msra.mxu0 0
    %2159 = vmatprep.subr.bf16.mxu0 0
    %2160 = vmatpush1.bf16.xpose.msra.mxu0 0
    %2161 = vmatprep.subr.bf16.mxu0 0
    %2162 = vmatpush1.bf16.xpose.msra.mxu0 0
    %2163 = vmatprep.subr.bf16.mxu0 0
    %2164 = vmatpush1.bf16.xpose.msra.mxu0 0
    %2165 = vmatprep.subr.bf16.mxu0 0
    %2166 = vmatpush1.bf16.xpose.msra.mxu0 0
    %2167 = vmatprep.mubr.bf16.mxu0 0
    %2168 = vmatmul.mubr.bf16.gmra.mrb[0].mxu0 %v2109
    %v2169 = vpop.f32.mrb[0].mxu0
    %v2170 = vadd.f32 0.0, %v2169
    %v2171 = vpop.f32.mrb[0].mxu0
    %v2172 = vpop.f32.mrb[0].mxu0
    %v2173 = vpop.f32.mrb[0].mxu0
    %2174 = vdwg.mxu0
    %2175 = vrot.lane.b32.xlu0 %v479, 64
    %v2176 = vpop.permute.xlu0 %2175
    %v2193 = vunpack.c.l.b16 %v803
    %v2194 = vunpack.c.l.b16 %v804
    %v2195 = vunpack.c.l.b16 %v805
    %v2196 = vunpack.c.l.b16 %v806
    %v2197 = vunpack.c.l.b16 %v807
    %v2198 = vunpack.c.l.b16 %v808
    %v2199 = vunpack.c.l.b16 %v809
    %v2200 = vunpack.c.l.b16 %v810
    %v2201 = vunpack.c.l.b16 %v811
    %v2202 = vunpack.c.l.b16 %v812
    %v2203 = vunpack.c.l.b16 %v813
    %v2204 = vunpack.c.l.b16 %v814
    %v2205 = vunpack.c.l.b16 %v815
    %v2206 = vunpack.c.l.b16 %v816
    %v2207 = vunpack.c.l.b16 %v817
    %v2208 = vunpack.c.l.b16 %v818
    %v2209 = vpack.c.b16 %v2194, %v2193
    %v2210 = vpack.c.b16 %v2196, %v2195
    %v2211 = vpack.c.b16 %v2198, %v2197
    %v2212 = vpack.c.b16 %v2200, %v2199
    %v2213 = vpack.c.b16 %v2202, %v2201
    %v2214 = vpack.c.b16 %v2204, %v2203
    %v2215 = vpack.c.b16 %v2206, %v2205
    %v2216 = vpack.c.b16 %v2208, %v2207
    %v2218 = vsel %vm233, %v2176, 0
    %v2221 = vsel %vm233, %v2209, 0
    %v2224 = vsel %vm233, %v2210, 0
    %v2227 = vsel %vm233, %v2211, 0
    %v2230 = vsel %vm233, %v2212, 0
    %v2233 = vsel %vm233, %v2213, 0
    %v2236 = vsel %vm233, %v2214, 0
    %v2239 = vsel %vm233, %v2215, 0
    %v2242 = vsel %vm233, %v2216, 0
    %2244 = vmatprep.subr.bf16.mxu0 0
    %2245 = vmatpush1.bf16.xpose.msra.mxu0 %v2221
    %2246 = vmatprep.subr.bf16.mxu0 0
    %2247 = vmatpush1.bf16.xpose.msra.mxu0 %v2224
    %2248 = vmatprep.subr.bf16.mxu0 0
    %2249 = vmatpush1.bf16.xpose.msra.mxu0 %v2227
    %2250 = vmatprep.subr.bf16.mxu0 0
    %2251 = vmatpush1.bf16.xpose.msra.mxu0 %v2230
    %2252 = vmatprep.subr.bf16.mxu0 0
    %2253 = vmatpush1.bf16.xpose.msra.mxu0 %v2233
    %2254 = vmatprep.subr.bf16.mxu0 0
    %2255 = vmatpush1.bf16.xpose.msra.mxu0 %v2236
    %2256 = vmatprep.subr.bf16.mxu0 0
    %2257 = vmatpush1.bf16.xpose.msra.mxu0 %v2239
    %2258 = vmatprep.subr.bf16.mxu0 0
    %2259 = vmatpush1.bf16.xpose.msra.mxu0 %v2242
    %2260 = vmatprep.subr.bf16.mxu0 0
    %2261 = vmatpush1.bf16.xpose.msra.mxu0 0
    %2262 = vmatprep.subr.bf16.mxu0 0
    %2263 = vmatpush1.bf16.xpose.msra.mxu0 0
    %2264 = vmatprep.subr.bf16.mxu0 0
    %2265 = vmatpush1.bf16.xpose.msra.mxu0 0
    %2266 = vmatprep.subr.bf16.mxu0 0
    %2267 = vmatpush1.bf16.xpose.msra.mxu0 0
    %2268 = vmatprep.subr.bf16.mxu0 0
    %2269 = vmatpush1.bf16.xpose.msra.mxu0 0
    %2270 = vmatprep.subr.bf16.mxu0 0
    %2271 = vmatpush1.bf16.xpose.msra.mxu0 0
    %2272 = vmatprep.subr.bf16.mxu0 0
    %2273 = vmatpush1.bf16.xpose.msra.mxu0 0
    %2274 = vmatprep.subr.bf16.mxu0 0
    %2275 = vmatpush1.bf16.xpose.msra.mxu0 0
    %2276 = vmatprep.mubr.bf16.mxu0 0
    %2277 = vmatmul.mubr.bf16.gmra.mrb[0].mxu0 %v2218
    %v2278 = vpop.f32.mrb[0].mxu0
    %v2279 = vadd.f32 0.0, %v2278
    %v2280 = vpop.f32.mrb[0].mxu0
    %v2281 = vpop.f32.mrb[0].mxu0
    %v2282 = vpop.f32.mrb[0].mxu0
    %2283 = vdwg.mxu0
    %2284 = vrot.lane.b32.xlu0 %v480, 64
    %v2285 = vpop.permute.xlu0 %2284
    %v2302 = vunpack.c.l.b16 %v819
    %v2303 = vunpack.c.l.b16 %v820
    %v2304 = vunpack.c.l.b16 %v821
    %v2305 = vunpack.c.l.b16 %v822
    %v2306 = vunpack.c.l.b16 %v823
    %v2307 = vunpack.c.l.b16 %v824
    %v2308 = vunpack.c.l.b16 %v825
    %v2309 = vunpack.c.l.b16 %v826
    %v2310 = vunpack.c.l.b16 %v827
    %v2311 = vunpack.c.l.b16 %v828
    %v2312 = vunpack.c.l.b16 %v829
    %v2313 = vunpack.c.l.b16 %v830
    %v2314 = vunpack.c.l.b16 %v831
    %v2315 = vunpack.c.l.b16 %v832
    %v2316 = vunpack.c.l.b16 %v833
    %v2317 = vunpack.c.l.b16 %v834
    %v2318 = vpack.c.b16 %v2303, %v2302
    %v2319 = vpack.c.b16 %v2305, %v2304
    %v2320 = vpack.c.b16 %v2307, %v2306
    %v2321 = vpack.c.b16 %v2309, %v2308
    %v2322 = vpack.c.b16 %v2311, %v2310
    %v2323 = vpack.c.b16 %v2313, %v2312
    %v2324 = vpack.c.b16 %v2315, %v2314
    %v2325 = vpack.c.b16 %v2317, %v2316
    %v2327 = vsel %vm233, %v2285, 0
    %v2330 = vsel %vm233, %v2318, 0
    %v2333 = vsel %vm233, %v2319, 0
    %v2336 = vsel %vm233, %v2320, 0
    %v2339 = vsel %vm233, %v2321, 0
    %v2342 = vsel %vm233, %v2322, 0
    %v2345 = vsel %vm233, %v2323, 0
    %v2348 = vsel %vm233, %v2324, 0
    %v2351 = vsel %vm233, %v2325, 0
    %2353 = vmatprep.subr.bf16.mxu0 0
    %2354 = vmatpush1.bf16.xpose.msra.mxu0 %v2330
    %2355 = vmatprep.subr.bf16.mxu0 0
    %2356 = vmatpush1.bf16.xpose.msra.mxu0 %v2333
    %2357 = vmatprep.subr.bf16.mxu0 0
    %2358 = vmatpush1.bf16.xpose.msra.mxu0 %v2336
    %2359 = vmatprep.subr.bf16.mxu0 0
    %2360 = vmatpush1.bf16.xpose.msra.mxu0 %v2339
    %2361 = vmatprep.subr.bf16.mxu0 0
    %2362 = vmatpush1.bf16.xpose.msra.mxu0 %v2342
    %2363 = vmatprep.subr.bf16.mxu0 0
    %2364 = vmatpush1.bf16.xpose.msra.mxu0 %v2345
    %2365 = vmatprep.subr.bf16.mxu0 0
    %2366 = vmatpush1.bf16.xpose.msra.mxu0 %v2348
    %2367 = vmatprep.subr.bf16.mxu0 0
    %2368 = vmatpush1.bf16.xpose.msra.mxu0 %v2351
    %2369 = vmatprep.subr.bf16.mxu0 0
    %2370 = vmatpush1.bf16.xpose.msra.mxu0 0
    %2371 = vmatprep.subr.bf16.mxu0 0
    %2372 = vmatpush1.bf16.xpose.msra.mxu0 0
    %2373 = vmatprep.subr.bf16.mxu0 0
    %2374 = vmatpush1.bf16.xpose.msra.mxu0 0
    %2375 = vmatprep.subr.bf16.mxu0 0
    %2376 = vmatpush1.bf16.xpose.msra.mxu0 0
    %2377 = vmatprep.subr.bf16.mxu0 0
    %2378 = vmatpush1.bf16.xpose.msra.mxu0 0
    %2379 = vmatprep.subr.bf16.mxu0 0
    %2380 = vmatpush1.bf16.xpose.msra.mxu0 0
    %2381 = vmatprep.subr.bf16.mxu0 0
    %2382 = vmatpush1.bf16.xpose.msra.mxu0 0
    %2383 = vmatprep.subr.bf16.mxu0 0
    %2384 = vmatpush1.bf16.xpose.msra.mxu0 0
    %2385 = vmatprep.mubr.bf16.mxu0 0
    %2386 = vmatmul.mubr.bf16.gmra.mrb[0].mxu0 %v2327
    %v2387 = vpop.f32.mrb[0].mxu0
    %v2388 = vadd.f32 0.0, %v2387
    %v2389 = vpop.f32.mrb[0].mxu0
    %v2390 = vpop.f32.mrb[0].mxu0
    %v2391 = vpop.f32.mrb[0].mxu0
    %2392 = vdwg.mxu0
    %2393 = vrot.lane.b32.xlu0 %v481, 64
    %v2394 = vpop.permute.xlu0 %2393
    %v2411 = vunpack.c.l.b16 %v835
    %v2412 = vunpack.c.l.b16 %v836
    %v2413 = vunpack.c.l.b16 %v837
    %v2414 = vunpack.c.l.b16 %v838
    %v2415 = vunpack.c.l.b16 %v839
    %v2416 = vunpack.c.l.b16 %v840
    %v2417 = vunpack.c.l.b16 %v841
    %v2418 = vunpack.c.l.b16 %v842
    %v2419 = vunpack.c.l.b16 %v843
    %v2420 = vunpack.c.l.b16 %v844
    %v2421 = vunpack.c.l.b16 %v845
    %v2422 = vunpack.c.l.b16 %v846
    %v2423 = vunpack.c.l.b16 %v847
    %v2424 = vunpack.c.l.b16 %v848
    %v2425 = vunpack.c.l.b16 %v849
    %v2426 = vunpack.c.l.b16 %v850
    %v2427 = vpack.c.b16 %v2412, %v2411
    %v2428 = vpack.c.b16 %v2414, %v2413
    %v2429 = vpack.c.b16 %v2416, %v2415
    %v2430 = vpack.c.b16 %v2418, %v2417
    %v2431 = vpack.c.b16 %v2420, %v2419
    %v2432 = vpack.c.b16 %v2422, %v2421
    %v2433 = vpack.c.b16 %v2424, %v2423
    %v2434 = vpack.c.b16 %v2426, %v2425
    %v2436 = vsel %vm233, %v2394, 0
    %v2439 = vsel %vm233, %v2427, 0
    %v2442 = vsel %vm233, %v2428, 0
    %v2445 = vsel %vm233, %v2429, 0
    %v2448 = vsel %vm233, %v2430, 0
    %v2451 = vsel %vm233, %v2431, 0
    %v2454 = vsel %vm233, %v2432, 0
    %v2457 = vsel %vm233, %v2433, 0
    %v2460 = vsel %vm233, %v2434, 0
    %2462 = vmatprep.subr.bf16.mxu0 0
    %2463 = vmatpush1.bf16.xpose.msra.mxu0 %v2439
    %2464 = vmatprep.subr.bf16.mxu0 0
    %2465 = vmatpush1.bf16.xpose.msra.mxu0 %v2442
    %2466 = vmatprep.subr.bf16.mxu0 0
    %2467 = vmatpush1.bf16.xpose.msra.mxu0 %v2445
    %2468 = vmatprep.subr.bf16.mxu0 0
    %2469 = vmatpush1.bf16.xpose.msra.mxu0 %v2448
    %2470 = vmatprep.subr.bf16.mxu0 0
    %2471 = vmatpush1.bf16.xpose.msra.mxu0 %v2451
    %2472 = vmatprep.subr.bf16.mxu0 0
    %2473 = vmatpush1.bf16.xpose.msra.mxu0 %v2454
    %2474 = vmatprep.subr.bf16.mxu0 0
    %2475 = vmatpush1.bf16.xpose.msra.mxu0 %v2457
    %2476 = vmatprep.subr.bf16.mxu0 0
    %2477 = vmatpush1.bf16.xpose.msra.mxu0 %v2460
    %2478 = vmatprep.subr.bf16.mxu0 0
    %2479 = vmatpush1.bf16.xpose.msra.mxu0 0
    %2480 = vmatprep.subr.bf16.mxu0 0
    %2481 = vmatpush1.bf16.xpose.msra.mxu0 0
    %2482 = vmatprep.subr.bf16.mxu0 0
    %2483 = vmatpush1.bf16.xpose.msra.mxu0 0
    %2484 = vmatprep.subr.bf16.mxu0 0
    %2485 = vmatpush1.bf16.xpose.msra.mxu0 0
    %2486 = vmatprep.subr.bf16.mxu0 0
    %2487 = vmatpush1.bf16.xpose.msra.mxu0 0
    %2488 = vmatprep.subr.bf16.mxu0 0
    %2489 = vmatpush1.bf16.xpose.msra.mxu0 0
    %2490 = vmatprep.subr.bf16.mxu0 0
    %2491 = vmatpush1.bf16.xpose.msra.mxu0 0
    %2492 = vmatprep.subr.bf16.mxu0 0
    %2493 = vmatpush1.bf16.xpose.msra.mxu0 0
    %2494 = vmatprep.mubr.bf16.mxu0 0
    %2495 = vmatmul.mubr.bf16.gmra.mrb[0].mxu0 %v2436
    %v2496 = vpop.f32.mrb[0].mxu0
    %v2497 = vadd.f32 0.0, %v2496
    %v2498 = vpop.f32.mrb[0].mxu0
    %v2499 = vpop.f32.mrb[0].mxu0
    %v2500 = vpop.f32.mrb[0].mxu0
    %2501 = vdwg.mxu0
    %2502 = vrot.lane.b32.xlu0 %v482, 64
    %v2503 = vpop.permute.xlu0 %2502
    %v2520 = vunpack.c.l.b16 %v851
    %v2521 = vunpack.c.l.b16 %v852
    %v2522 = vunpack.c.l.b16 %v853
    %v2523 = vunpack.c.l.b16 %v854
    %v2524 = vunpack.c.l.b16 %v855
    %v2525 = vunpack.c.l.b16 %v856
    %v2526 = vunpack.c.l.b16 %v857
    %v2527 = vunpack.c.l.b16 %v858
    %v2528 = vunpack.c.l.b16 %v859
    %v2529 = vunpack.c.l.b16 %v860
    %v2530 = vunpack.c.l.b16 %v861
    %v2531 = vunpack.c.l.b16 %v862
    %v2532 = vunpack.c.l.b16 %v863
    %v2533 = vunpack.c.l.b16 %v864
    %v2534 = vunpack.c.l.b16 %v865
    %v2535 = vunpack.c.l.b16 %v866
    %v2536 = vpack.c.b16 %v2521, %v2520
    %v2537 = vpack.c.b16 %v2523, %v2522
    %v2538 = vpack.c.b16 %v2525, %v2524
    %v2539 = vpack.c.b16 %v2527, %v2526
    %v2540 = vpack.c.b16 %v2529, %v2528
    %v2541 = vpack.c.b16 %v2531, %v2530
    %v2542 = vpack.c.b16 %v2533, %v2532
    %v2543 = vpack.c.b16 %v2535, %v2534
    %v2545 = vsel %vm233, %v2503, 0
    %v2548 = vsel %vm233, %v2536, 0
    %v2551 = vsel %vm233, %v2537, 0
    %v2554 = vsel %vm233, %v2538, 0
    %v2557 = vsel %vm233, %v2539, 0
    %v2560 = vsel %vm233, %v2540, 0
    %v2563 = vsel %vm233, %v2541, 0
    %v2566 = vsel %vm233, %v2542, 0
    %v2569 = vsel %vm233, %v2543, 0
    %2571 = vmatprep.subr.bf16.mxu0 0
    %2572 = vmatpush1.bf16.xpose.msra.mxu0 %v2548
    %2573 = vmatprep.subr.bf16.mxu0 0
    %2574 = vmatpush1.bf16.xpose.msra.mxu0 %v2551
    %2575 = vmatprep.subr.bf16.mxu0 0
    %2576 = vmatpush1.bf16.xpose.msra.mxu0 %v2554
    %2577 = vmatprep.subr.bf16.mxu0 0
    %2578 = vmatpush1.bf16.xpose.msra.mxu0 %v2557
    %2579 = vmatprep.subr.bf16.mxu0 0
    %2580 = vmatpush1.bf16.xpose.msra.mxu0 %v2560
    %2581 = vmatprep.subr.bf16.mxu0 0
    %2582 = vmatpush1.bf16.xpose.msra.mxu0 %v2563
    %2583 = vmatprep.subr.bf16.mxu0 0
    %2584 = vmatpush1.bf16.xpose.msra.mxu0 %v2566
    %2585 = vmatprep.subr.bf16.mxu0 0
    %2586 = vmatpush1.bf16.xpose.msra.mxu0 %v2569
    %2587 = vmatprep.subr.bf16.mxu0 0
    %2588 = vmatpush1.bf16.xpose.msra.mxu0 0
    %2589 = vmatprep.subr.bf16.mxu0 0
    %2590 = vmatpush1.bf16.xpose.msra.mxu0 0
    %2591 = vmatprep.subr.bf16.mxu0 0
    %2592 = vmatpush1.bf16.xpose.msra.mxu0 0
    %2593 = vmatprep.subr.bf16.mxu0 0
    %2594 = vmatpush1.bf16.xpose.msra.mxu0 0
    %2595 = vmatprep.subr.bf16.mxu0 0
    %2596 = vmatpush1.bf16.xpose.msra.mxu0 0
    %2597 = vmatprep.subr.bf16.mxu0 0
    %2598 = vmatpush1.bf16.xpose.msra.mxu0 0
    %2599 = vmatprep.subr.bf16.mxu0 0
    %2600 = vmatpush1.bf16.xpose.msra.mxu0 0
    %2601 = vmatprep.subr.bf16.mxu0 0
    %2602 = vmatpush1.bf16.xpose.msra.mxu0 0
    %2603 = vmatprep.mubr.bf16.mxu0 0
    %2604 = vmatmul.mubr.bf16.gmra.mrb[0].mxu0 %v2545
    %v2605 = vpop.f32.mrb[0].mxu0
    %v2606 = vadd.f32 0.0, %v2605
    %v2607 = vpop.f32.mrb[0].mxu0
    %v2608 = vpop.f32.mrb[0].mxu0
    %v2609 = vpop.f32.mrb[0].mxu0
    %2610 = vdwg.mxu0
    %v2611 = vrot.slane %v971, 4
    %v2612 = vmax.f32 %v971, %v2611
    %v2613 = vrot.slane %v2612, 2
    %v2614 = vmax.f32 %v2612, %v2613
    %v2615 = vrot.slane %v2614, 1
    %v2616 = vmax.f32 %v2614, %v2615
    %v2617 = vrot.slane %v1080, 4
    %v2618 = vmax.f32 %v1080, %v2617
    %v2619 = vrot.slane %v2618, 2
    %v2620 = vmax.f32 %v2618, %v2619
    %v2621 = vrot.slane %v2620, 1
    %v2622 = vmax.f32 %v2620, %v2621
    %v2623 = vrot.slane %v1189, 4
    %v2624 = vmax.f32 %v1189, %v2623
    %v2625 = vrot.slane %v2624, 2
    %v2626 = vmax.f32 %v2624, %v2625
    %v2627 = vrot.slane %v2626, 1
    %v2628 = vmax.f32 %v2626, %v2627
    %v2629 = vrot.slane %v1298, 4
    %v2630 = vmax.f32 %v1298, %v2629
    %v2631 = vrot.slane %v2630, 2
    %v2632 = vmax.f32 %v2630, %v2631
    %v2633 = vrot.slane %v2632, 1
    %v2634 = vmax.f32 %v2632, %v2633
    %v2635 = vrot.slane %v1407, 4
    %v2636 = vmax.f32 %v1407, %v2635
    %v2637 = vrot.slane %v2636, 2
    %v2638 = vmax.f32 %v2636, %v2637
    %v2639 = vrot.slane %v2638, 1
    %v2640 = vmax.f32 %v2638, %v2639
    %v2641 = vrot.slane %v1516, 4
    %v2642 = vmax.f32 %v1516, %v2641
    %v2643 = vrot.slane %v2642, 2
    %v2644 = vmax.f32 %v2642, %v2643
    %v2645 = vrot.slane %v2644, 1
    %v2646 = vmax.f32 %v2644, %v2645
    %v2647 = vrot.slane %v1625, 4
    %v2648 = vmax.f32 %v1625, %v2647
    %v2649 = vrot.slane %v2648, 2
    %v2650 = vmax.f32 %v2648, %v2649
    %v2651 = vrot.slane %v2650, 1
    %v2652 = vmax.f32 %v2650, %v2651
    %v2653 = vrot.slane %v1734, 4
    %v2654 = vmax.f32 %v1734, %v2653
    %v2655 = vrot.slane %v2654, 2
    %v2656 = vmax.f32 %v2654, %v2655
    %v2657 = vrot.slane %v2656, 1
    %v2658 = vmax.f32 %v2656, %v2657
    %v2659 = vrot.slane %v1843, 4
    %v2660 = vmax.f32 %v1843, %v2659
    %v2661 = vrot.slane %v2660, 2
    %v2662 = vmax.f32 %v2660, %v2661
    %v2663 = vrot.slane %v2662, 1
    %v2664 = vmax.f32 %v2662, %v2663
    %v2665 = vrot.slane %v1952, 4
    %v2666 = vmax.f32 %v1952, %v2665
    %v2667 = vrot.slane %v2666, 2
    %v2668 = vmax.f32 %v2666, %v2667
    %v2669 = vrot.slane %v2668, 1
    %v2670 = vmax.f32 %v2668, %v2669
    %v2671 = vrot.slane %v2061, 4
    %v2672 = vmax.f32 %v2061, %v2671
    %v2673 = vrot.slane %v2672, 2
    %v2674 = vmax.f32 %v2672, %v2673
    %v2675 = vrot.slane %v2674, 1
    %v2676 = vmax.f32 %v2674, %v2675
    %v2677 = vrot.slane %v2170, 4
    %v2678 = vmax.f32 %v2170, %v2677
    %v2679 = vrot.slane %v2678, 2
    %v2680 = vmax.f32 %v2678, %v2679
    %v2681 = vrot.slane %v2680, 1
    %v2682 = vmax.f32 %v2680, %v2681
    %v2683 = vrot.slane %v2279, 4
    %v2684 = vmax.f32 %v2279, %v2683
    %v2685 = vrot.slane %v2684, 2
    %v2686 = vmax.f32 %v2684, %v2685
    %v2687 = vrot.slane %v2686, 1
    %v2688 = vmax.f32 %v2686, %v2687
    %v2689 = vrot.slane %v2388, 4
    %v2690 = vmax.f32 %v2388, %v2689
    %v2691 = vrot.slane %v2690, 2
    %v2692 = vmax.f32 %v2690, %v2691
    %v2693 = vrot.slane %v2692, 1
    %v2694 = vmax.f32 %v2692, %v2693
    %v2695 = vrot.slane %v2497, 4
    %v2696 = vmax.f32 %v2497, %v2695
    %v2697 = vrot.slane %v2696, 2
    %v2698 = vmax.f32 %v2696, %v2697
    %v2699 = vrot.slane %v2698, 1
    %v2700 = vmax.f32 %v2698, %v2699
    %v2701 = vrot.slane %v2606, 4
    %v2702 = vmax.f32 %v2606, %v2701
    %v2703 = vrot.slane %v2702, 2
    %v2704 = vmax.f32 %v2702, %v2703
    %v2705 = vrot.slane %v2704, 1
    %v2706 = vmax.f32 %v2704, %v2705
    %v2707 = vsub.f32 %v971, %v2616
    %v2708 = vsub.f32 %v1080, %v2622
    %v2709 = vsub.f32 %v1189, %v2628
    %v2710 = vsub.f32 %v1298, %v2634
    %v2711 = vsub.f32 %v1407, %v2640
    %v2712 = vsub.f32 %v1516, %v2646
    %v2713 = vsub.f32 %v1625, %v2652
    %v2714 = vsub.f32 %v1734, %v2658
    %v2715 = vsub.f32 %v1843, %v2664
    %v2716 = vsub.f32 %v1952, %v2670
    %v2717 = vsub.f32 %v2061, %v2676
    %v2718 = vsub.f32 %v2170, %v2682
    %v2719 = vsub.f32 %v2279, %v2688
    %v2720 = vsub.f32 %v2388, %v2694
    %v2721 = vsub.f32 %v2497, %v2700
    %v2722 = vsub.f32 %v2606, %v2706
    %v2723 = vmul.f32 %v2707, 1.442695
    %v2724 = vpow.pop %v2723
    %v2725 = vmul.f32 %v2708, 1.442695
    %v2726 = vpow.pop %v2725
    %v2727 = vmul.f32 %v2709, 1.442695
    %v2728 = vpow.pop %v2727
    %v2729 = vmul.f32 %v2710, 1.442695
    %v2730 = vpow.pop %v2729
    %v2731 = vmul.f32 %v2711, 1.442695
    %v2732 = vpow.pop %v2731
    %v2733 = vmul.f32 %v2712, 1.442695
    %v2734 = vpow.pop %v2733
    %v2735 = vmul.f32 %v2713, 1.442695
    %v2736 = vpow.pop %v2735
    %v2737 = vmul.f32 %v2714, 1.442695
    %v2738 = vpow.pop %v2737
    %v2739 = vmul.f32 %v2715, 1.442695
    %v2740 = vpow.pop %v2739
    %v2741 = vmul.f32 %v2716, 1.442695
    %v2742 = vpow.pop %v2741
    %v2743 = vmul.f32 %v2717, 1.442695
    %v2744 = vpow.pop %v2743
    %v2745 = vmul.f32 %v2718, 1.442695
    %v2746 = vpow.pop %v2745
    %v2747 = vmul.f32 %v2719, 1.442695
    %v2748 = vpow.pop %v2747
    %v2749 = vmul.f32 %v2720, 1.442695
    %v2750 = vpow.pop %v2749
    %v2751 = vmul.f32 %v2721, 1.442695
    %v2752 = vpow.pop %v2751
    %v2753 = vmul.f32 %v2722, 1.442695
    %v2754 = vpow.pop %v2753
    %v2755 = vrot.slane %v2724, 4
    %v2756 = vadd.f32 %v2724, %v2755
    %v2757 = vrot.slane %v2756, 2
    %v2758 = vadd.f32 %v2756, %v2757
    %v2759 = vrot.slane %v2758, 1
    %v2760 = vadd.f32 %v2758, %v2759
    %v2761 = vrot.slane %v2726, 4
    %v2762 = vadd.f32 %v2726, %v2761
    %v2763 = vrot.slane %v2762, 2
    %v2764 = vadd.f32 %v2762, %v2763
    %v2765 = vrot.slane %v2764, 1
    %v2766 = vadd.f32 %v2764, %v2765
    %v2767 = vrot.slane %v2728, 4
    %v2768 = vadd.f32 %v2728, %v2767
    %v2769 = vrot.slane %v2768, 2
    %v2770 = vadd.f32 %v2768, %v2769
    %v2771 = vrot.slane %v2770, 1
    %v2772 = vadd.f32 %v2770, %v2771
    %v2773 = vrot.slane %v2730, 4
    %v2774 = vadd.f32 %v2730, %v2773
    %v2775 = vrot.slane %v2774, 2
    %v2776 = vadd.f32 %v2774, %v2775
    %v2777 = vrot.slane %v2776, 1
    %v2778 = vadd.f32 %v2776, %v2777
    %v2779 = vrot.slane %v2732, 4
    %v2780 = vadd.f32 %v2732, %v2779
    %v2781 = vrot.slane %v2780, 2
    %v2782 = vadd.f32 %v2780, %v2781
    %v2783 = vrot.slane %v2782, 1
    %v2784 = vadd.f32 %v2782, %v2783
    %v2785 = vrot.slane %v2734, 4
    %v2786 = vadd.f32 %v2734, %v2785
    %v2787 = vrot.slane %v2786, 2
    %v2788 = vadd.f32 %v2786, %v2787
    %v2789 = vrot.slane %v2788, 1
    %v2790 = vadd.f32 %v2788, %v2789
    %v2791 = vrot.slane %v2736, 4
    %v2792 = vadd.f32 %v2736, %v2791
    %v2793 = vrot.slane %v2792, 2
    %v2794 = vadd.f32 %v2792, %v2793
    %v2795 = vrot.slane %v2794, 1
    %v2796 = vadd.f32 %v2794, %v2795
    %v2797 = vrot.slane %v2738, 4
    %v2798 = vadd.f32 %v2738, %v2797
    %v2799 = vrot.slane %v2798, 2
    %v2800 = vadd.f32 %v2798, %v2799
    %v2801 = vrot.slane %v2800, 1
    %v2802 = vadd.f32 %v2800, %v2801
    %v2803 = vrot.slane %v2740, 4
    %v2804 = vadd.f32 %v2740, %v2803
    %v2805 = vrot.slane %v2804, 2
    %v2806 = vadd.f32 %v2804, %v2805
    %v2807 = vrot.slane %v2806, 1
    %v2808 = vadd.f32 %v2806, %v2807
    %v2809 = vrot.slane %v2742, 4
    %v2810 = vadd.f32 %v2742, %v2809
    %v2811 = vrot.slane %v2810, 2
    %v2812 = vadd.f32 %v2810, %v2811
    %v2813 = vrot.slane %v2812, 1
    %v2814 = vadd.f32 %v2812, %v2813
    %v2815 = vrot.slane %v2744, 4
    %v2816 = vadd.f32 %v2744, %v2815
    %v2817 = vrot.slane %v2816, 2
    %v2818 = vadd.f32 %v2816, %v2817
    %v2819 = vrot.slane %v2818, 1
    %v2820 = vadd.f32 %v2818, %v2819
    %v2821 = vrot.slane %v2746, 4
    %v2822 = vadd.f32 %v2746, %v2821
    %v2823 = vrot.slane %v2822, 2
    %v2824 = vadd.f32 %v2822, %v2823
    %v2825 = vrot.slane %v2824, 1
    %v2826 = vadd.f32 %v2824, %v2825
    %v2827 = vrot.slane %v2748, 4
    %v2828 = vadd.f32 %v2748, %v2827
    %v2829 = vrot.slane %v2828, 2
    %v2830 = vadd.f32 %v2828, %v2829
    %v2831 = vrot.slane %v2830, 1
    %v2832 = vadd.f32 %v2830, %v2831
    %v2833 = vrot.slane %v2750, 4
    %v2834 = vadd.f32 %v2750, %v2833
    %v2835 = vrot.slane %v2834, 2
    %v2836 = vadd.f32 %v2834, %v2835
    %v2837 = vrot.slane %v2836, 1
    %v2838 = vadd.f32 %v2836, %v2837
    %v2839 = vrot.slane %v2752, 4
    %v2840 = vadd.f32 %v2752, %v2839
    %v2841 = vrot.slane %v2840, 2
    %v2842 = vadd.f32 %v2840, %v2841
    %v2843 = vrot.slane %v2842, 1
    %v2844 = vadd.f32 %v2842, %v2843
    %v2845 = vrot.slane %v2754, 4
    %v2846 = vadd.f32 %v2754, %v2845
    %v2847 = vrot.slane %v2846, 2
    %v2848 = vadd.f32 %v2846, %v2847
    %v2849 = vrot.slane %v2848, 1
    %v2850 = vadd.f32 %v2848, %v2849
    %v2851 = vrcp.pop %v2760
    %v2852 = vrcp.pop %v2766
    %v2853 = vrcp.pop %v2772
    %v2854 = vrcp.pop %v2778
    %v2855 = vrcp.pop %v2784
    %v2856 = vrcp.pop %v2790
    %v2857 = vrcp.pop %v2796
    %v2858 = vrcp.pop %v2802
    %v2859 = vrcp.pop %v2808
    %v2860 = vrcp.pop %v2814
    %v2861 = vrcp.pop %v2820
    %v2862 = vrcp.pop %v2826
    %v2863 = vrcp.pop %v2832
    %v2864 = vrcp.pop %v2838
    %v2865 = vrcp.pop %v2844
    %v2866 = vrcp.pop %v2850
    %v2867 = vmul.f32 %v2724, %v2851
    %v2868 = vmul.f32 %v2726, %v2852
    %v2869 = vmul.f32 %v2728, %v2853
    %v2870 = vmul.f32 %v2730, %v2854
    %v2871 = vmul.f32 %v2732, %v2855
    %v2872 = vmul.f32 %v2734, %v2856
    %v2873 = vmul.f32 %v2736, %v2857
    %v2874 = vmul.f32 %v2738, %v2858
    %v2875 = vmul.f32 %v2740, %v2859
    %v2876 = vmul.f32 %v2742, %v2860
    %v2877 = vmul.f32 %v2744, %v2861
    %v2878 = vmul.f32 %v2746, %v2862
    %v2879 = vmul.f32 %v2748, %v2863
    %v2880 = vmul.f32 %v2750, %v2864
    %v2881 = vmul.f32 %v2752, %v2865
    %v2882 = vmul.f32 %v2754, %v2866
    %v2883 = vpack.c.bf16 %v2867, %v2867
    %v2884 = vpack.c.bf16 %v2868, %v2868
    %v2885 = vpack.c.bf16 %v2869, %v2869
    %v2886 = vpack.c.bf16 %v2870, %v2870
    %v2887 = vpack.c.bf16 %v2871, %v2871
    %v2888 = vpack.c.bf16 %v2872, %v2872
    %v2889 = vpack.c.bf16 %v2873, %v2873
    %v2890 = vpack.c.bf16 %v2874, %v2874
    %v2891 = vpack.c.bf16 %v2875, %v2875
    %v2892 = vpack.c.bf16 %v2876, %v2876
    %v2893 = vpack.c.bf16 %v2877, %v2877
    %v2894 = vpack.c.bf16 %v2878, %v2878
    %v2895 = vpack.c.bf16 %v2879, %v2879
    %v2896 = vpack.c.bf16 %v2880, %v2880
    %v2897 = vpack.c.bf16 %v2881, %v2881
    %v2898 = vpack.c.bf16 %v2882, %v2882
    %2899 = vxpose.xlu0.c.b16.start [1/8] %v2883, 128
    %2900 = vxpose.xlu0.c.b16.cont [2/8] 0, 128
    %2901 = vxpose.xlu0.c.b16.cont [3/8] 0, 128
    %2902 = vxpose.xlu0.c.b16.cont [4/8] 0, 128
    %2903 = vxpose.xlu0.c.b16.cont [5/8] 0, 128
    %2904 = vxpose.xlu0.c.b16.cont [6/8] 0, 128
    %2905 = vxpose.xlu0.c.b16.cont [7/8] 0, 128
    %2906 = vxpose.xlu0.c.b16.end [8/8] 0, 128
    %v2907 = vpop.trf.xlu0
    %v2908 = vpop.trf.xlu0
    %v2909 = vpop.trf.xlu0
    %v2910 = vpop.trf.xlu0
    %v2911 = vpop.trf.xlu0
    %v2912 = vpop.trf.xlu0
    %v2913 = vpop.trf.xlu0
    %v2914 = vpop.trf.xlu0
    %vm2915 = vcmask 64512
    %v2917 = vsel %vm2915, %v2907, 0
    %v2920 = vsel %vm2915, %v2908, 0
    %v2923 = vsel %vm2915, %v2909, 0
    %v2926 = vsel %vm2915, %v2910, 0
    %v2929 = vsel %vm2915, %v2911, 0
    %v2932 = vsel %vm2915, %v2912, 0
    %v2935 = vsel %vm2915, %v2913, 0
    %v2938 = vsel %vm2915, %v2914, 0
    %vm2940 = vcmask 1043456
    %v2942 = vsel %vm2940, %v435, 0
    %2944 = vmatprep.subr.bf16.mxu0 0
    %2945 = vmatpush1.bf16.msra.mxu0 %v2942
    %2946 = vmatprep.subr.bf16.mxu0 0
    %2947 = vmatpush1.bf16.msra.mxu0 0
    %2948 = vmatprep.subr.bf16.mxu0 0
    %2949 = vmatpush1.bf16.msra.mxu0 0
    %2950 = vmatprep.subr.bf16.mxu0 0
    %2951 = vmatpush1.bf16.msra.mxu0 0
    %2952 = vmatprep.subr.bf16.mxu0 0
    %2953 = vmatpush1.bf16.msra.mxu0 0
    %2954 = vmatprep.subr.bf16.mxu0 0
    %2955 = vmatpush1.bf16.msra.mxu0 0
    %2956 = vmatprep.subr.bf16.mxu0 0
    %2957 = vmatpush1.bf16.msra.mxu0 0
    %2958 = vmatprep.subr.bf16.mxu0 0
    %2959 = vmatpush1.bf16.msra.mxu0 0
    %2960 = vmatprep.subr.bf16.mxu0 0
    %2961 = vmatpush1.bf16.msra.mxu0 0
    %2962 = vmatprep.subr.bf16.mxu0 0
    %2963 = vmatpush1.bf16.msra.mxu0 0
    %2964 = vmatprep.subr.bf16.mxu0 0
    %2965 = vmatpush1.bf16.msra.mxu0 0
    %2966 = vmatprep.subr.bf16.mxu0 0
    %2967 = vmatpush1.bf16.msra.mxu0 0
    %2968 = vmatprep.subr.bf16.mxu0 0
    %2969 = vmatpush1.bf16.msra.mxu0 0
    %2970 = vmatprep.subr.bf16.mxu0 0
    %2971 = vmatpush1.bf16.msra.mxu0 0
    %2972 = vmatprep.subr.bf16.mxu0 0
    %2973 = vmatpush1.bf16.msra.mxu0 0
    %2974 = vmatprep.subr.bf16.mxu0 0
    %2975 = vmatpush1.bf16.msra.mxu0 0
    %2976 = vmatprep.mubr.bf16.mxu0 0
    %2977 = vmatmul.mubr.bf16.gmra.mrb[0].mxu0 %v2917
    %v2978 = vpop.f32.mrb[0].mxu0
    %v2979 = vadd.f32 0.0, %v2978
    %v2980 = vpop.f32.mrb[0].mxu0
    %v2981 = vpop.f32.mrb[0].mxu0
    %v2982 = vadd.f32 0.0, %v2981
    %v2983 = vpop.f32.mrb[0].mxu0
    %2984 = vmatprep.mubr.bf16.mxu0 0
    %2985 = vmatmul.mubr.bf16.gmra.mrb[0].mxu0 %v2920
    %v2986 = vpop.f32.mrb[0].mxu0
    %v2987 = vadd.f32 0.0, %v2986
    %v2988 = vpop.f32.mrb[0].mxu0
    %v2989 = vpop.f32.mrb[0].mxu0
    %v2990 = vadd.f32 0.0, %v2989
    %v2991 = vpop.f32.mrb[0].mxu0
    %2992 = vmatprep.mubr.bf16.mxu0 0
    %2993 = vmatmul.mubr.bf16.gmra.mrb[0].mxu0 %v2923
    %v2994 = vpop.f32.mrb[0].mxu0
    %v2995 = vadd.f32 0.0, %v2994
    %v2996 = vpop.f32.mrb[0].mxu0
    %v2997 = vpop.f32.mrb[0].mxu0
    %v2998 = vadd.f32 0.0, %v2997
    %v2999 = vpop.f32.mrb[0].mxu0
    %3000 = vmatprep.mubr.bf16.mxu0 0
    %3001 = vmatmul.mubr.bf16.gmra.mrb[0].mxu0 %v2926
    %v3002 = vpop.f32.mrb[0].mxu0
    %v3003 = vadd.f32 0.0, %v3002
    %v3004 = vpop.f32.mrb[0].mxu0
    %v3005 = vpop.f32.mrb[0].mxu0
    %v3006 = vadd.f32 0.0, %v3005
    %v3007 = vpop.f32.mrb[0].mxu0
    %3008 = vmatprep.mubr.bf16.mxu0 0
    %3009 = vmatmul.mubr.bf16.gmra.mrb[0].mxu0 %v2929
    %v3010 = vpop.f32.mrb[0].mxu0
    %v3011 = vadd.f32 0.0, %v3010
    %v3012 = vpop.f32.mrb[0].mxu0
    %v3013 = vpop.f32.mrb[0].mxu0
    %v3014 = vadd.f32 0.0, %v3013
    %v3015 = vpop.f32.mrb[0].mxu0
    %3016 = vmatprep.mubr.bf16.mxu0 0
    %3017 = vmatmul.mubr.bf16.gmra.mrb[0].mxu0 %v2932
    %v3018 = vpop.f32.mrb[0].mxu0
    %v3019 = vadd.f32 0.0, %v3018
    %v3020 = vpop.f32.mrb[0].mxu0
    %v3021 = vpop.f32.mrb[0].mxu0
    %v3022 = vadd.f32 0.0, %v3021
    %v3023 = vpop.f32.mrb[0].mxu0
    %3024 = vmatprep.mubr.bf16.mxu0 0
    %3025 = vmatmul.mubr.bf16.gmra.mrb[0].mxu0 %v2935
    %v3026 = vpop.f32.mrb[0].mxu0
    %v3027 = vadd.f32 0.0, %v3026
    %v3028 = vpop.f32.mrb[0].mxu0
    %v3029 = vpop.f32.mrb[0].mxu0
    %v3030 = vadd.f32 0.0, %v3029
    %v3031 = vpop.f32.mrb[0].mxu0
    %3032 = vmatprep.mubr.bf16.mxu0 0
    %3033 = vmatmul.mubr.bf16.gmra.mrb[0].mxu0 %v2938
    %v3034 = vpop.f32.mrb[0].mxu0
    %v3035 = vadd.f32 0.0, %v3034
    %v3036 = vpop.f32.mrb[0].mxu0
    %v3037 = vpop.f32.mrb[0].mxu0
    %v3038 = vadd.f32 0.0, %v3037
    %v3039 = vpop.f32.mrb[0].mxu0
    %3040 = vdwg.mxu0
    %3041 = vxpose.xlu0.c.b16.start [1/8] %v2884, 128
    %3042 = vxpose.xlu0.c.b16.cont [2/8] 0, 128
    %3043 = vxpose.xlu0.c.b16.cont [3/8] 0, 128
    %3044 = vxpose.xlu0.c.b16.cont [4/8] 0, 128
    %3045 = vxpose.xlu0.c.b16.cont [5/8] 0, 128
    %3046 = vxpose.xlu0.c.b16.cont [6/8] 0, 128
    %3047 = vxpose.xlu0.c.b16.cont [7/8] 0, 128
    %3048 = vxpose.xlu0.c.b16.end [8/8] 0, 128
    %v3049 = vpop.trf.xlu0
    %v3050 = vpop.trf.xlu0
    %v3051 = vpop.trf.xlu0
    %v3052 = vpop.trf.xlu0
    %v3053 = vpop.trf.xlu0
    %v3054 = vpop.trf.xlu0
    %v3055 = vpop.trf.xlu0
    %v3056 = vpop.trf.xlu0
    %v3058 = vsel %vm2915, %v3049, 0
    %v3061 = vsel %vm2915, %v3050, 0
    %v3064 = vsel %vm2915, %v3051, 0
    %v3067 = vsel %vm2915, %v3052, 0
    %v3070 = vsel %vm2915, %v3053, 0
    %v3073 = vsel %vm2915, %v3054, 0
    %v3076 = vsel %vm2915, %v3055, 0
    %v3079 = vsel %vm2915, %v3056, 0
    %v3082 = vsel %vm2940, %v436, 0
    %3084 = vmatprep.subr.bf16.mxu0 0
    %3085 = vmatpush1.bf16.msra.mxu0 %v3082
    %3086 = vmatprep.subr.bf16.mxu0 0
    %3087 = vmatpush1.bf16.msra.mxu0 0
    %3088 = vmatprep.subr.bf16.mxu0 0
    %3089 = vmatpush1.bf16.msra.mxu0 0
    %3090 = vmatprep.subr.bf16.mxu0 0
    %3091 = vmatpush1.bf16.msra.mxu0 0
    %3092 = vmatprep.subr.bf16.mxu0 0
    %3093 = vmatpush1.bf16.msra.mxu0 0
    %3094 = vmatprep.subr.bf16.mxu0 0
    %3095 = vmatpush1.bf16.msra.mxu0 0
    %3096 = vmatprep.subr.bf16.mxu0 0
    %3097 = vmatpush1.bf16.msra.mxu0 0
    %3098 = vmatprep.subr.bf16.mxu0 0
    %3099 = vmatpush1.bf16.msra.mxu0 0
    %3100 = vmatprep.subr.bf16.mxu0 0
    %3101 = vmatpush1.bf16.msra.mxu0 0
    %3102 = vmatprep.subr.bf16.mxu0 0
    %3103 = vmatpush1.bf16.msra.mxu0 0
    %3104 = vmatprep.subr.bf16.mxu0 0
    %3105 = vmatpush1.bf16.msra.mxu0 0
    %3106 = vmatprep.subr.bf16.mxu0 0
    %3107 = vmatpush1.bf16.msra.mxu0 0
    %3108 = vmatprep.subr.bf16.mxu0 0
    %3109 = vmatpush1.bf16.msra.mxu0 0
    %3110 = vmatprep.subr.bf16.mxu0 0
    %3111 = vmatpush1.bf16.msra.mxu0 0
    %3112 = vmatprep.subr.bf16.mxu0 0
    %3113 = vmatpush1.bf16.msra.mxu0 0
    %3114 = vmatprep.subr.bf16.mxu0 0
    %3115 = vmatpush1.bf16.msra.mxu0 0
    %3116 = vmatprep.mubr.bf16.mxu0 0
    %3117 = vmatmul.mubr.bf16.gmra.mrb[0].mxu0 %v3058
    %v3118 = vpop.f32.mrb[0].mxu0
    %v3119 = vadd.f32 0.0, %v3118
    %v3120 = vpop.f32.mrb[0].mxu0
    %v3121 = vpop.f32.mrb[0].mxu0
    %v3122 = vadd.f32 0.0, %v3121
    %v3123 = vpop.f32.mrb[0].mxu0
    %3124 = vmatprep.mubr.bf16.mxu0 0
    %3125 = vmatmul.mubr.bf16.gmra.mrb[0].mxu0 %v3061
    %v3126 = vpop.f32.mrb[0].mxu0
    %v3127 = vadd.f32 0.0, %v3126
    %v3128 = vpop.f32.mrb[0].mxu0
    %v3129 = vpop.f32.mrb[0].mxu0
    %v3130 = vadd.f32 0.0, %v3129
    %v3131 = vpop.f32.mrb[0].mxu0
    %3132 = vmatprep.mubr.bf16.mxu0 0
    %3133 = vmatmul.mubr.bf16.gmra.mrb[0].mxu0 %v3064
    %v3134 = vpop.f32.mrb[0].mxu0
    %v3135 = vadd.f32 0.0, %v3134
    %v3136 = vpop.f32.mrb[0].mxu0
    %v3137 = vpop.f32.mrb[0].mxu0
    %v3138 = vadd.f32 0.0, %v3137
    %v3139 = vpop.f32.mrb[0].mxu0
    %3140 = vmatprep.mubr.bf16.mxu0 0
    %3141 = vmatmul.mubr.bf16.gmra.mrb[0].mxu0 %v3067
    %v3142 = vpop.f32.mrb[0].mxu0
    %v3143 = vadd.f32 0.0, %v3142
    %v3144 = vpop.f32.mrb[0].mxu0
    %v3145 = vpop.f32.mrb[0].mxu0
    %v3146 = vadd.f32 0.0, %v3145
    %v3147 = vpop.f32.mrb[0].mxu0
    %3148 = vmatprep.mubr.bf16.mxu0 0
    %3149 = vmatmul.mubr.bf16.gmra.mrb[0].mxu0 %v3070
    %v3150 = vpop.f32.mrb[0].mxu0
    %v3151 = vadd.f32 0.0, %v3150
    %v3152 = vpop.f32.mrb[0].mxu0
    %v3153 = vpop.f32.mrb[0].mxu0
    %v3154 = vadd.f32 0.0, %v3153
    %v3155 = vpop.f32.mrb[0].mxu0
    %3156 = vmatprep.mubr.bf16.mxu0 0
    %3157 = vmatmul.mubr.bf16.gmra.mrb[0].mxu0 %v3073
    %v3158 = vpop.f32.mrb[0].mxu0
    %v3159 = vadd.f32 0.0, %v3158
    %v3160 = vpop.f32.mrb[0].mxu0
    %v3161 = vpop.f32.mrb[0].mxu0
    %v3162 = vadd.f32 0.0, %v3161
    %v3163 = vpop.f32.mrb[0].mxu0
    %3164 = vmatprep.mubr.bf16.mxu0 0
    %3165 = vmatmul.mubr.bf16.gmra.mrb[0].mxu0 %v3076
    %v3166 = vpop.f32.mrb[0].mxu0
    %v3167 = vadd.f32 0.0, %v3166
    %v3168 = vpop.f32.mrb[0].mxu0
    %v3169 = vpop.f32.mrb[0].mxu0
    %v3170 = vadd.f32 0.0, %v3169
    %v3171 = vpop.f32.mrb[0].mxu0
    %3172 = vmatprep.mubr.bf16.mxu0 0
    %3173 = vmatmul.mubr.bf16.gmra.mrb[0].mxu0 %v3079
    %v3174 = vpop.f32.mrb[0].mxu0
    %v3175 = vadd.f32 0.0, %v3174
    %v3176 = vpop.f32.mrb[0].mxu0
    %v3177 = vpop.f32.mrb[0].mxu0
    %v3178 = vadd.f32 0.0, %v3177
    %v3179 = vpop.f32.mrb[0].mxu0
    %3180 = vdwg.mxu0
    %3181 = vxpose.xlu0.c.b16.start [1/8] %v2885, 128
    %3182 = vxpose.xlu0.c.b16.cont [2/8] 0, 128
    %3183 = vxpose.xlu0.c.b16.cont [3/8] 0, 128
    %3184 = vxpose.xlu0.c.b16.cont [4/8] 0, 128
    %3185 = vxpose.xlu0.c.b16.cont [5/8] 0, 128
    %3186 = vxpose.xlu0.c.b16.cont [6/8] 0, 128
    %3187 = vxpose.xlu0.c.b16.cont [7/8] 0, 128
    %3188 = vxpose.xlu0.c.b16.end [8/8] 0, 128
    %v3189 = vpop.trf.xlu0
    %v3190 = vpop.trf.xlu0
    %v3191 = vpop.trf.xlu0
    %v3192 = vpop.trf.xlu0
    %v3193 = vpop.trf.xlu0
    %v3194 = vpop.trf.xlu0
    %v3195 = vpop.trf.xlu0
    %v3196 = vpop.trf.xlu0
    %v3198 = vsel %vm2915, %v3189, 0
    %v3201 = vsel %vm2915, %v3190, 0
    %v3204 = vsel %vm2915, %v3191, 0
    %v3207 = vsel %vm2915, %v3192, 0
    %v3210 = vsel %vm2915, %v3193, 0
    %v3213 = vsel %vm2915, %v3194, 0
    %v3216 = vsel %vm2915, %v3195, 0
    %v3219 = vsel %vm2915, %v3196, 0
    %v3222 = vsel %vm2940, %v437, 0
    %3224 = vmatprep.subr.bf16.mxu0 0
    %3225 = vmatpush1.bf16.msra.mxu0 %v3222
    %3226 = vmatprep.subr.bf16.mxu0 0
    %3227 = vmatpush1.bf16.msra.mxu0 0
    %3228 = vmatprep.subr.bf16.mxu0 0
    %3229 = vmatpush1.bf16.msra.mxu0 0
    %3230 = vmatprep.subr.bf16.mxu0 0
    %3231 = vmatpush1.bf16.msra.mxu0 0
    %3232 = vmatprep.subr.bf16.mxu0 0
    %3233 = vmatpush1.bf16.msra.mxu0 0
    %3234 = vmatprep.subr.bf16.mxu0 0
    %3235 = vmatpush1.bf16.msra.mxu0 0
    %3236 = vmatprep.subr.bf16.mxu0 0
    %3237 = vmatpush1.bf16.msra.mxu0 0
    %3238 = vmatprep.subr.bf16.mxu0 0
    %3239 = vmatpush1.bf16.msra.mxu0 0
    %3240 = vmatprep.subr.bf16.mxu0 0
    %3241 = vmatpush1.bf16.msra.mxu0 0
    %3242 = vmatprep.subr.bf16.mxu0 0
    %3243 = vmatpush1.bf16.msra.mxu0 0
    %3244 = vmatprep.subr.bf16.mxu0 0
    %3245 = vmatpush1.bf16.msra.mxu0 0
    %3246 = vmatprep.subr.bf16.mxu0 0
    %3247 = vmatpush1.bf16.msra.mxu0 0
    %3248 = vmatprep.subr.bf16.mxu0 0
    %3249 = vmatpush1.bf16.msra.mxu0 0
    %3250 = vmatprep.subr.bf16.mxu0 0
    %3251 = vmatpush1.bf16.msra.mxu0 0
    %3252 = vmatprep.subr.bf16.mxu0 0
    %3253 = vmatpush1.bf16.msra.mxu0 0
    %3254 = vmatprep.subr.bf16.mxu0 0
    %3255 = vmatpush1.bf16.msra.mxu0 0
    %3256 = vmatprep.mubr.bf16.mxu0 0
    %3257 = vmatmul.mubr.bf16.gmra.mrb[0].mxu0 %v3198
    %v3258 = vpop.f32.mrb[0].mxu0
    %v3259 = vadd.f32 0.0, %v3258
    %v3260 = vpop.f32.mrb[0].mxu0
    %v3261 = vpop.f32.mrb[0].mxu0
    %v3262 = vadd.f32 0.0, %v3261
    %v3263 = vpop.f32.mrb[0].mxu0
    %3264 = vmatprep.mubr.bf16.mxu0 0
    %3265 = vmatmul.mubr.bf16.gmra.mrb[0].mxu0 %v3201
    %v3266 = vpop.f32.mrb[0].mxu0
    %v3267 = vadd.f32 0.0, %v3266
    %v3268 = vpop.f32.mrb[0].mxu0
    %v3269 = vpop.f32.mrb[0].mxu0
    %v3270 = vadd.f32 0.0, %v3269
    %v3271 = vpop.f32.mrb[0].mxu0
    %3272 = vmatprep.mubr.bf16.mxu0 0
    %3273 = vmatmul.mubr.bf16.gmra.mrb[0].mxu0 %v3204
    %v3274 = vpop.f32.mrb[0].mxu0
    %v3275 = vadd.f32 0.0, %v3274
    %v3276 = vpop.f32.mrb[0].mxu0
    %v3277 = vpop.f32.mrb[0].mxu0
    %v3278 = vadd.f32 0.0, %v3277
    %v3279 = vpop.f32.mrb[0].mxu0
    %3280 = vmatprep.mubr.bf16.mxu0 0
    %3281 = vmatmul.mubr.bf16.gmra.mrb[0].mxu0 %v3207
    %v3282 = vpop.f32.mrb[0].mxu0
    %v3283 = vadd.f32 0.0, %v3282
    %v3284 = vpop.f32.mrb[0].mxu0
    %v3285 = vpop.f32.mrb[0].mxu0
    %v3286 = vadd.f32 0.0, %v3285
    %v3287 = vpop.f32.mrb[0].mxu0
    %3288 = vmatprep.mubr.bf16.mxu0 0
    %3289 = vmatmul.mubr.bf16.gmra.mrb[0].mxu0 %v3210
    %v3290 = vpop.f32.mrb[0].mxu0
    %v3291 = vadd.f32 0.0, %v3290
    %v3292 = vpop.f32.mrb[0].mxu0
    %v3293 = vpop.f32.mrb[0].mxu0
    %v3294 = vadd.f32 0.0, %v3293
    %v3295 = vpop.f32.mrb[0].mxu0
    %3296 = vmatprep.mubr.bf16.mxu0 0
    %3297 = vmatmul.mubr.bf16.gmra.mrb[0].mxu0 %v3213
    %v3298 = vpop.f32.mrb[0].mxu0
    %v3299 = vadd.f32 0.0, %v3298
    %v3300 = vpop.f32.mrb[0].mxu0
    %v3301 = vpop.f32.mrb[0].mxu0
    %v3302 = vadd.f32 0.0, %v3301
    %v3303 = vpop.f32.mrb[0].mxu0
    %3304 = vmatprep.mubr.bf16.mxu0 0
    %3305 = vmatmul.mubr.bf16.gmra.mrb[0].mxu0 %v3216
    %v3306 = vpop.f32.mrb[0].mxu0
    %v3307 = vadd.f32 0.0, %v3306
    %v3308 = vpop.f32.mrb[0].mxu0
    %v3309 = vpop.f32.mrb[0].mxu0
    %v3310 = vadd.f32 0.0, %v3309
    %v3311 = vpop.f32.mrb[0].mxu0
    %3312 = vmatprep.mubr.bf16.mxu0 0
    %3313 = vmatmul.mubr.bf16.gmra.mrb[0].mxu0 %v3219
    %v3314 = vpop.f32.mrb[0].mxu0
    %v3315 = vadd.f32 0.0, %v3314
    %v3316 = vpop.f32.mrb[0].mxu0
    %v3317 = vpop.f32.mrb[0].mxu0
    %v3318 = vadd.f32 0.0, %v3317
    %v3319 = vpop.f32.mrb[0].mxu0
    %3320 = vdwg.mxu0
    %3321 = vxpose.xlu0.c.b16.start [1/8] %v2886, 128
    %3322 = vxpose.xlu0.c.b16.cont [2/8] 0, 128
    %3323 = vxpose.xlu0.c.b16.cont [3/8] 0, 128
    %3324 = vxpose.xlu0.c.b16.cont [4/8] 0, 128
    %3325 = vxpose.xlu0.c.b16.cont [5/8] 0, 128
    %3326 = vxpose.xlu0.c.b16.cont [6/8] 0, 128
    %3327 = vxpose.xlu0.c.b16.cont [7/8] 0, 128
    %3328 = vxpose.xlu0.c.b16.end [8/8] 0, 128
    %v3329 = vpop.trf.xlu0
    %v3330 = vpop.trf.xlu0
    %v3331 = vpop.trf.xlu0
    %v3332 = vpop.trf.xlu0
    %v3333 = vpop.trf.xlu0
    %v3334 = vpop.trf.xlu0
    %v3335 = vpop.trf.xlu0
    %v3336 = vpop.trf.xlu0
    %v3338 = vsel %vm2915, %v3329, 0
    %v3341 = vsel %vm2915, %v3330, 0
    %v3344 = vsel %vm2915, %v3331, 0
    %v3347 = vsel %vm2915, %v3332, 0
    %v3350 = vsel %vm2915, %v3333, 0
    %v3353 = vsel %vm2915, %v3334, 0
    %v3356 = vsel %vm2915, %v3335, 0
    %v3359 = vsel %vm2915, %v3336, 0
    %v3362 = vsel %vm2940, %v438, 0
    %3364 = vmatprep.subr.bf16.mxu0 0
    %3365 = vmatpush1.bf16.msra.mxu0 %v3362
    %3366 = vmatprep.subr.bf16.mxu0 0
    %3367 = vmatpush1.bf16.msra.mxu0 0
    %3368 = vmatprep.subr.bf16.mxu0 0
    %3369 = vmatpush1.bf16.msra.mxu0 0
    %3370 = vmatprep.subr.bf16.mxu0 0
    %3371 = vmatpush1.bf16.msra.mxu0 0
    %3372 = vmatprep.subr.bf16.mxu0 0
    %3373 = vmatpush1.bf16.msra.mxu0 0
    %3374 = vmatprep.subr.bf16.mxu0 0
    %3375 = vmatpush1.bf16.msra.mxu0 0
    %3376 = vmatprep.subr.bf16.mxu0 0
    %3377 = vmatpush1.bf16.msra.mxu0 0
    %3378 = vmatprep.subr.bf16.mxu0 0
    %3379 = vmatpush1.bf16.msra.mxu0 0
    %3380 = vmatprep.subr.bf16.mxu0 0
    %3381 = vmatpush1.bf16.msra.mxu0 0
    %3382 = vmatprep.subr.bf16.mxu0 0
    %3383 = vmatpush1.bf16.msra.mxu0 0
    %3384 = vmatprep.subr.bf16.mxu0 0
    %3385 = vmatpush1.bf16.msra.mxu0 0
    %3386 = vmatprep.subr.bf16.mxu0 0
    %3387 = vmatpush1.bf16.msra.mxu0 0
    %3388 = vmatprep.subr.bf16.mxu0 0
    %3389 = vmatpush1.bf16.msra.mxu0 0
    %3390 = vmatprep.subr.bf16.mxu0 0
    %3391 = vmatpush1.bf16.msra.mxu0 0
    %3392 = vmatprep.subr.bf16.mxu0 0
    %3393 = vmatpush1.bf16.msra.mxu0 0
    %3394 = vmatprep.subr.bf16.mxu0 0
    %3395 = vmatpush1.bf16.msra.mxu0 0
    %3396 = vmatprep.mubr.bf16.mxu0 0
    %3397 = vmatmul.mubr.bf16.gmra.mrb[0].mxu0 %v3338
    %v3398 = vpop.f32.mrb[0].mxu0
    %v3399 = vadd.f32 0.0, %v3398
    %v3400 = vpop.f32.mrb[0].mxu0
    %v3401 = vpop.f32.mrb[0].mxu0
    %v3402 = vadd.f32 0.0, %v3401
    %v3403 = vpop.f32.mrb[0].mxu0
    %3404 = vmatprep.mubr.bf16.mxu0 0
    %3405 = vmatmul.mubr.bf16.gmra.mrb[0].mxu0 %v3341
    %v3406 = vpop.f32.mrb[0].mxu0
    %v3407 = vadd.f32 0.0, %v3406
    %v3408 = vpop.f32.mrb[0].mxu0
    %v3409 = vpop.f32.mrb[0].mxu0
    %v3410 = vadd.f32 0.0, %v3409
    %v3411 = vpop.f32.mrb[0].mxu0
    %3412 = vmatprep.mubr.bf16.mxu0 0
    %3413 = vmatmul.mubr.bf16.gmra.mrb[0].mxu0 %v3344
    %v3414 = vpop.f32.mrb[0].mxu0
    %v3415 = vadd.f32 0.0, %v3414
    %v3416 = vpop.f32.mrb[0].mxu0
    %v3417 = vpop.f32.mrb[0].mxu0
    %v3418 = vadd.f32 0.0, %v3417
    %v3419 = vpop.f32.mrb[0].mxu0
    %3420 = vmatprep.mubr.bf16.mxu0 0
    %3421 = vmatmul.mubr.bf16.gmra.mrb[0].mxu0 %v3347
    %v3422 = vpop.f32.mrb[0].mxu0
    %v3423 = vadd.f32 0.0, %v3422
    %v3424 = vpop.f32.mrb[0].mxu0
    %v3425 = vpop.f32.mrb[0].mxu0
    %v3426 = vadd.f32 0.0, %v3425
    %v3427 = vpop.f32.mrb[0].mxu0
    %3428 = vmatprep.mubr.bf16.mxu0 0
    %3429 = vmatmul.mubr.bf16.gmra.mrb[0].mxu0 %v3350
    %v3430 = vpop.f32.mrb[0].mxu0
    %v3431 = vadd.f32 0.0, %v3430
    %v3432 = vpop.f32.mrb[0].mxu0
    %v3433 = vpop.f32.mrb[0].mxu0
    %v3434 = vadd.f32 0.0, %v3433
    %v3435 = vpop.f32.mrb[0].mxu0
    %3436 = vmatprep.mubr.bf16.mxu0 0
    %3437 = vmatmul.mubr.bf16.gmra.mrb[0].mxu0 %v3353
    %v3438 = vpop.f32.mrb[0].mxu0
    %v3439 = vadd.f32 0.0, %v3438
    %v3440 = vpop.f32.mrb[0].mxu0
    %v3441 = vpop.f32.mrb[0].mxu0
    %v3442 = vadd.f32 0.0, %v3441
    %v3443 = vpop.f32.mrb[0].mxu0
    %3444 = vmatprep.mubr.bf16.mxu0 0
    %3445 = vmatmul.mubr.bf16.gmra.mrb[0].mxu0 %v3356
    %v3446 = vpop.f32.mrb[0].mxu0
    %v3447 = vadd.f32 0.0, %v3446
    %v3448 = vpop.f32.mrb[0].mxu0
    %v3449 = vpop.f32.mrb[0].mxu0
    %v3450 = vadd.f32 0.0, %v3449
    %v3451 = vpop.f32.mrb[0].mxu0
    %3452 = vmatprep.mubr.bf16.mxu0 0
    %3453 = vmatmul.mubr.bf16.gmra.mrb[0].mxu0 %v3359
    %v3454 = vpop.f32.mrb[0].mxu0
    %v3455 = vadd.f32 0.0, %v3454
    %v3456 = vpop.f32.mrb[0].mxu0
    %v3457 = vpop.f32.mrb[0].mxu0
    %v3458 = vadd.f32 0.0, %v3457
    %v3459 = vpop.f32.mrb[0].mxu0
    %3460 = vdwg.mxu0
    %3461 = vxpose.xlu0.c.b16.start [1/8] %v2887, 128
    %3462 = vxpose.xlu0.c.b16.cont [2/8] 0, 128
    %3463 = vxpose.xlu0.c.b16.cont [3/8] 0, 128
    %3464 = vxpose.xlu0.c.b16.cont [4/8] 0, 128
    %3465 = vxpose.xlu0.c.b16.cont [5/8] 0, 128
    %3466 = vxpose.xlu0.c.b16.cont [6/8] 0, 128
    %3467 = vxpose.xlu0.c.b16.cont [7/8] 0, 128
    %3468 = vxpose.xlu0.c.b16.end [8/8] 0, 128
    %v3469 = vpop.trf.xlu0
    %v3470 = vpop.trf.xlu0
    %v3471 = vpop.trf.xlu0
    %v3472 = vpop.trf.xlu0
    %v3473 = vpop.trf.xlu0
    %v3474 = vpop.trf.xlu0
    %v3475 = vpop.trf.xlu0
    %v3476 = vpop.trf.xlu0
    %v3478 = vsel %vm2915, %v3469, 0
    %v3481 = vsel %vm2915, %v3470, 0
    %v3484 = vsel %vm2915, %v3471, 0
    %v3487 = vsel %vm2915, %v3472, 0
    %v3490 = vsel %vm2915, %v3473, 0
    %v3493 = vsel %vm2915, %v3474, 0
    %v3496 = vsel %vm2915, %v3475, 0
    %v3499 = vsel %vm2915, %v3476, 0
    %v3502 = vsel %vm2940, %v439, 0
    %3504 = vmatprep.subr.bf16.mxu0 0
    %3505 = vmatpush1.bf16.msra.mxu0 %v3502
    %3506 = vmatprep.subr.bf16.mxu0 0
    %3507 = vmatpush1.bf16.msra.mxu0 0
    %3508 = vmatprep.subr.bf16.mxu0 0
    %3509 = vmatpush1.bf16.msra.mxu0 0
    %3510 = vmatprep.subr.bf16.mxu0 0
    %3511 = vmatpush1.bf16.msra.mxu0 0
    %3512 = vmatprep.subr.bf16.mxu0 0
    %3513 = vmatpush1.bf16.msra.mxu0 0
    %3514 = vmatprep.subr.bf16.mxu0 0
    %3515 = vmatpush1.bf16.msra.mxu0 0
    %3516 = vmatprep.subr.bf16.mxu0 0
    %3517 = vmatpush1.bf16.msra.mxu0 0
    %3518 = vmatprep.subr.bf16.mxu0 0
    %3519 = vmatpush1.bf16.msra.mxu0 0
    %3520 = vmatprep.subr.bf16.mxu0 0
    %3521 = vmatpush1.bf16.msra.mxu0 0
    %3522 = vmatprep.subr.bf16.mxu0 0
    %3523 = vmatpush1.bf16.msra.mxu0 0
    %3524 = vmatprep.subr.bf16.mxu0 0
    %3525 = vmatpush1.bf16.msra.mxu0 0
    %3526 = vmatprep.subr.bf16.mxu0 0
    %3527 = vmatpush1.bf16.msra.mxu0 0
    %3528 = vmatprep.subr.bf16.mxu0 0
    %3529 = vmatpush1.bf16.msra.mxu0 0
    %3530 = vmatprep.subr.bf16.mxu0 0
    %3531 = vmatpush1.bf16.msra.mxu0 0
    %3532 = vmatprep.subr.bf16.mxu0 0
    %3533 = vmatpush1.bf16.msra.mxu0 0
    %3534 = vmatprep.subr.bf16.mxu0 0
    %3535 = vmatpush1.bf16.msra.mxu0 0
    %3536 = vmatprep.mubr.bf16.mxu0 0
    %3537 = vmatmul.mubr.bf16.gmra.mrb[0].mxu0 %v3478
    %v3538 = vpop.f32.mrb[0].mxu0
    %v3539 = vadd.f32 0.0, %v3538
    %v3540 = vpop.f32.mrb[0].mxu0
    %v3541 = vpop.f32.mrb[0].mxu0
    %v3542 = vadd.f32 0.0, %v3541
    %v3543 = vpop.f32.mrb[0].mxu0
    %3544 = vmatprep.mubr.bf16.mxu0 0
    %3545 = vmatmul.mubr.bf16.gmra.mrb[0].mxu0 %v3481
    %v3546 = vpop.f32.mrb[0].mxu0
    %v3547 = vadd.f32 0.0, %v3546
    %v3548 = vpop.f32.mrb[0].mxu0
    %v3549 = vpop.f32.mrb[0].mxu0
    %v3550 = vadd.f32 0.0, %v3549
    %v3551 = vpop.f32.mrb[0].mxu0
    %3552 = vmatprep.mubr.bf16.mxu0 0
    %3553 = vmatmul.mubr.bf16.gmra.mrb[0].mxu0 %v3484
    %v3554 = vpop.f32.mrb[0].mxu0
    %v3555 = vadd.f32 0.0, %v3554
    %v3556 = vpop.f32.mrb[0].mxu0
    %v3557 = vpop.f32.mrb[0].mxu0
    %v3558 = vadd.f32 0.0, %v3557
    %v3559 = vpop.f32.mrb[0].mxu0
    %3560 = vmatprep.mubr.bf16.mxu0 0
    %3561 = vmatmul.mubr.bf16.gmra.mrb[0].mxu0 %v3487
    %v3562 = vpop.f32.mrb[0].mxu0
    %v3563 = vadd.f32 0.0, %v3562
    %v3564 = vpop.f32.mrb[0].mxu0
    %v3565 = vpop.f32.mrb[0].mxu0
    %v3566 = vadd.f32 0.0, %v3565
    %v3567 = vpop.f32.mrb[0].mxu0
    %3568 = vmatprep.mubr.bf16.mxu0 0
    %3569 = vmatmul.mubr.bf16.gmra.mrb[0].mxu0 %v3490
    %v3570 = vpop.f32.mrb[0].mxu0
    %v3571 = vadd.f32 0.0, %v3570
    %v3572 = vpop.f32.mrb[0].mxu0
    %v3573 = vpop.f32.mrb[0].mxu0
    %v3574 = vadd.f32 0.0, %v3573
    %v3575 = vpop.f32.mrb[0].mxu0
    %3576 = vmatprep.mubr.bf16.mxu0 0
    %3577 = vmatmul.mubr.bf16.gmra.mrb[0].mxu0 %v3493
    %v3578 = vpop.f32.mrb[0].mxu0
    %v3579 = vadd.f32 0.0, %v3578
    %v3580 = vpop.f32.mrb[0].mxu0
    %v3581 = vpop.f32.mrb[0].mxu0
    %v3582 = vadd.f32 0.0, %v3581
    %v3583 = vpop.f32.mrb[0].mxu0
    %3584 = vmatprep.mubr.bf16.mxu0 0
    %3585 = vmatmul.mubr.bf16.gmra.mrb[0].mxu0 %v3496
    %v3586 = vpop.f32.mrb[0].mxu0
    %v3587 = vadd.f32 0.0, %v3586
    %v3588 = vpop.f32.mrb[0].mxu0
    %v3589 = vpop.f32.mrb[0].mxu0
    %v3590 = vadd.f32 0.0, %v3589
    %v3591 = vpop.f32.mrb[0].mxu0
    %3592 = vmatprep.mubr.bf16.mxu0 0
    %3593 = vmatmul.mubr.bf16.gmra.mrb[0].mxu0 %v3499
    %v3594 = vpop.f32.mrb[0].mxu0
    %v3595 = vadd.f32 0.0, %v3594
    %v3596 = vpop.f32.mrb[0].mxu0
    %v3597 = vpop.f32.mrb[0].mxu0
    %v3598 = vadd.f32 0.0, %v3597
    %v3599 = vpop.f32.mrb[0].mxu0
    %3600 = vdwg.mxu0
    %3601 = vxpose.xlu0.c.b16.start [1/8] %v2888, 128
    %3602 = vxpose.xlu0.c.b16.cont [2/8] 0, 128
    %3603 = vxpose.xlu0.c.b16.cont [3/8] 0, 128
    %3604 = vxpose.xlu0.c.b16.cont [4/8] 0, 128
    %3605 = vxpose.xlu0.c.b16.cont [5/8] 0, 128
    %3606 = vxpose.xlu0.c.b16.cont [6/8] 0, 128
    %3607 = vxpose.xlu0.c.b16.cont [7/8] 0, 128
    %3608 = vxpose.xlu0.c.b16.end [8/8] 0, 128
    %v3609 = vpop.trf.xlu0
    %v3610 = vpop.trf.xlu0
    %v3611 = vpop.trf.xlu0
    %v3612 = vpop.trf.xlu0
    %v3613 = vpop.trf.xlu0
    %v3614 = vpop.trf.xlu0
    %v3615 = vpop.trf.xlu0
    %v3616 = vpop.trf.xlu0
    %v3618 = vsel %vm2915, %v3609, 0
    %v3621 = vsel %vm2915, %v3610, 0
    %v3624 = vsel %vm2915, %v3611, 0
    %v3627 = vsel %vm2915, %v3612, 0
    %v3630 = vsel %vm2915, %v3613, 0
    %v3633 = vsel %vm2915, %v3614, 0
    %v3636 = vsel %vm2915, %v3615, 0
    %v3639 = vsel %vm2915, %v3616, 0
    %v3642 = vsel %vm2940, %v440, 0
    %3644 = vmatprep.subr.bf16.mxu0 0
    %3645 = vmatpush1.bf16.msra.mxu0 %v3642
    %3646 = vmatprep.subr.bf16.mxu0 0
    %3647 = vmatpush1.bf16.msra.mxu0 0
    %3648 = vmatprep.subr.bf16.mxu0 0
    %3649 = vmatpush1.bf16.msra.mxu0 0
    %3650 = vmatprep.subr.bf16.mxu0 0
    %3651 = vmatpush1.bf16.msra.mxu0 0
    %3652 = vmatprep.subr.bf16.mxu0 0
    %3653 = vmatpush1.bf16.msra.mxu0 0
    %3654 = vmatprep.subr.bf16.mxu0 0
    %3655 = vmatpush1.bf16.msra.mxu0 0
    %3656 = vmatprep.subr.bf16.mxu0 0
    %3657 = vmatpush1.bf16.msra.mxu0 0
    %3658 = vmatprep.subr.bf16.mxu0 0
    %3659 = vmatpush1.bf16.msra.mxu0 0
    %3660 = vmatprep.subr.bf16.mxu0 0
    %3661 = vmatpush1.bf16.msra.mxu0 0
    %3662 = vmatprep.subr.bf16.mxu0 0
    %3663 = vmatpush1.bf16.msra.mxu0 0
    %3664 = vmatprep.subr.bf16.mxu0 0
    %3665 = vmatpush1.bf16.msra.mxu0 0
    %3666 = vmatprep.subr.bf16.mxu0 0
    %3667 = vmatpush1.bf16.msra.mxu0 0
    %3668 = vmatprep.subr.bf16.mxu0 0
    %3669 = vmatpush1.bf16.msra.mxu0 0
    %3670 = vmatprep.subr.bf16.mxu0 0
    %3671 = vmatpush1.bf16.msra.mxu0 0
    %3672 = vmatprep.subr.bf16.mxu0 0
    %3673 = vmatpush1.bf16.msra.mxu0 0
    %3674 = vmatprep.subr.bf16.mxu0 0
    %3675 = vmatpush1.bf16.msra.mxu0 0
    %3676 = vmatprep.mubr.bf16.mxu0 0
    %3677 = vmatmul.mubr.bf16.gmra.mrb[0].mxu0 %v3618
    %v3678 = vpop.f32.mrb[0].mxu0
    %v3679 = vadd.f32 0.0, %v3678
    %v3680 = vpop.f32.mrb[0].mxu0
    %v3681 = vpop.f32.mrb[0].mxu0
    %v3682 = vadd.f32 0.0, %v3681
    %v3683 = vpop.f32.mrb[0].mxu0
    %3684 = vmatprep.mubr.bf16.mxu0 0
    %3685 = vmatmul.mubr.bf16.gmra.mrb[0].mxu0 %v3621
    %v3686 = vpop.f32.mrb[0].mxu0
    %v3687 = vadd.f32 0.0, %v3686
    %v3688 = vpop.f32.mrb[0].mxu0
    %v3689 = vpop.f32.mrb[0].mxu0
    %v3690 = vadd.f32 0.0, %v3689
    %v3691 = vpop.f32.mrb[0].mxu0
    %3692 = vmatprep.mubr.bf16.mxu0 0
    %3693 = vmatmul.mubr.bf16.gmra.mrb[0].mxu0 %v3624
    %v3694 = vpop.f32.mrb[0].mxu0
    %v3695 = vadd.f32 0.0, %v3694
    %v3696 = vpop.f32.mrb[0].mxu0
    %v3697 = vpop.f32.mrb[0].mxu0
    %v3698 = vadd.f32 0.0, %v3697
    %v3699 = vpop.f32.mrb[0].mxu0
    %3700 = vmatprep.mubr.bf16.mxu0 0
    %3701 = vmatmul.mubr.bf16.gmra.mrb[0].mxu0 %v3627
    %v3702 = vpop.f32.mrb[0].mxu0
    %v3703 = vadd.f32 0.0, %v3702
    %v3704 = vpop.f32.mrb[0].mxu0
    %v3705 = vpop.f32.mrb[0].mxu0
    %v3706 = vadd.f32 0.0, %v3705
    %v3707 = vpop.f32.mrb[0].mxu0
    %3708 = vmatprep.mubr.bf16.mxu0 0
    %3709 = vmatmul.mubr.bf16.gmra.mrb[0].mxu0 %v3630
    %v3710 = vpop.f32.mrb[0].mxu0
    %v3711 = vadd.f32 0.0, %v3710
    %v3712 = vpop.f32.mrb[0].mxu0
    %v3713 = vpop.f32.mrb[0].mxu0
    %v3714 = vadd.f32 0.0, %v3713
    %v3715 = vpop.f32.mrb[0].mxu0
    %3716 = vmatprep.mubr.bf16.mxu0 0
    %3717 = vmatmul.mubr.bf16.gmra.mrb[0].mxu0 %v3633
    %v3718 = vpop.f32.mrb[0].mxu0
    %v3719 = vadd.f32 0.0, %v3718
    %v3720 = vpop.f32.mrb[0].mxu0
    %v3721 = vpop.f32.mrb[0].mxu0
    %v3722 = vadd.f32 0.0, %v3721
    %v3723 = vpop.f32.mrb[0].mxu0
    %3724 = vmatprep.mubr.bf16.mxu0 0
    %3725 = vmatmul.mubr.bf16.gmra.mrb[0].mxu0 %v3636
    %v3726 = vpop.f32.mrb[0].mxu0
    %v3727 = vadd.f32 0.0, %v3726
    %v3728 = vpop.f32.mrb[0].mxu0
    %v3729 = vpop.f32.mrb[0].mxu0
    %v3730 = vadd.f32 0.0, %v3729
    %v3731 = vpop.f32.mrb[0].mxu0
    %3732 = vmatprep.mubr.bf16.mxu0 0
    %3733 = vmatmul.mubr.bf16.gmra.mrb[0].mxu0 %v3639
    %v3734 = vpop.f32.mrb[0].mxu0
    %v3735 = vadd.f32 0.0, %v3734
    %v3736 = vpop.f32.mrb[0].mxu0
    %v3737 = vpop.f32.mrb[0].mxu0
    %v3738 = vadd.f32 0.0, %v3737
    %v3739 = vpop.f32.mrb[0].mxu0
    %3740 = vdwg.mxu0
    %3741 = vxpose.xlu0.c.b16.start [1/8] %v2889, 128
    %3742 = vxpose.xlu0.c.b16.cont [2/8] 0, 128
    %3743 = vxpose.xlu0.c.b16.cont [3/8] 0, 128
    %3744 = vxpose.xlu0.c.b16.cont [4/8] 0, 128
    %3745 = vxpose.xlu0.c.b16.cont [5/8] 0, 128
    %3746 = vxpose.xlu0.c.b16.cont [6/8] 0, 128
    %3747 = vxpose.xlu0.c.b16.cont [7/8] 0, 128
    %3748 = vxpose.xlu0.c.b16.end [8/8] 0, 128
    %v3749 = vpop.trf.xlu0
    %v3750 = vpop.trf.xlu0
    %v3751 = vpop.trf.xlu0
    %v3752 = vpop.trf.xlu0
    %v3753 = vpop.trf.xlu0
    %v3754 = vpop.trf.xlu0
    %v3755 = vpop.trf.xlu0
    %v3756 = vpop.trf.xlu0
    %v3758 = vsel %vm2915, %v3749, 0
    %v3761 = vsel %vm2915, %v3750, 0
    %v3764 = vsel %vm2915, %v3751, 0
    %v3767 = vsel %vm2915, %v3752, 0
    %v3770 = vsel %vm2915, %v3753, 0
    %v3773 = vsel %vm2915, %v3754, 0
    %v3776 = vsel %vm2915, %v3755, 0
    %v3779 = vsel %vm2915, %v3756, 0
    %v3782 = vsel %vm2940, %v441, 0
    %3784 = vmatprep.subr.bf16.mxu0 0
    %3785 = vmatpush1.bf16.msra.mxu0 %v3782
    %3786 = vmatprep.subr.bf16.mxu0 0
    %3787 = vmatpush1.bf16.msra.mxu0 0
    %3788 = vmatprep.subr.bf16.mxu0 0
    %3789 = vmatpush1.bf16.msra.mxu0 0
    %3790 = vmatprep.subr.bf16.mxu0 0
    %3791 = vmatpush1.bf16.msra.mxu0 0
    %3792 = vmatprep.subr.bf16.mxu0 0
    %3793 = vmatpush1.bf16.msra.mxu0 0
    %3794 = vmatprep.subr.bf16.mxu0 0
    %3795 = vmatpush1.bf16.msra.mxu0 0
    %3796 = vmatprep.subr.bf16.mxu0 0
    %3797 = vmatpush1.bf16.msra.mxu0 0
    %3798 = vmatprep.subr.bf16.mxu0 0
    %3799 = vmatpush1.bf16.msra.mxu0 0
    %3800 = vmatprep.subr.bf16.mxu0 0
    %3801 = vmatpush1.bf16.msra.mxu0 0
    %3802 = vmatprep.subr.bf16.mxu0 0
    %3803 = vmatpush1.bf16.msra.mxu0 0
    %3804 = vmatprep.subr.bf16.mxu0 0
    %3805 = vmatpush1.bf16.msra.mxu0 0
    %3806 = vmatprep.subr.bf16.mxu0 0
    %3807 = vmatpush1.bf16.msra.mxu0 0
    %3808 = vmatprep.subr.bf16.mxu0 0
    %3809 = vmatpush1.bf16.msra.mxu0 0
    %3810 = vmatprep.subr.bf16.mxu0 0
    %3811 = vmatpush1.bf16.msra.mxu0 0
    %3812 = vmatprep.subr.bf16.mxu0 0
    %3813 = vmatpush1.bf16.msra.mxu0 0
    %3814 = vmatprep.subr.bf16.mxu0 0
    %3815 = vmatpush1.bf16.msra.mxu0 0
    %3816 = vmatprep.mubr.bf16.mxu0 0
    %3817 = vmatmul.mubr.bf16.gmra.mrb[0].mxu0 %v3758
    %v3818 = vpop.f32.mrb[0].mxu0
    %v3819 = vadd.f32 0.0, %v3818
    %v3820 = vpop.f32.mrb[0].mxu0
    %v3821 = vpop.f32.mrb[0].mxu0
    %v3822 = vadd.f32 0.0, %v3821
    %v3823 = vpop.f32.mrb[0].mxu0
    %3824 = vmatprep.mubr.bf16.mxu0 0
    %3825 = vmatmul.mubr.bf16.gmra.mrb[0].mxu0 %v3761
    %v3826 = vpop.f32.mrb[0].mxu0
    %v3827 = vadd.f32 0.0, %v3826
    %v3828 = vpop.f32.mrb[0].mxu0
    %v3829 = vpop.f32.mrb[0].mxu0
    %v3830 = vadd.f32 0.0, %v3829
    %v3831 = vpop.f32.mrb[0].mxu0
    %3832 = vmatprep.mubr.bf16.mxu0 0
    %3833 = vmatmul.mubr.bf16.gmra.mrb[0].mxu0 %v3764
    %v3834 = vpop.f32.mrb[0].mxu0
    %v3835 = vadd.f32 0.0, %v3834
    %v3836 = vpop.f32.mrb[0].mxu0
    %v3837 = vpop.f32.mrb[0].mxu0
    %v3838 = vadd.f32 0.0, %v3837
    %v3839 = vpop.f32.mrb[0].mxu0
    %3840 = vmatprep.mubr.bf16.mxu0 0
    %3841 = vmatmul.mubr.bf16.gmra.mrb[0].mxu0 %v3767
    %v3842 = vpop.f32.mrb[0].mxu0
    %v3843 = vadd.f32 0.0, %v3842
    %v3844 = vpop.f32.mrb[0].mxu0
    %v3845 = vpop.f32.mrb[0].mxu0
    %v3846 = vadd.f32 0.0, %v3845
    %v3847 = vpop.f32.mrb[0].mxu0
    %3848 = vmatprep.mubr.bf16.mxu0 0
    %3849 = vmatmul.mubr.bf16.gmra.mrb[0].mxu0 %v3770
    %v3850 = vpop.f32.mrb[0].mxu0
    %v3851 = vadd.f32 0.0, %v3850
    %v3852 = vpop.f32.mrb[0].mxu0
    %v3853 = vpop.f32.mrb[0].mxu0
    %v3854 = vadd.f32 0.0, %v3853
    %v3855 = vpop.f32.mrb[0].mxu0
    %3856 = vmatprep.mubr.bf16.mxu0 0
    %3857 = vmatmul.mubr.bf16.gmra.mrb[0].mxu0 %v3773
    %v3858 = vpop.f32.mrb[0].mxu0
    %v3859 = vadd.f32 0.0, %v3858
    %v3860 = vpop.f32.mrb[0].mxu0
    %v3861 = vpop.f32.mrb[0].mxu0
    %v3862 = vadd.f32 0.0, %v3861
    %v3863 = vpop.f32.mrb[0].mxu0
    %3864 = vmatprep.mubr.bf16.mxu0 0
    %3865 = vmatmul.mubr.bf16.gmra.mrb[0].mxu0 %v3776
    %v3866 = vpop.f32.mrb[0].mxu0
    %v3867 = vadd.f32 0.0, %v3866
    %v3868 = vpop.f32.mrb[0].mxu0
    %v3869 = vpop.f32.mrb[0].mxu0
    %v3870 = vadd.f32 0.0, %v3869
    %v3871 = vpop.f32.mrb[0].mxu0
    %3872 = vmatprep.mubr.bf16.mxu0 0
    %3873 = vmatmul.mubr.bf16.gmra.mrb[0].mxu0 %v3779
    %v3874 = vpop.f32.mrb[0].mxu0
    %v3875 = vadd.f32 0.0, %v3874
    %v3876 = vpop.f32.mrb[0].mxu0
    %v3877 = vpop.f32.mrb[0].mxu0
    %v3878 = vadd.f32 0.0, %v3877
    %v3879 = vpop.f32.mrb[0].mxu0
    %3880 = vdwg.mxu0
    %3881 = vxpose.xlu0.c.b16.start [1/8] %v2890, 128
    %3882 = vxpose.xlu0.c.b16.cont [2/8] 0, 128
    %3883 = vxpose.xlu0.c.b16.cont [3/8] 0, 128
    %3884 = vxpose.xlu0.c.b16.cont [4/8] 0, 128
    %3885 = vxpose.xlu0.c.b16.cont [5/8] 0, 128
    %3886 = vxpose.xlu0.c.b16.cont [6/8] 0, 128
    %3887 = vxpose.xlu0.c.b16.cont [7/8] 0, 128
    %3888 = vxpose.xlu0.c.b16.end [8/8] 0, 128
    %v3889 = vpop.trf.xlu0
    %v3890 = vpop.trf.xlu0
    %v3891 = vpop.trf.xlu0
    %v3892 = vpop.trf.xlu0
    %v3893 = vpop.trf.xlu0
    %v3894 = vpop.trf.xlu0
    %v3895 = vpop.trf.xlu0
    %v3896 = vpop.trf.xlu0
    %v3898 = vsel %vm2915, %v3889, 0
    %v3901 = vsel %vm2915, %v3890, 0
    %v3904 = vsel %vm2915, %v3891, 0
    %v3907 = vsel %vm2915, %v3892, 0
    %v3910 = vsel %vm2915, %v3893, 0
    %v3913 = vsel %vm2915, %v3894, 0
    %v3916 = vsel %vm2915, %v3895, 0
    %v3919 = vsel %vm2915, %v3896, 0
    %v3922 = vsel %vm2940, %v442, 0
    %3924 = vmatprep.subr.bf16.mxu0 0
    %3925 = vmatpush1.bf16.msra.mxu0 %v3922
    %3926 = vmatprep.subr.bf16.mxu0 0
    %3927 = vmatpush1.bf16.msra.mxu0 0
    %3928 = vmatprep.subr.bf16.mxu0 0
    %3929 = vmatpush1.bf16.msra.mxu0 0
    %3930 = vmatprep.subr.bf16.mxu0 0
    %3931 = vmatpush1.bf16.msra.mxu0 0
    %3932 = vmatprep.subr.bf16.mxu0 0
    %3933 = vmatpush1.bf16.msra.mxu0 0
    %3934 = vmatprep.subr.bf16.mxu0 0
    %3935 = vmatpush1.bf16.msra.mxu0 0
    %3936 = vmatprep.subr.bf16.mxu0 0
    %3937 = vmatpush1.bf16.msra.mxu0 0
    %3938 = vmatprep.subr.bf16.mxu0 0
    %3939 = vmatpush1.bf16.msra.mxu0 0
    %3940 = vmatprep.subr.bf16.mxu0 0
    %3941 = vmatpush1.bf16.msra.mxu0 0
    %3942 = vmatprep.subr.bf16.mxu0 0
    %3943 = vmatpush1.bf16.msra.mxu0 0
    %3944 = vmatprep.subr.bf16.mxu0 0
    %3945 = vmatpush1.bf16.msra.mxu0 0
    %3946 = vmatprep.subr.bf16.mxu0 0
    %3947 = vmatpush1.bf16.msra.mxu0 0
    %3948 = vmatprep.subr.bf16.mxu0 0
    %3949 = vmatpush1.bf16.msra.mxu0 0
    %3950 = vmatprep.subr.bf16.mxu0 0
    %3951 = vmatpush1.bf16.msra.mxu0 0
    %3952 = vmatprep.subr.bf16.mxu0 0
    %3953 = vmatpush1.bf16.msra.mxu0 0
    %3954 = vmatprep.subr.bf16.mxu0 0
    %3955 = vmatpush1.bf16.msra.mxu0 0
    %3956 = vmatprep.mubr.bf16.mxu0 0
    %3957 = vmatmul.mubr.bf16.gmra.mrb[0].mxu0 %v3898
    %v3958 = vpop.f32.mrb[0].mxu0
    %v3959 = vadd.f32 0.0, %v3958
    %v3960 = vpop.f32.mrb[0].mxu0
    %v3961 = vpop.f32.mrb[0].mxu0
    %v3962 = vadd.f32 0.0, %v3961
    %v3963 = vpop.f32.mrb[0].mxu0
    %3964 = vmatprep.mubr.bf16.mxu0 0
    %3965 = vmatmul.mubr.bf16.gmra.mrb[0].mxu0 %v3901
    %v3966 = vpop.f32.mrb[0].mxu0
    %v3967 = vadd.f32 0.0, %v3966
    %v3968 = vpop.f32.mrb[0].mxu0
    %v3969 = vpop.f32.mrb[0].mxu0
    %v3970 = vadd.f32 0.0, %v3969
    %v3971 = vpop.f32.mrb[0].mxu0
    %3972 = vmatprep.mubr.bf16.mxu0 0
    %3973 = vmatmul.mubr.bf16.gmra.mrb[0].mxu0 %v3904
    %v3974 = vpop.f32.mrb[0].mxu0
    %v3975 = vadd.f32 0.0, %v3974
    %v3976 = vpop.f32.mrb[0].mxu0
    %v3977 = vpop.f32.mrb[0].mxu0
    %v3978 = vadd.f32 0.0, %v3977
    %v3979 = vpop.f32.mrb[0].mxu0
    %3980 = vmatprep.mubr.bf16.mxu0 0
    %3981 = vmatmul.mubr.bf16.gmra.mrb[0].mxu0 %v3907
    %v3982 = vpop.f32.mrb[0].mxu0
    %v3983 = vadd.f32 0.0, %v3982
    %v3984 = vpop.f32.mrb[0].mxu0
    %v3985 = vpop.f32.mrb[0].mxu0
    %v3986 = vadd.f32 0.0, %v3985
    %v3987 = vpop.f32.mrb[0].mxu0
    %3988 = vmatprep.mubr.bf16.mxu0 0
    %3989 = vmatmul.mubr.bf16.gmra.mrb[0].mxu0 %v3910
    %v3990 = vpop.f32.mrb[0].mxu0
    %v3991 = vadd.f32 0.0, %v3990
    %v3992 = vpop.f32.mrb[0].mxu0
    %v3993 = vpop.f32.mrb[0].mxu0
    %v3994 = vadd.f32 0.0, %v3993
    %v3995 = vpop.f32.mrb[0].mxu0
    %3996 = vmatprep.mubr.bf16.mxu0 0
    %3997 = vmatmul.mubr.bf16.gmra.mrb[0].mxu0 %v3913
    %v3998 = vpop.f32.mrb[0].mxu0
    %v3999 = vadd.f32 0.0, %v3998
    %v4000 = vpop.f32.mrb[0].mxu0
    %v4001 = vpop.f32.mrb[0].mxu0
    %v4002 = vadd.f32 0.0, %v4001
    %v4003 = vpop.f32.mrb[0].mxu0
    %4004 = vmatprep.mubr.bf16.mxu0 0
    %4005 = vmatmul.mubr.bf16.gmra.mrb[0].mxu0 %v3916
    %v4006 = vpop.f32.mrb[0].mxu0
    %v4007 = vadd.f32 0.0, %v4006
    %v4008 = vpop.f32.mrb[0].mxu0
    %v4009 = vpop.f32.mrb[0].mxu0
    %v4010 = vadd.f32 0.0, %v4009
    %v4011 = vpop.f32.mrb[0].mxu0
    %4012 = vmatprep.mubr.bf16.mxu0 0
    %4013 = vmatmul.mubr.bf16.gmra.mrb[0].mxu0 %v3919
    %v4014 = vpop.f32.mrb[0].mxu0
    %v4015 = vadd.f32 0.0, %v4014
    %v4016 = vpop.f32.mrb[0].mxu0
    %v4017 = vpop.f32.mrb[0].mxu0
    %v4018 = vadd.f32 0.0, %v4017
    %v4019 = vpop.f32.mrb[0].mxu0
    %4020 = vdwg.mxu0
    %4021 = vxpose.xlu0.c.b16.start [1/8] %v2891, 128
    %4022 = vxpose.xlu0.c.b16.cont [2/8] 0, 128
    %4023 = vxpose.xlu0.c.b16.cont [3/8] 0, 128
    %4024 = vxpose.xlu0.c.b16.cont [4/8] 0, 128
    %4025 = vxpose.xlu0.c.b16.cont [5/8] 0, 128
    %4026 = vxpose.xlu0.c.b16.cont [6/8] 0, 128
    %4027 = vxpose.xlu0.c.b16.cont [7/8] 0, 128
    %4028 = vxpose.xlu0.c.b16.end [8/8] 0, 128
    %v4029 = vpop.trf.xlu0
    %v4030 = vpop.trf.xlu0
    %v4031 = vpop.trf.xlu0
    %v4032 = vpop.trf.xlu0
    %v4033 = vpop.trf.xlu0
    %v4034 = vpop.trf.xlu0
    %v4035 = vpop.trf.xlu0
    %v4036 = vpop.trf.xlu0
    %v4038 = vsel %vm2915, %v4029, 0
    %v4041 = vsel %vm2915, %v4030, 0
    %v4044 = vsel %vm2915, %v4031, 0
    %v4047 = vsel %vm2915, %v4032, 0
    %v4050 = vsel %vm2915, %v4033, 0
    %v4053 = vsel %vm2915, %v4034, 0
    %v4056 = vsel %vm2915, %v4035, 0
    %v4059 = vsel %vm2915, %v4036, 0
    %v4062 = vsel %vm2940, %v443, 0
    %4064 = vmatprep.subr.bf16.mxu0 0
    %4065 = vmatpush1.bf16.msra.mxu0 %v4062
    %4066 = vmatprep.subr.bf16.mxu0 0
    %4067 = vmatpush1.bf16.msra.mxu0 0
    %4068 = vmatprep.subr.bf16.mxu0 0
    %4069 = vmatpush1.bf16.msra.mxu0 0
    %4070 = vmatprep.subr.bf16.mxu0 0
    %4071 = vmatpush1.bf16.msra.mxu0 0
    %4072 = vmatprep.subr.bf16.mxu0 0
    %4073 = vmatpush1.bf16.msra.mxu0 0
    %4074 = vmatprep.subr.bf16.mxu0 0
    %4075 = vmatpush1.bf16.msra.mxu0 0
    %4076 = vmatprep.subr.bf16.mxu0 0
    %4077 = vmatpush1.bf16.msra.mxu0 0
    %4078 = vmatprep.subr.bf16.mxu0 0
    %4079 = vmatpush1.bf16.msra.mxu0 0
    %4080 = vmatprep.subr.bf16.mxu0 0
    %4081 = vmatpush1.bf16.msra.mxu0 0
    %4082 = vmatprep.subr.bf16.mxu0 0
    %4083 = vmatpush1.bf16.msra.mxu0 0
    %4084 = vmatprep.subr.bf16.mxu0 0
    %4085 = vmatpush1.bf16.msra.mxu0 0
    %4086 = vmatprep.subr.bf16.mxu0 0
    %4087 = vmatpush1.bf16.msra.mxu0 0
    %4088 = vmatprep.subr.bf16.mxu0 0
    %4089 = vmatpush1.bf16.msra.mxu0 0
    %4090 = vmatprep.subr.bf16.mxu0 0
    %4091 = vmatpush1.bf16.msra.mxu0 0
    %4092 = vmatprep.subr.bf16.mxu0 0
    %4093 = vmatpush1.bf16.msra.mxu0 0
    %4094 = vmatprep.subr.bf16.mxu0 0
    %4095 = vmatpush1.bf16.msra.mxu0 0
    %4096 = vmatprep.mubr.bf16.mxu0 0
    %4097 = vmatmul.mubr.bf16.gmra.mrb[0].mxu0 %v4038
    %v4098 = vpop.f32.mrb[0].mxu0
    %v4099 = vadd.f32 0.0, %v4098
    %v4100 = vpop.f32.mrb[0].mxu0
    %v4101 = vpop.f32.mrb[0].mxu0
    %v4102 = vadd.f32 0.0, %v4101
    %v4103 = vpop.f32.mrb[0].mxu0
    %4104 = vmatprep.mubr.bf16.mxu0 0
    %4105 = vmatmul.mubr.bf16.gmra.mrb[0].mxu0 %v4041
    %v4106 = vpop.f32.mrb[0].mxu0
    %v4107 = vadd.f32 0.0, %v4106
    %v4108 = vpop.f32.mrb[0].mxu0
    %v4109 = vpop.f32.mrb[0].mxu0
    %v4110 = vadd.f32 0.0, %v4109
    %v4111 = vpop.f32.mrb[0].mxu0
    %4112 = vmatprep.mubr.bf16.mxu0 0
    %4113 = vmatmul.mubr.bf16.gmra.mrb[0].mxu0 %v4044
    %v4114 = vpop.f32.mrb[0].mxu0
    %v4115 = vadd.f32 0.0, %v4114
    %v4116 = vpop.f32.mrb[0].mxu0
    %v4117 = vpop.f32.mrb[0].mxu0
    %v4118 = vadd.f32 0.0, %v4117
    %v4119 = vpop.f32.mrb[0].mxu0
    %4120 = vmatprep.mubr.bf16.mxu0 0
    %4121 = vmatmul.mubr.bf16.gmra.mrb[0].mxu0 %v4047
    %v4122 = vpop.f32.mrb[0].mxu0
    %v4123 = vadd.f32 0.0, %v4122
    %v4124 = vpop.f32.mrb[0].mxu0
    %v4125 = vpop.f32.mrb[0].mxu0
    %v4126 = vadd.f32 0.0, %v4125
    %v4127 = vpop.f32.mrb[0].mxu0
    %4128 = vmatprep.mubr.bf16.mxu0 0
    %4129 = vmatmul.mubr.bf16.gmra.mrb[0].mxu0 %v4050
    %v4130 = vpop.f32.mrb[0].mxu0
    %v4131 = vadd.f32 0.0, %v4130
    %v4132 = vpop.f32.mrb[0].mxu0
    %v4133 = vpop.f32.mrb[0].mxu0
    %v4134 = vadd.f32 0.0, %v4133
    %v4135 = vpop.f32.mrb[0].mxu0
    %4136 = vmatprep.mubr.bf16.mxu0 0
    %4137 = vmatmul.mubr.bf16.gmra.mrb[0].mxu0 %v4053
    %v4138 = vpop.f32.mrb[0].mxu0
    %v4139 = vadd.f32 0.0, %v4138
    %v4140 = vpop.f32.mrb[0].mxu0
    %v4141 = vpop.f32.mrb[0].mxu0
    %v4142 = vadd.f32 0.0, %v4141
    %v4143 = vpop.f32.mrb[0].mxu0
    %4144 = vmatprep.mubr.bf16.mxu0 0
    %4145 = vmatmul.mubr.bf16.gmra.mrb[0].mxu0 %v4056
    %v4146 = vpop.f32.mrb[0].mxu0
    %v4147 = vadd.f32 0.0, %v4146
    %v4148 = vpop.f32.mrb[0].mxu0
    %v4149 = vpop.f32.mrb[0].mxu0
    %v4150 = vadd.f32 0.0, %v4149
    %v4151 = vpop.f32.mrb[0].mxu0
    %4152 = vmatprep.mubr.bf16.mxu0 0
    %4153 = vmatmul.mubr.bf16.gmra.mrb[0].mxu0 %v4059
    %v4154 = vpop.f32.mrb[0].mxu0
    %v4155 = vadd.f32 0.0, %v4154
    %v4156 = vpop.f32.mrb[0].mxu0
    %v4157 = vpop.f32.mrb[0].mxu0
    %v4158 = vadd.f32 0.0, %v4157
    %v4159 = vpop.f32.mrb[0].mxu0
    %4160 = vdwg.mxu0
    %4161 = vxpose.xlu0.c.b16.start [1/8] %v2892, 128
    %4162 = vxpose.xlu0.c.b16.cont [2/8] 0, 128
    %4163 = vxpose.xlu0.c.b16.cont [3/8] 0, 128
    %4164 = vxpose.xlu0.c.b16.cont [4/8] 0, 128
    %4165 = vxpose.xlu0.c.b16.cont [5/8] 0, 128
    %4166 = vxpose.xlu0.c.b16.cont [6/8] 0, 128
    %4167 = vxpose.xlu0.c.b16.cont [7/8] 0, 128
    %4168 = vxpose.xlu0.c.b16.end [8/8] 0, 128
    %v4169 = vpop.trf.xlu0
    %v4170 = vpop.trf.xlu0
    %v4171 = vpop.trf.xlu0
    %v4172 = vpop.trf.xlu0
    %v4173 = vpop.trf.xlu0
    %v4174 = vpop.trf.xlu0
    %v4175 = vpop.trf.xlu0
    %v4176 = vpop.trf.xlu0
    %v4178 = vsel %vm2915, %v4169, 0
    %v4181 = vsel %vm2915, %v4170, 0
    %v4184 = vsel %vm2915, %v4171, 0
    %v4187 = vsel %vm2915, %v4172, 0
    %v4190 = vsel %vm2915, %v4173, 0
    %v4193 = vsel %vm2915, %v4174, 0
    %v4196 = vsel %vm2915, %v4175, 0
    %v4199 = vsel %vm2915, %v4176, 0
    %v4202 = vsel %vm2940, %v444, 0
    %4204 = vmatprep.subr.bf16.mxu0 0
    %4205 = vmatpush1.bf16.msra.mxu0 %v4202
    %4206 = vmatprep.subr.bf16.mxu0 0
    %4207 = vmatpush1.bf16.msra.mxu0 0
    %4208 = vmatprep.subr.bf16.mxu0 0
    %4209 = vmatpush1.bf16.msra.mxu0 0
    %4210 = vmatprep.subr.bf16.mxu0 0
    %4211 = vmatpush1.bf16.msra.mxu0 0
    %4212 = vmatprep.subr.bf16.mxu0 0
    %4213 = vmatpush1.bf16.msra.mxu0 0
    %4214 = vmatprep.subr.bf16.mxu0 0
    %4215 = vmatpush1.bf16.msra.mxu0 0
    %4216 = vmatprep.subr.bf16.mxu0 0
    %4217 = vmatpush1.bf16.msra.mxu0 0
    %4218 = vmatprep.subr.bf16.mxu0 0
    %4219 = vmatpush1.bf16.msra.mxu0 0
    %4220 = vmatprep.subr.bf16.mxu0 0
    %4221 = vmatpush1.bf16.msra.mxu0 0
    %4222 = vmatprep.subr.bf16.mxu0 0
    %4223 = vmatpush1.bf16.msra.mxu0 0
    %4224 = vmatprep.subr.bf16.mxu0 0
    %4225 = vmatpush1.bf16.msra.mxu0 0
    %4226 = vmatprep.subr.bf16.mxu0 0
    %4227 = vmatpush1.bf16.msra.mxu0 0
    %4228 = vmatprep.subr.bf16.mxu0 0
    %4229 = vmatpush1.bf16.msra.mxu0 0
    %4230 = vmatprep.subr.bf16.mxu0 0
    %4231 = vmatpush1.bf16.msra.mxu0 0
    %4232 = vmatprep.subr.bf16.mxu0 0
    %4233 = vmatpush1.bf16.msra.mxu0 0
    %4234 = vmatprep.subr.bf16.mxu0 0
    %4235 = vmatpush1.bf16.msra.mxu0 0
    %4236 = vmatprep.mubr.bf16.mxu0 0
    %4237 = vmatmul.mubr.bf16.gmra.mrb[0].mxu0 %v4178
    %v4238 = vpop.f32.mrb[0].mxu0
    %v4239 = vadd.f32 0.0, %v4238
    %v4240 = vpop.f32.mrb[0].mxu0
    %v4241 = vpop.f32.mrb[0].mxu0
    %v4242 = vadd.f32 0.0, %v4241
    %v4243 = vpop.f32.mrb[0].mxu0
    %4244 = vmatprep.mubr.bf16.mxu0 0
    %4245 = vmatmul.mubr.bf16.gmra.mrb[0].mxu0 %v4181
    %v4246 = vpop.f32.mrb[0].mxu0
    %v4247 = vadd.f32 0.0, %v4246
    %v4248 = vpop.f32.mrb[0].mxu0
    %v4249 = vpop.f32.mrb[0].mxu0
    %v4250 = vadd.f32 0.0, %v4249
    %v4251 = vpop.f32.mrb[0].mxu0
    %4252 = vmatprep.mubr.bf16.mxu0 0
    %4253 = vmatmul.mubr.bf16.gmra.mrb[0].mxu0 %v4184
    %v4254 = vpop.f32.mrb[0].mxu0
    %v4255 = vadd.f32 0.0, %v4254
    %v4256 = vpop.f32.mrb[0].mxu0
    %v4257 = vpop.f32.mrb[0].mxu0
    %v4258 = vadd.f32 0.0, %v4257
    %v4259 = vpop.f32.mrb[0].mxu0
    %4260 = vmatprep.mubr.bf16.mxu0 0
    %4261 = vmatmul.mubr.bf16.gmra.mrb[0].mxu0 %v4187
    %v4262 = vpop.f32.mrb[0].mxu0
    %v4263 = vadd.f32 0.0, %v4262
    %v4264 = vpop.f32.mrb[0].mxu0
    %v4265 = vpop.f32.mrb[0].mxu0
    %v4266 = vadd.f32 0.0, %v4265
    %v4267 = vpop.f32.mrb[0].mxu0
    %4268 = vmatprep.mubr.bf16.mxu0 0
    %4269 = vmatmul.mubr.bf16.gmra.mrb[0].mxu0 %v4190
    %v4270 = vpop.f32.mrb[0].mxu0
    %v4271 = vadd.f32 0.0, %v4270
    %v4272 = vpop.f32.mrb[0].mxu0
    %v4273 = vpop.f32.mrb[0].mxu0
    %v4274 = vadd.f32 0.0, %v4273
    %v4275 = vpop.f32.mrb[0].mxu0
    %4276 = vmatprep.mubr.bf16.mxu0 0
    %4277 = vmatmul.mubr.bf16.gmra.mrb[0].mxu0 %v4193
    %v4278 = vpop.f32.mrb[0].mxu0
    %v4279 = vadd.f32 0.0, %v4278
    %v4280 = vpop.f32.mrb[0].mxu0
    %v4281 = vpop.f32.mrb[0].mxu0
    %v4282 = vadd.f32 0.0, %v4281
    %v4283 = vpop.f32.mrb[0].mxu0
    %4284 = vmatprep.mubr.bf16.mxu0 0
    %4285 = vmatmul.mubr.bf16.gmra.mrb[0].mxu0 %v4196
    %v4286 = vpop.f32.mrb[0].mxu0
    %v4287 = vadd.f32 0.0, %v4286
    %v4288 = vpop.f32.mrb[0].mxu0
    %v4289 = vpop.f32.mrb[0].mxu0
    %v4290 = vadd.f32 0.0, %v4289
    %v4291 = vpop.f32.mrb[0].mxu0
    %4292 = vmatprep.mubr.bf16.mxu0 0
    %4293 = vmatmul.mubr.bf16.gmra.mrb[0].mxu0 %v4199
    %v4294 = vpop.f32.mrb[0].mxu0
    %v4295 = vadd.f32 0.0, %v4294
    %v4296 = vpop.f32.mrb[0].mxu0
    %v4297 = vpop.f32.mrb[0].mxu0
    %v4298 = vadd.f32 0.0, %v4297
    %v4299 = vpop.f32.mrb[0].mxu0
    %4300 = vdwg.mxu0
    %4301 = vxpose.xlu0.c.b16.start [1/8] %v2893, 128
    %4302 = vxpose.xlu0.c.b16.cont [2/8] 0, 128
    %4303 = vxpose.xlu0.c.b16.cont [3/8] 0, 128
    %4304 = vxpose.xlu0.c.b16.cont [4/8] 0, 128
    %4305 = vxpose.xlu0.c.b16.cont [5/8] 0, 128
    %4306 = vxpose.xlu0.c.b16.cont [6/8] 0, 128
    %4307 = vxpose.xlu0.c.b16.cont [7/8] 0, 128
    %4308 = vxpose.xlu0.c.b16.end [8/8] 0, 128
    %v4309 = vpop.trf.xlu0
    %v4310 = vpop.trf.xlu0
    %v4311 = vpop.trf.xlu0
    %v4312 = vpop.trf.xlu0
    %v4313 = vpop.trf.xlu0
    %v4314 = vpop.trf.xlu0
    %v4315 = vpop.trf.xlu0
    %v4316 = vpop.trf.xlu0
    %v4318 = vsel %vm2915, %v4309, 0
    %v4321 = vsel %vm2915, %v4310, 0
    %v4324 = vsel %vm2915, %v4311, 0
    %v4327 = vsel %vm2915, %v4312, 0
    %v4330 = vsel %vm2915, %v4313, 0
    %v4333 = vsel %vm2915, %v4314, 0
    %v4336 = vsel %vm2915, %v4315, 0
    %v4339 = vsel %vm2915, %v4316, 0
    %v4342 = vsel %vm2940, %v445, 0
    %4344 = vmatprep.subr.bf16.mxu0 0
    %4345 = vmatpush1.bf16.msra.mxu0 %v4342
    %4346 = vmatprep.subr.bf16.mxu0 0
    %4347 = vmatpush1.bf16.msra.mxu0 0
    %4348 = vmatprep.subr.bf16.mxu0 0
    %4349 = vmatpush1.bf16.msra.mxu0 0
    %4350 = vmatprep.subr.bf16.mxu0 0
    %4351 = vmatpush1.bf16.msra.mxu0 0
    %4352 = vmatprep.subr.bf16.mxu0 0
    %4353 = vmatpush1.bf16.msra.mxu0 0
    %4354 = vmatprep.subr.bf16.mxu0 0
    %4355 = vmatpush1.bf16.msra.mxu0 0
    %4356 = vmatprep.subr.bf16.mxu0 0
    %4357 = vmatpush1.bf16.msra.mxu0 0
    %4358 = vmatprep.subr.bf16.mxu0 0
    %4359 = vmatpush1.bf16.msra.mxu0 0
    %4360 = vmatprep.subr.bf16.mxu0 0
    %4361 = vmatpush1.bf16.msra.mxu0 0
    %4362 = vmatprep.subr.bf16.mxu0 0
    %4363 = vmatpush1.bf16.msra.mxu0 0
    %4364 = vmatprep.subr.bf16.mxu0 0
    %4365 = vmatpush1.bf16.msra.mxu0 0
    %4366 = vmatprep.subr.bf16.mxu0 0
    %4367 = vmatpush1.bf16.msra.mxu0 0
    %4368 = vmatprep.subr.bf16.mxu0 0
    %4369 = vmatpush1.bf16.msra.mxu0 0
    %4370 = vmatprep.subr.bf16.mxu0 0
    %4371 = vmatpush1.bf16.msra.mxu0 0
    %4372 = vmatprep.subr.bf16.mxu0 0
    %4373 = vmatpush1.bf16.msra.mxu0 0
    %4374 = vmatprep.subr.bf16.mxu0 0
    %4375 = vmatpush1.bf16.msra.mxu0 0
    %4376 = vmatprep.mubr.bf16.mxu0 0
    %4377 = vmatmul.mubr.bf16.gmra.mrb[0].mxu0 %v4318
    %v4378 = vpop.f32.mrb[0].mxu0
    %v4379 = vadd.f32 0.0, %v4378
    %v4380 = vpop.f32.mrb[0].mxu0
    %v4381 = vpop.f32.mrb[0].mxu0
    %v4382 = vadd.f32 0.0, %v4381
    %v4383 = vpop.f32.mrb[0].mxu0
    %4384 = vmatprep.mubr.bf16.mxu0 0
    %4385 = vmatmul.mubr.bf16.gmra.mrb[0].mxu0 %v4321
    %v4386 = vpop.f32.mrb[0].mxu0
    %v4387 = vadd.f32 0.0, %v4386
    %v4388 = vpop.f32.mrb[0].mxu0
    %v4389 = vpop.f32.mrb[0].mxu0
    %v4390 = vadd.f32 0.0, %v4389
    %v4391 = vpop.f32.mrb[0].mxu0
    %4392 = vmatprep.mubr.bf16.mxu0 0
    %4393 = vmatmul.mubr.bf16.gmra.mrb[0].mxu0 %v4324
    %v4394 = vpop.f32.mrb[0].mxu0
    %v4395 = vadd.f32 0.0, %v4394
    %v4396 = vpop.f32.mrb[0].mxu0
    %v4397 = vpop.f32.mrb[0].mxu0
    %v4398 = vadd.f32 0.0, %v4397
    %v4399 = vpop.f32.mrb[0].mxu0
    %4400 = vmatprep.mubr.bf16.mxu0 0
    %4401 = vmatmul.mubr.bf16.gmra.mrb[0].mxu0 %v4327
    %v4402 = vpop.f32.mrb[0].mxu0
    %v4403 = vadd.f32 0.0, %v4402
    %v4404 = vpop.f32.mrb[0].mxu0
    %v4405 = vpop.f32.mrb[0].mxu0
    %v4406 = vadd.f32 0.0, %v4405
    %v4407 = vpop.f32.mrb[0].mxu0
    %4408 = vmatprep.mubr.bf16.mxu0 0
    %4409 = vmatmul.mubr.bf16.gmra.mrb[0].mxu0 %v4330
    %v4410 = vpop.f32.mrb[0].mxu0
    %v4411 = vadd.f32 0.0, %v4410
    %v4412 = vpop.f32.mrb[0].mxu0
    %v4413 = vpop.f32.mrb[0].mxu0
    %v4414 = vadd.f32 0.0, %v4413
    %v4415 = vpop.f32.mrb[0].mxu0
    %4416 = vmatprep.mubr.bf16.mxu0 0
    %4417 = vmatmul.mubr.bf16.gmra.mrb[0].mxu0 %v4333
    %v4418 = vpop.f32.mrb[0].mxu0
    %v4419 = vadd.f32 0.0, %v4418
    %v4420 = vpop.f32.mrb[0].mxu0
    %v4421 = vpop.f32.mrb[0].mxu0
    %v4422 = vadd.f32 0.0, %v4421
    %v4423 = vpop.f32.mrb[0].mxu0
    %4424 = vmatprep.mubr.bf16.mxu0 0
    %4425 = vmatmul.mubr.bf16.gmra.mrb[0].mxu0 %v4336
    %v4426 = vpop.f32.mrb[0].mxu0
    %v4427 = vadd.f32 0.0, %v4426
    %v4428 = vpop.f32.mrb[0].mxu0
    %v4429 = vpop.f32.mrb[0].mxu0
    %v4430 = vadd.f32 0.0, %v4429
    %v4431 = vpop.f32.mrb[0].mxu0
    %4432 = vmatprep.mubr.bf16.mxu0 0
    %4433 = vmatmul.mubr.bf16.gmra.mrb[0].mxu0 %v4339
    %v4434 = vpop.f32.mrb[0].mxu0
    %v4435 = vadd.f32 0.0, %v4434
    %v4436 = vpop.f32.mrb[0].mxu0
    %v4437 = vpop.f32.mrb[0].mxu0
    %v4438 = vadd.f32 0.0, %v4437
    %v4439 = vpop.f32.mrb[0].mxu0
    %4440 = vdwg.mxu0
    %4441 = vxpose.xlu0.c.b16.start [1/8] %v2894, 128
    %4442 = vxpose.xlu0.c.b16.cont [2/8] 0, 128
    %4443 = vxpose.xlu0.c.b16.cont [3/8] 0, 128
    %4444 = vxpose.xlu0.c.b16.cont [4/8] 0, 128
    %4445 = vxpose.xlu0.c.b16.cont [5/8] 0, 128
    %4446 = vxpose.xlu0.c.b16.cont [6/8] 0, 128
    %4447 = vxpose.xlu0.c.b16.cont [7/8] 0, 128
    %4448 = vxpose.xlu0.c.b16.end [8/8] 0, 128
    %v4449 = vpop.trf.xlu0
    %v4450 = vpop.trf.xlu0
    %v4451 = vpop.trf.xlu0
    %v4452 = vpop.trf.xlu0
    %v4453 = vpop.trf.xlu0
    %v4454 = vpop.trf.xlu0
    %v4455 = vpop.trf.xlu0
    %v4456 = vpop.trf.xlu0
    %v4458 = vsel %vm2915, %v4449, 0
    %v4461 = vsel %vm2915, %v4450, 0
    %v4464 = vsel %vm2915, %v4451, 0
    %v4467 = vsel %vm2915, %v4452, 0
    %v4470 = vsel %vm2915, %v4453, 0
    %v4473 = vsel %vm2915, %v4454, 0
    %v4476 = vsel %vm2915, %v4455, 0
    %v4479 = vsel %vm2915, %v4456, 0
    %v4482 = vsel %vm2940, %v446, 0
    %4484 = vmatprep.subr.bf16.mxu0 0
    %4485 = vmatpush1.bf16.msra.mxu0 %v4482
    %4486 = vmatprep.subr.bf16.mxu0 0
    %4487 = vmatpush1.bf16.msra.mxu0 0
    %4488 = vmatprep.subr.bf16.mxu0 0
    %4489 = vmatpush1.bf16.msra.mxu0 0
    %4490 = vmatprep.subr.bf16.mxu0 0
    %4491 = vmatpush1.bf16.msra.mxu0 0
    %4492 = vmatprep.subr.bf16.mxu0 0
    %4493 = vmatpush1.bf16.msra.mxu0 0
    %4494 = vmatprep.subr.bf16.mxu0 0
    %4495 = vmatpush1.bf16.msra.mxu0 0
    %4496 = vmatprep.subr.bf16.mxu0 0
    %4497 = vmatpush1.bf16.msra.mxu0 0
    %4498 = vmatprep.subr.bf16.mxu0 0
    %4499 = vmatpush1.bf16.msra.mxu0 0
    %4500 = vmatprep.subr.bf16.mxu0 0
    %4501 = vmatpush1.bf16.msra.mxu0 0
    %4502 = vmatprep.subr.bf16.mxu0 0
    %4503 = vmatpush1.bf16.msra.mxu0 0
    %4504 = vmatprep.subr.bf16.mxu0 0
    %4505 = vmatpush1.bf16.msra.mxu0 0
    %4506 = vmatprep.subr.bf16.mxu0 0
    %4507 = vmatpush1.bf16.msra.mxu0 0
    %4508 = vmatprep.subr.bf16.mxu0 0
    %4509 = vmatpush1.bf16.msra.mxu0 0
    %4510 = vmatprep.subr.bf16.mxu0 0
    %4511 = vmatpush1.bf16.msra.mxu0 0
    %4512 = vmatprep.subr.bf16.mxu0 0
    %4513 = vmatpush1.bf16.msra.mxu0 0
    %4514 = vmatprep.subr.bf16.mxu0 0
    %4515 = vmatpush1.bf16.msra.mxu0 0
    %4516 = vmatprep.mubr.bf16.mxu0 0
    %4517 = vmatmul.mubr.bf16.gmra.mrb[0].mxu0 %v4458
    %v4518 = vpop.f32.mrb[0].mxu0
    %v4519 = vadd.f32 0.0, %v4518
    %v4520 = vpop.f32.mrb[0].mxu0
    %v4521 = vpop.f32.mrb[0].mxu0
    %v4522 = vadd.f32 0.0, %v4521
    %v4523 = vpop.f32.mrb[0].mxu0
    %4524 = vmatprep.mubr.bf16.mxu0 0
    %4525 = vmatmul.mubr.bf16.gmra.mrb[0].mxu0 %v4461
    %v4526 = vpop.f32.mrb[0].mxu0
    %v4527 = vadd.f32 0.0, %v4526
    %v4528 = vpop.f32.mrb[0].mxu0
    %v4529 = vpop.f32.mrb[0].mxu0
    %v4530 = vadd.f32 0.0, %v4529
    %v4531 = vpop.f32.mrb[0].mxu0
    %4532 = vmatprep.mubr.bf16.mxu0 0
    %4533 = vmatmul.mubr.bf16.gmra.mrb[0].mxu0 %v4464
    %v4534 = vpop.f32.mrb[0].mxu0
    %v4535 = vadd.f32 0.0, %v4534
    %v4536 = vpop.f32.mrb[0].mxu0
    %v4537 = vpop.f32.mrb[0].mxu0
    %v4538 = vadd.f32 0.0, %v4537
    %v4539 = vpop.f32.mrb[0].mxu0
    %4540 = vmatprep.mubr.bf16.mxu0 0
    %4541 = vmatmul.mubr.bf16.gmra.mrb[0].mxu0 %v4467
    %v4542 = vpop.f32.mrb[0].mxu0
    %v4543 = vadd.f32 0.0, %v4542
    %v4544 = vpop.f32.mrb[0].mxu0
    %v4545 = vpop.f32.mrb[0].mxu0
    %v4546 = vadd.f32 0.0, %v4545
    %v4547 = vpop.f32.mrb[0].mxu0
    %4548 = vmatprep.mubr.bf16.mxu0 0
    %4549 = vmatmul.mubr.bf16.gmra.mrb[0].mxu0 %v4470
    %v4550 = vpop.f32.mrb[0].mxu0
    %v4551 = vadd.f32 0.0, %v4550
    %v4552 = vpop.f32.mrb[0].mxu0
    %v4553 = vpop.f32.mrb[0].mxu0
    %v4554 = vadd.f32 0.0, %v4553
    %v4555 = vpop.f32.mrb[0].mxu0
    %4556 = vmatprep.mubr.bf16.mxu0 0
    %4557 = vmatmul.mubr.bf16.gmra.mrb[0].mxu0 %v4473
    %v4558 = vpop.f32.mrb[0].mxu0
    %v4559 = vadd.f32 0.0, %v4558
    %v4560 = vpop.f32.mrb[0].mxu0
    %v4561 = vpop.f32.mrb[0].mxu0
    %v4562 = vadd.f32 0.0, %v4561
    %v4563 = vpop.f32.mrb[0].mxu0
    %4564 = vmatprep.mubr.bf16.mxu0 0
    %4565 = vmatmul.mubr.bf16.gmra.mrb[0].mxu0 %v4476
    %v4566 = vpop.f32.mrb[0].mxu0
    %v4567 = vadd.f32 0.0, %v4566
    %v4568 = vpop.f32.mrb[0].mxu0
    %v4569 = vpop.f32.mrb[0].mxu0
    %v4570 = vadd.f32 0.0, %v4569
    %v4571 = vpop.f32.mrb[0].mxu0
    %4572 = vmatprep.mubr.bf16.mxu0 0
    %4573 = vmatmul.mubr.bf16.gmra.mrb[0].mxu0 %v4479
    %v4574 = vpop.f32.mrb[0].mxu0
    %v4575 = vadd.f32 0.0, %v4574
    %v4576 = vpop.f32.mrb[0].mxu0
    %v4577 = vpop.f32.mrb[0].mxu0
    %v4578 = vadd.f32 0.0, %v4577
    %v4579 = vpop.f32.mrb[0].mxu0
    %4580 = vdwg.mxu0
    %4581 = vxpose.xlu0.c.b16.start [1/8] %v2895, 128
    %4582 = vxpose.xlu0.c.b16.cont [2/8] 0, 128
    %4583 = vxpose.xlu0.c.b16.cont [3/8] 0, 128
    %4584 = vxpose.xlu0.c.b16.cont [4/8] 0, 128
    %4585 = vxpose.xlu0.c.b16.cont [5/8] 0, 128
    %4586 = vxpose.xlu0.c.b16.cont [6/8] 0, 128
    %4587 = vxpose.xlu0.c.b16.cont [7/8] 0, 128
    %4588 = vxpose.xlu0.c.b16.end [8/8] 0, 128
    %v4589 = vpop.trf.xlu0
    %v4590 = vpop.trf.xlu0
    %v4591 = vpop.trf.xlu0
    %v4592 = vpop.trf.xlu0
    %v4593 = vpop.trf.xlu0
    %v4594 = vpop.trf.xlu0
    %v4595 = vpop.trf.xlu0
    %v4596 = vpop.trf.xlu0
    %v4598 = vsel %vm2915, %v4589, 0
    %v4601 = vsel %vm2915, %v4590, 0
    %v4604 = vsel %vm2915, %v4591, 0
    %v4607 = vsel %vm2915, %v4592, 0
    %v4610 = vsel %vm2915, %v4593, 0
    %v4613 = vsel %vm2915, %v4594, 0
    %v4616 = vsel %vm2915, %v4595, 0
    %v4619 = vsel %vm2915, %v4596, 0
    %v4622 = vsel %vm2940, %v447, 0
    %4624 = vmatprep.subr.bf16.mxu0 0
    %4625 = vmatpush1.bf16.msra.mxu0 %v4622
    %4626 = vmatprep.subr.bf16.mxu0 0
    %4627 = vmatpush1.bf16.msra.mxu0 0
    %4628 = vmatprep.subr.bf16.mxu0 0
    %4629 = vmatpush1.bf16.msra.mxu0 0
    %4630 = vmatprep.subr.bf16.mxu0 0
    %4631 = vmatpush1.bf16.msra.mxu0 0
    %4632 = vmatprep.subr.bf16.mxu0 0
    %4633 = vmatpush1.bf16.msra.mxu0 0
    %4634 = vmatprep.subr.bf16.mxu0 0
    %4635 = vmatpush1.bf16.msra.mxu0 0
    %4636 = vmatprep.subr.bf16.mxu0 0
    %4637 = vmatpush1.bf16.msra.mxu0 0
    %4638 = vmatprep.subr.bf16.mxu0 0
    %4639 = vmatpush1.bf16.msra.mxu0 0
    %4640 = vmatprep.subr.bf16.mxu0 0
    %4641 = vmatpush1.bf16.msra.mxu0 0
    %4642 = vmatprep.subr.bf16.mxu0 0
    %4643 = vmatpush1.bf16.msra.mxu0 0
    %4644 = vmatprep.subr.bf16.mxu0 0
    %4645 = vmatpush1.bf16.msra.mxu0 0
    %4646 = vmatprep.subr.bf16.mxu0 0
    %4647 = vmatpush1.bf16.msra.mxu0 0
    %4648 = vmatprep.subr.bf16.mxu0 0
    %4649 = vmatpush1.bf16.msra.mxu0 0
    %4650 = vmatprep.subr.bf16.mxu0 0
    %4651 = vmatpush1.bf16.msra.mxu0 0
    %4652 = vmatprep.subr.bf16.mxu0 0
    %4653 = vmatpush1.bf16.msra.mxu0 0
    %4654 = vmatprep.subr.bf16.mxu0 0
    %4655 = vmatpush1.bf16.msra.mxu0 0
    %4656 = vmatprep.mubr.bf16.mxu0 0
    %4657 = vmatmul.mubr.bf16.gmra.mrb[0].mxu0 %v4598
    %v4658 = vpop.f32.mrb[0].mxu0
    %v4659 = vadd.f32 0.0, %v4658
    %v4660 = vpop.f32.mrb[0].mxu0
    %v4661 = vpop.f32.mrb[0].mxu0
    %v4662 = vadd.f32 0.0, %v4661
    %v4663 = vpop.f32.mrb[0].mxu0
    %4664 = vmatprep.mubr.bf16.mxu0 0
    %4665 = vmatmul.mubr.bf16.gmra.mrb[0].mxu0 %v4601
    %v4666 = vpop.f32.mrb[0].mxu0
    %v4667 = vadd.f32 0.0, %v4666
    %v4668 = vpop.f32.mrb[0].mxu0
    %v4669 = vpop.f32.mrb[0].mxu0
    %v4670 = vadd.f32 0.0, %v4669
    %v4671 = vpop.f32.mrb[0].mxu0
    %4672 = vmatprep.mubr.bf16.mxu0 0
    %4673 = vmatmul.mubr.bf16.gmra.mrb[0].mxu0 %v4604
    %v4674 = vpop.f32.mrb[0].mxu0
    %v4675 = vadd.f32 0.0, %v4674
    %v4676 = vpop.f32.mrb[0].mxu0
    %v4677 = vpop.f32.mrb[0].mxu0
    %v4678 = vadd.f32 0.0, %v4677
    %v4679 = vpop.f32.mrb[0].mxu0
    %4680 = vmatprep.mubr.bf16.mxu0 0
    %4681 = vmatmul.mubr.bf16.gmra.mrb[0].mxu0 %v4607
    %v4682 = vpop.f32.mrb[0].mxu0
    %v4683 = vadd.f32 0.0, %v4682
    %v4684 = vpop.f32.mrb[0].mxu0
    %v4685 = vpop.f32.mrb[0].mxu0
    %v4686 = vadd.f32 0.0, %v4685
    %v4687 = vpop.f32.mrb[0].mxu0
    %4688 = vmatprep.mubr.bf16.mxu0 0
    %4689 = vmatmul.mubr.bf16.gmra.mrb[0].mxu0 %v4610
    %v4690 = vpop.f32.mrb[0].mxu0
    %v4691 = vadd.f32 0.0, %v4690
    %v4692 = vpop.f32.mrb[0].mxu0
    %v4693 = vpop.f32.mrb[0].mxu0
    %v4694 = vadd.f32 0.0, %v4693
    %v4695 = vpop.f32.mrb[0].mxu0
    %4696 = vmatprep.mubr.bf16.mxu0 0
    %4697 = vmatmul.mubr.bf16.gmra.mrb[0].mxu0 %v4613
    %v4698 = vpop.f32.mrb[0].mxu0
    %v4699 = vadd.f32 0.0, %v4698
    %v4700 = vpop.f32.mrb[0].mxu0
    %v4701 = vpop.f32.mrb[0].mxu0
    %v4702 = vadd.f32 0.0, %v4701
    %v4703 = vpop.f32.mrb[0].mxu0
    %4704 = vmatprep.mubr.bf16.mxu0 0
    %4705 = vmatmul.mubr.bf16.gmra.mrb[0].mxu0 %v4616
    %v4706 = vpop.f32.mrb[0].mxu0
    %v4707 = vadd.f32 0.0, %v4706
    %v4708 = vpop.f32.mrb[0].mxu0
    %v4709 = vpop.f32.mrb[0].mxu0
    %v4710 = vadd.f32 0.0, %v4709
    %v4711 = vpop.f32.mrb[0].mxu0
    %4712 = vmatprep.mubr.bf16.mxu0 0
    %4713 = vmatmul.mubr.bf16.gmra.mrb[0].mxu0 %v4619
    %v4714 = vpop.f32.mrb[0].mxu0
    %v4715 = vadd.f32 0.0, %v4714
    %v4716 = vpop.f32.mrb[0].mxu0
    %v4717 = vpop.f32.mrb[0].mxu0
    %v4718 = vadd.f32 0.0, %v4717
    %v4719 = vpop.f32.mrb[0].mxu0
    %4720 = vdwg.mxu0
    %4721 = vxpose.xlu0.c.b16.start [1/8] %v2896, 128
    %4722 = vxpose.xlu0.c.b16.cont [2/8] 0, 128
    %4723 = vxpose.xlu0.c.b16.cont [3/8] 0, 128
    %4724 = vxpose.xlu0.c.b16.cont [4/8] 0, 128
    %4725 = vxpose.xlu0.c.b16.cont [5/8] 0, 128
    %4726 = vxpose.xlu0.c.b16.cont [6/8] 0, 128
    %4727 = vxpose.xlu0.c.b16.cont [7/8] 0, 128
    %4728 = vxpose.xlu0.c.b16.end [8/8] 0, 128
    %v4729 = vpop.trf.xlu0
    %v4730 = vpop.trf.xlu0
    %v4731 = vpop.trf.xlu0
    %v4732 = vpop.trf.xlu0
    %v4733 = vpop.trf.xlu0
    %v4734 = vpop.trf.xlu0
    %v4735 = vpop.trf.xlu0
    %v4736 = vpop.trf.xlu0
    %v4738 = vsel %vm2915, %v4729, 0
    %v4741 = vsel %vm2915, %v4730, 0
    %v4744 = vsel %vm2915, %v4731, 0
    %v4747 = vsel %vm2915, %v4732, 0
    %v4750 = vsel %vm2915, %v4733, 0
    %v4753 = vsel %vm2915, %v4734, 0
    %v4756 = vsel %vm2915, %v4735, 0
    %v4759 = vsel %vm2915, %v4736, 0
    %v4762 = vsel %vm2940, %v448, 0
    %4764 = vmatprep.subr.bf16.mxu0 0
    %4765 = vmatpush1.bf16.msra.mxu0 %v4762
    %4766 = vmatprep.subr.bf16.mxu0 0
    %4767 = vmatpush1.bf16.msra.mxu0 0
    %4768 = vmatprep.subr.bf16.mxu0 0
    %4769 = vmatpush1.bf16.msra.mxu0 0
    %4770 = vmatprep.subr.bf16.mxu0 0
    %4771 = vmatpush1.bf16.msra.mxu0 0
    %4772 = vmatprep.subr.bf16.mxu0 0
    %4773 = vmatpush1.bf16.msra.mxu0 0
    %4774 = vmatprep.subr.bf16.mxu0 0
    %4775 = vmatpush1.bf16.msra.mxu0 0
    %4776 = vmatprep.subr.bf16.mxu0 0
    %4777 = vmatpush1.bf16.msra.mxu0 0
    %4778 = vmatprep.subr.bf16.mxu0 0
    %4779 = vmatpush1.bf16.msra.mxu0 0
    %4780 = vmatprep.subr.bf16.mxu0 0
    %4781 = vmatpush1.bf16.msra.mxu0 0
    %4782 = vmatprep.subr.bf16.mxu0 0
    %4783 = vmatpush1.bf16.msra.mxu0 0
    %4784 = vmatprep.subr.bf16.mxu0 0
    %4785 = vmatpush1.bf16.msra.mxu0 0
    %4786 = vmatprep.subr.bf16.mxu0 0
    %4787 = vmatpush1.bf16.msra.mxu0 0
    %4788 = vmatprep.subr.bf16.mxu0 0
    %4789 = vmatpush1.bf16.msra.mxu0 0
    %4790 = vmatprep.subr.bf16.mxu0 0
    %4791 = vmatpush1.bf16.msra.mxu0 0
    %4792 = vmatprep.subr.bf16.mxu0 0
    %4793 = vmatpush1.bf16.msra.mxu0 0
    %4794 = vmatprep.subr.bf16.mxu0 0
    %4795 = vmatpush1.bf16.msra.mxu0 0
    %4796 = vmatprep.mubr.bf16.mxu0 0
    %4797 = vmatmul.mubr.bf16.gmra.mrb[0].mxu0 %v4738
    %v4798 = vpop.f32.mrb[0].mxu0
    %v4799 = vadd.f32 0.0, %v4798
    %v4800 = vpop.f32.mrb[0].mxu0
    %v4801 = vpop.f32.mrb[0].mxu0
    %v4802 = vadd.f32 0.0, %v4801
    %v4803 = vpop.f32.mrb[0].mxu0
    %4804 = vmatprep.mubr.bf16.mxu0 0
    %4805 = vmatmul.mubr.bf16.gmra.mrb[0].mxu0 %v4741
    %v4806 = vpop.f32.mrb[0].mxu0
    %v4807 = vadd.f32 0.0, %v4806
    %v4808 = vpop.f32.mrb[0].mxu0
    %v4809 = vpop.f32.mrb[0].mxu0
    %v4810 = vadd.f32 0.0, %v4809
    %v4811 = vpop.f32.mrb[0].mxu0
    %4812 = vmatprep.mubr.bf16.mxu0 0
    %4813 = vmatmul.mubr.bf16.gmra.mrb[0].mxu0 %v4744
    %v4814 = vpop.f32.mrb[0].mxu0
    %v4815 = vadd.f32 0.0, %v4814
    %v4816 = vpop.f32.mrb[0].mxu0
    %v4817 = vpop.f32.mrb[0].mxu0
    %v4818 = vadd.f32 0.0, %v4817
    %v4819 = vpop.f32.mrb[0].mxu0
    %4820 = vmatprep.mubr.bf16.mxu0 0
    %4821 = vmatmul.mubr.bf16.gmra.mrb[0].mxu0 %v4747
    %v4822 = vpop.f32.mrb[0].mxu0
    %v4823 = vadd.f32 0.0, %v4822
    %v4824 = vpop.f32.mrb[0].mxu0
    %v4825 = vpop.f32.mrb[0].mxu0
    %v4826 = vadd.f32 0.0, %v4825
    %v4827 = vpop.f32.mrb[0].mxu0
    %4828 = vmatprep.mubr.bf16.mxu0 0
    %4829 = vmatmul.mubr.bf16.gmra.mrb[0].mxu0 %v4750
    %v4830 = vpop.f32.mrb[0].mxu0
    %v4831 = vadd.f32 0.0, %v4830
    %v4832 = vpop.f32.mrb[0].mxu0
    %v4833 = vpop.f32.mrb[0].mxu0
    %v4834 = vadd.f32 0.0, %v4833
    %v4835 = vpop.f32.mrb[0].mxu0
    %4836 = vmatprep.mubr.bf16.mxu0 0
    %4837 = vmatmul.mubr.bf16.gmra.mrb[0].mxu0 %v4753
    %v4838 = vpop.f32.mrb[0].mxu0
    %v4839 = vadd.f32 0.0, %v4838
    %v4840 = vpop.f32.mrb[0].mxu0
    %v4841 = vpop.f32.mrb[0].mxu0
    %v4842 = vadd.f32 0.0, %v4841
    %v4843 = vpop.f32.mrb[0].mxu0
    %4844 = vmatprep.mubr.bf16.mxu0 0
    %4845 = vmatmul.mubr.bf16.gmra.mrb[0].mxu0 %v4756
    %v4846 = vpop.f32.mrb[0].mxu0
    %v4847 = vadd.f32 0.0, %v4846
    %v4848 = vpop.f32.mrb[0].mxu0
    %v4849 = vpop.f32.mrb[0].mxu0
    %v4850 = vadd.f32 0.0, %v4849
    %v4851 = vpop.f32.mrb[0].mxu0
    %4852 = vmatprep.mubr.bf16.mxu0 0
    %4853 = vmatmul.mubr.bf16.gmra.mrb[0].mxu0 %v4759
    %v4854 = vpop.f32.mrb[0].mxu0
    %v4855 = vadd.f32 0.0, %v4854
    %v4856 = vpop.f32.mrb[0].mxu0
    %v4857 = vpop.f32.mrb[0].mxu0
    %v4858 = vadd.f32 0.0, %v4857
    %v4859 = vpop.f32.mrb[0].mxu0
    %4860 = vdwg.mxu0
    %4861 = vxpose.xlu0.c.b16.start [1/8] %v2897, 128
    %4862 = vxpose.xlu0.c.b16.cont [2/8] 0, 128
    %4863 = vxpose.xlu0.c.b16.cont [3/8] 0, 128
    %4864 = vxpose.xlu0.c.b16.cont [4/8] 0, 128
    %4865 = vxpose.xlu0.c.b16.cont [5/8] 0, 128
    %4866 = vxpose.xlu0.c.b16.cont [6/8] 0, 128
    %4867 = vxpose.xlu0.c.b16.cont [7/8] 0, 128
    %4868 = vxpose.xlu0.c.b16.end [8/8] 0, 128
    %v4869 = vpop.trf.xlu0
    %v4870 = vpop.trf.xlu0
    %v4871 = vpop.trf.xlu0
    %v4872 = vpop.trf.xlu0
    %v4873 = vpop.trf.xlu0
    %v4874 = vpop.trf.xlu0
    %v4875 = vpop.trf.xlu0
    %v4876 = vpop.trf.xlu0
    %v4878 = vsel %vm2915, %v4869, 0
    %v4881 = vsel %vm2915, %v4870, 0
    %v4884 = vsel %vm2915, %v4871, 0
    %v4887 = vsel %vm2915, %v4872, 0
    %v4890 = vsel %vm2915, %v4873, 0
    %v4893 = vsel %vm2915, %v4874, 0
    %v4896 = vsel %vm2915, %v4875, 0
    %v4899 = vsel %vm2915, %v4876, 0
    %v4902 = vsel %vm2940, %v449, 0
    %4904 = vmatprep.subr.bf16.mxu0 0
    %4905 = vmatpush1.bf16.msra.mxu0 %v4902
    %4906 = vmatprep.subr.bf16.mxu0 0
    %4907 = vmatpush1.bf16.msra.mxu0 0
    %4908 = vmatprep.subr.bf16.mxu0 0
    %4909 = vmatpush1.bf16.msra.mxu0 0
    %4910 = vmatprep.subr.bf16.mxu0 0
    %4911 = vmatpush1.bf16.msra.mxu0 0
    %4912 = vmatprep.subr.bf16.mxu0 0
    %4913 = vmatpush1.bf16.msra.mxu0 0
    %4914 = vmatprep.subr.bf16.mxu0 0
    %4915 = vmatpush1.bf16.msra.mxu0 0
    %4916 = vmatprep.subr.bf16.mxu0 0
    %4917 = vmatpush1.bf16.msra.mxu0 0
    %4918 = vmatprep.subr.bf16.mxu0 0
    %4919 = vmatpush1.bf16.msra.mxu0 0
    %4920 = vmatprep.subr.bf16.mxu0 0
    %4921 = vmatpush1.bf16.msra.mxu0 0
    %4922 = vmatprep.subr.bf16.mxu0 0
    %4923 = vmatpush1.bf16.msra.mxu0 0
    %4924 = vmatprep.subr.bf16.mxu0 0
    %4925 = vmatpush1.bf16.msra.mxu0 0
    %4926 = vmatprep.subr.bf16.mxu0 0
    %4927 = vmatpush1.bf16.msra.mxu0 0
    %4928 = vmatprep.subr.bf16.mxu0 0
    %4929 = vmatpush1.bf16.msra.mxu0 0
    %4930 = vmatprep.subr.bf16.mxu0 0
    %4931 = vmatpush1.bf16.msra.mxu0 0
    %4932 = vmatprep.subr.bf16.mxu0 0
    %4933 = vmatpush1.bf16.msra.mxu0 0
    %4934 = vmatprep.subr.bf16.mxu0 0
    %4935 = vmatpush1.bf16.msra.mxu0 0
    %4936 = vmatprep.mubr.bf16.mxu0 0
    %4937 = vmatmul.mubr.bf16.gmra.mrb[0].mxu0 %v4878
    %v4938 = vpop.f32.mrb[0].mxu0
    %v4939 = vadd.f32 0.0, %v4938
    %v4940 = vpop.f32.mrb[0].mxu0
    %v4941 = vpop.f32.mrb[0].mxu0
    %v4942 = vadd.f32 0.0, %v4941
    %v4943 = vpop.f32.mrb[0].mxu0
    %4944 = vmatprep.mubr.bf16.mxu0 0
    %4945 = vmatmul.mubr.bf16.gmra.mrb[0].mxu0 %v4881
    %v4946 = vpop.f32.mrb[0].mxu0
    %v4947 = vadd.f32 0.0, %v4946
    %v4948 = vpop.f32.mrb[0].mxu0
    %v4949 = vpop.f32.mrb[0].mxu0
    %v4950 = vadd.f32 0.0, %v4949
    %v4951 = vpop.f32.mrb[0].mxu0
    %4952 = vmatprep.mubr.bf16.mxu0 0
    %4953 = vmatmul.mubr.bf16.gmra.mrb[0].mxu0 %v4884
    %v4954 = vpop.f32.mrb[0].mxu0
    %v4955 = vadd.f32 0.0, %v4954
    %v4956 = vpop.f32.mrb[0].mxu0
    %v4957 = vpop.f32.mrb[0].mxu0
    %v4958 = vadd.f32 0.0, %v4957
    %v4959 = vpop.f32.mrb[0].mxu0
    %4960 = vmatprep.mubr.bf16.mxu0 0
    %4961 = vmatmul.mubr.bf16.gmra.mrb[0].mxu0 %v4887
    %v4962 = vpop.f32.mrb[0].mxu0
    %v4963 = vadd.f32 0.0, %v4962
    %v4964 = vpop.f32.mrb[0].mxu0
    %v4965 = vpop.f32.mrb[0].mxu0
    %v4966 = vadd.f32 0.0, %v4965
    %v4967 = vpop.f32.mrb[0].mxu0
    %4968 = vmatprep.mubr.bf16.mxu0 0
    %4969 = vmatmul.mubr.bf16.gmra.mrb[0].mxu0 %v4890
    %v4970 = vpop.f32.mrb[0].mxu0
    %v4971 = vadd.f32 0.0, %v4970
    %v4972 = vpop.f32.mrb[0].mxu0
    %v4973 = vpop.f32.mrb[0].mxu0
    %v4974 = vadd.f32 0.0, %v4973
    %v4975 = vpop.f32.mrb[0].mxu0
    %4976 = vmatprep.mubr.bf16.mxu0 0
    %4977 = vmatmul.mubr.bf16.gmra.mrb[0].mxu0 %v4893
    %v4978 = vpop.f32.mrb[0].mxu0
    %v4979 = vadd.f32 0.0, %v4978
    %v4980 = vpop.f32.mrb[0].mxu0
    %v4981 = vpop.f32.mrb[0].mxu0
    %v4982 = vadd.f32 0.0, %v4981
    %v4983 = vpop.f32.mrb[0].mxu0
    %4984 = vmatprep.mubr.bf16.mxu0 0
    %4985 = vmatmul.mubr.bf16.gmra.mrb[0].mxu0 %v4896
    %v4986 = vpop.f32.mrb[0].mxu0
    %v4987 = vadd.f32 0.0, %v4986
    %v4988 = vpop.f32.mrb[0].mxu0
    %v4989 = vpop.f32.mrb[0].mxu0
    %v4990 = vadd.f32 0.0, %v4989
    %v4991 = vpop.f32.mrb[0].mxu0
    %4992 = vmatprep.mubr.bf16.mxu0 0
    %4993 = vmatmul.mubr.bf16.gmra.mrb[0].mxu0 %v4899
    %v4994 = vpop.f32.mrb[0].mxu0
    %v4995 = vadd.f32 0.0, %v4994
    %v4996 = vpop.f32.mrb[0].mxu0
    %v4997 = vpop.f32.mrb[0].mxu0
    %v4998 = vadd.f32 0.0, %v4997
    %v4999 = vpop.f32.mrb[0].mxu0
    %5000 = vdwg.mxu0
    %5001 = vxpose.xlu0.c.b16.start [1/8] %v2898, 128
    %5002 = vxpose.xlu0.c.b16.cont [2/8] 0, 128
    %5003 = vxpose.xlu0.c.b16.cont [3/8] 0, 128
    %5004 = vxpose.xlu0.c.b16.cont [4/8] 0, 128
    %5005 = vxpose.xlu0.c.b16.cont [5/8] 0, 128
    %5006 = vxpose.xlu0.c.b16.cont [6/8] 0, 128
    %5007 = vxpose.xlu0.c.b16.cont [7/8] 0, 128
    %5008 = vxpose.xlu0.c.b16.end [8/8] 0, 128
    %v5009 = vpop.trf.xlu0
    %v5010 = vpop.trf.xlu0
    %v5011 = vpop.trf.xlu0
    %v5012 = vpop.trf.xlu0
    %v5013 = vpop.trf.xlu0
    %v5014 = vpop.trf.xlu0
    %v5015 = vpop.trf.xlu0
    %v5016 = vpop.trf.xlu0
    %v5018 = vsel %vm2915, %v5009, 0
    %v5021 = vsel %vm2915, %v5010, 0
    %v5024 = vsel %vm2915, %v5011, 0
    %v5027 = vsel %vm2915, %v5012, 0
    %v5030 = vsel %vm2915, %v5013, 0
    %v5033 = vsel %vm2915, %v5014, 0
    %v5036 = vsel %vm2915, %v5015, 0
    %v5039 = vsel %vm2915, %v5016, 0
    %v5042 = vsel %vm2940, %v450, 0
    %5044 = vmatprep.subr.bf16.mxu0 0
    %5045 = vmatpush1.bf16.msra.mxu0 %v5042
    %5046 = vmatprep.subr.bf16.mxu0 0
    %5047 = vmatpush1.bf16.msra.mxu0 0
    %5048 = vmatprep.subr.bf16.mxu0 0
    %5049 = vmatpush1.bf16.msra.mxu0 0
    %5050 = vmatprep.subr.bf16.mxu0 0
    %5051 = vmatpush1.bf16.msra.mxu0 0
    %5052 = vmatprep.subr.bf16.mxu0 0
    %5053 = vmatpush1.bf16.msra.mxu0 0
    %5054 = vmatprep.subr.bf16.mxu0 0
    %5055 = vmatpush1.bf16.msra.mxu0 0
    %5056 = vmatprep.subr.bf16.mxu0 0
    %5057 = vmatpush1.bf16.msra.mxu0 0
    %5058 = vmatprep.subr.bf16.mxu0 0
    %5059 = vmatpush1.bf16.msra.mxu0 0
    %5060 = vmatprep.subr.bf16.mxu0 0
    %5061 = vmatpush1.bf16.msra.mxu0 0
    %5062 = vmatprep.subr.bf16.mxu0 0
    %5063 = vmatpush1.bf16.msra.mxu0 0
    %5064 = vmatprep.subr.bf16.mxu0 0
    %5065 = vmatpush1.bf16.msra.mxu0 0
    %5066 = vmatprep.subr.bf16.mxu0 0
    %5067 = vmatpush1.bf16.msra.mxu0 0
    %5068 = vmatprep.subr.bf16.mxu0 0
    %5069 = vmatpush1.bf16.msra.mxu0 0
    %5070 = vmatprep.subr.bf16.mxu0 0
    %5071 = vmatpush1.bf16.msra.mxu0 0
    %5072 = vmatprep.subr.bf16.mxu0 0
    %5073 = vmatpush1.bf16.msra.mxu0 0
    %5074 = vmatprep.subr.bf16.mxu0 0
    %5075 = vmatpush1.bf16.msra.mxu0 0
    %5076 = vmatprep.mubr.bf16.mxu0 0
    %5077 = vmatmul.mubr.bf16.gmra.mrb[0].mxu0 %v5018
    %v5078 = vpop.f32.mrb[0].mxu0
    %v5079 = vadd.f32 0.0, %v5078
    %v5080 = vpop.f32.mrb[0].mxu0
    %v5081 = vpop.f32.mrb[0].mxu0
    %v5082 = vadd.f32 0.0, %v5081
    %v5083 = vpop.f32.mrb[0].mxu0
    %5084 = vmatprep.mubr.bf16.mxu0 0
    %5085 = vmatmul.mubr.bf16.gmra.mrb[0].mxu0 %v5021
    %v5086 = vpop.f32.mrb[0].mxu0
    %v5087 = vadd.f32 0.0, %v5086
    %v5088 = vpop.f32.mrb[0].mxu0
    %v5089 = vpop.f32.mrb[0].mxu0
    %v5090 = vadd.f32 0.0, %v5089
    %v5091 = vpop.f32.mrb[0].mxu0
    %5092 = vmatprep.mubr.bf16.mxu0 0
    %5093 = vmatmul.mubr.bf16.gmra.mrb[0].mxu0 %v5024
    %v5094 = vpop.f32.mrb[0].mxu0
    %v5095 = vadd.f32 0.0, %v5094
    %v5096 = vpop.f32.mrb[0].mxu0
    %v5097 = vpop.f32.mrb[0].mxu0
    %v5098 = vadd.f32 0.0, %v5097
    %v5099 = vpop.f32.mrb[0].mxu0
    %5100 = vmatprep.mubr.bf16.mxu0 0
    %5101 = vmatmul.mubr.bf16.gmra.mrb[0].mxu0 %v5027
    %v5102 = vpop.f32.mrb[0].mxu0
    %v5103 = vadd.f32 0.0, %v5102
    %v5104 = vpop.f32.mrb[0].mxu0
    %v5105 = vpop.f32.mrb[0].mxu0
    %v5106 = vadd.f32 0.0, %v5105
    %v5107 = vpop.f32.mrb[0].mxu0
    %5108 = vmatprep.mubr.bf16.mxu0 0
    %5109 = vmatmul.mubr.bf16.gmra.mrb[0].mxu0 %v5030
    %v5110 = vpop.f32.mrb[0].mxu0
    %v5111 = vadd.f32 0.0, %v5110
    %v5112 = vpop.f32.mrb[0].mxu0
    %v5113 = vpop.f32.mrb[0].mxu0
    %v5114 = vadd.f32 0.0, %v5113
    %v5115 = vpop.f32.mrb[0].mxu0
    %5116 = vmatprep.mubr.bf16.mxu0 0
    %5117 = vmatmul.mubr.bf16.gmra.mrb[0].mxu0 %v5033
    %v5118 = vpop.f32.mrb[0].mxu0
    %v5119 = vadd.f32 0.0, %v5118
    %v5120 = vpop.f32.mrb[0].mxu0
    %v5121 = vpop.f32.mrb[0].mxu0
    %v5122 = vadd.f32 0.0, %v5121
    %v5123 = vpop.f32.mrb[0].mxu0
    %5124 = vmatprep.mubr.bf16.mxu0 0
    %5125 = vmatmul.mubr.bf16.gmra.mrb[0].mxu0 %v5036
    %v5126 = vpop.f32.mrb[0].mxu0
    %v5127 = vadd.f32 0.0, %v5126
    %v5128 = vpop.f32.mrb[0].mxu0
    %v5129 = vpop.f32.mrb[0].mxu0
    %v5130 = vadd.f32 0.0, %v5129
    %v5131 = vpop.f32.mrb[0].mxu0
    %5132 = vmatprep.mubr.bf16.mxu0 0
    %5133 = vmatmul.mubr.bf16.gmra.mrb[0].mxu0 %v5039
    %v5134 = vpop.f32.mrb[0].mxu0
    %v5135 = vadd.f32 0.0, %v5134
    %v5136 = vpop.f32.mrb[0].mxu0
    %v5137 = vpop.f32.mrb[0].mxu0
    %v5138 = vadd.f32 0.0, %v5137
    %v5139 = vpop.f32.mrb[0].mxu0
    %5140 = vdwg.mxu0
    %v5141 = vpack.c.bf16 %v2979, %v2979
    %v5142 = vpack.c.bf16 %v2982, %v2982
    %v5143 = vpack.c.bf16 %v2987, %v2987
    %v5144 = vpack.c.bf16 %v2990, %v2990
    %v5145 = vpack.c.bf16 %v2995, %v2995
    %v5146 = vpack.c.bf16 %v2998, %v2998
    %v5147 = vpack.c.bf16 %v3003, %v3003
    %v5148 = vpack.c.bf16 %v3006, %v3006
    %v5149 = vpack.c.bf16 %v3011, %v3011
    %v5150 = vpack.c.bf16 %v3014, %v3014
    %v5151 = vpack.c.bf16 %v3019, %v3019
    %v5152 = vpack.c.bf16 %v3022, %v3022
    %v5153 = vpack.c.bf16 %v3027, %v3027
    %v5154 = vpack.c.bf16 %v3030, %v3030
    %v5155 = vpack.c.bf16 %v3035, %v3035
    %v5156 = vpack.c.bf16 %v3038, %v3038
    %v5157 = vpack.c.bf16 %v3119, %v3119
    %v5158 = vpack.c.bf16 %v3122, %v3122
    %v5159 = vpack.c.bf16 %v3127, %v3127
    %v5160 = vpack.c.bf16 %v3130, %v3130
    %v5161 = vpack.c.bf16 %v3135, %v3135
    %v5162 = vpack.c.bf16 %v3138, %v3138
    %v5163 = vpack.c.bf16 %v3143, %v3143
    %v5164 = vpack.c.bf16 %v3146, %v3146
    %v5165 = vpack.c.bf16 %v3151, %v3151
    %v5166 = vpack.c.bf16 %v3154, %v3154
    %v5167 = vpack.c.bf16 %v3159, %v3159
    %v5168 = vpack.c.bf16 %v3162, %v3162
    %v5169 = vpack.c.bf16 %v3167, %v3167
    %v5170 = vpack.c.bf16 %v3170, %v3170
    %v5171 = vpack.c.bf16 %v3175, %v3175
    %v5172 = vpack.c.bf16 %v3178, %v3178
    %v5173 = vpack.c.bf16 %v3259, %v3259
    %v5174 = vpack.c.bf16 %v3262, %v3262
    %v5175 = vpack.c.bf16 %v3267, %v3267
    %v5176 = vpack.c.bf16 %v3270, %v3270
    %v5177 = vpack.c.bf16 %v3275, %v3275
    %v5178 = vpack.c.bf16 %v3278, %v3278
    %v5179 = vpack.c.bf16 %v3283, %v3283
    %v5180 = vpack.c.bf16 %v3286, %v3286
    %v5181 = vpack.c.bf16 %v3291, %v3291
    %v5182 = vpack.c.bf16 %v3294, %v3294
    %v5183 = vpack.c.bf16 %v3299, %v3299
    %v5184 = vpack.c.bf16 %v3302, %v3302
    %v5185 = vpack.c.bf16 %v3307, %v3307
    %v5186 = vpack.c.bf16 %v3310, %v3310
    %v5187 = vpack.c.bf16 %v3315, %v3315
    %v5188 = vpack.c.bf16 %v3318, %v3318
    %v5189 = vpack.c.bf16 %v3399, %v3399
    %v5190 = vpack.c.bf16 %v3402, %v3402
    %v5191 = vpack.c.bf16 %v3407, %v3407
    %v5192 = vpack.c.bf16 %v3410, %v3410
    %v5193 = vpack.c.bf16 %v3415, %v3415
    %v5194 = vpack.c.bf16 %v3418, %v3418
    %v5195 = vpack.c.bf16 %v3423, %v3423
    %v5196 = vpack.c.bf16 %v3426, %v3426
    %v5197 = vpack.c.bf16 %v3431, %v3431
    %v5198 = vpack.c.bf16 %v3434, %v3434
    %v5199 = vpack.c.bf16 %v3439, %v3439
    %v5200 = vpack.c.bf16 %v3442, %v3442
    %v5201 = vpack.c.bf16 %v3447, %v3447
    %v5202 = vpack.c.bf16 %v3450, %v3450
    %v5203 = vpack.c.bf16 %v3455, %v3455
    %v5204 = vpack.c.bf16 %v3458, %v3458
    %v5205 = vpack.c.bf16 %v3539, %v3539
    %v5206 = vpack.c.bf16 %v3542, %v3542
    %v5207 = vpack.c.bf16 %v3547, %v3547
    %v5208 = vpack.c.bf16 %v3550, %v3550
    %v5209 = vpack.c.bf16 %v3555, %v3555
    %v5210 = vpack.c.bf16 %v3558, %v3558
    %v5211 = vpack.c.bf16 %v3563, %v3563
    %v5212 = vpack.c.bf16 %v3566, %v3566
    %v5213 = vpack.c.bf16 %v3571, %v3571
    %v5214 = vpack.c.bf16 %v3574, %v3574
    %v5215 = vpack.c.bf16 %v3579, %v3579
    %v5216 = vpack.c.bf16 %v3582, %v3582
    %v5217 = vpack.c.bf16 %v3587, %v3587
    %v5218 = vpack.c.bf16 %v3590, %v3590
    %v5219 = vpack.c.bf16 %v3595, %v3595
    %v5220 = vpack.c.bf16 %v3598, %v3598
    %v5221 = vpack.c.bf16 %v3679, %v3679
    %v5222 = vpack.c.bf16 %v3682, %v3682
    %v5223 = vpack.c.bf16 %v3687, %v3687
    %v5224 = vpack.c.bf16 %v3690, %v3690
    %v5225 = vpack.c.bf16 %v3695, %v3695
    %v5226 = vpack.c.bf16 %v3698, %v3698
    %v5227 = vpack.c.bf16 %v3703, %v3703
    %v5228 = vpack.c.bf16 %v3706, %v3706
    %v5229 = vpack.c.bf16 %v3711, %v3711
    %v5230 = vpack.c.bf16 %v3714, %v3714
    %v5231 = vpack.c.bf16 %v3719, %v3719
    %v5232 = vpack.c.bf16 %v3722, %v3722
    %v5233 = vpack.c.bf16 %v3727, %v3727
    %v5234 = vpack.c.bf16 %v3730, %v3730
    %v5235 = vpack.c.bf16 %v3735, %v3735
    %v5236 = vpack.c.bf16 %v3738, %v3738
    %v5237 = vpack.c.bf16 %v3819, %v3819
    %v5238 = vpack.c.bf16 %v3822, %v3822
    %v5239 = vpack.c.bf16 %v3827, %v3827
    %v5240 = vpack.c.bf16 %v3830, %v3830
    %v5241 = vpack.c.bf16 %v3835, %v3835
    %v5242 = vpack.c.bf16 %v3838, %v3838
    %v5243 = vpack.c.bf16 %v3843, %v3843
    %v5244 = vpack.c.bf16 %v3846, %v3846
    %v5245 = vpack.c.bf16 %v3851, %v3851
    %v5246 = vpack.c.bf16 %v3854, %v3854
    %v5247 = vpack.c.bf16 %v3859, %v3859
    %v5248 = vpack.c.bf16 %v3862, %v3862
    %v5249 = vpack.c.bf16 %v3867, %v3867
    %v5250 = vpack.c.bf16 %v3870, %v3870
    %v5251 = vpack.c.bf16 %v3875, %v3875
    %v5252 = vpack.c.bf16 %v3878, %v3878
    %v5253 = vpack.c.bf16 %v3959, %v3959
    %v5254 = vpack.c.bf16 %v3962, %v3962
    %v5255 = vpack.c.bf16 %v3967, %v3967
    %v5256 = vpack.c.bf16 %v3970, %v3970
    %v5257 = vpack.c.bf16 %v3975, %v3975
    %v5258 = vpack.c.bf16 %v3978, %v3978
    %v5259 = vpack.c.bf16 %v3983, %v3983
    %v5260 = vpack.c.bf16 %v3986, %v3986
    %v5261 = vpack.c.bf16 %v3991, %v3991
    %v5262 = vpack.c.bf16 %v3994, %v3994
    %v5263 = vpack.c.bf16 %v3999, %v3999
    %v5264 = vpack.c.bf16 %v4002, %v4002
    %v5265 = vpack.c.bf16 %v4007, %v4007
    %v5266 = vpack.c.bf16 %v4010, %v4010
    %v5267 = vpack.c.bf16 %v4015, %v4015
    %v5268 = vpack.c.bf16 %v4018, %v4018
    %v5269 = vpack.c.bf16 %v4099, %v4099
    %v5270 = vpack.c.bf16 %v4102, %v4102
    %v5271 = vpack.c.bf16 %v4107, %v4107
    %v5272 = vpack.c.bf16 %v4110, %v4110
    %v5273 = vpack.c.bf16 %v4115, %v4115
    %v5274 = vpack.c.bf16 %v4118, %v4118
    %v5275 = vpack.c.bf16 %v4123, %v4123
    %v5276 = vpack.c.bf16 %v4126, %v4126
    %v5277 = vpack.c.bf16 %v4131, %v4131
    %v5278 = vpack.c.bf16 %v4134, %v4134
    %v5279 = vpack.c.bf16 %v4139, %v4139
    %v5280 = vpack.c.bf16 %v4142, %v4142
    %v5281 = vpack.c.bf16 %v4147, %v4147
    %v5282 = vpack.c.bf16 %v4150, %v4150
    %v5283 = vpack.c.bf16 %v4155, %v4155
    %v5284 = vpack.c.bf16 %v4158, %v4158
    %v5285 = vpack.c.bf16 %v4239, %v4239
    %v5286 = vpack.c.bf16 %v4242, %v4242
    %v5287 = vpack.c.bf16 %v4247, %v4247
    %v5288 = vpack.c.bf16 %v4250, %v4250
    %v5289 = vpack.c.bf16 %v4255, %v4255
    %v5290 = vpack.c.bf16 %v4258, %v4258
    %v5291 = vpack.c.bf16 %v4263, %v4263
    %v5292 = vpack.c.bf16 %v4266, %v4266
    %v5293 = vpack.c.bf16 %v4271, %v4271
    %v5294 = vpack.c.bf16 %v4274, %v4274
    %v5295 = vpack.c.bf16 %v4279, %v4279
    %v5296 = vpack.c.bf16 %v4282, %v4282
    %v5297 = vpack.c.bf16 %v4287, %v4287
    %v5298 = vpack.c.bf16 %v4290, %v4290
    %v5299 = vpack.c.bf16 %v4295, %v4295
    %v5300 = vpack.c.bf16 %v4298, %v4298
    %v5301 = vpack.c.bf16 %v4379, %v4379
    %v5302 = vpack.c.bf16 %v4382, %v4382
    %v5303 = vpack.c.bf16 %v4387, %v4387
    %v5304 = vpack.c.bf16 %v4390, %v4390
    %v5305 = vpack.c.bf16 %v4395, %v4395
    %v5306 = vpack.c.bf16 %v4398, %v4398
    %v5307 = vpack.c.bf16 %v4403, %v4403
    %v5308 = vpack.c.bf16 %v4406, %v4406
    %v5309 = vpack.c.bf16 %v4411, %v4411
    %v5310 = vpack.c.bf16 %v4414, %v4414
    %v5311 = vpack.c.bf16 %v4419, %v4419
    %v5312 = vpack.c.bf16 %v4422, %v4422
    %v5313 = vpack.c.bf16 %v4427, %v4427
    %v5314 = vpack.c.bf16 %v4430, %v4430
    %v5315 = vpack.c.bf16 %v4435, %v4435
    %v5316 = vpack.c.bf16 %v4438, %v4438
    %v5317 = vpack.c.bf16 %v4519, %v4519
    %v5318 = vpack.c.bf16 %v4522, %v4522
    %v5319 = vpack.c.bf16 %v4527, %v4527
    %v5320 = vpack.c.bf16 %v4530, %v4530
    %v5321 = vpack.c.bf16 %v4535, %v4535
    %v5322 = vpack.c.bf16 %v4538, %v4538
    %v5323 = vpack.c.bf16 %v4543, %v4543
    %v5324 = vpack.c.bf16 %v4546, %v4546
    %v5325 = vpack.c.bf16 %v4551, %v4551
    %v5326 = vpack.c.bf16 %v4554, %v4554
    %v5327 = vpack.c.bf16 %v4559, %v4559
    %v5328 = vpack.c.bf16 %v4562, %v4562
    %v5329 = vpack.c.bf16 %v4567, %v4567
    %v5330 = vpack.c.bf16 %v4570, %v4570
    %v5331 = vpack.c.bf16 %v4575, %v4575
    %v5332 = vpack.c.bf16 %v4578, %v4578
    %v5333 = vpack.c.bf16 %v4659, %v4659
    %v5334 = vpack.c.bf16 %v4662, %v4662
    %v5335 = vpack.c.bf16 %v4667, %v4667
    %v5336 = vpack.c.bf16 %v4670, %v4670
    %v5337 = vpack.c.bf16 %v4675, %v4675
    %v5338 = vpack.c.bf16 %v4678, %v4678
    %v5339 = vpack.c.bf16 %v4683, %v4683
    %v5340 = vpack.c.bf16 %v4686, %v4686
    %v5341 = vpack.c.bf16 %v4691, %v4691
    %v5342 = vpack.c.bf16 %v4694, %v4694
    %v5343 = vpack.c.bf16 %v4699, %v4699
    %v5344 = vpack.c.bf16 %v4702, %v4702
    %v5345 = vpack.c.bf16 %v4707, %v4707
    %v5346 = vpack.c.bf16 %v4710, %v4710
    %v5347 = vpack.c.bf16 %v4715, %v4715
    %v5348 = vpack.c.bf16 %v4718, %v4718
    %v5349 = vpack.c.bf16 %v4799, %v4799
    %v5350 = vpack.c.bf16 %v4802, %v4802
    %v5351 = vpack.c.bf16 %v4807, %v4807
    %v5352 = vpack.c.bf16 %v4810, %v4810
    %v5353 = vpack.c.bf16 %v4815, %v4815
    %v5354 = vpack.c.bf16 %v4818, %v4818
    %v5355 = vpack.c.bf16 %v4823, %v4823
    %v5356 = vpack.c.bf16 %v4826, %v4826
    %v5357 = vpack.c.bf16 %v4831, %v4831
    %v5358 = vpack.c.bf16 %v4834, %v4834
    %v5359 = vpack.c.bf16 %v4839, %v4839
    %v5360 = vpack.c.bf16 %v4842, %v4842
    %v5361 = vpack.c.bf16 %v4847, %v4847
    %v5362 = vpack.c.bf16 %v4850, %v4850
    %v5363 = vpack.c.bf16 %v4855, %v4855
    %v5364 = vpack.c.bf16 %v4858, %v4858
    %v5365 = vpack.c.bf16 %v4939, %v4939
    %v5366 = vpack.c.bf16 %v4942, %v4942
    %v5367 = vpack.c.bf16 %v4947, %v4947
    %v5368 = vpack.c.bf16 %v4950, %v4950
    %v5369 = vpack.c.bf16 %v4955, %v4955
    %v5370 = vpack.c.bf16 %v4958, %v4958
    %v5371 = vpack.c.bf16 %v4963, %v4963
    %v5372 = vpack.c.bf16 %v4966, %v4966
    %v5373 = vpack.c.bf16 %v4971, %v4971
    %v5374 = vpack.c.bf16 %v4974, %v4974
    %v5375 = vpack.c.bf16 %v4979, %v4979
    %v5376 = vpack.c.bf16 %v4982, %v4982
    %v5377 = vpack.c.bf16 %v4987, %v4987
    %v5378 = vpack.c.bf16 %v4990, %v4990
    %v5379 = vpack.c.bf16 %v4995, %v4995
    %v5380 = vpack.c.bf16 %v4998, %v4998
    %v5381 = vpack.c.bf16 %v5079, %v5079
    %v5382 = vpack.c.bf16 %v5082, %v5082
    %v5383 = vpack.c.bf16 %v5087, %v5087
    %v5384 = vpack.c.bf16 %v5090, %v5090
    %v5385 = vpack.c.bf16 %v5095, %v5095
    %v5386 = vpack.c.bf16 %v5098, %v5098
    %v5387 = vpack.c.bf16 %v5103, %v5103
    %v5388 = vpack.c.bf16 %v5106, %v5106
    %v5389 = vpack.c.bf16 %v5111, %v5111
    %v5390 = vpack.c.bf16 %v5114, %v5114
    %v5391 = vpack.c.bf16 %v5119, %v5119
    %v5392 = vpack.c.bf16 %v5122, %v5122
    %v5393 = vpack.c.bf16 %v5127, %v5127
    %v5394 = vpack.c.bf16 %v5130, %v5130
    %v5395 = vpack.c.bf16 %v5135, %v5135
    %v5396 = vpack.c.bf16 %v5138, %v5138
    %v5397 = vmul.bf16 %v5141, %v505
    %v5398 = vmul.bf16 %v5142, %v512
    %v5399 = vmul.bf16 %v5143, %v519
    %v5400 = vmul.bf16 %v5144, %v526
    %v5401 = vmul.bf16 %v5145, %v533
    %v5402 = vmul.bf16 %v5146, %v540
    %v5403 = vmul.bf16 %v5147, %v547
    %v5404 = vmul.bf16 %v5148, %v554
    %v5405 = vmul.bf16 %v5149, %v561
    %v5406 = vmul.bf16 %v5150, %v568
    %v5407 = vmul.bf16 %v5151, %v575
    %v5408 = vmul.bf16 %v5152, %v582
    %v5409 = vmul.bf16 %v5153, %v589
    %v5410 = vmul.bf16 %v5154, %v596
    %v5411 = vmul.bf16 %v5155, %v603
    %v5412 = vmul.bf16 %v5156, %v610
    %v5413 = vmul.bf16 %v5157, %v505
    %v5414 = vmul.bf16 %v5158, %v512
    %v5415 = vmul.bf16 %v5159, %v519
    %v5416 = vmul.bf16 %v5160, %v526
    %v5417 = vmul.bf16 %v5161, %v533
    %v5418 = vmul.bf16 %v5162, %v540
    %v5419 = vmul.bf16 %v5163, %v547
    %v5420 = vmul.bf16 %v5164, %v554
    %v5421 = vmul.bf16 %v5165, %v561
    %v5422 = vmul.bf16 %v5166, %v568
    %v5423 = vmul.bf16 %v5167, %v575
    %v5424 = vmul.bf16 %v5168, %v582
    %v5425 = vmul.bf16 %v5169, %v589
    %v5426 = vmul.bf16 %v5170, %v596
    %v5427 = vmul.bf16 %v5171, %v603
    %v5428 = vmul.bf16 %v5172, %v610
    %v5429 = vmul.bf16 %v5173, %v505
    %v5430 = vmul.bf16 %v5174, %v512
    %v5431 = vmul.bf16 %v5175, %v519
    %v5432 = vmul.bf16 %v5176, %v526
    %v5433 = vmul.bf16 %v5177, %v533
    %v5434 = vmul.bf16 %v5178, %v540
    %v5435 = vmul.bf16 %v5179, %v547
    %v5436 = vmul.bf16 %v5180, %v554
    %v5437 = vmul.bf16 %v5181, %v561
    %v5438 = vmul.bf16 %v5182, %v568
    %v5439 = vmul.bf16 %v5183, %v575
    %v5440 = vmul.bf16 %v5184, %v582
    %v5441 = vmul.bf16 %v5185, %v589
    %v5442 = vmul.bf16 %v5186, %v596
    %v5443 = vmul.bf16 %v5187, %v603
    %v5444 = vmul.bf16 %v5188, %v610
    %v5445 = vmul.bf16 %v5189, %v505
    %v5446 = vmul.bf16 %v5190, %v512
    %v5447 = vmul.bf16 %v5191, %v519
    %v5448 = vmul.bf16 %v5192, %v526
    %v5449 = vmul.bf16 %v5193, %v533
    %v5450 = vmul.bf16 %v5194, %v540
    %v5451 = vmul.bf16 %v5195, %v547
    %v5452 = vmul.bf16 %v5196, %v554
    %v5453 = vmul.bf16 %v5197, %v561
    %v5454 = vmul.bf16 %v5198, %v568
    %v5455 = vmul.bf16 %v5199, %v575
    %v5456 = vmul.bf16 %v5200, %v582
    %v5457 = vmul.bf16 %v5201, %v589
    %v5458 = vmul.bf16 %v5202, %v596
    %v5459 = vmul.bf16 %v5203, %v603
    %v5460 = vmul.bf16 %v5204, %v610
    %v5461 = vmul.bf16 %v5205, %v505
    %v5462 = vmul.bf16 %v5206, %v512
    %v5463 = vmul.bf16 %v5207, %v519
    %v5464 = vmul.bf16 %v5208, %v526
    %v5465 = vmul.bf16 %v5209, %v533
    %v5466 = vmul.bf16 %v5210, %v540
    %v5467 = vmul.bf16 %v5211, %v547
    %v5468 = vmul.bf16 %v5212, %v554
    %v5469 = vmul.bf16 %v5213, %v561
    %v5470 = vmul.bf16 %v5214, %v568
    %v5471 = vmul.bf16 %v5215, %v575
    %v5472 = vmul.bf16 %v5216, %v582
    %v5473 = vmul.bf16 %v5217, %v589
    %v5474 = vmul.bf16 %v5218, %v596
    %v5475 = vmul.bf16 %v5219, %v603
    %v5476 = vmul.bf16 %v5220, %v610
    %v5477 = vmul.bf16 %v5221, %v505
    %v5478 = vmul.bf16 %v5222, %v512
    %v5479 = vmul.bf16 %v5223, %v519
    %v5480 = vmul.bf16 %v5224, %v526
    %v5481 = vmul.bf16 %v5225, %v533
    %v5482 = vmul.bf16 %v5226, %v540
    %v5483 = vmul.bf16 %v5227, %v547
    %v5484 = vmul.bf16 %v5228, %v554
    %v5485 = vmul.bf16 %v5229, %v561
    %v5486 = vmul.bf16 %v5230, %v568
    %v5487 = vmul.bf16 %v5231, %v575
    %v5488 = vmul.bf16 %v5232, %v582
    %v5489 = vmul.bf16 %v5233, %v589
    %v5490 = vmul.bf16 %v5234, %v596
    %v5491 = vmul.bf16 %v5235, %v603
    %v5492 = vmul.bf16 %v5236, %v610
    %v5493 = vmul.bf16 %v5237, %v505
    %v5494 = vmul.bf16 %v5238, %v512
    %v5495 = vmul.bf16 %v5239, %v519
    %v5496 = vmul.bf16 %v5240, %v526
    %v5497 = vmul.bf16 %v5241, %v533
    %v5498 = vmul.bf16 %v5242, %v540
    %v5499 = vmul.bf16 %v5243, %v547
    %v5500 = vmul.bf16 %v5244, %v554
    %v5501 = vmul.bf16 %v5245, %v561
    %v5502 = vmul.bf16 %v5246, %v568
    %v5503 = vmul.bf16 %v5247, %v575
    %v5504 = vmul.bf16 %v5248, %v582
    %v5505 = vmul.bf16 %v5249, %v589
    %v5506 = vmul.bf16 %v5250, %v596
    %v5507 = vmul.bf16 %v5251, %v603
    %v5508 = vmul.bf16 %v5252, %v610
    %v5509 = vmul.bf16 %v5253, %v505
    %v5510 = vmul.bf16 %v5254, %v512
    %v5511 = vmul.bf16 %v5255, %v519
    %v5512 = vmul.bf16 %v5256, %v526
    %v5513 = vmul.bf16 %v5257, %v533
    %v5514 = vmul.bf16 %v5258, %v540
    %v5515 = vmul.bf16 %v5259, %v547
    %v5516 = vmul.bf16 %v5260, %v554
    %v5517 = vmul.bf16 %v5261, %v561
    %v5518 = vmul.bf16 %v5262, %v568
    %v5519 = vmul.bf16 %v5263, %v575
    %v5520 = vmul.bf16 %v5264, %v582
    %v5521 = vmul.bf16 %v5265, %v589
    %v5522 = vmul.bf16 %v5266, %v596
    %v5523 = vmul.bf16 %v5267, %v603
    %v5524 = vmul.bf16 %v5268, %v610
    %v5525 = vmul.bf16 %v5269, %v505
    %v5526 = vmul.bf16 %v5270, %v512
    %v5527 = vmul.bf16 %v5271, %v519
    %v5528 = vmul.bf16 %v5272, %v526
    %v5529 = vmul.bf16 %v5273, %v533
    %v5530 = vmul.bf16 %v5274, %v540
    %v5531 = vmul.bf16 %v5275, %v547
    %v5532 = vmul.bf16 %v5276, %v554
    %v5533 = vmul.bf16 %v5277, %v561
    %v5534 = vmul.bf16 %v5278, %v568
    %v5535 = vmul.bf16 %v5279, %v575
    %v5536 = vmul.bf16 %v5280, %v582
    %v5537 = vmul.bf16 %v5281, %v589
    %v5538 = vmul.bf16 %v5282, %v596
    %v5539 = vmul.bf16 %v5283, %v603
    %v5540 = vmul.bf16 %v5284, %v610
    %v5541 = vmul.bf16 %v5285, %v505
    %v5542 = vmul.bf16 %v5286, %v512
    %v5543 = vmul.bf16 %v5287, %v519
    %v5544 = vmul.bf16 %v5288, %v526
    %v5545 = vmul.bf16 %v5289, %v533
    %v5546 = vmul.bf16 %v5290, %v540
    %v5547 = vmul.bf16 %v5291, %v547
    %v5548 = vmul.bf16 %v5292, %v554
    %v5549 = vmul.bf16 %v5293, %v561
    %v5550 = vmul.bf16 %v5294, %v568
    %v5551 = vmul.bf16 %v5295, %v575
    %v5552 = vmul.bf16 %v5296, %v582
    %v5553 = vmul.bf16 %v5297, %v589
    %v5554 = vmul.bf16 %v5298, %v596
    %v5555 = vmul.bf16 %v5299, %v603
    %v5556 = vmul.bf16 %v5300, %v610
    %v5557 = vmul.bf16 %v5301, %v505
    %v5558 = vmul.bf16 %v5302, %v512
    %v5559 = vmul.bf16 %v5303, %v519
    %v5560 = vmul.bf16 %v5304, %v526
    %v5561 = vmul.bf16 %v5305, %v533
    %v5562 = vmul.bf16 %v5306, %v540
    %v5563 = vmul.bf16 %v5307, %v547
    %v5564 = vmul.bf16 %v5308, %v554
    %v5565 = vmul.bf16 %v5309, %v561
    %v5566 = vmul.bf16 %v5310, %v568
    %v5567 = vmul.bf16 %v5311, %v575
    %v5568 = vmul.bf16 %v5312, %v582
    %v5569 = vmul.bf16 %v5313, %v589
    %v5570 = vmul.bf16 %v5314, %v596
    %v5571 = vmul.bf16 %v5315, %v603
    %v5572 = vmul.bf16 %v5316, %v610
    %v5573 = vmul.bf16 %v5317, %v505
    %v5574 = vmul.bf16 %v5318, %v512
    %v5575 = vmul.bf16 %v5319, %v519
    %v5576 = vmul.bf16 %v5320, %v526
    %v5577 = vmul.bf16 %v5321, %v533
    %v5578 = vmul.bf16 %v5322, %v540
    %v5579 = vmul.bf16 %v5323, %v547
    %v5580 = vmul.bf16 %v5324, %v554
    %v5581 = vmul.bf16 %v5325, %v561
    %v5582 = vmul.bf16 %v5326, %v568
    %v5583 = vmul.bf16 %v5327, %v575
    %v5584 = vmul.bf16 %v5328, %v582
    %v5585 = vmul.bf16 %v5329, %v589
    %v5586 = vmul.bf16 %v5330, %v596
    %v5587 = vmul.bf16 %v5331, %v603
    %v5588 = vmul.bf16 %v5332, %v610
    %v5589 = vmul.bf16 %v5333, %v505
    %v5590 = vmul.bf16 %v5334, %v512
    %v5591 = vmul.bf16 %v5335, %v519
    %v5592 = vmul.bf16 %v5336, %v526
    %v5593 = vmul.bf16 %v5337, %v533
    %v5594 = vmul.bf16 %v5338, %v540
    %v5595 = vmul.bf16 %v5339, %v547
    %v5596 = vmul.bf16 %v5340, %v554
    %v5597 = vmul.bf16 %v5341, %v561
    %v5598 = vmul.bf16 %v5342, %v568
    %v5599 = vmul.bf16 %v5343, %v575
    %v5600 = vmul.bf16 %v5344, %v582
    %v5601 = vmul.bf16 %v5345, %v589
    %v5602 = vmul.bf16 %v5346, %v596
    %v5603 = vmul.bf16 %v5347, %v603
    %v5604 = vmul.bf16 %v5348, %v610
    %v5605 = vmul.bf16 %v5349, %v505
    %v5606 = vmul.bf16 %v5350, %v512
    %v5607 = vmul.bf16 %v5351, %v519
    %v5608 = vmul.bf16 %v5352, %v526
    %v5609 = vmul.bf16 %v5353, %v533
    %v5610 = vmul.bf16 %v5354, %v540
    %v5611 = vmul.bf16 %v5355, %v547
    %v5612 = vmul.bf16 %v5356, %v554
    %v5613 = vmul.bf16 %v5357, %v561
    %v5614 = vmul.bf16 %v5358, %v568
    %v5615 = vmul.bf16 %v5359, %v575
    %v5616 = vmul.bf16 %v5360, %v582
    %v5617 = vmul.bf16 %v5361, %v589
    %v5618 = vmul.bf16 %v5362, %v596
    %v5619 = vmul.bf16 %v5363, %v603
    %v5620 = vmul.bf16 %v5364, %v610
    %v5621 = vmul.bf16 %v5365, %v505
    %v5622 = vmul.bf16 %v5366, %v512
    %v5623 = vmul.bf16 %v5367, %v519
    %v5624 = vmul.bf16 %v5368, %v526
    %v5625 = vmul.bf16 %v5369, %v533
    %v5626 = vmul.bf16 %v5370, %v540
    %v5627 = vmul.bf16 %v5371, %v547
    %v5628 = vmul.bf16 %v5372, %v554
    %v5629 = vmul.bf16 %v5373, %v561
    %v5630 = vmul.bf16 %v5374, %v568
    %v5631 = vmul.bf16 %v5375, %v575
    %v5632 = vmul.bf16 %v5376, %v582
    %v5633 = vmul.bf16 %v5377, %v589
    %v5634 = vmul.bf16 %v5378, %v596
    %v5635 = vmul.bf16 %v5379, %v603
    %v5636 = vmul.bf16 %v5380, %v610
    %v5637 = vmul.bf16 %v5381, %v505
    %v5638 = vmul.bf16 %v5382, %v512
    %v5639 = vmul.bf16 %v5383, %v519
    %v5640 = vmul.bf16 %v5384, %v526
    %v5641 = vmul.bf16 %v5385, %v533
    %v5642 = vmul.bf16 %v5386, %v540
    %v5643 = vmul.bf16 %v5387, %v547
    %v5644 = vmul.bf16 %v5388, %v554
    %v5645 = vmul.bf16 %v5389, %v561
    %v5646 = vmul.bf16 %v5390, %v568
    %v5647 = vmul.bf16 %v5391, %v575
    %v5648 = vmul.bf16 %v5392, %v582
    %v5649 = vmul.bf16 %v5393, %v589
    %v5650 = vmul.bf16 %v5394, %v596
    %v5651 = vmul.bf16 %v5395, %v603
    %v5652 = vmul.bf16 %v5396, %v610
    %v5653 = vunpack.c.l.bf16 %v5397
    %v5654 = vunpack.c.l.bf16 %v5398
    %v5655 = vunpack.c.l.bf16 %v5399
    %v5656 = vunpack.c.l.bf16 %v5400
    %v5657 = vunpack.c.l.bf16 %v5401
    %v5658 = vunpack.c.l.bf16 %v5402
    %v5659 = vunpack.c.l.bf16 %v5403
    %v5660 = vunpack.c.l.bf16 %v5404
    %v5661 = vunpack.c.l.bf16 %v5405
    %v5662 = vunpack.c.l.bf16 %v5406
    %v5663 = vunpack.c.l.bf16 %v5407
    %v5664 = vunpack.c.l.bf16 %v5408
    %v5665 = vunpack.c.l.bf16 %v5409
    %v5666 = vunpack.c.l.bf16 %v5410
    %v5667 = vunpack.c.l.bf16 %v5411
    %v5668 = vunpack.c.l.bf16 %v5412
    %v5669 = vunpack.c.l.bf16 %v5413
    %v5670 = vunpack.c.l.bf16 %v5414
    %v5671 = vunpack.c.l.bf16 %v5415
    %v5672 = vunpack.c.l.bf16 %v5416
    %v5673 = vunpack.c.l.bf16 %v5417
    %v5674 = vunpack.c.l.bf16 %v5418
    %v5675 = vunpack.c.l.bf16 %v5419
    %v5676 = vunpack.c.l.bf16 %v5420
    %v5677 = vunpack.c.l.bf16 %v5421
    %v5678 = vunpack.c.l.bf16 %v5422
    %v5679 = vunpack.c.l.bf16 %v5423
    %v5680 = vunpack.c.l.bf16 %v5424
    %v5681 = vunpack.c.l.bf16 %v5425
    %v5682 = vunpack.c.l.bf16 %v5426
    %v5683 = vunpack.c.l.bf16 %v5427
    %v5684 = vunpack.c.l.bf16 %v5428
    %v5685 = vunpack.c.l.bf16 %v5429
    %v5686 = vunpack.c.l.bf16 %v5430
    %v5687 = vunpack.c.l.bf16 %v5431
    %v5688 = vunpack.c.l.bf16 %v5432
    %v5689 = vunpack.c.l.bf16 %v5433
    %v5690 = vunpack.c.l.bf16 %v5434
    %v5691 = vunpack.c.l.bf16 %v5435
    %v5692 = vunpack.c.l.bf16 %v5436
    %v5693 = vunpack.c.l.bf16 %v5437
    %v5694 = vunpack.c.l.bf16 %v5438
    %v5695 = vunpack.c.l.bf16 %v5439
    %v5696 = vunpack.c.l.bf16 %v5440
    %v5697 = vunpack.c.l.bf16 %v5441
    %v5698 = vunpack.c.l.bf16 %v5442
    %v5699 = vunpack.c.l.bf16 %v5443
    %v5700 = vunpack.c.l.bf16 %v5444
    %v5701 = vunpack.c.l.bf16 %v5445
    %v5702 = vunpack.c.l.bf16 %v5446
    %v5703 = vunpack.c.l.bf16 %v5447
    %v5704 = vunpack.c.l.bf16 %v5448
    %v5705 = vunpack.c.l.bf16 %v5449
    %v5706 = vunpack.c.l.bf16 %v5450
    %v5707 = vunpack.c.l.bf16 %v5451
    %v5708 = vunpack.c.l.bf16 %v5452
    %v5709 = vunpack.c.l.bf16 %v5453
    %v5710 = vunpack.c.l.bf16 %v5454
    %v5711 = vunpack.c.l.bf16 %v5455
    %v5712 = vunpack.c.l.bf16 %v5456
    %v5713 = vunpack.c.l.bf16 %v5457
    %v5714 = vunpack.c.l.bf16 %v5458
    %v5715 = vunpack.c.l.bf16 %v5459
    %v5716 = vunpack.c.l.bf16 %v5460
    %v5717 = vunpack.c.l.bf16 %v5461
    %v5718 = vunpack.c.l.bf16 %v5462
    %v5719 = vunpack.c.l.bf16 %v5463
    %v5720 = vunpack.c.l.bf16 %v5464
    %v5721 = vunpack.c.l.bf16 %v5465
    %v5722 = vunpack.c.l.bf16 %v5466
    %v5723 = vunpack.c.l.bf16 %v5467
    %v5724 = vunpack.c.l.bf16 %v5468
    %v5725 = vunpack.c.l.bf16 %v5469
    %v5726 = vunpack.c.l.bf16 %v5470
    %v5727 = vunpack.c.l.bf16 %v5471
    %v5728 = vunpack.c.l.bf16 %v5472
    %v5729 = vunpack.c.l.bf16 %v5473
    %v5730 = vunpack.c.l.bf16 %v5474
    %v5731 = vunpack.c.l.bf16 %v5475
    %v5732 = vunpack.c.l.bf16 %v5476
    %v5733 = vunpack.c.l.bf16 %v5477
    %v5734 = vunpack.c.l.bf16 %v5478
    %v5735 = vunpack.c.l.bf16 %v5479
    %v5736 = vunpack.c.l.bf16 %v5480
    %v5737 = vunpack.c.l.bf16 %v5481
    %v5738 = vunpack.c.l.bf16 %v5482
    %v5739 = vunpack.c.l.bf16 %v5483
    %v5740 = vunpack.c.l.bf16 %v5484
    %v5741 = vunpack.c.l.bf16 %v5485
    %v5742 = vunpack.c.l.bf16 %v5486
    %v5743 = vunpack.c.l.bf16 %v5487
    %v5744 = vunpack.c.l.bf16 %v5488
    %v5745 = vunpack.c.l.bf16 %v5489
    %v5746 = vunpack.c.l.bf16 %v5490
    %v5747 = vunpack.c.l.bf16 %v5491
    %v5748 = vunpack.c.l.bf16 %v5492
    %v5749 = vunpack.c.l.bf16 %v5493
    %v5750 = vunpack.c.l.bf16 %v5494
    %v5751 = vunpack.c.l.bf16 %v5495
    %v5752 = vunpack.c.l.bf16 %v5496
    %v5753 = vunpack.c.l.bf16 %v5497
    %v5754 = vunpack.c.l.bf16 %v5498
    %v5755 = vunpack.c.l.bf16 %v5499
    %v5756 = vunpack.c.l.bf16 %v5500
    %v5757 = vunpack.c.l.bf16 %v5501
    %v5758 = vunpack.c.l.bf16 %v5502
    %v5759 = vunpack.c.l.bf16 %v5503
    %v5760 = vunpack.c.l.bf16 %v5504
    %v5761 = vunpack.c.l.bf16 %v5505
    %v5762 = vunpack.c.l.bf16 %v5506
    %v5763 = vunpack.c.l.bf16 %v5507
    %v5764 = vunpack.c.l.bf16 %v5508
    %v5765 = vunpack.c.l.bf16 %v5509
    %v5766 = vunpack.c.l.bf16 %v5510
    %v5767 = vunpack.c.l.bf16 %v5511
    %v5768 = vunpack.c.l.bf16 %v5512
    %v5769 = vunpack.c.l.bf16 %v5513
    %v5770 = vunpack.c.l.bf16 %v5514
    %v5771 = vunpack.c.l.bf16 %v5515
    %v5772 = vunpack.c.l.bf16 %v5516
    %v5773 = vunpack.c.l.bf16 %v5517
    %v5774 = vunpack.c.l.bf16 %v5518
    %v5775 = vunpack.c.l.bf16 %v5519
    %v5776 = vunpack.c.l.bf16 %v5520
    %v5777 = vunpack.c.l.bf16 %v5521
    %v5778 = vunpack.c.l.bf16 %v5522
    %v5779 = vunpack.c.l.bf16 %v5523
    %v5780 = vunpack.c.l.bf16 %v5524
    %v5781 = vunpack.c.l.bf16 %v5525
    %v5782 = vunpack.c.l.bf16 %v5526
    %v5783 = vunpack.c.l.bf16 %v5527
    %v5784 = vunpack.c.l.bf16 %v5528
    %v5785 = vunpack.c.l.bf16 %v5529
    %v5786 = vunpack.c.l.bf16 %v5530
    %v5787 = vunpack.c.l.bf16 %v5531
    %v5788 = vunpack.c.l.bf16 %v5532
    %v5789 = vunpack.c.l.bf16 %v5533
    %v5790 = vunpack.c.l.bf16 %v5534
    %v5791 = vunpack.c.l.bf16 %v5535
    %v5792 = vunpack.c.l.bf16 %v5536
    %v5793 = vunpack.c.l.bf16 %v5537
    %v5794 = vunpack.c.l.bf16 %v5538
    %v5795 = vunpack.c.l.bf16 %v5539
    %v5796 = vunpack.c.l.bf16 %v5540
    %v5797 = vunpack.c.l.bf16 %v5541
    %v5798 = vunpack.c.l.bf16 %v5542
    %v5799 = vunpack.c.l.bf16 %v5543
    %v5800 = vunpack.c.l.bf16 %v5544
    %v5801 = vunpack.c.l.bf16 %v5545
    %v5802 = vunpack.c.l.bf16 %v5546
    %v5803 = vunpack.c.l.bf16 %v5547
    %v5804 = vunpack.c.l.bf16 %v5548
    %v5805 = vunpack.c.l.bf16 %v5549
    %v5806 = vunpack.c.l.bf16 %v5550
    %v5807 = vunpack.c.l.bf16 %v5551
    %v5808 = vunpack.c.l.bf16 %v5552
    %v5809 = vunpack.c.l.bf16 %v5553
    %v5810 = vunpack.c.l.bf16 %v5554
    %v5811 = vunpack.c.l.bf16 %v5555
    %v5812 = vunpack.c.l.bf16 %v5556
    %v5813 = vunpack.c.l.bf16 %v5557
    %v5814 = vunpack.c.l.bf16 %v5558
    %v5815 = vunpack.c.l.bf16 %v5559
    %v5816 = vunpack.c.l.bf16 %v5560
    %v5817 = vunpack.c.l.bf16 %v5561
    %v5818 = vunpack.c.l.bf16 %v5562
    %v5819 = vunpack.c.l.bf16 %v5563
    %v5820 = vunpack.c.l.bf16 %v5564
    %v5821 = vunpack.c.l.bf16 %v5565
    %v5822 = vunpack.c.l.bf16 %v5566
    %v5823 = vunpack.c.l.bf16 %v5567
    %v5824 = vunpack.c.l.bf16 %v5568
    %v5825 = vunpack.c.l.bf16 %v5569
    %v5826 = vunpack.c.l.bf16 %v5570
    %v5827 = vunpack.c.l.bf16 %v5571
    %v5828 = vunpack.c.l.bf16 %v5572
    %v5829 = vunpack.c.l.bf16 %v5573
    %v5830 = vunpack.c.l.bf16 %v5574
    %v5831 = vunpack.c.l.bf16 %v5575
    %v5832 = vunpack.c.l.bf16 %v5576
    %v5833 = vunpack.c.l.bf16 %v5577
    %v5834 = vunpack.c.l.bf16 %v5578
    %v5835 = vunpack.c.l.bf16 %v5579
    %v5836 = vunpack.c.l.bf16 %v5580
    %v5837 = vunpack.c.l.bf16 %v5581
    %v5838 = vunpack.c.l.bf16 %v5582
    %v5839 = vunpack.c.l.bf16 %v5583
    %v5840 = vunpack.c.l.bf16 %v5584
    %v5841 = vunpack.c.l.bf16 %v5585
    %v5842 = vunpack.c.l.bf16 %v5586
    %v5843 = vunpack.c.l.bf16 %v5587
    %v5844 = vunpack.c.l.bf16 %v5588
    %v5845 = vunpack.c.l.bf16 %v5589
    %v5846 = vunpack.c.l.bf16 %v5590
    %v5847 = vunpack.c.l.bf16 %v5591
    %v5848 = vunpack.c.l.bf16 %v5592
    %v5849 = vunpack.c.l.bf16 %v5593
    %v5850 = vunpack.c.l.bf16 %v5594
    %v5851 = vunpack.c.l.bf16 %v5595
    %v5852 = vunpack.c.l.bf16 %v5596
    %v5853 = vunpack.c.l.bf16 %v5597
    %v5854 = vunpack.c.l.bf16 %v5598
    %v5855 = vunpack.c.l.bf16 %v5599
    %v5856 = vunpack.c.l.bf16 %v5600
    %v5857 = vunpack.c.l.bf16 %v5601
    %v5858 = vunpack.c.l.bf16 %v5602
    %v5859 = vunpack.c.l.bf16 %v5603
    %v5860 = vunpack.c.l.bf16 %v5604
    %v5861 = vunpack.c.l.bf16 %v5605
    %v5862 = vunpack.c.l.bf16 %v5606
    %v5863 = vunpack.c.l.bf16 %v5607
    %v5864 = vunpack.c.l.bf16 %v5608
    %v5865 = vunpack.c.l.bf16 %v5609
    %v5866 = vunpack.c.l.bf16 %v5610
    %v5867 = vunpack.c.l.bf16 %v5611
    %v5868 = vunpack.c.l.bf16 %v5612
    %v5869 = vunpack.c.l.bf16 %v5613
    %v5870 = vunpack.c.l.bf16 %v5614
    %v5871 = vunpack.c.l.bf16 %v5615
    %v5872 = vunpack.c.l.bf16 %v5616
    %v5873 = vunpack.c.l.bf16 %v5617
    %v5874 = vunpack.c.l.bf16 %v5618
    %v5875 = vunpack.c.l.bf16 %v5619
    %v5876 = vunpack.c.l.bf16 %v5620
    %v5877 = vunpack.c.l.bf16 %v5621
    %v5878 = vunpack.c.l.bf16 %v5622
    %v5879 = vunpack.c.l.bf16 %v5623
    %v5880 = vunpack.c.l.bf16 %v5624
    %v5881 = vunpack.c.l.bf16 %v5625
    %v5882 = vunpack.c.l.bf16 %v5626
    %v5883 = vunpack.c.l.bf16 %v5627
    %v5884 = vunpack.c.l.bf16 %v5628
    %v5885 = vunpack.c.l.bf16 %v5629
    %v5886 = vunpack.c.l.bf16 %v5630
    %v5887 = vunpack.c.l.bf16 %v5631
    %v5888 = vunpack.c.l.bf16 %v5632
    %v5889 = vunpack.c.l.bf16 %v5633
    %v5890 = vunpack.c.l.bf16 %v5634
    %v5891 = vunpack.c.l.bf16 %v5635
    %v5892 = vunpack.c.l.bf16 %v5636
    %v5893 = vunpack.c.l.bf16 %v5637
    %v5894 = vunpack.c.l.bf16 %v5638
    %v5895 = vunpack.c.l.bf16 %v5639
    %v5896 = vunpack.c.l.bf16 %v5640
    %v5897 = vunpack.c.l.bf16 %v5641
    %v5898 = vunpack.c.l.bf16 %v5642
    %v5899 = vunpack.c.l.bf16 %v5643
    %v5900 = vunpack.c.l.bf16 %v5644
    %v5901 = vunpack.c.l.bf16 %v5645
    %v5902 = vunpack.c.l.bf16 %v5646
    %v5903 = vunpack.c.l.bf16 %v5647
    %v5904 = vunpack.c.l.bf16 %v5648
    %v5905 = vunpack.c.l.bf16 %v5649
    %v5906 = vunpack.c.l.bf16 %v5650
    %v5907 = vunpack.c.l.bf16 %v5651
    %v5908 = vunpack.c.l.bf16 %v5652
    %v5909 = vsel %vm233, %v5653, 0.0
    %v5910 = vsel %vm233, %v5654, 0.0
    %v5911 = vadd.f32 %v5909, %v5910
    %v5912 = vsel %vm233, %v5655, 0.0
    %v5913 = vadd.f32 %v5911, %v5912
    %v5914 = vsel %vm233, %v5656, 0.0
    %v5915 = vadd.f32 %v5913, %v5914
    %v5916 = vsel %vm233, %v5657, 0.0
    %v5917 = vadd.f32 %v5915, %v5916
    %v5918 = vsel %vm233, %v5658, 0.0
    %v5919 = vadd.f32 %v5917, %v5918
    %v5920 = vsel %vm233, %v5659, 0.0
    %v5921 = vadd.f32 %v5919, %v5920
    %v5922 = vsel %vm233, %v5660, 0.0
    %v5923 = vadd.f32 %v5921, %v5922
    %v5924 = vsel %vm233, %v5661, 0.0
    %v5925 = vadd.f32 %v5923, %v5924
    %v5926 = vsel %vm233, %v5662, 0.0
    %v5927 = vadd.f32 %v5925, %v5926
    %v5928 = vsel %vm233, %v5663, 0.0
    %v5929 = vadd.f32 %v5927, %v5928
    %v5930 = vsel %vm233, %v5664, 0.0
    %v5931 = vadd.f32 %v5929, %v5930
    %v5932 = vsel %vm233, %v5665, 0.0
    %v5933 = vadd.f32 %v5931, %v5932
    %v5934 = vsel %vm233, %v5666, 0.0
    %v5935 = vadd.f32 %v5933, %v5934
    %v5936 = vsel %vm233, %v5667, 0.0
    %v5937 = vadd.f32 %v5935, %v5936
    %v5938 = vsel %vm233, %v5668, 0.0
    %v5939 = vadd.f32 %v5937, %v5938
    %v5940 = vsel %vm233, %v5669, 0.0
    %v5941 = vsel %vm233, %v5670, 0.0
    %v5942 = vadd.f32 %v5940, %v5941
    %v5943 = vsel %vm233, %v5671, 0.0
    %v5944 = vadd.f32 %v5942, %v5943
    %v5945 = vsel %vm233, %v5672, 0.0
    %v5946 = vadd.f32 %v5944, %v5945
    %v5947 = vsel %vm233, %v5673, 0.0
    %v5948 = vadd.f32 %v5946, %v5947
    %v5949 = vsel %vm233, %v5674, 0.0
    %v5950 = vadd.f32 %v5948, %v5949
    %v5951 = vsel %vm233, %v5675, 0.0
    %v5952 = vadd.f32 %v5950, %v5951
    %v5953 = vsel %vm233, %v5676, 0.0
    %v5954 = vadd.f32 %v5952, %v5953
    %v5955 = vsel %vm233, %v5677, 0.0
    %v5956 = vadd.f32 %v5954, %v5955
    %v5957 = vsel %vm233, %v5678, 0.0
    %v5958 = vadd.f32 %v5956, %v5957
    %v5959 = vsel %vm233, %v5679, 0.0
    %v5960 = vadd.f32 %v5958, %v5959
    %v5961 = vsel %vm233, %v5680, 0.0
    %v5962 = vadd.f32 %v5960, %v5961
    %v5963 = vsel %vm233, %v5681, 0.0
    %v5964 = vadd.f32 %v5962, %v5963
    %v5965 = vsel %vm233, %v5682, 0.0
    %v5966 = vadd.f32 %v5964, %v5965
    %v5967 = vsel %vm233, %v5683, 0.0
    %v5968 = vadd.f32 %v5966, %v5967
    %v5969 = vsel %vm233, %v5684, 0.0
    %v5970 = vadd.f32 %v5968, %v5969
    %v5971 = vsel %vm233, %v5685, 0.0
    %v5972 = vsel %vm233, %v5686, 0.0
    %v5973 = vadd.f32 %v5971, %v5972
    %v5974 = vsel %vm233, %v5687, 0.0
    %v5975 = vadd.f32 %v5973, %v5974
    %v5976 = vsel %vm233, %v5688, 0.0
    %v5977 = vadd.f32 %v5975, %v5976
    %v5978 = vsel %vm233, %v5689, 0.0
    %v5979 = vadd.f32 %v5977, %v5978
    %v5980 = vsel %vm233, %v5690, 0.0
    %v5981 = vadd.f32 %v5979, %v5980
    %v5982 = vsel %vm233, %v5691, 0.0
    %v5983 = vadd.f32 %v5981, %v5982
    %v5984 = vsel %vm233, %v5692, 0.0
    %v5985 = vadd.f32 %v5983, %v5984
    %v5986 = vsel %vm233, %v5693, 0.0
    %v5987 = vadd.f32 %v5985, %v5986
    %v5988 = vsel %vm233, %v5694, 0.0
    %v5989 = vadd.f32 %v5987, %v5988
    %v5990 = vsel %vm233, %v5695, 0.0
    %v5991 = vadd.f32 %v5989, %v5990
    %v5992 = vsel %vm233, %v5696, 0.0
    %v5993 = vadd.f32 %v5991, %v5992
    %v5994 = vsel %vm233, %v5697, 0.0
    %v5995 = vadd.f32 %v5993, %v5994
    %v5996 = vsel %vm233, %v5698, 0.0
    %v5997 = vadd.f32 %v5995, %v5996
    %v5998 = vsel %vm233, %v5699, 0.0
    %v5999 = vadd.f32 %v5997, %v5998
    %v6000 = vsel %vm233, %v5700, 0.0
    %v6001 = vadd.f32 %v5999, %v6000
    %v6002 = vsel %vm233, %v5701, 0.0
    %v6003 = vsel %vm233, %v5702, 0.0
    %v6004 = vadd.f32 %v6002, %v6003
    %v6005 = vsel %vm233, %v5703, 0.0
    %v6006 = vadd.f32 %v6004, %v6005
    %v6007 = vsel %vm233, %v5704, 0.0
    %v6008 = vadd.f32 %v6006, %v6007
    %v6009 = vsel %vm233, %v5705, 0.0
    %v6010 = vadd.f32 %v6008, %v6009
    %v6011 = vsel %vm233, %v5706, 0.0
    %v6012 = vadd.f32 %v6010, %v6011
    %v6013 = vsel %vm233, %v5707, 0.0
    %v6014 = vadd.f32 %v6012, %v6013
    %v6015 = vsel %vm233, %v5708, 0.0
    %v6016 = vadd.f32 %v6014, %v6015
    %v6017 = vsel %vm233, %v5709, 0.0
    %v6018 = vadd.f32 %v6016, %v6017
    %v6019 = vsel %vm233, %v5710, 0.0
    %v6020 = vadd.f32 %v6018, %v6019
    %v6021 = vsel %vm233, %v5711, 0.0
    %v6022 = vadd.f32 %v6020, %v6021
    %v6023 = vsel %vm233, %v5712, 0.0
    %v6024 = vadd.f32 %v6022, %v6023
    %v6025 = vsel %vm233, %v5713, 0.0
    %v6026 = vadd.f32 %v6024, %v6025
    %v6027 = vsel %vm233, %v5714, 0.0
    %v6028 = vadd.f32 %v6026, %v6027
    %v6029 = vsel %vm233, %v5715, 0.0
    %v6030 = vadd.f32 %v6028, %v6029
    %v6031 = vsel %vm233, %v5716, 0.0
    %v6032 = vadd.f32 %v6030, %v6031
    %v6033 = vsel %vm233, %v5717, 0.0
    %v6034 = vsel %vm233, %v5718, 0.0
    %v6035 = vadd.f32 %v6033, %v6034
    %v6036 = vsel %vm233, %v5719, 0.0
    %v6037 = vadd.f32 %v6035, %v6036
    %v6038 = vsel %vm233, %v5720, 0.0
    %v6039 = vadd.f32 %v6037, %v6038
    %v6040 = vsel %vm233, %v5721, 0.0
    %v6041 = vadd.f32 %v6039, %v6040
    %v6042 = vsel %vm233, %v5722, 0.0
    %v6043 = vadd.f32 %v6041, %v6042
    %v6044 = vsel %vm233, %v5723, 0.0
    %v6045 = vadd.f32 %v6043, %v6044
    %v6046 = vsel %vm233, %v5724, 0.0
    %v6047 = vadd.f32 %v6045, %v6046
    %v6048 = vsel %vm233, %v5725, 0.0
    %v6049 = vadd.f32 %v6047, %v6048
    %v6050 = vsel %vm233, %v5726, 0.0
    %v6051 = vadd.f32 %v6049, %v6050
    %v6052 = vsel %vm233, %v5727, 0.0
    %v6053 = vadd.f32 %v6051, %v6052
    %v6054 = vsel %vm233, %v5728, 0.0
    %v6055 = vadd.f32 %v6053, %v6054
    %v6056 = vsel %vm233, %v5729, 0.0
    %v6057 = vadd.f32 %v6055, %v6056
    %v6058 = vsel %vm233, %v5730, 0.0
    %v6059 = vadd.f32 %v6057, %v6058
    %v6060 = vsel %vm233, %v5731, 0.0
    %v6061 = vadd.f32 %v6059, %v6060
    %v6062 = vsel %vm233, %v5732, 0.0
    %v6063 = vadd.f32 %v6061, %v6062
    %v6064 = vsel %vm233, %v5733, 0.0
    %v6065 = vsel %vm233, %v5734, 0.0
    %v6066 = vadd.f32 %v6064, %v6065
    %v6067 = vsel %vm233, %v5735, 0.0
    %v6068 = vadd.f32 %v6066, %v6067
    %v6069 = vsel %vm233, %v5736, 0.0
    %v6070 = vadd.f32 %v6068, %v6069
    %v6071 = vsel %vm233, %v5737, 0.0
    %v6072 = vadd.f32 %v6070, %v6071
    %v6073 = vsel %vm233, %v5738, 0.0
    %v6074 = vadd.f32 %v6072, %v6073
    %v6075 = vsel %vm233, %v5739, 0.0
    %v6076 = vadd.f32 %v6074, %v6075
    %v6077 = vsel %vm233, %v5740, 0.0
    %v6078 = vadd.f32 %v6076, %v6077
    %v6079 = vsel %vm233, %v5741, 0.0
    %v6080 = vadd.f32 %v6078, %v6079
    %v6081 = vsel %vm233, %v5742, 0.0
    %v6082 = vadd.f32 %v6080, %v6081
    %v6083 = vsel %vm233, %v5743, 0.0
    %v6084 = vadd.f32 %v6082, %v6083
    %v6085 = vsel %vm233, %v5744, 0.0
    %v6086 = vadd.f32 %v6084, %v6085
    %v6087 = vsel %vm233, %v5745, 0.0
    %v6088 = vadd.f32 %v6086, %v6087
    %v6089 = vsel %vm233, %v5746, 0.0
    %v6090 = vadd.f32 %v6088, %v6089
    %v6091 = vsel %vm233, %v5747, 0.0
    %v6092 = vadd.f32 %v6090, %v6091
    %v6093 = vsel %vm233, %v5748, 0.0
    %v6094 = vadd.f32 %v6092, %v6093
    %v6095 = vsel %vm233, %v5749, 0.0
    %v6096 = vsel %vm233, %v5750, 0.0
    %v6097 = vadd.f32 %v6095, %v6096
    %v6098 = vsel %vm233, %v5751, 0.0
    %v6099 = vadd.f32 %v6097, %v6098
    %v6100 = vsel %vm233, %v5752, 0.0
    %v6101 = vadd.f32 %v6099, %v6100
    %v6102 = vsel %vm233, %v5753, 0.0
    %v6103 = vadd.f32 %v6101, %v6102
    %v6104 = vsel %vm233, %v5754, 0.0
    %v6105 = vadd.f32 %v6103, %v6104
    %v6106 = vsel %vm233, %v5755, 0.0
    %v6107 = vadd.f32 %v6105, %v6106
    %v6108 = vsel %vm233, %v5756, 0.0
    %v6109 = vadd.f32 %v6107, %v6108
    %v6110 = vsel %vm233, %v5757, 0.0
    %v6111 = vadd.f32 %v6109, %v6110
    %v6112 = vsel %vm233, %v5758, 0.0
    %v6113 = vadd.f32 %v6111, %v6112
    %v6114 = vsel %vm233, %v5759, 0.0
    %v6115 = vadd.f32 %v6113, %v6114
    %v6116 = vsel %vm233, %v5760, 0.0
    %v6117 = vadd.f32 %v6115, %v6116
    %v6118 = vsel %vm233, %v5761, 0.0
    %v6119 = vadd.f32 %v6117, %v6118
    %v6120 = vsel %vm233, %v5762, 0.0
    %v6121 = vadd.f32 %v6119, %v6120
    %v6122 = vsel %vm233, %v5763, 0.0
    %v6123 = vadd.f32 %v6121, %v6122
    %v6124 = vsel %vm233, %v5764, 0.0
    %v6125 = vadd.f32 %v6123, %v6124
    %v6126 = vsel %vm233, %v5765, 0.0
    %v6127 = vsel %vm233, %v5766, 0.0
    %v6128 = vadd.f32 %v6126, %v6127
    %v6129 = vsel %vm233, %v5767, 0.0
    %v6130 = vadd.f32 %v6128, %v6129
    %v6131 = vsel %vm233, %v5768, 0.0
    %v6132 = vadd.f32 %v6130, %v6131
    %v6133 = vsel %vm233, %v5769, 0.0
    %v6134 = vadd.f32 %v6132, %v6133
    %v6135 = vsel %vm233, %v5770, 0.0
    %v6136 = vadd.f32 %v6134, %v6135
    %v6137 = vsel %vm233, %v5771, 0.0
    %v6138 = vadd.f32 %v6136, %v6137
    %v6139 = vsel %vm233, %v5772, 0.0
    %v6140 = vadd.f32 %v6138, %v6139
    %v6141 = vsel %vm233, %v5773, 0.0
    %v6142 = vadd.f32 %v6140, %v6141
    %v6143 = vsel %vm233, %v5774, 0.0
    %v6144 = vadd.f32 %v6142, %v6143
    %v6145 = vsel %vm233, %v5775, 0.0
    %v6146 = vadd.f32 %v6144, %v6145
    %v6147 = vsel %vm233, %v5776, 0.0
    %v6148 = vadd.f32 %v6146, %v6147
    %v6149 = vsel %vm233, %v5777, 0.0
    %v6150 = vadd.f32 %v6148, %v6149
    %v6151 = vsel %vm233, %v5778, 0.0
    %v6152 = vadd.f32 %v6150, %v6151
    %v6153 = vsel %vm233, %v5779, 0.0
    %v6154 = vadd.f32 %v6152, %v6153
    %v6155 = vsel %vm233, %v5780, 0.0
    %v6156 = vadd.f32 %v6154, %v6155
    %v6157 = vsel %vm233, %v5781, 0.0
    %v6158 = vsel %vm233, %v5782, 0.0
    %v6159 = vadd.f32 %v6157, %v6158
    %v6160 = vsel %vm233, %v5783, 0.0
    %v6161 = vadd.f32 %v6159, %v6160
    %v6162 = vsel %vm233, %v5784, 0.0
    %v6163 = vadd.f32 %v6161, %v6162
    %v6164 = vsel %vm233, %v5785, 0.0
    %v6165 = vadd.f32 %v6163, %v6164
    %v6166 = vsel %vm233, %v5786, 0.0
    %v6167 = vadd.f32 %v6165, %v6166
    %v6168 = vsel %vm233, %v5787, 0.0
    %v6169 = vadd.f32 %v6167, %v6168
    %v6170 = vsel %vm233, %v5788, 0.0
    %v6171 = vadd.f32 %v6169, %v6170
    %v6172 = vsel %vm233, %v5789, 0.0
    %v6173 = vadd.f32 %v6171, %v6172
    %v6174 = vsel %vm233, %v5790, 0.0
    %v6175 = vadd.f32 %v6173, %v6174
    %v6176 = vsel %vm233, %v5791, 0.0
    %v6177 = vadd.f32 %v6175, %v6176
    %v6178 = vsel %vm233, %v5792, 0.0
    %v6179 = vadd.f32 %v6177, %v6178
    %v6180 = vsel %vm233, %v5793, 0.0
    %v6181 = vadd.f32 %v6179, %v6180
    %v6182 = vsel %vm233, %v5794, 0.0
    %v6183 = vadd.f32 %v6181, %v6182
    %v6184 = vsel %vm233, %v5795, 0.0
    %v6185 = vadd.f32 %v6183, %v6184
    %v6186 = vsel %vm233, %v5796, 0.0
    %v6187 = vadd.f32 %v6185, %v6186
    %v6188 = vsel %vm233, %v5797, 0.0
    %v6189 = vsel %vm233, %v5798, 0.0
    %v6190 = vadd.f32 %v6188, %v6189
    %v6191 = vsel %vm233, %v5799, 0.0
    %v6192 = vadd.f32 %v6190, %v6191
    %v6193 = vsel %vm233, %v5800, 0.0
    %v6194 = vadd.f32 %v6192, %v6193
    %v6195 = vsel %vm233, %v5801, 0.0
    %v6196 = vadd.f32 %v6194, %v6195
    %v6197 = vsel %vm233, %v5802, 0.0
    %v6198 = vadd.f32 %v6196, %v6197
    %v6199 = vsel %vm233, %v5803, 0.0
    %v6200 = vadd.f32 %v6198, %v6199
    %v6201 = vsel %vm233, %v5804, 0.0
    %v6202 = vadd.f32 %v6200, %v6201
    %v6203 = vsel %vm233, %v5805, 0.0
    %v6204 = vadd.f32 %v6202, %v6203
    %v6205 = vsel %vm233, %v5806, 0.0
    %v6206 = vadd.f32 %v6204, %v6205
    %v6207 = vsel %vm233, %v5807, 0.0
    %v6208 = vadd.f32 %v6206, %v6207
    %v6209 = vsel %vm233, %v5808, 0.0
    %v6210 = vadd.f32 %v6208, %v6209
    %v6211 = vsel %vm233, %v5809, 0.0
    %v6212 = vadd.f32 %v6210, %v6211
    %v6213 = vsel %vm233, %v5810, 0.0
    %v6214 = vadd.f32 %v6212, %v6213
    %v6215 = vsel %vm233, %v5811, 0.0
    %v6216 = vadd.f32 %v6214, %v6215
    %v6217 = vsel %vm233, %v5812, 0.0
    %v6218 = vadd.f32 %v6216, %v6217
    %v6219 = vsel %vm233, %v5813, 0.0
    %v6220 = vsel %vm233, %v5814, 0.0
    %v6221 = vadd.f32 %v6219, %v6220
    %v6222 = vsel %vm233, %v5815, 0.0
    %v6223 = vadd.f32 %v6221, %v6222
    %v6224 = vsel %vm233, %v5816, 0.0
    %v6225 = vadd.f32 %v6223, %v6224
    %v6226 = vsel %vm233, %v5817, 0.0
    %v6227 = vadd.f32 %v6225, %v6226
    %v6228 = vsel %vm233, %v5818, 0.0
    %v6229 = vadd.f32 %v6227, %v6228
    %v6230 = vsel %vm233, %v5819, 0.0
    %v6231 = vadd.f32 %v6229, %v6230
    %v6232 = vsel %vm233, %v5820, 0.0
    %v6233 = vadd.f32 %v6231, %v6232
    %v6234 = vsel %vm233, %v5821, 0.0
    %v6235 = vadd.f32 %v6233, %v6234
    %v6236 = vsel %vm233, %v5822, 0.0
    %v6237 = vadd.f32 %v6235, %v6236
    %v6238 = vsel %vm233, %v5823, 0.0
    %v6239 = vadd.f32 %v6237, %v6238
    %v6240 = vsel %vm233, %v5824, 0.0
    %v6241 = vadd.f32 %v6239, %v6240
    %v6242 = vsel %vm233, %v5825, 0.0
    %v6243 = vadd.f32 %v6241, %v6242
    %v6244 = vsel %vm233, %v5826, 0.0
    %v6245 = vadd.f32 %v6243, %v6244
    %v6246 = vsel %vm233, %v5827, 0.0
    %v6247 = vadd.f32 %v6245, %v6246
    %v6248 = vsel %vm233, %v5828, 0.0
    %v6249 = vadd.f32 %v6247, %v6248
    %v6250 = vsel %vm233, %v5829, 0.0
    %v6251 = vsel %vm233, %v5830, 0.0
    %v6252 = vadd.f32 %v6250, %v6251
    %v6253 = vsel %vm233, %v5831, 0.0
    %v6254 = vadd.f32 %v6252, %v6253
    %v6255 = vsel %vm233, %v5832, 0.0
    %v6256 = vadd.f32 %v6254, %v6255
    %v6257 = vsel %vm233, %v5833, 0.0
    %v6258 = vadd.f32 %v6256, %v6257
    %v6259 = vsel %vm233, %v5834, 0.0
    %v6260 = vadd.f32 %v6258, %v6259
    %v6261 = vsel %vm233, %v5835, 0.0
    %v6262 = vadd.f32 %v6260, %v6261
    %v6263 = vsel %vm233, %v5836, 0.0
    %v6264 = vadd.f32 %v6262, %v6263
    %v6265 = vsel %vm233, %v5837, 0.0
    %v6266 = vadd.f32 %v6264, %v6265
    %v6267 = vsel %vm233, %v5838, 0.0
    %v6268 = vadd.f32 %v6266, %v6267
    %v6269 = vsel %vm233, %v5839, 0.0
    %v6270 = vadd.f32 %v6268, %v6269
    %v6271 = vsel %vm233, %v5840, 0.0
    %v6272 = vadd.f32 %v6270, %v6271
    %v6273 = vsel %vm233, %v5841, 0.0
    %v6274 = vadd.f32 %v6272, %v6273
    %v6275 = vsel %vm233, %v5842, 0.0
    %v6276 = vadd.f32 %v6274, %v6275
    %v6277 = vsel %vm233, %v5843, 0.0
    %v6278 = vadd.f32 %v6276, %v6277
    %v6279 = vsel %vm233, %v5844, 0.0
    %v6280 = vadd.f32 %v6278, %v6279
    %v6281 = vsel %vm233, %v5845, 0.0
    %v6282 = vsel %vm233, %v5846, 0.0
    %v6283 = vadd.f32 %v6281, %v6282
    %v6284 = vsel %vm233, %v5847, 0.0
    %v6285 = vadd.f32 %v6283, %v6284
    %v6286 = vsel %vm233, %v5848, 0.0
    %v6287 = vadd.f32 %v6285, %v6286
    %v6288 = vsel %vm233, %v5849, 0.0
    %v6289 = vadd.f32 %v6287, %v6288
    %v6290 = vsel %vm233, %v5850, 0.0
    %v6291 = vadd.f32 %v6289, %v6290
    %v6292 = vsel %vm233, %v5851, 0.0
    %v6293 = vadd.f32 %v6291, %v6292
    %v6294 = vsel %vm233, %v5852, 0.0
    %v6295 = vadd.f32 %v6293, %v6294
    %v6296 = vsel %vm233, %v5853, 0.0
    %v6297 = vadd.f32 %v6295, %v6296
    %v6298 = vsel %vm233, %v5854, 0.0
    %v6299 = vadd.f32 %v6297, %v6298
    %v6300 = vsel %vm233, %v5855, 0.0
    %v6301 = vadd.f32 %v6299, %v6300
    %v6302 = vsel %vm233, %v5856, 0.0
    %v6303 = vadd.f32 %v6301, %v6302
    %v6304 = vsel %vm233, %v5857, 0.0
    %v6305 = vadd.f32 %v6303, %v6304
    %v6306 = vsel %vm233, %v5858, 0.0
    %v6307 = vadd.f32 %v6305, %v6306
    %v6308 = vsel %vm233, %v5859, 0.0
    %v6309 = vadd.f32 %v6307, %v6308
    %v6310 = vsel %vm233, %v5860, 0.0
    %v6311 = vadd.f32 %v6309, %v6310
    %v6312 = vsel %vm233, %v5861, 0.0
    %v6313 = vsel %vm233, %v5862, 0.0
    %v6314 = vadd.f32 %v6312, %v6313
    %v6315 = vsel %vm233, %v5863, 0.0
    %v6316 = vadd.f32 %v6314, %v6315
    %v6317 = vsel %vm233, %v5864, 0.0
    %v6318 = vadd.f32 %v6316, %v6317
    %v6319 = vsel %vm233, %v5865, 0.0
    %v6320 = vadd.f32 %v6318, %v6319
    %v6321 = vsel %vm233, %v5866, 0.0
    %v6322 = vadd.f32 %v6320, %v6321
    %v6323 = vsel %vm233, %v5867, 0.0
    %v6324 = vadd.f32 %v6322, %v6323
    %v6325 = vsel %vm233, %v5868, 0.0
    %v6326 = vadd.f32 %v6324, %v6325
    %v6327 = vsel %vm233, %v5869, 0.0
    %v6328 = vadd.f32 %v6326, %v6327
    %v6329 = vsel %vm233, %v5870, 0.0
    %v6330 = vadd.f32 %v6328, %v6329
    %v6331 = vsel %vm233, %v5871, 0.0
    %v6332 = vadd.f32 %v6330, %v6331
    %v6333 = vsel %vm233, %v5872, 0.0
    %v6334 = vadd.f32 %v6332, %v6333
    %v6335 = vsel %vm233, %v5873, 0.0
    %v6336 = vadd.f32 %v6334, %v6335
    %v6337 = vsel %vm233, %v5874, 0.0
    %v6338 = vadd.f32 %v6336, %v6337
    %v6339 = vsel %vm233, %v5875, 0.0
    %v6340 = vadd.f32 %v6338, %v6339
    %v6341 = vsel %vm233, %v5876, 0.0
    %v6342 = vadd.f32 %v6340, %v6341
    %v6343 = vsel %vm233, %v5877, 0.0
    %v6344 = vsel %vm233, %v5878, 0.0
    %v6345 = vadd.f32 %v6343, %v6344
    %v6346 = vsel %vm233, %v5879, 0.0
    %v6347 = vadd.f32 %v6345, %v6346
    %v6348 = vsel %vm233, %v5880, 0.0
    %v6349 = vadd.f32 %v6347, %v6348
    %v6350 = vsel %vm233, %v5881, 0.0
    %v6351 = vadd.f32 %v6349, %v6350
    %v6352 = vsel %vm233, %v5882, 0.0
    %v6353 = vadd.f32 %v6351, %v6352
    %v6354 = vsel %vm233, %v5883, 0.0
    %v6355 = vadd.f32 %v6353, %v6354
    %v6356 = vsel %vm233, %v5884, 0.0
    %v6357 = vadd.f32 %v6355, %v6356
    %v6358 = vsel %vm233, %v5885, 0.0
    %v6359 = vadd.f32 %v6357, %v6358
    %v6360 = vsel %vm233, %v5886, 0.0
    %v6361 = vadd.f32 %v6359, %v6360
    %v6362 = vsel %vm233, %v5887, 0.0
    %v6363 = vadd.f32 %v6361, %v6362
    %v6364 = vsel %vm233, %v5888, 0.0
    %v6365 = vadd.f32 %v6363, %v6364
    %v6366 = vsel %vm233, %v5889, 0.0
    %v6367 = vadd.f32 %v6365, %v6366
    %v6368 = vsel %vm233, %v5890, 0.0
    %v6369 = vadd.f32 %v6367, %v6368
    %v6370 = vsel %vm233, %v5891, 0.0
    %v6371 = vadd.f32 %v6369, %v6370
    %v6372 = vsel %vm233, %v5892, 0.0
    %v6373 = vadd.f32 %v6371, %v6372
    %v6374 = vsel %vm233, %v5893, 0.0
    %v6375 = vsel %vm233, %v5894, 0.0
    %v6376 = vadd.f32 %v6374, %v6375
    %v6377 = vsel %vm233, %v5895, 0.0
    %v6378 = vadd.f32 %v6376, %v6377
    %v6379 = vsel %vm233, %v5896, 0.0
    %v6380 = vadd.f32 %v6378, %v6379
    %v6381 = vsel %vm233, %v5897, 0.0
    %v6382 = vadd.f32 %v6380, %v6381
    %v6383 = vsel %vm233, %v5898, 0.0
    %v6384 = vadd.f32 %v6382, %v6383
    %v6385 = vsel %vm233, %v5899, 0.0
    %v6386 = vadd.f32 %v6384, %v6385
    %v6387 = vsel %vm233, %v5900, 0.0
    %v6388 = vadd.f32 %v6386, %v6387
    %v6389 = vsel %vm233, %v5901, 0.0
    %v6390 = vadd.f32 %v6388, %v6389
    %v6391 = vsel %vm233, %v5902, 0.0
    %v6392 = vadd.f32 %v6390, %v6391
    %v6393 = vsel %vm233, %v5903, 0.0
    %v6394 = vadd.f32 %v6392, %v6393
    %v6395 = vsel %vm233, %v5904, 0.0
    %v6396 = vadd.f32 %v6394, %v6395
    %v6397 = vsel %vm233, %v5905, 0.0
    %v6398 = vadd.f32 %v6396, %v6397
    %v6399 = vsel %vm233, %v5906, 0.0
    %v6400 = vadd.f32 %v6398, %v6399
    %v6401 = vsel %vm233, %v5907, 0.0
    %v6402 = vadd.f32 %v6400, %v6401
    %v6403 = vsel %vm233, %v5908, 0.0
    %v6404 = vadd.f32 %v6402, %v6403
    %v6405 = vpack.c.bf16 %v5939, %v5939
    %v6406 = vpack.c.bf16 %v5970, %v5970
    %v6407 = vpack.c.bf16 %v6001, %v6001
    %v6408 = vpack.c.bf16 %v6032, %v6032
    %v6409 = vpack.c.bf16 %v6063, %v6063
    %v6410 = vpack.c.bf16 %v6094, %v6094
    %v6411 = vpack.c.bf16 %v6125, %v6125
    %v6412 = vpack.c.bf16 %v6156, %v6156
    %v6413 = vpack.c.bf16 %v6187, %v6187
    %v6414 = vpack.c.bf16 %v6218, %v6218
    %v6415 = vpack.c.bf16 %v6249, %v6249
    %v6416 = vpack.c.bf16 %v6280, %v6280
    %v6417 = vpack.c.bf16 %v6311, %v6311
    %v6418 = vpack.c.bf16 %v6342, %v6342
    %v6419 = vpack.c.bf16 %v6373, %v6373
    %v6420 = vpack.c.bf16 %v6404, %v6404
    %v6421 = vld [vmem:[#allocation10] sm:$0xff]
    %v6422 = vld [vmem:[#allocation10 + $0x8] sm:$0xf]
    %v6423 = vld [vmem:[#allocation10 + $0xc] sm:$0xff]
    %v6424 = vld [vmem:[#allocation10 + $0x14] sm:$0xf]
    %v6425 = vld [vmem:[#allocation10 + $0x18] sm:$0xff]
    %v6426 = vld [vmem:[#allocation10 + $0x20] sm:$0xf]
    %v6427 = vld [vmem:[#allocation10 + $0x24] sm:$0xff]
    %v6428 = vld [vmem:[#allocation10 + $0x2c] sm:$0xf]
    %v6429 = vld [vmem:[#allocation10 + $0x30] sm:$0xff]
    %v6430 = vld [vmem:[#allocation10 + $0x38] sm:$0xf]
    %v6431 = vld [vmem:[#allocation10 + $0x3c] sm:$0xff]
    %v6432 = vld [vmem:[#allocation10 + $0x44] sm:$0xf]
    %v6433 = vld [vmem:[#allocation10 + $0x48] sm:$0xff]
    %v6434 = vld [vmem:[#allocation10 + $0x50] sm:$0xf]
    %v6435 = vld [vmem:[#allocation10 + $0x54] sm:$0xff]
    %v6436 = vld [vmem:[#allocation10 + $0x5c] sm:$0xf]
    %v6437 = vld [vmem:[#allocation11] sm:$0x7]
    %v6439 = vlaneseq
    %v6440 = vshrl.u32 %v6439, 7
    %v6441 = vsub.s32 0, %v6440
    %v6442 = vrot.slane %v6437, %v6441
    %v6443 = vlaneseq
    %v6444 = vshrl.u32 %v6443, 7
    %v6445 = vsub.s32 1, %v6444
    %v6446 = vrot.slane %v6437, %v6445
    %v6447 = vlaneseq
    %v6448 = vshrl.u32 %v6447, 7
    %v6449 = vsub.s32 2, %v6448
    %v6450 = vrot.slane %v6437, %v6449
    %v6470 = vunpack.c.l.b16 %v6405
    %v6471 = vunpack.c.l.b16 %v6406
    %v6472 = vunpack.c.l.b16 %v6407
    %v6473 = vunpack.c.l.b16 %v6408
    %v6474 = vunpack.c.l.b16 %v6409
    %v6475 = vunpack.c.l.b16 %v6410
    %v6476 = vunpack.c.l.b16 %v6411
    %v6477 = vunpack.c.l.b16 %v6412
    %v6478 = vunpack.c.l.b16 %v6413
    %v6479 = vunpack.c.l.b16 %v6414
    %v6480 = vunpack.c.l.b16 %v6415
    %v6481 = vunpack.c.l.b16 %v6416
    %v6482 = vunpack.c.l.b16 %v6417
    %v6483 = vunpack.c.l.b16 %v6418
    %v6484 = vunpack.c.l.b16 %v6419
    %v6485 = vunpack.c.l.b16 %v6420
    %v6486 = vpack.c.b16 %v6471, %v6470
    %v6487 = vpack.c.b16 %v6473, %v6472
    %v6488 = vpack.c.b16 %v6475, %v6474
    %v6489 = vpack.c.b16 %v6477, %v6476
    %v6490 = vpack.c.b16 %v6479, %v6478
    %v6491 = vpack.c.b16 %v6481, %v6480
    %v6492 = vpack.c.b16 %v6483, %v6482
    %v6493 = vpack.c.b16 %v6485, %v6484
    %v6510 = vunpack.c.l.b16 %v6421
    %v6511 = vunpack.c.h.b16 %v6421
    %v6512 = vunpack.c.l.b16 %v6422
    %v6513 = vunpack.c.l.b16 %v6423
    %v6514 = vunpack.c.h.b16 %v6423
    %v6515 = vunpack.c.l.b16 %v6424
    %v6516 = vunpack.c.l.b16 %v6425
    %v6517 = vunpack.c.h.b16 %v6425
    %v6518 = vunpack.c.l.b16 %v6426
    %v6519 = vunpack.c.l.b16 %v6427
    %v6520 = vunpack.c.h.b16 %v6427
    %v6521 = vunpack.c.l.b16 %v6428
    %v6522 = vunpack.c.l.b16 %v6429
    %v6523 = vunpack.c.h.b16 %v6429
    %v6524 = vunpack.c.l.b16 %v6430
    %v6525 = vunpack.c.l.b16 %v6431
    %v6526 = vunpack.c.h.b16 %v6431
    %v6527 = vunpack.c.l.b16 %v6432
    %v6528 = vunpack.c.l.b16 %v6433
    %v6529 = vunpack.c.h.b16 %v6433
    %v6530 = vunpack.c.l.b16 %v6434
    %v6531 = vunpack.c.l.b16 %v6435
    %v6532 = vunpack.c.h.b16 %v6435
    %v6533 = vunpack.c.l.b16 %v6436
    %v6534 = vpack.c.b16 %v6513, %v6510
    %v6535 = vpack.c.b16 %v6514, %v6511
    %v6536 = vpack.c.b16 %v6515, %v6512
    %v6537 = vpack.c.b16 %v6519, %v6516
    %v6538 = vpack.c.b16 %v6520, %v6517
    %v6539 = vpack.c.b16 %v6521, %v6518
    %v6540 = vpack.c.b16 %v6525, %v6522
    %v6541 = vpack.c.b16 %v6526, %v6523
    %v6542 = vpack.c.b16 %v6527, %v6524
    %v6543 = vpack.c.b16 %v6531, %v6528
    %v6544 = vpack.c.b16 %v6532, %v6529
    %v6545 = vpack.c.b16 %v6533, %v6530
    %v6559 = vsel %vm233, %v6486, 0
    %v6562 = vsel %vm233, %v6487, 0
    %v6565 = vsel %vm233, %v6488, 0
    %v6568 = vsel %vm233, %v6489, 0
    %v6571 = vsel %vm233, %v6490, 0
    %v6574 = vsel %vm233, %v6491, 0
    %v6577 = vsel %vm233, %v6492, 0
    %v6580 = vsel %vm233, %v6493, 0
    %6582 = vmatprep.subr.bf16.mxu0 %v6535
    %6583 = vmatpush1.bf16.msra.mxu0 %v6534
    %6584 = vmatprep.subr.bf16.mxu0 %v6538
    %6585 = vmatpush1.bf16.msra.mxu0 %v6537
    %6586 = vmatprep.subr.bf16.mxu0 %v6541
    %6587 = vmatpush1.bf16.msra.mxu0 %v6540
    %6588 = vmatprep.subr.bf16.mxu0 %v6544
    %6589 = vmatpush1.bf16.msra.mxu0 %v6543
    %6590 = vmatprep.subr.bf16.mxu0 0
    %6591 = vmatpush1.bf16.msra.mxu0 0
    %6592 = vmatprep.subr.bf16.mxu0 0
    %6593 = vmatpush1.bf16.msra.mxu0 0
    %6594 = vmatprep.subr.bf16.mxu0 0
    %6595 = vmatpush1.bf16.msra.mxu0 0
    %6596 = vmatprep.subr.bf16.mxu0 0
    %6597 = vmatpush1.bf16.msra.mxu0 0
    %6598 = vmatprep.subr.bf16.mxu0 0
    %6599 = vmatpush1.bf16.msra.mxu0 0
    %6600 = vmatprep.subr.bf16.mxu0 0
    %6601 = vmatpush1.bf16.msra.mxu0 0
    %6602 = vmatprep.subr.bf16.mxu0 0
    %6603 = vmatpush1.bf16.msra.mxu0 0
    %6604 = vmatprep.subr.bf16.mxu0 0
    %6605 = vmatpush1.bf16.msra.mxu0 0
    %6606 = vmatprep.subr.bf16.mxu0 0
    %6607 = vmatpush1.bf16.msra.mxu0 0
    %6608 = vmatprep.subr.bf16.mxu0 0
    %6609 = vmatpush1.bf16.msra.mxu0 0
    %6610 = vmatprep.subr.bf16.mxu0 0
    %6611 = vmatpush1.bf16.msra.mxu0 0
    %6612 = vmatprep.subr.bf16.mxu0 0
    %6613 = vmatpush1.bf16.msra.mxu0 0
    %6614 = vmatprep.mubr.bf16.mxu0 0
    %6615 = vmatmul.mubr.bf16.gmra.mrb[0].mxu0 %v6559
    %v6616 = vpop.f32.mrb[0].mxu0
    %v6617 = vadd.f32 %v6442, %v6616
    %v6618 = vpop.f32.mrb[0].mxu0
    %v6619 = vadd.f32 %v6446, %v6618
    %v6620 = vpop.f32.mrb[0].mxu0
    %v6621 = vadd.f32 %v6442, %v6620
    %v6622 = vpop.f32.mrb[0].mxu0
    %v6623 = vadd.f32 %v6446, %v6622
    %6624 = vmatprep.mubr.bf16.mxu0 0
    %6625 = vmatmul.mubr.bf16.gmra.mrb[0].mxu0 %v6562
    %v6626 = vpop.f32.mrb[0].mxu0
    %v6627 = vadd.f32 %v6442, %v6626
    %v6628 = vpop.f32.mrb[0].mxu0
    %v6629 = vadd.f32 %v6446, %v6628
    %v6630 = vpop.f32.mrb[0].mxu0
    %v6631 = vadd.f32 %v6442, %v6630
    %v6632 = vpop.f32.mrb[0].mxu0
    %v6633 = vadd.f32 %v6446, %v6632
    %6634 = vmatprep.mubr.bf16.mxu0 0
    %6635 = vmatmul.mubr.bf16.gmra.mrb[0].mxu0 %v6565
    %v6636 = vpop.f32.mrb[0].mxu0
    %v6637 = vadd.f32 %v6442, %v6636
    %v6638 = vpop.f32.mrb[0].mxu0
    %v6639 = vadd.f32 %v6446, %v6638
    %v6640 = vpop.f32.mrb[0].mxu0
    %v6641 = vadd.f32 %v6442, %v6640
    %v6642 = vpop.f32.mrb[0].mxu0
    %v6643 = vadd.f32 %v6446, %v6642
    %6644 = vmatprep.mubr.bf16.mxu0 0
    %6645 = vmatmul.mubr.bf16.gmra.mrb[0].mxu0 %v6568
    %v6646 = vpop.f32.mrb[0].mxu0
    %v6647 = vadd.f32 %v6442, %v6646
    %v6648 = vpop.f32.mrb[0].mxu0
    %v6649 = vadd.f32 %v6446, %v6648
    %v6650 = vpop.f32.mrb[0].mxu0
    %v6651 = vadd.f32 %v6442, %v6650
    %v6652 = vpop.f32.mrb[0].mxu0
    %v6653 = vadd.f32 %v6446, %v6652
    %6654 = vmatprep.mubr.bf16.mxu0 0
    %6655 = vmatmul.mubr.bf16.gmra.mrb[0].mxu0 %v6571
    %v6656 = vpop.f32.mrb[0].mxu0
    %v6657 = vadd.f32 %v6442, %v6656
    %v6658 = vpop.f32.mrb[0].mxu0
    %v6659 = vadd.f32 %v6446, %v6658
    %v6660 = vpop.f32.mrb[0].mxu0
    %v6661 = vadd.f32 %v6442, %v6660
    %v6662 = vpop.f32.mrb[0].mxu0
    %v6663 = vadd.f32 %v6446, %v6662
    %6664 = vmatprep.mubr.bf16.mxu0 0
    %6665 = vmatmul.mubr.bf16.gmra.mrb[0].mxu0 %v6574
    %v6666 = vpop.f32.mrb[0].mxu0
    %v6667 = vadd.f32 %v6442, %v6666
    %v6668 = vpop.f32.mrb[0].mxu0
    %v6669 = vadd.f32 %v6446, %v6668
    %v6670 = vpop.f32.mrb[0].mxu0
    %v6671 = vadd.f32 %v6442, %v6670
    %v6672 = vpop.f32.mrb[0].mxu0
    %v6673 = vadd.f32 %v6446, %v6672
    %6674 = vmatprep.mubr.bf16.mxu0 0
    %6675 = vmatmul.mubr.bf16.gmra.mrb[0].mxu0 %v6577
    %v6676 = vpop.f32.mrb[0].mxu0
    %v6677 = vadd.f32 %v6442, %v6676
    %v6678 = vpop.f32.mrb[0].mxu0
    %v6679 = vadd.f32 %v6446, %v6678
    %v6680 = vpop.f32.mrb[0].mxu0
    %v6681 = vadd.f32 %v6442, %v6680
    %v6682 = vpop.f32.mrb[0].mxu0
    %v6683 = vadd.f32 %v6446, %v6682
    %6684 = vmatprep.mubr.bf16.mxu0 0
    %6685 = vmatmul.mubr.bf16.gmra.mrb[0].mxu0 %v6580
    %v6686 = vpop.f32.mrb[0].mxu0
    %v6687 = vadd.f32 %v6442, %v6686
    %v6688 = vpop.f32.mrb[0].mxu0
    %v6689 = vadd.f32 %v6446, %v6688
    %v6690 = vpop.f32.mrb[0].mxu0
    %v6691 = vadd.f32 %v6442, %v6690
    %v6692 = vpop.f32.mrb[0].mxu0
    %v6693 = vadd.f32 %v6446, %v6692
    %6694 = vdwg.mxu0
    %6695 = vmatprep.subr.bf16.mxu0 0
    %6696 = vmatpush1.bf16.msra.mxu0 %v6536
    %6697 = vmatprep.subr.bf16.mxu0 0
    %6698 = vmatpush1.bf16.msra.mxu0 %v6539
    %6699 = vmatprep.subr.bf16.mxu0 0
    %6700 = vmatpush1.bf16.msra.mxu0 %v6542
    %6701 = vmatprep.subr.bf16.mxu0 0
    %6702 = vmatpush1.bf16.msra.mxu0 %v6545
    %6703 = vmatprep.subr.bf16.mxu0 0
    %6704 = vmatpush1.bf16.msra.mxu0 0
    %6705 = vmatprep.subr.bf16.mxu0 0
    %6706 = vmatpush1.bf16.msra.mxu0 0
    %6707 = vmatprep.subr.bf16.mxu0 0
    %6708 = vmatpush1.bf16.msra.mxu0 0
    %6709 = vmatprep.subr.bf16.mxu0 0
    %6710 = vmatpush1.bf16.msra.mxu0 0
    %6711 = vmatprep.subr.bf16.mxu0 0
    %6712 = vmatpush1.bf16.msra.mxu0 0
    %6713 = vmatprep.subr.bf16.mxu0 0
    %6714 = vmatpush1.bf16.msra.mxu0 0
    %6715 = vmatprep.subr.bf16.mxu0 0
    %6716 = vmatpush1.bf16.msra.mxu0 0
    %6717 = vmatprep.subr.bf16.mxu0 0
    %6718 = vmatpush1.bf16.msra.mxu0 0
    %6719 = vmatprep.subr.bf16.mxu0 0
    %6720 = vmatpush1.bf16.msra.mxu0 0
    %6721 = vmatprep.subr.bf16.mxu0 0
    %6722 = vmatpush1.bf16.msra.mxu0 0
    %6723 = vmatprep.subr.bf16.mxu0 0
    %6724 = vmatpush1.bf16.msra.mxu0 0
    %6725 = vmatprep.subr.bf16.mxu0 0
    %6726 = vmatpush1.bf16.msra.mxu0 0
    %6727 = vmatprep.mubr.bf16.mxu0 0
    %6728 = vmatmul.mubr.bf16.gmra.mrb[0].mxu0 %v6559
    %v6729 = vpop.f32.mrb[0].mxu0
    %v6730 = vadd.f32 %v6450, %v6729
    %v6731 = vpop.f32.mrb[0].mxu0
    %v6732 = vpop.f32.mrb[0].mxu0
    %v6733 = vadd.f32 %v6450, %v6732
    %v6734 = vpop.f32.mrb[0].mxu0
    %6735 = vmatprep.mubr.bf16.mxu0 0
    %6736 = vmatmul.mubr.bf16.gmra.mrb[0].mxu0 %v6562
    %v6737 = vpop.f32.mrb[0].mxu0
    %v6738 = vadd.f32 %v6450, %v6737
    %v6739 = vpop.f32.mrb[0].mxu0
    %v6740 = vpop.f32.mrb[0].mxu0
    %v6741 = vadd.f32 %v6450, %v6740
    %v6742 = vpop.f32.mrb[0].mxu0
    %6743 = vmatprep.mubr.bf16.mxu0 0
    %6744 = vmatmul.mubr.bf16.gmra.mrb[0].mxu0 %v6565
    %v6745 = vpop.f32.mrb[0].mxu0
    %v6746 = vadd.f32 %v6450, %v6745
    %v6747 = vpop.f32.mrb[0].mxu0
    %v6748 = vpop.f32.mrb[0].mxu0
    %v6749 = vadd.f32 %v6450, %v6748
    %v6750 = vpop.f32.mrb[0].mxu0
    %6751 = vmatprep.mubr.bf16.mxu0 0
    %6752 = vmatmul.mubr.bf16.gmra.mrb[0].mxu0 %v6568
    %v6753 = vpop.f32.mrb[0].mxu0
    %v6754 = vadd.f32 %v6450, %v6753
    %v6755 = vpop.f32.mrb[0].mxu0
    %v6756 = vpop.f32.mrb[0].mxu0
    %v6757 = vadd.f32 %v6450, %v6756
    %v6758 = vpop.f32.mrb[0].mxu0
    %6759 = vmatprep.mubr.bf16.mxu0 0
    %6760 = vmatmul.mubr.bf16.gmra.mrb[0].mxu0 %v6571
    %v6761 = vpop.f32.mrb[0].mxu0
    %v6762 = vadd.f32 %v6450, %v6761
    %v6763 = vpop.f32.mrb[0].mxu0
    %v6764 = vpop.f32.mrb[0].mxu0
    %v6765 = vadd.f32 %v6450, %v6764
    %v6766 = vpop.f32.mrb[0].mxu0
    %6767 = vmatprep.mubr.bf16.mxu0 0
    %6768 = vmatmul.mubr.bf16.gmra.mrb[0].mxu0 %v6574
    %v6769 = vpop.f32.mrb[0].mxu0
    %v6770 = vadd.f32 %v6450, %v6769
    %v6771 = vpop.f32.mrb[0].mxu0
    %v6772 = vpop.f32.mrb[0].mxu0
    %v6773 = vadd.f32 %v6450, %v6772
    %v6774 = vpop.f32.mrb[0].mxu0
    %6775 = vmatprep.mubr.bf16.mxu0 0
    %6776 = vmatmul.mubr.bf16.gmra.mrb[0].mxu0 %v6577
    %v6777 = vpop.f32.mrb[0].mxu0
    %v6778 = vadd.f32 %v6450, %v6777
    %v6779 = vpop.f32.mrb[0].mxu0
    %v6780 = vpop.f32.mrb[0].mxu0
    %v6781 = vadd.f32 %v6450, %v6780
    %v6782 = vpop.f32.mrb[0].mxu0
    %6783 = vmatprep.mubr.bf16.mxu0 0
    %6784 = vmatmul.mubr.bf16.gmra.mrb[0].mxu0 %v6580
    %v6785 = vpop.f32.mrb[0].mxu0
    %v6786 = vadd.f32 %v6450, %v6785
    %v6787 = vpop.f32.mrb[0].mxu0
    %v6788 = vpop.f32.mrb[0].mxu0
    %v6789 = vadd.f32 %v6450, %v6788
    %v6790 = vpop.f32.mrb[0].mxu0
    %6791 = vdwg.mxu0
    %v6792 = vtanh.pop %v6617
    %v6793 = vtanh.pop %v6619
    %v6794 = vtanh.pop %v6621
    %v6795 = vtanh.pop %v6623
    %v6796 = vtanh.pop %v6627
    %v6797 = vtanh.pop %v6629
    %v6798 = vtanh.pop %v6631
    %v6799 = vtanh.pop %v6633
    %v6800 = vtanh.pop %v6637
    %v6801 = vtanh.pop %v6639
    %v6802 = vtanh.pop %v6641
    %v6803 = vtanh.pop %v6643
    %v6804 = vtanh.pop %v6647
    %v6805 = vtanh.pop %v6649
    %v6806 = vtanh.pop %v6651
    %v6807 = vtanh.pop %v6653
    %v6808 = vtanh.pop %v6657
    %v6809 = vtanh.pop %v6659
    %v6810 = vtanh.pop %v6661
    %v6811 = vtanh.pop %v6663
    %v6812 = vtanh.pop %v6667
    %v6813 = vtanh.pop %v6669
    %v6814 = vtanh.pop %v6671
    %v6815 = vtanh.pop %v6673
    %v6816 = vtanh.pop %v6677
    %v6817 = vtanh.pop %v6679
    %v6818 = vtanh.pop %v6681
    %v6819 = vtanh.pop %v6683
    %v6820 = vtanh.pop %v6687
    %v6821 = vtanh.pop %v6689
    %v6822 = vtanh.pop %v6691
    %v6823 = vtanh.pop %v6693
    %v6824 = vld [vmem:[#allocation13] sm:$0x3]
    %v6826 = vlaneseq
    %v6827 = vshrl.u32 %v6826, 7
    %v6828 = vsub.s32 0, %v6827
    %v6829 = vrot.slane %v6824, %v6828
    %v6830 = vlaneseq
    %v6831 = vshrl.u32 %v6830, 7
    %v6832 = vsub.s32 1, %v6831
    %v6833 = vrot.slane %v6824, %v6832
    %v6836 = vmul.f32 %v6792, %v6829
    %v6837 = vmul.f32 %v6793, %v6833
    %v6838 = vmul.f32 %v6794, %v6829
    %v6839 = vmul.f32 %v6795, %v6833
    %v6840 = vmul.f32 %v6796, %v6829
    %v6841 = vmul.f32 %v6797, %v6833
    %v6842 = vmul.f32 %v6798, %v6829
    %v6843 = vmul.f32 %v6799, %v6833
    %v6844 = vmul.f32 %v6800, %v6829
    %v6845 = vmul.f32 %v6801, %v6833
    %v6846 = vmul.f32 %v6802, %v6829
    %v6847 = vmul.f32 %v6803, %v6833
    %v6848 = vmul.f32 %v6804, %v6829
    %v6849 = vmul.f32 %v6805, %v6833
    %v6850 = vmul.f32 %v6806, %v6829
    %v6851 = vmul.f32 %v6807, %v6833
    %v6852 = vmul.f32 %v6808, %v6829
    %v6853 = vmul.f32 %v6809, %v6833
    %v6854 = vmul.f32 %v6810, %v6829
    %v6855 = vmul.f32 %v6811, %v6833
    %v6856 = vmul.f32 %v6812, %v6829
    %v6857 = vmul.f32 %v6813, %v6833
    %v6858 = vmul.f32 %v6814, %v6829
    %v6859 = vmul.f32 %v6815, %v6833
    %v6860 = vmul.f32 %v6816, %v6829
    %v6861 = vmul.f32 %v6817, %v6833
    %v6862 = vmul.f32 %v6818, %v6829
    %v6863 = vmul.f32 %v6819, %v6833
    %v6864 = vmul.f32 %v6820, %v6829
    %v6865 = vmul.f32 %v6821, %v6833
    %v6866 = vmul.f32 %v6822, %v6829
    %v6867 = vmul.f32 %v6823, %v6833
    %v6868 = vadd.f32 %v6836, %v6837
    %6869 = vadd.xlane.f32.xlu0 %v6868
    %v6870 = vpop.xlane.xlu0 %6869
    %v6871 = vadd.f32 %v6838, %v6839
    %6872 = vadd.xlane.f32.xlu0 %v6871
    %v6873 = vpop.xlane.xlu0 %6872
    %v6874 = vadd.f32 %v6840, %v6841
    %6875 = vadd.xlane.f32.xlu0 %v6874
    %v6876 = vpop.xlane.xlu0 %6875
    %v6877 = vadd.f32 %v6842, %v6843
    %6878 = vadd.xlane.f32.xlu0 %v6877
    %v6879 = vpop.xlane.xlu0 %6878
    %v6880 = vadd.f32 %v6844, %v6845
    %6881 = vadd.xlane.f32.xlu0 %v6880
    %v6882 = vpop.xlane.xlu0 %6881
    %v6883 = vadd.f32 %v6846, %v6847
    %6884 = vadd.xlane.f32.xlu0 %v6883
    %v6885 = vpop.xlane.xlu0 %6884
    %v6886 = vadd.f32 %v6848, %v6849
    %6887 = vadd.xlane.f32.xlu0 %v6886
    %v6888 = vpop.xlane.xlu0 %6887
    %v6889 = vadd.f32 %v6850, %v6851
    %6890 = vadd.xlane.f32.xlu0 %v6889
    %v6891 = vpop.xlane.xlu0 %6890
    %v6892 = vadd.f32 %v6852, %v6853
    %6893 = vadd.xlane.f32.xlu0 %v6892
    %v6894 = vpop.xlane.xlu0 %6893
    %v6895 = vadd.f32 %v6854, %v6855
    %6896 = vadd.xlane.f32.xlu0 %v6895
    %v6897 = vpop.xlane.xlu0 %6896
    %v6898 = vadd.f32 %v6856, %v6857
    %6899 = vadd.xlane.f32.xlu0 %v6898
    %v6900 = vpop.xlane.xlu0 %6899
    %v6901 = vadd.f32 %v6858, %v6859
    %6902 = vadd.xlane.f32.xlu0 %v6901
    %v6903 = vpop.xlane.xlu0 %6902
    %v6904 = vadd.f32 %v6860, %v6861
    %6905 = vadd.xlane.f32.xlu0 %v6904
    %v6906 = vpop.xlane.xlu0 %6905
    %v6907 = vadd.f32 %v6862, %v6863
    %6908 = vadd.xlane.f32.xlu0 %v6907
    %v6909 = vpop.xlane.xlu0 %6908
    %v6910 = vadd.f32 %v6864, %v6865
    %6911 = vadd.xlane.f32.xlu0 %v6910
    %v6912 = vpop.xlane.xlu0 %6911
    %v6913 = vadd.f32 %v6866, %v6867
    %6914 = vadd.xlane.f32.xlu0 %v6913
    %v6915 = vpop.xlane.xlu0 %6914
    %v6916 = vrot.slane %v6870, 4
    %v6917 = vmax.f32 %v6870, %v6916
    %v6918 = vrot.slane %v6917, 2
    %v6919 = vmax.f32 %v6917, %v6918
    %v6920 = vrot.slane %v6919, 1
    %v6921 = vmax.f32 %v6919, %v6920
    %v6922 = vrot.slane %v6873, 4
    %v6923 = vmax.f32 %v6873, %v6922
    %v6924 = vrot.slane %v6923, 2
    %v6925 = vmax.f32 %v6923, %v6924
    %v6926 = vrot.slane %v6925, 1
    %v6927 = vmax.f32 %v6925, %v6926
    %v6928 = vrot.slane %v6876, 4
    %v6929 = vmax.f32 %v6876, %v6928
    %v6930 = vrot.slane %v6929, 2
    %v6931 = vmax.f32 %v6929, %v6930
    %v6932 = vrot.slane %v6931, 1
    %v6933 = vmax.f32 %v6931, %v6932
    %v6934 = vrot.slane %v6879, 4
    %v6935 = vmax.f32 %v6879, %v6934
    %v6936 = vrot.slane %v6935, 2
    %v6937 = vmax.f32 %v6935, %v6936
    %v6938 = vrot.slane %v6937, 1
    %v6939 = vmax.f32 %v6937, %v6938
    %v6940 = vrot.slane %v6882, 4
    %v6941 = vmax.f32 %v6882, %v6940
    %v6942 = vrot.slane %v6941, 2
    %v6943 = vmax.f32 %v6941, %v6942
    %v6944 = vrot.slane %v6943, 1
    %v6945 = vmax.f32 %v6943, %v6944
    %v6946 = vrot.slane %v6885, 4
    %v6947 = vmax.f32 %v6885, %v6946
    %v6948 = vrot.slane %v6947, 2
    %v6949 = vmax.f32 %v6947, %v6948
    %v6950 = vrot.slane %v6949, 1
    %v6951 = vmax.f32 %v6949, %v6950
    %v6952 = vrot.slane %v6888, 4
    %v6953 = vmax.f32 %v6888, %v6952
    %v6954 = vrot.slane %v6953, 2
    %v6955 = vmax.f32 %v6953, %v6954
    %v6956 = vrot.slane %v6955, 1
    %v6957 = vmax.f32 %v6955, %v6956
    %v6958 = vrot.slane %v6891, 4
    %v6959 = vmax.f32 %v6891, %v6958
    %v6960 = vrot.slane %v6959, 2
    %v6961 = vmax.f32 %v6959, %v6960
    %v6962 = vrot.slane %v6961, 1
    %v6963 = vmax.f32 %v6961, %v6962
    %v6964 = vrot.slane %v6894, 4
    %v6965 = vmax.f32 %v6894, %v6964
    %v6966 = vrot.slane %v6965, 2
    %v6967 = vmax.f32 %v6965, %v6966
    %v6968 = vrot.slane %v6967, 1
    %v6969 = vmax.f32 %v6967, %v6968
    %v6970 = vrot.slane %v6897, 4
    %v6971 = vmax.f32 %v6897, %v6970
    %v6972 = vrot.slane %v6971, 2
    %v6973 = vmax.f32 %v6971, %v6972
    %v6974 = vrot.slane %v6973, 1
    %v6975 = vmax.f32 %v6973, %v6974
    %v6976 = vrot.slane %v6900, 4
    %v6977 = vmax.f32 %v6900, %v6976
    %v6978 = vrot.slane %v6977, 2
    %v6979 = vmax.f32 %v6977, %v6978
    %v6980 = vrot.slane %v6979, 1
    %v6981 = vmax.f32 %v6979, %v6980
    %v6982 = vrot.slane %v6903, 4
    %v6983 = vmax.f32 %v6903, %v6982
    %v6984 = vrot.slane %v6983, 2
    %v6985 = vmax.f32 %v6983, %v6984
    %v6986 = vrot.slane %v6985, 1
    %v6987 = vmax.f32 %v6985, %v6986
    %v6988 = vrot.slane %v6906, 4
    %v6989 = vmax.f32 %v6906, %v6988
    %v6990 = vrot.slane %v6989, 2
    %v6991 = vmax.f32 %v6989, %v6990
    %v6992 = vrot.slane %v6991, 1
    %v6993 = vmax.f32 %v6991, %v6992
    %v6994 = vrot.slane %v6909, 4
    %v6995 = vmax.f32 %v6909, %v6994
    %v6996 = vrot.slane %v6995, 2
    %v6997 = vmax.f32 %v6995, %v6996
    %v6998 = vrot.slane %v6997, 1
    %v6999 = vmax.f32 %v6997, %v6998
    %v7000 = vrot.slane %v6912, 4
    %v7001 = vmax.f32 %v6912, %v7000
    %v7002 = vrot.slane %v7001, 2
    %v7003 = vmax.f32 %v7001, %v7002
    %v7004 = vrot.slane %v7003, 1
    %v7005 = vmax.f32 %v7003, %v7004
    %v7006 = vrot.slane %v6915, 4
    %v7007 = vmax.f32 %v6915, %v7006
    %v7008 = vrot.slane %v7007, 2
    %v7009 = vmax.f32 %v7007, %v7008
    %v7010 = vrot.slane %v7009, 1
    %v7011 = vmax.f32 %v7009, %v7010
    %v7012 = vsub.f32 %v6870, %v6921
    %v7013 = vsub.f32 %v6873, %v6927
    %v7014 = vsub.f32 %v6876, %v6933
    %v7015 = vsub.f32 %v6879, %v6939
    %v7016 = vsub.f32 %v6882, %v6945
    %v7017 = vsub.f32 %v6885, %v6951
    %v7018 = vsub.f32 %v6888, %v6957
    %v7019 = vsub.f32 %v6891, %v6963
    %v7020 = vsub.f32 %v6894, %v6969
    %v7021 = vsub.f32 %v6897, %v6975
    %v7022 = vsub.f32 %v6900, %v6981
    %v7023 = vsub.f32 %v6903, %v6987
    %v7024 = vsub.f32 %v6906, %v6993
    %v7025 = vsub.f32 %v6909, %v6999
    %v7026 = vsub.f32 %v6912, %v7005
    %v7027 = vsub.f32 %v6915, %v7011
    %v7028 = vmul.f32 %v7012, 1.442695
    %v7029 = vpow.pop %v7028
    %v7030 = vmul.f32 %v7013, 1.442695
    %v7031 = vpow.pop %v7030
    %v7032 = vmul.f32 %v7014, 1.442695
    %v7033 = vpow.pop %v7032
    %v7034 = vmul.f32 %v7015, 1.442695
    %v7035 = vpow.pop %v7034
    %v7036 = vmul.f32 %v7016, 1.442695
    %v7037 = vpow.pop %v7036
    %v7038 = vmul.f32 %v7017, 1.442695
    %v7039 = vpow.pop %v7038
    %v7040 = vmul.f32 %v7018, 1.442695
    %v7041 = vpow.pop %v7040
    %v7042 = vmul.f32 %v7019, 1.442695
    %v7043 = vpow.pop %v7042
    %v7044 = vmul.f32 %v7020, 1.442695
    %v7045 = vpow.pop %v7044
    %v7046 = vmul.f32 %v7021, 1.442695
    %v7047 = vpow.pop %v7046
    %v7048 = vmul.f32 %v7022, 1.442695
    %v7049 = vpow.pop %v7048
    %v7050 = vmul.f32 %v7023, 1.442695
    %v7051 = vpow.pop %v7050
    %v7052 = vmul.f32 %v7024, 1.442695
    %v7053 = vpow.pop %v7052
    %v7054 = vmul.f32 %v7025, 1.442695
    %v7055 = vpow.pop %v7054
    %v7056 = vmul.f32 %v7026, 1.442695
    %v7057 = vpow.pop %v7056
    %v7058 = vmul.f32 %v7027, 1.442695
    %v7059 = vpow.pop %v7058
    %v7060 = vrot.slane %v7029, 4
    %v7061 = vadd.f32 %v7029, %v7060
    %v7062 = vrot.slane %v7061, 2
    %v7063 = vadd.f32 %v7061, %v7062
    %v7064 = vrot.slane %v7063, 1
    %v7065 = vadd.f32 %v7063, %v7064
    %v7066 = vrot.slane %v7031, 4
    %v7067 = vadd.f32 %v7031, %v7066
    %v7068 = vrot.slane %v7067, 2
    %v7069 = vadd.f32 %v7067, %v7068
    %v7070 = vrot.slane %v7069, 1
    %v7071 = vadd.f32 %v7069, %v7070
    %v7072 = vrot.slane %v7033, 4
    %v7073 = vadd.f32 %v7033, %v7072
    %v7074 = vrot.slane %v7073, 2
    %v7075 = vadd.f32 %v7073, %v7074
    %v7076 = vrot.slane %v7075, 1
    %v7077 = vadd.f32 %v7075, %v7076
    %v7078 = vrot.slane %v7035, 4
    %v7079 = vadd.f32 %v7035, %v7078
    %v7080 = vrot.slane %v7079, 2
    %v7081 = vadd.f32 %v7079, %v7080
    %v7082 = vrot.slane %v7081, 1
    %v7083 = vadd.f32 %v7081, %v7082
    %v7084 = vrot.slane %v7037, 4
    %v7085 = vadd.f32 %v7037, %v7084
    %v7086 = vrot.slane %v7085, 2
    %v7087 = vadd.f32 %v7085, %v7086
    %v7088 = vrot.slane %v7087, 1
    %v7089 = vadd.f32 %v7087, %v7088
    %v7090 = vrot.slane %v7039, 4
    %v7091 = vadd.f32 %v7039, %v7090
    %v7092 = vrot.slane %v7091, 2
    %v7093 = vadd.f32 %v7091, %v7092
    %v7094 = vrot.slane %v7093, 1
    %v7095 = vadd.f32 %v7093, %v7094
    %v7096 = vrot.slane %v7041, 4
    %v7097 = vadd.f32 %v7041, %v7096
    %v7098 = vrot.slane %v7097, 2
    %v7099 = vadd.f32 %v7097, %v7098
    %v7100 = vrot.slane %v7099, 1
    %v7101 = vadd.f32 %v7099, %v7100
    %v7102 = vrot.slane %v7043, 4
    %v7103 = vadd.f32 %v7043, %v7102
    %v7104 = vrot.slane %v7103, 2
    %v7105 = vadd.f32 %v7103, %v7104
    %v7106 = vrot.slane %v7105, 1
    %v7107 = vadd.f32 %v7105, %v7106
    %v7108 = vrot.slane %v7045, 4
    %v7109 = vadd.f32 %v7045, %v7108
    %v7110 = vrot.slane %v7109, 2
    %v7111 = vadd.f32 %v7109, %v7110
    %v7112 = vrot.slane %v7111, 1
    %v7113 = vadd.f32 %v7111, %v7112
    %v7114 = vrot.slane %v7047, 4
    %v7115 = vadd.f32 %v7047, %v7114
    %v7116 = vrot.slane %v7115, 2
    %v7117 = vadd.f32 %v7115, %v7116
    %v7118 = vrot.slane %v7117, 1
    %v7119 = vadd.f32 %v7117, %v7118
    %v7120 = vrot.slane %v7049, 4
    %v7121 = vadd.f32 %v7049, %v7120
    %v7122 = vrot.slane %v7121, 2
    %v7123 = vadd.f32 %v7121, %v7122
    %v7124 = vrot.slane %v7123, 1
    %v7125 = vadd.f32 %v7123, %v7124
    %v7126 = vrot.slane %v7051, 4
    %v7127 = vadd.f32 %v7051, %v7126
    %v7128 = vrot.slane %v7127, 2
    %v7129 = vadd.f32 %v7127, %v7128
    %v7130 = vrot.slane %v7129, 1
    %v7131 = vadd.f32 %v7129, %v7130
    %v7132 = vrot.slane %v7053, 4
    %v7133 = vadd.f32 %v7053, %v7132
    %v7134 = vrot.slane %v7133, 2
    %v7135 = vadd.f32 %v7133, %v7134
    %v7136 = vrot.slane %v7135, 1
    %v7137 = vadd.f32 %v7135, %v7136
    %v7138 = vrot.slane %v7055, 4
    %v7139 = vadd.f32 %v7055, %v7138
    %v7140 = vrot.slane %v7139, 2
    %v7141 = vadd.f32 %v7139, %v7140
    %v7142 = vrot.slane %v7141, 1
    %v7143 = vadd.f32 %v7141, %v7142
    %v7144 = vrot.slane %v7057, 4
    %v7145 = vadd.f32 %v7057, %v7144
    %v7146 = vrot.slane %v7145, 2
    %v7147 = vadd.f32 %v7145, %v7146
    %v7148 = vrot.slane %v7147, 1
    %v7149 = vadd.f32 %v7147, %v7148
    %v7150 = vrot.slane %v7059, 4
    %v7151 = vadd.f32 %v7059, %v7150
    %v7152 = vrot.slane %v7151, 2
    %v7153 = vadd.f32 %v7151, %v7152
    %v7154 = vrot.slane %v7153, 1
    %v7155 = vadd.f32 %v7153, %v7154
    %v7156 = vrcp.pop %v7065
    %v7157 = vrcp.pop %v7071
    %v7158 = vrcp.pop %v7077
    %v7159 = vrcp.pop %v7083
    %v7160 = vrcp.pop %v7089
    %v7161 = vrcp.pop %v7095
    %v7162 = vrcp.pop %v7101
    %v7163 = vrcp.pop %v7107
    %v7164 = vrcp.pop %v7113
    %v7165 = vrcp.pop %v7119
    %v7166 = vrcp.pop %v7125
    %v7167 = vrcp.pop %v7131
    %v7168 = vrcp.pop %v7137
    %v7169 = vrcp.pop %v7143
    %v7170 = vrcp.pop %v7149
    %v7171 = vrcp.pop %v7155
    %v7172 = vmul.f32 %v7029, %v7156
    %v7173 = vmul.f32 %v7031, %v7157
    %v7174 = vmul.f32 %v7033, %v7158
    %v7175 = vmul.f32 %v7035, %v7159
    %v7176 = vmul.f32 %v7037, %v7160
    %v7177 = vmul.f32 %v7039, %v7161
    %v7178 = vmul.f32 %v7041, %v7162
    %v7179 = vmul.f32 %v7043, %v7163
    %v7180 = vmul.f32 %v7045, %v7164
    %v7181 = vmul.f32 %v7047, %v7165
    %v7182 = vmul.f32 %v7049, %v7166
    %v7183 = vmul.f32 %v7051, %v7167
    %v7184 = vmul.f32 %v7053, %v7168
    %v7185 = vmul.f32 %v7055, %v7169
    %v7186 = vmul.f32 %v7057, %v7170
    %v7187 = vmul.f32 %v7059, %v7171
    %v7188 = vmul.f32 %v7172, %v6730
    %v7189 = vmul.f32 %v7173, %v6733
    %v7190 = vmul.f32 %v7174, %v6738
    %v7191 = vmul.f32 %v7175, %v6741
    %v7192 = vmul.f32 %v7176, %v6746
    %v7193 = vmul.f32 %v7177, %v6749
    %v7194 = vmul.f32 %v7178, %v6754
    %v7195 = vmul.f32 %v7179, %v6757
    %v7196 = vmul.f32 %v7180, %v6762
    %v7197 = vmul.f32 %v7181, %v6765
    %v7198 = vmul.f32 %v7182, %v6770
    %v7199 = vmul.f32 %v7183, %v6773
    %v7200 = vmul.f32 %v7184, %v6778
    %v7201 = vmul.f32 %v7185, %v6781
    %v7202 = vmul.f32 %v7186, %v6786
    %v7203 = vmul.f32 %v7187, %v6789
    %v7204 = vsel %vm233, %v7188, 0.0
    %v7205 = vrot.slane %v7204, 4
    %v7206 = vadd.f32 %v7204, %v7205
    %v7207 = vrot.slane %v7206, 2
    %v7208 = vadd.f32 %v7206, %v7207
    %v7209 = vrot.slane %v7208, 1
    %v7210 = vadd.f32 %v7208, %v7209
    %v7211 = vsel %vm233, %v7189, 0.0
    %v7212 = vrot.slane %v7211, 4
    %v7213 = vadd.f32 %v7211, %v7212
    %v7214 = vrot.slane %v7213, 2
    %v7215 = vadd.f32 %v7213, %v7214
    %v7216 = vrot.slane %v7215, 1
    %v7217 = vadd.f32 %v7215, %v7216
    %v7218 = vsel %vm233, %v7190, 0.0
    %v7219 = vrot.slane %v7218, 4
    %v7220 = vadd.f32 %v7218, %v7219
    %v7221 = vrot.slane %v7220, 2
    %v7222 = vadd.f32 %v7220, %v7221
    %v7223 = vrot.slane %v7222, 1
    %v7224 = vadd.f32 %v7222, %v7223
    %v7225 = vsel %vm233, %v7191, 0.0
    %v7226 = vrot.slane %v7225, 4
    %v7227 = vadd.f32 %v7225, %v7226
    %v7228 = vrot.slane %v7227, 2
    %v7229 = vadd.f32 %v7227, %v7228
    %v7230 = vrot.slane %v7229, 1
    %v7231 = vadd.f32 %v7229, %v7230
    %v7232 = vsel %vm233, %v7192, 0.0
    %v7233 = vrot.slane %v7232, 4
    %v7234 = vadd.f32 %v7232, %v7233
    %v7235 = vrot.slane %v7234, 2
    %v7236 = vadd.f32 %v7234, %v7235
    %v7237 = vrot.slane %v7236, 1
    %v7238 = vadd.f32 %v7236, %v7237
    %v7239 = vsel %vm233, %v7193, 0.0
    %v7240 = vrot.slane %v7239, 4
    %v7241 = vadd.f32 %v7239, %v7240
    %v7242 = vrot.slane %v7241, 2
    %v7243 = vadd.f32 %v7241, %v7242
    %v7244 = vrot.slane %v7243, 1
    %v7245 = vadd.f32 %v7243, %v7244
    %v7246 = vsel %vm233, %v7194, 0.0
    %v7247 = vrot.slane %v7246, 4
    %v7248 = vadd.f32 %v7246, %v7247
    %v7249 = vrot.slane %v7248, 2
    %v7250 = vadd.f32 %v7248, %v7249
    %v7251 = vrot.slane %v7250, 1
    %v7252 = vadd.f32 %v7250, %v7251
    %v7253 = vsel %vm233, %v7195, 0.0
    %v7254 = vrot.slane %v7253, 4
    %v7255 = vadd.f32 %v7253, %v7254
    %v7256 = vrot.slane %v7255, 2
    %v7257 = vadd.f32 %v7255, %v7256
    %v7258 = vrot.slane %v7257, 1
    %v7259 = vadd.f32 %v7257, %v7258
    %v7260 = vsel %vm233, %v7196, 0.0
    %v7261 = vrot.slane %v7260, 4
    %v7262 = vadd.f32 %v7260, %v7261
    %v7263 = vrot.slane %v7262, 2
    %v7264 = vadd.f32 %v7262, %v7263
    %v7265 = vrot.slane %v7264, 1
    %v7266 = vadd.f32 %v7264, %v7265
    %v7267 = vsel %vm233, %v7197, 0.0
    %v7268 = vrot.slane %v7267, 4
    %v7269 = vadd.f32 %v7267, %v7268
    %v7270 = vrot.slane %v7269, 2
    %v7271 = vadd.f32 %v7269, %v7270
    %v7272 = vrot.slane %v7271, 1
    %v7273 = vadd.f32 %v7271, %v7272
    %v7274 = vsel %vm233, %v7198, 0.0
    %v7275 = vrot.slane %v7274, 4
    %v7276 = vadd.f32 %v7274, %v7275
    %v7277 = vrot.slane %v7276, 2
    %v7278 = vadd.f32 %v7276, %v7277
    %v7279 = vrot.slane %v7278, 1
    %v7280 = vadd.f32 %v7278, %v7279
    %v7281 = vsel %vm233, %v7199, 0.0
    %v7282 = vrot.slane %v7281, 4
    %v7283 = vadd.f32 %v7281, %v7282
    %v7284 = vrot.slane %v7283, 2
    %v7285 = vadd.f32 %v7283, %v7284
    %v7286 = vrot.slane %v7285, 1
    %v7287 = vadd.f32 %v7285, %v7286
    %v7288 = vsel %vm233, %v7200, 0.0
    %v7289 = vrot.slane %v7288, 4
    %v7290 = vadd.f32 %v7288, %v7289
    %v7291 = vrot.slane %v7290, 2
    %v7292 = vadd.f32 %v7290, %v7291
    %v7293 = vrot.slane %v7292, 1
    %v7294 = vadd.f32 %v7292, %v7293
    %v7295 = vsel %vm233, %v7201, 0.0
    %v7296 = vrot.slane %v7295, 4
    %v7297 = vadd.f32 %v7295, %v7296
    %v7298 = vrot.slane %v7297, 2
    %v7299 = vadd.f32 %v7297, %v7298
    %v7300 = vrot.slane %v7299, 1
    %v7301 = vadd.f32 %v7299, %v7300
    %v7302 = vsel %vm233, %v7202, 0.0
    %v7303 = vrot.slane %v7302, 4
    %v7304 = vadd.f32 %v7302, %v7303
    %v7305 = vrot.slane %v7304, 2
    %v7306 = vadd.f32 %v7304, %v7305
    %v7307 = vrot.slane %v7306, 1
    %v7308 = vadd.f32 %v7306, %v7307
    %v7309 = vsel %vm233, %v7203, 0.0
    %v7310 = vrot.slane %v7309, 4
    %v7311 = vadd.f32 %v7309, %v7310
    %v7312 = vrot.slane %v7311, 2
    %v7313 = vadd.f32 %v7311, %v7312
    %v7314 = vrot.slane %v7313, 1
    %v7315 = vadd.f32 %v7313, %v7314
    %vm7332 = vcmask 1041409
    %v7333 = vsel %vm7332, %v7217, %v7210
    %vm7334 = vcmask 1042434
    %v7335 = vsel %vm7334, %v7224, %v7333
    %vm7336 = vcmask 1043459
    %v7337 = vsel %vm7336, %v7231, %v7335
    %vm7338 = vcmask 1044484
    %v7339 = vsel %vm7338, %v7238, %v7337
    %vm7340 = vcmask 1045509
    %v7341 = vsel %vm7340, %v7245, %v7339
    %vm7342 = vcmask 1046534
    %v7343 = vsel %vm7342, %v7252, %v7341
    %vm7344 = vcmask 1047559
    %v7345 = vsel %vm7344, %v7259, %v7343
    %v7346 = vsel %vm7332, %v7273, %v7266
    %v7347 = vsel %vm7334, %v7280, %v7346
    %v7348 = vsel %vm7336, %v7287, %v7347
    %v7349 = vsel %vm7338, %v7294, %v7348
    %v7350 = vsel %vm7340, %v7301, %v7349
    %v7351 = vsel %vm7342, %v7308, %v7350
    %v7352 = vsel %vm7344, %v7315, %v7351
    %7355 = vst.msk [vmem:[#allocation14] sm:$0xff] %vm233, %v7345
    %7356 = vst.msk [vmem:[#allocation14 + $0x8] sm:$0xff] %vm233, %v7352
    // Predicated region
    $region58: #{user_encoder_forward.1} parent=1 // pred_check
      _
    $region59: #{user_encoder_forward.1} parent=1 // pred_check_branch
      %7358 = sbr.rel (0) target = $region61
    $region60: #{user_encoder_forward.1} parent=1 // pred_region
      %s7360 = ssub.s32 256, 256
      %7361 = vsyncadd [#allocation4], %s7360
      %s7362 = sshll.u32 [#allocation14], 4
      %s7363 = int_to_ptr.vmem [resolvable:$true] %s7362
      %7368 = dma.vmem_to_hbm [thread:$0]  %s7363, 256, %s7, [#allocation4], 128, 128, 8
    $region61: #{user_encoder_forward.1} parent=1 // pred_fallthru
      _
    // Predicated region
    $region62: #{user_encoder_forward.1} parent=1 // pred_check
      _
    $region63: #{user_encoder_forward.1} parent=1 // pred_check_branch
      %7370 = sbr.rel (0) target = $region65
    $region64: #{user_encoder_forward.1} parent=1 // pred_region
      %7371 = dma.done [#allocation4], 256
    $region65: #{user_encoder_forward.1} parent=1 // pred_fallthru
      _
    %7372 = vsyncpa [#allocation3], 1
    %7373 = vsyncpa [#allocation6], 1
    %7374 = vsyncpa [#allocation9], 1
    %7375 = vsyncpa [#allocation12], 1
    %7376 = vsyncpa [#allocation4], 1

</llo_original>
